<compile_context>
chip_gen: v7x
topology: tpu7x:2x2x1
jax: 0.10.0
libtpu: 0.0.40
codegen_flags: <defaults>
</compile_context>

<pallas_src>
import functools
from collections import namedtuple

import numpy as np
import jax
import jax.numpy as jnp
from jax.experimental import pallas as pl
from jax.experimental.pallas import tpu as pltpu


_ConvGeom = namedtuple("_ConvGeom", ["Hi", "Ho", "RW", "relu"])
# Hi : layer input height, Ho = Hi + (K-1) : output height
# RW : Ci * (Wi + 2*(K-1)) -- lane width of one zero-padded input row
# relu: ReLU follows this ConvTranspose2d in the reversed nn.Sequential


# --------------------------------------------------------------------------- #
# Host-side weight packing (pure layout transforms of the module parameters).  #
# --------------------------------------------------------------------------- #
def _pack_fc_last(w, b, C, Hin, Win, P):
    """Permute + zero-pad the last FC layer so its output rows are already the
    W-padded, (H, C*Wp)-ordered rows of the first conv's input."""
    hid = w.shape[0]
    Wp = Win + 2 * P
    wr = np.asarray(w, np.float32).reshape(hid, C, Hin, Win)   # view order (C,H,W)
    br = np.asarray(b, np.float32).reshape(C, Hin, Win)
    wp = np.zeros((hid, Hin * C * Wp), np.float32)
    bp = np.zeros((1, Hin * C * Wp), np.float32)
    for hh in range(Hin):
        for ci in range(C):
            dst = hh * (C * Wp) + ci * Wp + P
            wp[:, dst:dst + Win] = wr[:, ci, hh, :]
            bp[0, dst:dst + Win] = br[ci, hh, :]
    return wp, bp


def _pack_convt(w, b, Wi, pad_out):
    """Pack a stride-1 / pad-0 / dil-1 ConvTranspose2d weight (Ci,Co,K,K) into a
    banded matrix so the whole layer is a single
      (Ho, K*Ci*Wp) @ (K*Ci*Wp, Co*Wrow)
    matmul on rows of the zero-padded input.  If pad_out, the output columns
    already carry the zero W-padding of the NEXT layer's input rows."""
    Ci, Co, K, _ = w.shape
    P = K - 1
    Wp = Wi + 2 * P            # padded input row width (per channel)
    Wo = Wi + P                # output width
    Wrow = Wo + 2 * P if pad_out else Wo
    off = P if pad_out else 0
    wf = np.asarray(w, np.float32)[:, :, ::-1, ::-1]   # spatial flip (correlation form)
    wbig = np.zeros((K * Ci * Wp, Co * Wrow), np.float32)
    for ky in range(K):
        for ci in range(Ci):
            row0 = ky * Ci * Wp + ci * Wp
            for co in range(Co):
                col0 = co * Wrow + off
                for kx in range(K):
                    v = wf[ci, co, ky, kx]
                    for x in range(Wo):
                        wbig[row0 + x + kx, col0 + x] = v
    brow = np.zeros((1, Co * Wrow), np.float32)
    bb = np.asarray(b, np.float32)
    for co in range(Co):
        brow[0, co * Wrow + off: co * Wrow + off + Wo] = bb[co]
    return wbig, brow


def build_image_decoder_params(key, output_size, latent_size, num_convs=3, ks=4,
                               num_fcs=2, fc_hidden_size=50):
    """Random parameters in the PyTorch module's native layouts."""
    C, H, W = output_size
    P = ks - 1
    Hin, Win = H - num_convs * P, W - num_convs * P      # stride=1, pad=0, dil=1
    conv_in_size = (C, Hin, Win)
    fc_out = C * Hin * Win
    fc_sizes = [latent_size] + [fc_hidden_size] * (num_fcs - 1) + [fc_out]

    keys = jax.random.split(key, 2 * (len(fc_sizes) - 1) + 2 * num_convs)
    ki = 0
    fc_params = []
    for i in range(len(fc_sizes) - 1):
        w = 0.1 * jax.random.normal(keys[ki], (fc_sizes[i], fc_sizes[i + 1]), jnp.float32); ki += 1
        b = 0.1 * jax.random.normal(keys[ki], (fc_sizes[i + 1],), jnp.float32); ki += 1
        fc_params.append((w, b))

    conv_params = []
    for j in range(num_convs):
        w = 0.1 * jax.random.normal(keys[ki], (C, C, ks, ks), jnp.float32); ki += 1
        b = 0.1 * jax.random.normal(keys[ki], (C,), jnp.float32); ki += 1
        relu_after = j < num_convs - 2      # ReLU only follows the first conv
        conv_params.append((w, b, relu_after))
    return fc_params, conv_params, conv_in_size


def pack_decoder_params(fc_params, conv_params, conv_in_size, ks):
    """Host-side packing of the module parameters into the kernel's layouts."""
    # TODO(synk): only the module defaults (stride=1, padding=0, dilation=1,
    # output_padding=0, activation='relu') are supported by this packing.
    C, Hin, Win = conv_in_size
    num_convs = len(conv_params)
    P = ks - 1

    geoms = []
    Hi, Wi = Hin, Win
    for l in range(num_convs):
        geoms.append(_ConvGeom(Hi=Hi, Ho=Hi + P, RW=C * (Wi + 2 * P),
                               relu=bool(conv_params[l][2])))
        Hi, Wi = Hi + P, Wi + P

    fc_packed = [(jnp.asarray(w, jnp.float32),
                  jnp.asarray(b, jnp.float32).reshape(1, -1))
                 for (w, b) in fc_params[:-1]]
    wl, bl = _pack_fc_last(fc_params[-1][0], fc_params[-1][1], C, Hin, Win, P)
    fc_packed.append((jnp.asarray(wl), jnp.asarray(bl)))

    conv_packed = []
    Wi = Win
    for l, (w, b, _) in enumerate(conv_params):
        wbig, brow = _pack_convt(w, b, Wi, pad_out=(l + 1 < num_convs))
        conv_packed.append((jnp.asarray(wbig), jnp.asarray(brow)))
        Wi += P

    final_relu = num_convs >= 2     # leading ReLU of the reversed conv decoder
    static = dict(K=ks, P=P, C=C, Hin=Hin, geoms=tuple(geoms), final_relu=final_relu)
    return fc_packed, conv_packed, static


# --------------------------------------------------------------------------- #
# Fused Pallas kernel: FC stack + all transposed convs for a whole batch tile. #
# --------------------------------------------------------------------------- #
def _decoder_kernel(num_fcs, num_convs, TB, K, P, geoms, final_relu, *refs):
    n_fc = 2 * num_fcs
    n_cv = 2 * num_convs
    z_ref = refs[0]
    fc_refs = refs[1:1 + n_fc]
    cv_refs = refs[1 + n_fc:1 + n_fc + n_cv]
    out_ref = refs[1 + n_fc + n_cv]
    scratch = refs[2 + n_fc + n_cv:]
    fc_scr = scratch[0]
    pads = scratch[1::2]          # zero-padded layer inputs, (TB*Hp, Ci*Wp)
    lhss = scratch[2::2]          # row-level im2col matrices, (TB*Ho, K*Ci*Wp)

    prec = jax.lax.Precision.HIGHEST

    # ---- FC stack for the whole batch tile at once (one MXU matmul per layer).
    #      The last layer's weights already bake in the (H, C, padded-W)
    #      permutation and zero W-padding of the conv-0 input rows.
    h = z_ref[...]                                   # (TB, latent)
    for l in range(num_fcs):
        h = jnp.dot(h, fc_refs[2 * l][...], preferred_element_type=jnp.float32,
                    precision=prec) + fc_refs[2 * l + 1][...]
        if l < num_fcs - 1:
            h = jnp.maximum(h, 0.0)
    if final_relu:
        # Leading ReLU of the reversed conv decoder (applied to the FC output).
        h = jnp.maximum(h, 0.0)
    fc_scr[...] = h                                  # (TB, Hin * Ci * Wp0)

    # ---- zero every padded-input buffer with one full-width store each;
    #      the center rows are overwritten below, borders stay zero.
    for l in range(num_convs):
        pads[l][...] = jnp.zeros_like(pads[l])

    # ---- scatter FC rows into the zero-padded conv-0 input
    #      (per-sample padded blocks stacked along the sublane/row axis).
    g0 = geoms[0]
    Hp0 = g0.Hi + 2 * P
    for b in range(TB):
        for hh in range(g0.Hi):
            r = b * Hp0 + P + hh
            pads[0][r:r + 1, :] = fc_scr[b:b + 1, hh * g0.RW:(hh + 1) * g0.RW]

    # ---- ConvTranspose2d layers: one batched MXU matmul each.
    for l in range(num_convs):
        g = geoms[l]
        Hp = g.Hi + 2 * P
        pad = pads[l]
        lhs = lhss[l]
        # lhs = K row-shifted copies of the padded rows (row-level im2col),
        # built per sample with static ref->ref slice copies.
        for b in range(TB):
            for ky in range(K):
                lhs[b * g.Ho:(b + 1) * g.Ho, ky * g.RW:(ky + 1) * g.RW] = \
                    pad[b * Hp + ky:b * Hp + ky + g.Ho, :]
        a = jnp.dot(lhs[...], cv_refs[2 * l][...],
                    preferred_element_type=jnp.float32, precision=prec)
        a = a + cv_refs[2 * l + 1][...]
        if g.relu:
            a = jnp.maximum(a, 0.0)
        if l + 1 < num_convs:
            # Output columns already carry the next layer's zero W-padding:
            # one full-width store per sample fills the next padded input's center.
            g1 = geoms[l + 1]
            Hp1 = g1.Hi + 2 * P
            for b in range(TB):
                pads[l + 1][b * Hp1 + P:b * Hp1 + P + g1.Hi, :] = \
                    a[b * g.Ho:(b + 1) * g.Ho, :]
        else:
            for b in range(TB):
                out_ref[b, :, :] = a[b * g.Ho:(b + 1) * g.Ho, :]   # lane-dense (Ho, Co*Wo)


def image_decoder_forward(z, fc_packed, conv_packed, static, batch_tile=None):
    K, P, C = static["K"], static["P"], static["C"]
    geoms, final_relu = static["geoms"], static["final_relu"]
    num_fcs, num_convs = len(fc_packed), len(conv_packed)
    B, latent = z.shape
    Ho_last = geoms[-1].Ho
    out_cols = conv_packed[-1][0].shape[1]
    Wo_last = out_cols // C

    # Whole batch in one grid step when small; tile by 8 (sublane-aligned) when large.
    if batch_tile is None:
        batch_tile = 8 if (B > 8 and B % 8 == 0) else B
    TB = batch_tile
    assert B % TB == 0, (B, TB)

    inputs = [z]
    in_specs = [pl.BlockSpec((TB, latent), lambda i: (i, 0))]
    for (w, brow) in list(fc_packed) + list(conv_packed):
        inputs += [w, brow]
        in_specs += [pl.BlockSpec(w.shape, lambda i: (0, 0)),
                     pl.BlockSpec(brow.shape, lambda i: (0, 0))]

    scratch = [pltpu.VMEM((TB, fc_packed[-1][0].shape[1]), jnp.float32)]
    for g in geoms:
        scratch.append(pltpu.VMEM((TB * (g.Hi + 2 * P), g.RW), jnp.float32))   # padded input
        scratch.append(pltpu.VMEM((TB * g.Ho, K * g.RW), jnp.float32))         # row im2col

    kernel = functools.partial(_decoder_kernel, num_fcs, num_convs, TB, K, P,
                               geoms, final_relu)

    out = pl.pallas_call(
        kernel,
        grid=(B // TB,),
        in_specs=in_specs,
        out_specs=pl.BlockSpec((TB, Ho_last, out_cols), lambda i: (i, 0, 0)),
        out_shape=jax.ShapeDtypeStruct((B, Ho_last, out_cols), jnp.float32),
        scratch_shapes=scratch,
        compiler_params=pltpu.CompilerParams(dimension_semantics=("parallel",)),
    )(*inputs)

    # (B, Ho, Co*Wo) -> (B, Co, Ho, Wo): cheap wrapper-side layout fix-up.
    return out.reshape(B, Ho_last, C, Wo_last).transpose(0, 2, 1, 3)


# ------------------------------ pure-JAX reference ---------------------------- #
def _ref_forward(z, fc_params, conv_params, conv_in_size, num_convs):
    h = z
    for i, (w, b) in enumerate(fc_params):
        h = jnp.dot(h, w, precision=jax.lax.Precision.HIGHEST) + b
        if i < len(fc_params) - 1:
            h = jnp.maximum(h, 0.0)
    if num_convs >= 2:
        h = jnp.maximum(h, 0.0)
    x = h.reshape((z.shape[0],) + conv_in_size)
    for (w, b, relu) in conv_params:
        B, Ci, Hi, Wi = x.shape
        _, Co, K, _ = w.shape
        out = jnp.zeros((B, Co, Hi + K - 1, Wi + K - 1), jnp.float32) + b[None, :, None, None]
        for ky in range(K):
            for kx in range(K):
                out = out.at[:, :, ky:ky + Hi, kx:kx + Wi].add(
                    jnp.einsum('nchw,cd->ndhw', x, w[:, :, ky, kx],
                               precision=jax.lax.Precision.HIGHEST))
        x = jnp.maximum(out, 0.0) if relu else out
    return x


if __name__ == "__main__":
    key = jax.random.PRNGKey(0)
    output_size = (4, 16, 16)      # (C, H, W)
    latent_size = 8
    num_convs = 3
    ks = 4
    B = 2

    k_param, k_z = jax.random.split(key)
    fc_params, conv_params, conv_in_size = build_image_decoder_params(
        k_param, output_size, latent_size, num_convs=num_convs, ks=ks)
    z = jax.random.normal(k_z, (B, latent_size), jnp.float32)

    fc_packed, conv_packed, static = pack_decoder_params(
        fc_params, conv_params, conv_in_size, ks=ks)

    out = image_decoder_forward(z, fc_packed, conv_packed, static)
    out = jax.block_until_ready(out)

    assert out.shape == (B,) + output_size, out.shape
    ref = _ref_forward(z, fc_params, conv_params, conv_in_size, num_convs)
    np.testing.assert_allclose(np.asarray(out), np.asarray(ref), rtol=1e-4, atol=1e-4)
    print("KERNEL_OK")
</pallas_src>

<mosaic_0001>
module attributes {stable_mosaic.version = 11 : i64} {
  func.func @_decoder_kernel(%arg0: i32, %arg1: memref<2x8xf32, #tpu.memory_space<vmem>>, %arg2: memref<8x50xf32, #tpu.memory_space<vmem>>, %arg3: memref<1x50xf32, #tpu.memory_space<vmem>>, %arg4: memref<50x364xf32, #tpu.memory_space<vmem>>, %arg5: memref<1x364xf32, #tpu.memory_space<vmem>>, %arg6: memref<208x64xf32, #tpu.memory_space<vmem>>, %arg7: memref<1x64xf32, #tpu.memory_space<vmem>>, %arg8: memref<256x76xf32, #tpu.memory_space<vmem>>, %arg9: memref<1x76xf32, #tpu.memory_space<vmem>>, %arg10: memref<304x64xf32, #tpu.memory_space<vmem>>, %arg11: memref<1x64xf32, #tpu.memory_space<vmem>>, %arg12: memref<2x16x64xf32, #tpu.memory_space<vmem>>, %arg13: memref<2x364xf32, #tpu.memory_space<vmem>>, %arg14: memref<26x52xf32, #tpu.memory_space<vmem>>, %arg15: memref<20x208xf32, #tpu.memory_space<vmem>>, %arg16: memref<32x64xf32, #tpu.memory_space<vmem>>, %arg17: memref<26x256xf32, #tpu.memory_space<vmem>>, %arg18: memref<38x76xf32, #tpu.memory_space<vmem>>, %arg19: memref<32x304xf32, #tpu.memory_space<vmem>>) attributes {dimension_semantics = [#tpu.dimension_semantics<parallel>], iteration_bounds = array<i64: 1>, scalar_prefetch = 0 : i64, scratch_operands = 7 : i64, tpu.core_type = #tpu.core_type<tc>, window_params = [{transform_indices = @transform_0, window_bounds = array<i64: 2, 8>}, {pipeline_mode = #tpu.pipeline_mode<synchronous>, transform_indices = @transform_1, window_bounds = array<i64: 8, 50>}, {pipeline_mode = #tpu.pipeline_mode<synchronous>, transform_indices = @transform_2, window_bounds = array<i64: 1, 50>}, {pipeline_mode = #tpu.pipeline_mode<synchronous>, transform_indices = @transform_3, window_bounds = array<i64: 50, 364>}, {pipeline_mode = #tpu.pipeline_mode<synchronous>, transform_indices = @transform_4, window_bounds = array<i64: 1, 364>}, {pipeline_mode = #tpu.pipeline_mode<synchronous>, transform_indices = @transform_5, window_bounds = array<i64: 208, 64>}, {pipeline_mode = #tpu.pipeline_mode<synchronous>, transform_indices = @transform_6, window_bounds = array<i64: 1, 64>}, {pipeline_mode = #tpu.pipeline_mode<synchronous>, transform_indices = @transform_7, window_bounds = array<i64: 256, 76>}, {pipeline_mode = #tpu.pipeline_mode<synchronous>, transform_indices = @transform_8, window_bounds = array<i64: 1, 76>}, {pipeline_mode = #tpu.pipeline_mode<synchronous>, transform_indices = @transform_9, window_bounds = array<i64: 304, 64>}, {pipeline_mode = #tpu.pipeline_mode<synchronous>, transform_indices = @transform_10, window_bounds = array<i64: 1, 64>}, {transform_indices = @transform_11, window_bounds = array<i64: 2, 16, 64>}]} {
    %c0 = arith.constant 0 : index
    %c0_0 = arith.constant 0 : index
    %0 = vector.load %arg1[%c0, %c0_0] : memref<2x8xf32, #tpu.memory_space<vmem>>, vector<2x8xf32>
    %c0_1 = arith.constant 0 : index
    %c0_2 = arith.constant 0 : index
    %1 = vector.load %arg2[%c0_1, %c0_2] : memref<8x50xf32, #tpu.memory_space<vmem>>, vector<8x50xf32>
    %cst = arith.constant dense<0.000000e+00> : vector<2x50xf32>
    %2 = tpu.matmul %0, %1, %cst {dimension_numbers = #tpu.dot_dimension_numbers<[1], [0], [0], [1], [0, 0, 1, 1], [], []>, precision = #tpu.contract_precision<fp32>} : vector<2x8xf32>, vector<8x50xf32>, vector<2x50xf32> -> vector<2x50xf32>
    %c0_3 = arith.constant 0 : index
    %c0_4 = arith.constant 0 : index
    %3 = vector.load %arg3[%c0_3, %c0_4] : memref<1x50xf32, #tpu.memory_space<vmem>>, vector<1x50xf32>
    %4 = vector.broadcast %3 : vector<1x50xf32> to vector<2x50xf32>
    %5 = arith.addf %2, %4 : vector<2x50xf32>
    %cst_5 = arith.constant 0.000000e+00 : f32
    %6 = vector.broadcast %cst_5 : f32 to vector<2x50xf32>
    %7 = arith.maximumf %5, %6 : vector<2x50xf32>
    %c0_6 = arith.constant 0 : index
    %c0_7 = arith.constant 0 : index
    %8 = vector.load %arg4[%c0_6, %c0_7] : memref<50x364xf32, #tpu.memory_space<vmem>>, vector<50x364xf32>
    %cst_8 = arith.constant dense<0.000000e+00> : vector<2x364xf32>
    %9 = tpu.matmul %7, %8, %cst_8 {dimension_numbers = #tpu.dot_dimension_numbers<[1], [0], [0], [1], [0, 0, 1, 1], [], []>, precision = #tpu.contract_precision<fp32>} : vector<2x50xf32>, vector<50x364xf32>, vector<2x364xf32> -> vector<2x364xf32>
    %c0_9 = arith.constant 0 : index
    %c0_10 = arith.constant 0 : index
    %10 = vector.load %arg5[%c0_9, %c0_10] : memref<1x364xf32, #tpu.memory_space<vmem>>, vector<1x364xf32>
    %11 = vector.broadcast %10 : vector<1x364xf32> to vector<2x364xf32>
    %12 = arith.addf %9, %11 : vector<2x364xf32>
    %cst_11 = arith.constant 0.000000e+00 : f32
    %13 = vector.broadcast %cst_11 : f32 to vector<2x364xf32>
    %14 = arith.maximumf %12, %13 : vector<2x364xf32>
    %c0_12 = arith.constant 0 : index
    %c0_13 = arith.constant 0 : index
    %15 = vector.load %arg13[%c0_12, %c0_13] : memref<2x364xf32, #tpu.memory_space<vmem>>, vector<2x364xf32>
    tpu.vector_store %arg13[%c0_12, %c0_13], %14 {strides = array<i32>} : memref<2x364xf32, #tpu.memory_space<vmem>>, vector<2x364xf32>,
    %cst_14 = arith.constant 0.000000e+00 : f32
    %16 = vector.broadcast %cst_14 : f32 to vector<26x52xf32>
    %c0_15 = arith.constant 0 : index
    %c0_16 = arith.constant 0 : index
    %17 = vector.load %arg14[%c0_15, %c0_16] : memref<26x52xf32, #tpu.memory_space<vmem>>, vector<26x52xf32>
    tpu.vector_store %arg14[%c0_15, %c0_16], %16 {strides = array<i32>} : memref<26x52xf32, #tpu.memory_space<vmem>>, vector<26x52xf32>,
    %cst_17 = arith.constant 0.000000e+00 : f32
    %18 = vector.broadcast %cst_17 : f32 to vector<32x64xf32>
    %c0_18 = arith.constant 0 : index
    %c0_19 = arith.constant 0 : index
    %19 = vector.load %arg16[%c0_18, %c0_19] : memref<32x64xf32, #tpu.memory_space<vmem>>, vector<32x64xf32>
    tpu.vector_store %arg16[%c0_18, %c0_19], %18 {strides = array<i32>} : memref<32x64xf32, #tpu.memory_space<vmem>>, vector<32x64xf32>,
    %cst_20 = arith.constant 0.000000e+00 : f32
    %20 = vector.broadcast %cst_20 : f32 to vector<38x76xf32>
    %c0_21 = arith.constant 0 : index
    %c0_22 = arith.constant 0 : index
    %21 = vector.load %arg18[%c0_21, %c0_22] : memref<38x76xf32, #tpu.memory_space<vmem>>, vector<38x76xf32>
    tpu.vector_store %arg18[%c0_21, %c0_22], %20 {strides = array<i32>} : memref<38x76xf32, #tpu.memory_space<vmem>>, vector<38x76xf32>,
    %c0_23 = arith.constant 0 : index
    %c0_24 = arith.constant 0 : index
    %22 = vector.load %arg13[%c0_23, %c0_24] : memref<2x364xf32, #tpu.memory_space<vmem>>, vector<1x52xf32>
    %c3 = arith.constant 3 : index
    %c0_25 = arith.constant 0 : index
    %23 = vector.load %arg14[%c3, %c0_25] : memref<26x52xf32, #tpu.memory_space<vmem>>, vector<1x52xf32>
    tpu.vector_store %arg14[%c3, %c0_25], %22 {strides = array<i32>} : memref<26x52xf32, #tpu.memory_space<vmem>>, vector<1x52xf32>,
    %c0_26 = arith.constant 0 : index
    %c52 = arith.constant 52 : index
    %24 = vector.load %arg13[%c0_26, %c52] : memref<2x364xf32, #tpu.memory_space<vmem>>, vector<1x52xf32>
    %c4 = arith.constant 4 : index
    %c0_27 = arith.constant 0 : index
    %25 = vector.load %arg14[%c4, %c0_27] : memref<26x52xf32, #tpu.memory_space<vmem>>, vector<1x52xf32>
    tpu.vector_store %arg14[%c4, %c0_27], %24 {strides = array<i32>} : memref<26x52xf32, #tpu.memory_space<vmem>>, vector<1x52xf32>,
    %c0_28 = arith.constant 0 : index
    %c104 = arith.constant 104 : index
    %26 = vector.load %arg13[%c0_28, %c104] : memref<2x364xf32, #tpu.memory_space<vmem>>, vector<1x52xf32>
    %c5 = arith.constant 5 : index
    %c0_29 = arith.constant 0 : index
    %27 = vector.load %arg14[%c5, %c0_29] : memref<26x52xf32, #tpu.memory_space<vmem>>, vector<1x52xf32>
    tpu.vector_store %arg14[%c5, %c0_29], %26 {strides = array<i32>} : memref<26x52xf32, #tpu.memory_space<vmem>>, vector<1x52xf32>,
    %c0_30 = arith.constant 0 : index
    %c156 = arith.constant 156 : index
    %28 = vector.load %arg13[%c0_30, %c156] : memref<2x364xf32, #tpu.memory_space<vmem>>, vector<1x52xf32>
    %c6 = arith.constant 6 : index
    %c0_31 = arith.constant 0 : index
    %29 = vector.load %arg14[%c6, %c0_31] : memref<26x52xf32, #tpu.memory_space<vmem>>, vector<1x52xf32>
    tpu.vector_store %arg14[%c6, %c0_31], %28 {strides = array<i32>} : memref<26x52xf32, #tpu.memory_space<vmem>>, vector<1x52xf32>,
    %c0_32 = arith.constant 0 : index
    %c208 = arith.constant 208 : index
    %30 = vector.load %arg13[%c0_32, %c208] : memref<2x364xf32, #tpu.memory_space<vmem>>, vector<1x52xf32>
    %c7 = arith.constant 7 : index
    %c0_33 = arith.constant 0 : index
    %31 = vector.load %arg14[%c7, %c0_33] : memref<26x52xf32, #tpu.memory_space<vmem>>, vector<1x52xf32>
    tpu.vector_store %arg14[%c7, %c0_33], %30 {strides = array<i32>} : memref<26x52xf32, #tpu.memory_space<vmem>>, vector<1x52xf32>,
    %c0_34 = arith.constant 0 : index
    %c260 = arith.constant 260 : index
    %32 = vector.load %arg13[%c0_34, %c260] : memref<2x364xf32, #tpu.memory_space<vmem>>, vector<1x52xf32>
    %c8 = arith.constant 8 : index
    %c0_35 = arith.constant 0 : index
    %33 = vector.load %arg14[%c8, %c0_35] : memref<26x52xf32, #tpu.memory_space<vmem>>, vector<1x52xf32>
    tpu.vector_store %arg14[%c8, %c0_35], %32 {strides = array<i32>} : memref<26x52xf32, #tpu.memory_space<vmem>>, vector<1x52xf32>,
    %c0_36 = arith.constant 0 : index
    %c312 = arith.constant 312 : index
    %34 = vector.load %arg13[%c0_36, %c312] : memref<2x364xf32, #tpu.memory_space<vmem>>, vector<1x52xf32>
    %c9 = arith.constant 9 : index
    %c0_37 = arith.constant 0 : index
    %35 = vector.load %arg14[%c9, %c0_37] : memref<26x52xf32, #tpu.memory_space<vmem>>, vector<1x52xf32>
    tpu.vector_store %arg14[%c9, %c0_37], %34 {strides = array<i32>} : memref<26x52xf32, #tpu.memory_space<vmem>>, vector<1x52xf32>,
    %c1 = arith.constant 1 : index
    %c0_38 = arith.constant 0 : index
    %36 = vector.load %arg13[%c1, %c0_38] : memref<2x364xf32, #tpu.memory_space<vmem>>, vector<1x52xf32>
    %c16 = arith.constant 16 : index
    %c0_39 = arith.constant 0 : index
    %37 = vector.load %arg14[%c16, %c0_39] : memref<26x52xf32, #tpu.memory_space<vmem>>, vector<1x52xf32>
    tpu.vector_store %arg14[%c16, %c0_39], %36 {strides = array<i32>} : memref<26x52xf32, #tpu.memory_space<vmem>>, vector<1x52xf32>,
    %c1_40 = arith.constant 1 : index
    %c52_41 = arith.constant 52 : index
    %38 = vector.load %arg13[%c1_40, %c52_41] : memref<2x364xf32, #tpu.memory_space<vmem>>, vector<1x52xf32>
    %c17 = arith.constant 17 : index
    %c0_42 = arith.constant 0 : index
    %39 = vector.load %arg14[%c17, %c0_42] : memref<26x52xf32, #tpu.memory_space<vmem>>, vector<1x52xf32>
    tpu.vector_store %arg14[%c17, %c0_42], %38 {strides = array<i32>} : memref<26x52xf32, #tpu.memory_space<vmem>>, vector<1x52xf32>,
    %c1_43 = arith.constant 1 : index
    %c104_44 = arith.constant 104 : index
    %40 = vector.load %arg13[%c1_43, %c104_44] : memref<2x364xf32, #tpu.memory_space<vmem>>, vector<1x52xf32>
    %c18 = arith.constant 18 : index
    %c0_45 = arith.constant 0 : index
    %41 = vector.load %arg14[%c18, %c0_45] : memref<26x52xf32, #tpu.memory_space<vmem>>, vector<1x52xf32>
    tpu.vector_store %arg14[%c18, %c0_45], %40 {strides = array<i32>} : memref<26x52xf32, #tpu.memory_space<vmem>>, vector<1x52xf32>,
    %c1_46 = arith.constant 1 : index
    %c156_47 = arith.constant 156 : index
    %42 = vector.load %arg13[%c1_46, %c156_47] : memref<2x364xf32, #tpu.memory_space<vmem>>, vector<1x52xf32>
    %c19 = arith.constant 19 : index
    %c0_48 = arith.constant 0 : index
    %43 = vector.load %arg14[%c19, %c0_48] : memref<26x52xf32, #tpu.memory_space<vmem>>, vector<1x52xf32>
    tpu.vector_store %arg14[%c19, %c0_48], %42 {strides = array<i32>} : memref<26x52xf32, #tpu.memory_space<vmem>>, vector<1x52xf32>,
    %c1_49 = arith.constant 1 : index
    %c208_50 = arith.constant 208 : index
    %44 = vector.load %arg13[%c1_49, %c208_50] : memref<2x364xf32, #tpu.memory_space<vmem>>, vector<1x52xf32>
    %c20 = arith.constant 20 : index
    %c0_51 = arith.constant 0 : index
    %45 = vector.load %arg14[%c20, %c0_51] : memref<26x52xf32, #tpu.memory_space<vmem>>, vector<1x52xf32>
    tpu.vector_store %arg14[%c20, %c0_51], %44 {strides = array<i32>} : memref<26x52xf32, #tpu.memory_space<vmem>>, vector<1x52xf32>,
    %c1_52 = arith.constant 1 : index
    %c260_53 = arith.constant 260 : index
    %46 = vector.load %arg13[%c1_52, %c260_53] : memref<2x364xf32, #tpu.memory_space<vmem>>, vector<1x52xf32>
    %c21 = arith.constant 21 : index
    %c0_54 = arith.constant 0 : index
    %47 = vector.load %arg14[%c21, %c0_54] : memref<26x52xf32, #tpu.memory_space<vmem>>, vector<1x52xf32>
    tpu.vector_store %arg14[%c21, %c0_54], %46 {strides = array<i32>} : memref<26x52xf32, #tpu.memory_space<vmem>>, vector<1x52xf32>,
    %c1_55 = arith.constant 1 : index
    %c312_56 = arith.constant 312 : index
    %48 = vector.load %arg13[%c1_55, %c312_56] : memref<2x364xf32, #tpu.memory_space<vmem>>, vector<1x52xf32>
    %c22 = arith.constant 22 : index
    %c0_57 = arith.constant 0 : index
    %49 = vector.load %arg14[%c22, %c0_57] : memref<26x52xf32, #tpu.memory_space<vmem>>, vector<1x52xf32>
    tpu.vector_store %arg14[%c22, %c0_57], %48 {strides = array<i32>} : memref<26x52xf32, #tpu.memory_space<vmem>>, vector<1x52xf32>,
    %c0_58 = arith.constant 0 : index
    %c0_59 = arith.constant 0 : index
    %50 = vector.load %arg14[%c0_58, %c0_59] : memref<26x52xf32, #tpu.memory_space<vmem>>, vector<10x52xf32>
    %c0_60 = arith.constant 0 : index
    %c0_61 = arith.constant 0 : index
    %51 = vector.load %arg15[%c0_60, %c0_61] : memref<20x208xf32, #tpu.memory_space<vmem>>, vector<10x52xf32>
    tpu.vector_store %arg15[%c0_60, %c0_61], %50 {strides = array<i32>} : memref<20x208xf32, #tpu.memory_space<vmem>>, vector<10x52xf32>,
    %c1_62 = arith.constant 1 : index
    %c0_63 = arith.constant 0 : index
    %52 = vector.load %arg14[%c1_62, %c0_63] : memref<26x52xf32, #tpu.memory_space<vmem>>, vector<10x52xf32>
    %c0_64 = arith.constant 0 : index
    %c52_65 = arith.constant 52 : index
    %53 = vector.load %arg15[%c0_64, %c52_65] : memref<20x208xf32, #tpu.memory_space<vmem>>, vector<10x52xf32>
    tpu.vector_store %arg15[%c0_64, %c52_65], %52 {strides = array<i32>} : memref<20x208xf32, #tpu.memory_space<vmem>>, vector<10x52xf32>,
    %c2 = arith.constant 2 : index
    %c0_66 = arith.constant 0 : index
    %54 = vector.load %arg14[%c2, %c0_66] : memref<26x52xf32, #tpu.memory_space<vmem>>, vector<10x52xf32>
    %c0_67 = arith.constant 0 : index
    %c104_68 = arith.constant 104 : index
    %55 = vector.load %arg15[%c0_67, %c104_68] : memref<20x208xf32, #tpu.memory_space<vmem>>, vector<10x52xf32>
    tpu.vector_store %arg15[%c0_67, %c104_68], %54 {strides = array<i32>} : memref<20x208xf32, #tpu.memory_space<vmem>>, vector<10x52xf32>,
    %c3_69 = arith.constant 3 : index
    %c0_70 = arith.constant 0 : index
    %56 = vector.load %arg14[%c3_69, %c0_70] : memref<26x52xf32, #tpu.memory_space<vmem>>, vector<10x52xf32>
    %c0_71 = arith.constant 0 : index
    %c156_72 = arith.constant 156 : index
    %57 = vector.load %arg15[%c0_71, %c156_72] : memref<20x208xf32, #tpu.memory_space<vmem>>, vector<10x52xf32>
    tpu.vector_store %arg15[%c0_71, %c156_72], %56 {strides = array<i32>} : memref<20x208xf32, #tpu.memory_space<vmem>>, vector<10x52xf32>,
    %c13 = arith.constant 13 : index
    %c0_73 = arith.constant 0 : index
    %58 = vector.load %arg14[%c13, %c0_73] : memref<26x52xf32, #tpu.memory_space<vmem>>, vector<10x52xf32>
    %c10 = arith.constant 10 : index
    %c0_74 = arith.constant 0 : index
    %59 = vector.load %arg15[%c10, %c0_74] : memref<20x208xf32, #tpu.memory_space<vmem>>, vector<10x52xf32>
    tpu.vector_store %arg15[%c10, %c0_74], %58 {strides = array<i32>} : memref<20x208xf32, #tpu.memory_space<vmem>>, vector<10x52xf32>,
    %c14 = arith.constant 14 : index
    %c0_75 = arith.constant 0 : index
    %60 = vector.load %arg14[%c14, %c0_75] : memref<26x52xf32, #tpu.memory_space<vmem>>, vector<10x52xf32>
    %c10_76 = arith.constant 10 : index
    %c52_77 = arith.constant 52 : index
    %61 = vector.load %arg15[%c10_76, %c52_77] : memref<20x208xf32, #tpu.memory_space<vmem>>, vector<10x52xf32>
    tpu.vector_store %arg15[%c10_76, %c52_77], %60 {strides = array<i32>} : memref<20x208xf32, #tpu.memory_space<vmem>>, vector<10x52xf32>,
    %c15 = arith.constant 15 : index
    %c0_78 = arith.constant 0 : index
    %62 = vector.load %arg14[%c15, %c0_78] : memref<26x52xf32, #tpu.memory_space<vmem>>, vector<10x52xf32>
    %c10_79 = arith.constant 10 : index
    %c104_80 = arith.constant 104 : index
    %63 = vector.load %arg15[%c10_79, %c104_80] : memref<20x208xf32, #tpu.memory_space<vmem>>, vector<10x52xf32>
    tpu.vector_store %arg15[%c10_79, %c104_80], %62 {strides = array<i32>} : memref<20x208xf32, #tpu.memory_space<vmem>>, vector<10x52xf32>,
    %c16_81 = arith.constant 16 : index
    %c0_82 = arith.constant 0 : index
    %64 = vector.load %arg14[%c16_81, %c0_82] : memref<26x52xf32, #tpu.memory_space<vmem>>, vector<10x52xf32>
    %c10_83 = arith.constant 10 : index
    %c156_84 = arith.constant 156 : index
    %65 = vector.load %arg15[%c10_83, %c156_84] : memref<20x208xf32, #tpu.memory_space<vmem>>, vector<10x52xf32>
    tpu.vector_store %arg15[%c10_83, %c156_84], %64 {strides = array<i32>} : memref<20x208xf32, #tpu.memory_space<vmem>>, vector<10x52xf32>,
    %c0_85 = arith.constant 0 : index
    %c0_86 = arith.constant 0 : index
    %66 = vector.load %arg15[%c0_85, %c0_86] : memref<20x208xf32, #tpu.memory_space<vmem>>, vector<20x208xf32>
    %c0_87 = arith.constant 0 : index
    %c0_88 = arith.constant 0 : index
    %67 = vector.load %arg6[%c0_87, %c0_88] : memref<208x64xf32, #tpu.memory_space<vmem>>, vector<208x64xf32>
    %cst_89 = arith.constant dense<0.000000e+00> : vector<20x64xf32>
    %68 = tpu.matmul %66, %67, %cst_89 {dimension_numbers = #tpu.dot_dimension_numbers<[1], [0], [0], [1], [0, 0, 1, 1], [], []>, precision = #tpu.contract_precision<fp32>} : vector<20x208xf32>, vector<208x64xf32>, vector<20x64xf32> -> vector<20x64xf32>
    %c0_90 = arith.constant 0 : index
    %c0_91 = arith.constant 0 : index
    %69 = vector.load %arg7[%c0_90, %c0_91] : memref<1x64xf32, #tpu.memory_space<vmem>>, vector<1x64xf32>
    %70 = vector.broadcast %69 : vector<1x64xf32> to vector<20x64xf32>
    %71 = arith.addf %68, %70 : vector<20x64xf32>
    %cst_92 = arith.constant 0.000000e+00 : f32
    %72 = vector.broadcast %cst_92 : f32 to vector<20x64xf32>
    %73 = arith.maximumf %71, %72 : vector<20x64xf32>
    %74 = vector.extract_strided_slice %73 {offsets = [0, 0], sizes = [10, 64], strides = [1, 1]} : vector<20x64xf32> to vector<10x64xf32>
    %c3_93 = arith.constant 3 : index
    %c0_94 = arith.constant 0 : index
    %75 = vector.load %arg16[%c3_93, %c0_94] : memref<32x64xf32, #tpu.memory_space<vmem>>, vector<10x64xf32>
    tpu.vector_store %arg16[%c3_93, %c0_94], %74 {strides = array<i32>} : memref<32x64xf32, #tpu.memory_space<vmem>>, vector<10x64xf32>,
    %76 = vector.extract_strided_slice %73 {offsets = [10, 0], sizes = [10, 64], strides = [1, 1]} : vector<20x64xf32> to vector<10x64xf32>
    %c19_95 = arith.constant 19 : index
    %c0_96 = arith.constant 0 : index
    %77 = vector.load %arg16[%c19_95, %c0_96] : memref<32x64xf32, #tpu.memory_space<vmem>>, vector<10x64xf32>
    tpu.vector_store %arg16[%c19_95, %c0_96], %76 {strides = array<i32>} : memref<32x64xf32, #tpu.memory_space<vmem>>, vector<10x64xf32>,
    %c0_97 = arith.constant 0 : index
    %c0_98 = arith.constant 0 : index
    %78 = vector.load %arg16[%c0_97, %c0_98] : memref<32x64xf32, #tpu.memory_space<vmem>>, vector<13x64xf32>
    %c0_99 = arith.constant 0 : index
    %c0_100 = arith.constant 0 : index
    %79 = vector.load %arg17[%c0_99, %c0_100] : memref<26x256xf32, #tpu.memory_space<vmem>>, vector<13x64xf32>
    tpu.vector_store %arg17[%c0_99, %c0_100], %78 {strides = array<i32>} : memref<26x256xf32, #tpu.memory_space<vmem>>, vector<13x64xf32>,
    %c1_101 = arith.constant 1 : index
    %c0_102 = arith.constant 0 : index
    %80 = vector.load %arg16[%c1_101, %c0_102] : memref<32x64xf32, #tpu.memory_space<vmem>>, vector<13x64xf32>
    %c0_103 = arith.constant 0 : index
    %c64 = arith.constant 64 : index
    %81 = vector.load %arg17[%c0_103, %c64] : memref<26x256xf32, #tpu.memory_space<vmem>>, vector<13x64xf32>
    tpu.vector_store %arg17[%c0_103, %c64], %80 {strides = array<i32>} : memref<26x256xf32, #tpu.memory_space<vmem>>, vector<13x64xf32>,
    %c2_104 = arith.constant 2 : index
    %c0_105 = arith.constant 0 : index
    %82 = vector.load %arg16[%c2_104, %c0_105] : memref<32x64xf32, #tpu.memory_space<vmem>>, vector<13x64xf32>
    %c0_106 = arith.constant 0 : index
    %c128 = arith.constant 128 : index
    %83 = vector.load %arg17[%c0_106, %c128] : memref<26x256xf32, #tpu.memory_space<vmem>>, vector<13x64xf32>
    tpu.vector_store %arg17[%c0_106, %c128], %82 {strides = array<i32>} : memref<26x256xf32, #tpu.memory_space<vmem>>, vector<13x64xf32>,
    %c3_107 = arith.constant 3 : index
    %c0_108 = arith.constant 0 : index
    %84 = vector.load %arg16[%c3_107, %c0_108] : memref<32x64xf32, #tpu.memory_space<vmem>>, vector<13x64xf32>
    %c0_109 = arith.constant 0 : index
    %c192 = arith.constant 192 : index
    %85 = vector.load %arg17[%c0_109, %c192] : memref<26x256xf32, #tpu.memory_space<vmem>>, vector<13x64xf32>
    tpu.vector_store %arg17[%c0_109, %c192], %84 {strides = array<i32>} : memref<26x256xf32, #tpu.memory_space<vmem>>, vector<13x64xf32>,
    %c16_110 = arith.constant 16 : index
    %c0_111 = arith.constant 0 : index
    %86 = vector.load %arg16[%c16_110, %c0_111] : memref<32x64xf32, #tpu.memory_space<vmem>>, vector<13x64xf32>
    %c13_112 = arith.constant 13 : index
    %c0_113 = arith.constant 0 : index
    %87 = vector.load %arg17[%c13_112, %c0_113] : memref<26x256xf32, #tpu.memory_space<vmem>>, vector<13x64xf32>
    tpu.vector_store %arg17[%c13_112, %c0_113], %86 {strides = array<i32>} : memref<26x256xf32, #tpu.memory_space<vmem>>, vector<13x64xf32>,
    %c17_114 = arith.constant 17 : index
    %c0_115 = arith.constant 0 : index
    %88 = vector.load %arg16[%c17_114, %c0_115] : memref<32x64xf32, #tpu.memory_space<vmem>>, vector<13x64xf32>
    %c13_116 = arith.constant 13 : index
    %c64_117 = arith.constant 64 : index
    %89 = vector.load %arg17[%c13_116, %c64_117] : memref<26x256xf32, #tpu.memory_space<vmem>>, vector<13x64xf32>
    tpu.vector_store %arg17[%c13_116, %c64_117], %88 {strides = array<i32>} : memref<26x256xf32, #tpu.memory_space<vmem>>, vector<13x64xf32>,
    %c18_118 = arith.constant 18 : index
    %c0_119 = arith.constant 0 : index
    %90 = vector.load %arg16[%c18_118, %c0_119] : memref<32x64xf32, #tpu.memory_space<vmem>>, vector<13x64xf32>
    %c13_120 = arith.constant 13 : index
    %c128_121 = arith.constant 128 : index
    %91 = vector.load %arg17[%c13_120, %c128_121] : memref<26x256xf32, #tpu.memory_space<vmem>>, vector<13x64xf32>
    tpu.vector_store %arg17[%c13_120, %c128_121], %90 {strides = array<i32>} : memref<26x256xf32, #tpu.memory_space<vmem>>, vector<13x64xf32>,
    %c19_122 = arith.constant 19 : index
    %c0_123 = arith.constant 0 : index
    %92 = vector.load %arg16[%c19_122, %c0_123] : memref<32x64xf32, #tpu.memory_space<vmem>>, vector<13x64xf32>
    %c13_124 = arith.constant 13 : index
    %c192_125 = arith.constant 192 : index
    %93 = vector.load %arg17[%c13_124, %c192_125] : memref<26x256xf32, #tpu.memory_space<vmem>>, vector<13x64xf32>
    tpu.vector_store %arg17[%c13_124, %c192_125], %92 {strides = array<i32>} : memref<26x256xf32, #tpu.memory_space<vmem>>, vector<13x64xf32>,
    %c0_126 = arith.constant 0 : index
    %c0_127 = arith.constant 0 : index
    %94 = vector.load %arg17[%c0_126, %c0_127] : memref<26x256xf32, #tpu.memory_space<vmem>>, vector<26x256xf32>
    %c0_128 = arith.constant 0 : index
    %c0_129 = arith.constant 0 : index
    %95 = vector.load %arg8[%c0_128, %c0_129] : memref<256x76xf32, #tpu.memory_space<vmem>>, vector<256x76xf32>
    %cst_130 = arith.constant dense<0.000000e+00> : vector<26x76xf32>
    %96 = tpu.matmul %94, %95, %cst_130 {dimension_numbers = #tpu.dot_dimension_numbers<[1], [0], [0], [1], [0, 0, 1, 1], [], []>, precision = #tpu.contract_precision<fp32>} : vector<26x256xf32>, vector<256x76xf32>, vector<26x76xf32> -> vector<26x76xf32>
    %c0_131 = arith.constant 0 : index
    %c0_132 = arith.constant 0 : index
    %97 = vector.load %arg9[%c0_131, %c0_132] : memref<1x76xf32, #tpu.memory_space<vmem>>, vector<1x76xf32>
    %98 = vector.broadcast %97 : vector<1x76xf32> to vector<26x76xf32>
    %99 = arith.addf %96, %98 : vector<26x76xf32>
    %100 = vector.extract_strided_slice %99 {offsets = [0, 0], sizes = [13, 76], strides = [1, 1]} : vector<26x76xf32> to vector<13x76xf32>
    %c3_133 = arith.constant 3 : index
    %c0_134 = arith.constant 0 : index
    %101 = vector.load %arg18[%c3_133, %c0_134] : memref<38x76xf32, #tpu.memory_space<vmem>>, vector<13x76xf32>
    tpu.vector_store %arg18[%c3_133, %c0_134], %100 {strides = array<i32>} : memref<38x76xf32, #tpu.memory_space<vmem>>, vector<13x76xf32>,
    %102 = vector.extract_strided_slice %99 {offsets = [13, 0], sizes = [13, 76], strides = [1, 1]} : vector<26x76xf32> to vector<13x76xf32>
    %c22_135 = arith.constant 22 : index
    %c0_136 = arith.constant 0 : index
    %103 = vector.load %arg18[%c22_135, %c0_136] : memref<38x76xf32, #tpu.memory_space<vmem>>, vector<13x76xf32>
    tpu.vector_store %arg18[%c22_135, %c0_136], %102 {strides = array<i32>} : memref<38x76xf32, #tpu.memory_space<vmem>>, vector<13x76xf32>,
    %c0_137 = arith.constant 0 : index
    %c0_138 = arith.constant 0 : index
    %104 = vector.load %arg18[%c0_137, %c0_138] : memref<38x76xf32, #tpu.memory_space<vmem>>, vector<16x76xf32>
    %c0_139 = arith.constant 0 : index
    %c0_140 = arith.constant 0 : index
    %105 = vector.load %arg19[%c0_139, %c0_140] : memref<32x304xf32, #tpu.memory_space<vmem>>, vector<16x76xf32>
    tpu.vector_store %arg19[%c0_139, %c0_140], %104 {strides = array<i32>} : memref<32x304xf32, #tpu.memory_space<vmem>>, vector<16x76xf32>,
    %c1_141 = arith.constant 1 : index
    %c0_142 = arith.constant 0 : index
    %106 = vector.load %arg18[%c1_141, %c0_142] : memref<38x76xf32, #tpu.memory_space<vmem>>, vector<16x76xf32>
    %c0_143 = arith.constant 0 : index
    %c76 = arith.constant 76 : index
    %107 = vector.load %arg19[%c0_143, %c76] : memref<32x304xf32, #tpu.memory_space<vmem>>, vector<16x76xf32>
    tpu.vector_store %arg19[%c0_143, %c76], %106 {strides = array<i32>} : memref<32x304xf32, #tpu.memory_space<vmem>>, vector<16x76xf32>,
    %c2_144 = arith.constant 2 : index
    %c0_145 = arith.constant 0 : index
    %108 = vector.load %arg18[%c2_144, %c0_145] : memref<38x76xf32, #tpu.memory_space<vmem>>, vector<16x76xf32>
    %c0_146 = arith.constant 0 : index
    %c152 = arith.constant 152 : index
    %109 = vector.load %arg19[%c0_146, %c152] : memref<32x304xf32, #tpu.memory_space<vmem>>, vector<16x76xf32>
    tpu.vector_store %arg19[%c0_146, %c152], %108 {strides = array<i32>} : memref<32x304xf32, #tpu.memory_space<vmem>>, vector<16x76xf32>,
    %c3_147 = arith.constant 3 : index
    %c0_148 = arith.constant 0 : index
    %110 = vector.load %arg18[%c3_147, %c0_148] : memref<38x76xf32, #tpu.memory_space<vmem>>, vector<16x76xf32>
    %c0_149 = arith.constant 0 : index
    %c228 = arith.constant 228 : index
    %111 = vector.load %arg19[%c0_149, %c228] : memref<32x304xf32, #tpu.memory_space<vmem>>, vector<16x76xf32>
    tpu.vector_store %arg19[%c0_149, %c228], %110 {strides = array<i32>} : memref<32x304xf32, #tpu.memory_space<vmem>>, vector<16x76xf32>,
    %c19_150 = arith.constant 19 : index
    %c0_151 = arith.constant 0 : index
    %112 = vector.load %arg18[%c19_150, %c0_151] : memref<38x76xf32, #tpu.memory_space<vmem>>, vector<16x76xf32>
    %c16_152 = arith.constant 16 : index
    %c0_153 = arith.constant 0 : index
    %113 = vector.load %arg19[%c16_152, %c0_153] : memref<32x304xf32, #tpu.memory_space<vmem>>, vector<16x76xf32>
    tpu.vector_store %arg19[%c16_152, %c0_153], %112 {strides = array<i32>} : memref<32x304xf32, #tpu.memory_space<vmem>>, vector<16x76xf32>,
    %c20_154 = arith.constant 20 : index
    %c0_155 = arith.constant 0 : index
    %114 = vector.load %arg18[%c20_154, %c0_155] : memref<38x76xf32, #tpu.memory_space<vmem>>, vector<16x76xf32>
    %c16_156 = arith.constant 16 : index
    %c76_157 = arith.constant 76 : index
    %115 = vector.load %arg19[%c16_156, %c76_157] : memref<32x304xf32, #tpu.memory_space<vmem>>, vector<16x76xf32>
    tpu.vector_store %arg19[%c16_156, %c76_157], %114 {strides = array<i32>} : memref<32x304xf32, #tpu.memory_space<vmem>>, vector<16x76xf32>,
    %c21_158 = arith.constant 21 : index
    %c0_159 = arith.constant 0 : index
    %116 = vector.load %arg18[%c21_158, %c0_159] : memref<38x76xf32, #tpu.memory_space<vmem>>, vector<16x76xf32>
    %c16_160 = arith.constant 16 : index
    %c152_161 = arith.constant 152 : index
    %117 = vector.load %arg19[%c16_160, %c152_161] : memref<32x304xf32, #tpu.memory_space<vmem>>, vector<16x76xf32>
    tpu.vector_store %arg19[%c16_160, %c152_161], %116 {strides = array<i32>} : memref<32x304xf32, #tpu.memory_space<vmem>>, vector<16x76xf32>,
    %c22_162 = arith.constant 22 : index
    %c0_163 = arith.constant 0 : index
    %118 = vector.load %arg18[%c22_162, %c0_163] : memref<38x76xf32, #tpu.memory_space<vmem>>, vector<16x76xf32>
    %c16_164 = arith.constant 16 : index
    %c228_165 = arith.constant 228 : index
    %119 = vector.load %arg19[%c16_164, %c228_165] : memref<32x304xf32, #tpu.memory_space<vmem>>, vector<16x76xf32>
    tpu.vector_store %arg19[%c16_164, %c228_165], %118 {strides = array<i32>} : memref<32x304xf32, #tpu.memory_space<vmem>>, vector<16x76xf32>,
    %c0_166 = arith.constant 0 : index
    %c0_167 = arith.constant 0 : index
    %120 = vector.load %arg19[%c0_166, %c0_167] : memref<32x304xf32, #tpu.memory_space<vmem>>, vector<32x304xf32>
    %c0_168 = arith.constant 0 : index
    %c0_169 = arith.constant 0 : index
    %121 = vector.load %arg10[%c0_168, %c0_169] : memref<304x64xf32, #tpu.memory_space<vmem>>, vector<304x64xf32>
    %cst_170 = arith.constant dense<0.000000e+00> : vector<32x64xf32>
    %122 = tpu.matmul %120, %121, %cst_170 {dimension_numbers = #tpu.dot_dimension_numbers<[1], [0], [0], [1], [0, 0, 1, 1], [], []>, precision = #tpu.contract_precision<fp32>} : vector<32x304xf32>, vector<304x64xf32>, vector<32x64xf32> -> vector<32x64xf32>
    %c0_171 = arith.constant 0 : index
    %c0_172 = arith.constant 0 : index
    %123 = vector.load %arg11[%c0_171, %c0_172] : memref<1x64xf32, #tpu.memory_space<vmem>>, vector<1x64xf32>
    %124 = vector.broadcast %123 : vector<1x64xf32> to vector<32x64xf32>
    %125 = arith.addf %122, %124 : vector<32x64xf32>
    %126 = vector.extract_strided_slice %125 {offsets = [0, 0], sizes = [16, 64], strides = [1, 1]} : vector<32x64xf32> to vector<16x64xf32>
    %c0_173 = arith.constant 0 : index
    %c0_174 = arith.constant 0 : index
    %c0_175 = arith.constant 0 : index
    %127 = vector.load %arg12[%c0_173, %c0_174, %c0_175] : memref<2x16x64xf32, #tpu.memory_space<vmem>>, vector<1x16x64xf32>
    %128 = vector.shape_cast %127 : vector<1x16x64xf32> to vector<16x64xf32>
    %129 = vector.shape_cast %126 : vector<16x64xf32> to vector<1x16x64xf32>
    tpu.vector_store %arg12[%c0_173, %c0_174, %c0_175], %129 {strides = array<i32>} : memref<2x16x64xf32, #tpu.memory_space<vmem>>, vector<1x16x64xf32>,
    %130 = vector.extract_strided_slice %125 {offsets = [16, 0], sizes = [16, 64], strides = [1, 1]} : vector<32x64xf32> to vector<16x64xf32>
    %c1_176 = arith.constant 1 : index
    %c0_177 = arith.constant 0 : index
    %c0_178 = arith.constant 0 : index
    %131 = vector.load %arg12[%c1_176, %c0_177, %c0_178] : memref<2x16x64xf32, #tpu.memory_space<vmem>>, vector<1x16x64xf32>
    %132 = vector.shape_cast %131 : vector<1x16x64xf32> to vector<16x64xf32>
    %133 = vector.shape_cast %130 : vector<16x64xf32> to vector<1x16x64xf32>
    tpu.vector_store %arg12[%c1_176, %c0_177, %c0_178], %133 {strides = array<i32>} : memref<2x16x64xf32, #tpu.memory_space<vmem>>, vector<1x16x64xf32>,
    return
  }
  func.func @transform_0(%arg0: i32) -> (i32, i32) {
    %c0_i32 = arith.constant 0 : i32
    %c0_i32_0 = arith.constant 0 : i32
    return %arg0, %c0_i32 : i32, i32
  }
  func.func @transform_1(%arg0: i32) -> (i32, i32) {
    %c0_i32 = arith.constant 0 : i32
    %c0_i32_0 = arith.constant 0 : i32
    %c0_i32_1 = arith.constant 0 : i32
    return %c0_i32, %c0_i32_0 : i32, i32
  }
  func.func @transform_2(%arg0: i32) -> (i32, i32) {
    %c0_i32 = arith.constant 0 : i32
    %c0_i32_0 = arith.constant 0 : i32
    %c0_i32_1 = arith.constant 0 : i32
    return %c0_i32, %c0_i32_0 : i32, i32
  }
  func.func @transform_3(%arg0: i32) -> (i32, i32) {
    %c0_i32 = arith.constant 0 : i32
    %c0_i32_0 = arith.constant 0 : i32
    %c0_i32_1 = arith.constant 0 : i32
    return %c0_i32, %c0_i32_0 : i32, i32
  }
  func.func @transform_4(%arg0: i32) -> (i32, i32) {
    %c0_i32 = arith.constant 0 : i32
    %c0_i32_0 = arith.constant 0 : i32
    %c0_i32_1 = arith.constant 0 : i32
    return %c0_i32, %c0_i32_0 : i32, i32
  }
  func.func @transform_5(%arg0: i32) -> (i32, i32) {
    %c0_i32 = arith.constant 0 : i32
    %c0_i32_0 = arith.constant 0 : i32
    %c0_i32_1 = arith.constant 0 : i32
    return %c0_i32, %c0_i32_0 : i32, i32
  }
  func.func @transform_6(%arg0: i32) -> (i32, i32) {
    %c0_i32 = arith.constant 0 : i32
    %c0_i32_0 = arith.constant 0 : i32
    %c0_i32_1 = arith.constant 0 : i32
    return %c0_i32, %c0_i32_0 : i32, i32
  }
  func.func @transform_7(%arg0: i32) -> (i32, i32) {
    %c0_i32 = arith.constant 0 : i32
    %c0_i32_0 = arith.constant 0 : i32
    %c0_i32_1 = arith.constant 0 : i32
    return %c0_i32, %c0_i32_0 : i32, i32
  }
  func.func @transform_8(%arg0: i32) -> (i32, i32) {
    %c0_i32 = arith.constant 0 : i32
    %c0_i32_0 = arith.constant 0 : i32
    %c0_i32_1 = arith.constant 0 : i32
    return %c0_i32, %c0_i32_0 : i32, i32
  }
  func.func @transform_9(%arg0: i32) -> (i32, i32) {
    %c0_i32 = arith.constant 0 : i32
    %c0_i32_0 = arith.constant 0 : i32
    %c0_i32_1 = arith.constant 0 : i32
    return %c0_i32, %c0_i32_0 : i32, i32
  }
  func.func @transform_10(%arg0: i32) -> (i32, i32) {
    %c0_i32 = arith.constant 0 : i32
    %c0_i32_0 = arith.constant 0 : i32
    %c0_i32_1 = arith.constant 0 : i32
    return %c0_i32, %c0_i32_0 : i32, i32
  }
  func.func @transform_11(%arg0: i32) -> (i32, i32, i32) {
    %c0_i32 = arith.constant 0 : i32
    %c0_i32_0 = arith.constant 0 : i32
    %c0_i32_1 = arith.constant 0 : i32
    return %arg0, %c0_i32, %c0_i32_0 : i32, i32, i32
  }
}

</mosaic_0001>

<llo_original>
// kernel: tpu_custom_call.1
$region0: #{tpu_custom_call.1}
  #allocation0 [shape = 'u32[]', space=smem, size = 0x4, offset = 0x4, fixed_abs, tag = 'smem constant byte address 0x4 - core index']
  #allocation1 [shape = 'u32[144,128]{1,0:T(1,128)}', space=vmem, size = 0x12000, scoped, tag = 'internal scratch']
  #allocation2 [shape = 'f32[2,364]{1,0:T(2,128)}', space=vmem, size = 0xc00, scoped, tag = 'scratch operand']
  #allocation3 [shape = 'f32[26,52]{1,0:T(8,128)}', space=vmem, size = 0x4000, scoped, tag = 'scratch operand']
  #allocation4 [shape = 'f32[20,208]{1,0:T(8,128)}', space=vmem, size = 0x6000, scoped, tag = 'scratch operand']
  #allocation5 [shape = 'f32[32,64]{1,0:T(8,128)}', space=vmem, size = 0x4000, scoped, tag = 'scratch operand']
  #allocation6 [shape = 'f32[26,256]{1,0:T(8,128)}', space=vmem, size = 0x8000, scoped, tag = 'scratch operand']
  #allocation7 [shape = 'f32[38,76]{1,0:T(8,128)}', space=vmem, size = 0x5000, scoped, tag = 'scratch operand']
  #allocation8 [shape = 'f32[32,304]{1,0:T(8,128)}', space=vmem, size = 0xc000, scoped, tag = 'scratch operand']
  %s0 = inlined_call_operand.vmem [shape: f32[2,8], index: 0, kind: input, shape index: {}]
  %s1 = inlined_call_operand.vmem [shape: f32[8,50], index: 1, kind: input, shape index: {}]
  %s2 = inlined_call_operand.vmem [shape: f32[1,50], index: 2, kind: input, shape index: {}]
  %s3 = inlined_call_operand.vmem [shape: f32[50,364], index: 3, kind: input, shape index: {}]
  %s4 = inlined_call_operand.vmem [shape: f32[1,364], index: 4, kind: input, shape index: {}]
  %s5 = inlined_call_operand.vmem [shape: f32[208,64], index: 5, kind: input, shape index: {}]
  %s6 = inlined_call_operand.vmem [shape: f32[1,64], index: 6, kind: input, shape index: {}]
  %s7 = inlined_call_operand.vmem [shape: f32[256,76], index: 7, kind: input, shape index: {}]
  %s8 = inlined_call_operand.vmem [shape: f32[1,76], index: 8, kind: input, shape index: {}]
  %s9 = inlined_call_operand.vmem [shape: f32[304,64], index: 9, kind: input, shape index: {}]
  %s10 = inlined_call_operand.vmem [shape: f32[1,64], index: 10, kind: input, shape index: {}]
  %s11 = inlined_call_operand.hbm [shape: f32[2,16,64], index: 11, kind: output, shape index: {}]
  %s12 = sld [smem:[#allocation0]]
  $region54: #{tpu_custom_call.1} parent=0
    _
  %s14 = ssub.s32 1, %s12
  %s15 = scalar_select 0, %s14, %s12
  $region1: #{tpu_custom_call.1} parent=0
    #allocation9 [shape = 'u8[16384]{0}', space=vmem, size = 0x4000, scoped, tag = 'output window, operand 0, single buffered']
    #allocation10 [shape = 's32[1]{0}', space=sflag, size = 0x4, scoped, tag = 'scoped memory for tpu_custom_call.1']
    %16 = vsyncpa [#allocation10], 0
    // Predicated region
    $region2: #{tpu_custom_call.1} parent=1 // pred_check
      _
    $region3: #{tpu_custom_call.1} parent=1 // pred_check_branch
      %18 = sbr.rel (0) target = $region5
    $region4: #{tpu_custom_call.1} parent=1 // pred_region
      _
    $region5: #{tpu_custom_call.1} parent=1 // pred_fallthru
      _
    // Predicated region
    $region6: #{tpu_custom_call.1} parent=1 // pred_check
      _
    $region7: #{tpu_custom_call.1} parent=1 // pred_check_branch
      %20 = sbr.rel (0) target = $region9
    $region8: #{tpu_custom_call.1} parent=1 // pred_region
      _
    $region9: #{tpu_custom_call.1} parent=1 // pred_fallthru
      _
    // Predicated region
    $region10: #{tpu_custom_call.1} parent=1 // pred_check
      _
    $region11: #{tpu_custom_call.1} parent=1 // pred_check_branch
      %22 = sbr.rel (0) target = $region13
    $region12: #{tpu_custom_call.1} parent=1 // pred_region
      _
    $region13: #{tpu_custom_call.1} parent=1 // pred_fallthru
      _
    // Predicated region
    $region14: #{tpu_custom_call.1} parent=1 // pred_check
      _
    $region15: #{tpu_custom_call.1} parent=1 // pred_check_branch
      %24 = sbr.rel (0) target = $region17
    $region16: #{tpu_custom_call.1} parent=1 // pred_region
      _
    $region17: #{tpu_custom_call.1} parent=1 // pred_fallthru
      _
    // Predicated region
    $region18: #{tpu_custom_call.1} parent=1 // pred_check
      _
    $region19: #{tpu_custom_call.1} parent=1 // pred_check_branch
      %26 = sbr.rel (0) target = $region21
    $region20: #{tpu_custom_call.1} parent=1 // pred_region
      _
    $region21: #{tpu_custom_call.1} parent=1 // pred_fallthru
      _
    // Predicated region
    $region22: #{tpu_custom_call.1} parent=1 // pred_check
      _
    $region23: #{tpu_custom_call.1} parent=1 // pred_check_branch
      %28 = sbr.rel (0) target = $region25
    $region24: #{tpu_custom_call.1} parent=1 // pred_region
      _
    $region25: #{tpu_custom_call.1} parent=1 // pred_fallthru
      _
    // Predicated region
    $region26: #{tpu_custom_call.1} parent=1 // pred_check
      _
    $region27: #{tpu_custom_call.1} parent=1 // pred_check_branch
      %30 = sbr.rel (0) target = $region29
    $region28: #{tpu_custom_call.1} parent=1 // pred_region
      _
    $region29: #{tpu_custom_call.1} parent=1 // pred_fallthru
      _
    // Predicated region
    $region30: #{tpu_custom_call.1} parent=1 // pred_check
      _
    $region31: #{tpu_custom_call.1} parent=1 // pred_check_branch
      %32 = sbr.rel (0) target = $region33
    $region32: #{tpu_custom_call.1} parent=1 // pred_region
      _
    $region33: #{tpu_custom_call.1} parent=1 // pred_fallthru
      _
    // Predicated region
    $region34: #{tpu_custom_call.1} parent=1 // pred_check
      _
    $region35: #{tpu_custom_call.1} parent=1 // pred_check_branch
      %34 = sbr.rel (0) target = $region37
    $region36: #{tpu_custom_call.1} parent=1 // pred_region
      _
    $region37: #{tpu_custom_call.1} parent=1 // pred_fallthru
      _
    // Predicated region
    $region38: #{tpu_custom_call.1} parent=1 // pred_check
      _
    $region39: #{tpu_custom_call.1} parent=1 // pred_check_branch
      %36 = sbr.rel (0) target = $region41
    $region40: #{tpu_custom_call.1} parent=1 // pred_region
      _
    $region41: #{tpu_custom_call.1} parent=1 // pred_fallthru
      _
    // Predicated region
    $region42: #{tpu_custom_call.1} parent=1 // pred_check
      _
    $region43: #{tpu_custom_call.1} parent=1 // pred_check_branch
      %38 = sbr.rel (0) target = $region45
    $region44: #{tpu_custom_call.1} parent=1 // pred_region
      _
    $region45: #{tpu_custom_call.1} parent=1 // pred_fallthru
      _
    %v39 = vld [vmem:[%s0] sm:$0x3]
    %v40 = vld [vmem:[%s1] sm:$0xff]
    %v41 = vld [vmem:[%s2] sm:$0x1]
    %v43 = vlaneseq
    %v44 = vshrl.u32 %v43, 7
    %v45 = vsub.s32 0, %v44
    %v46 = vrot.slane %v41, %v45
    %vm48 = vcmask 64512
    %v50 = vsel %vm48, %v39, 0
    %52 = vmatprep.subr.mxu0 0.0
    %v53 = vand.u32 %v40, 4294901760
    %54 = vmatpush1.msra.mxu0 %v53
    %55 = vmatprep.subr.mxu0 0.0
    %56 = vmatpush1.msra.mxu0 0.0
    %57 = vmatprep.subr.mxu0 0.0
    %58 = vmatpush1.msra.mxu0 0.0
    %59 = vmatprep.subr.mxu0 0.0
    %60 = vmatpush1.msra.mxu0 0.0
    %61 = vmatprep.subr.mxu0 0.0
    %62 = vmatpush1.msra.mxu0 0.0
    %63 = vmatprep.subr.mxu0 0.0
    %64 = vmatpush1.msra.mxu0 0.0
    %65 = vmatprep.subr.mxu0 0.0
    %66 = vmatpush1.msra.mxu0 0.0
    %67 = vmatprep.subr.mxu0 0.0
    %68 = vmatpush1.msra.mxu0 0.0
    %69 = vmatprep.subr.mxu0 0.0
    %70 = vmatpush1.msra.mxu0 0.0
    %71 = vmatprep.subr.mxu0 0.0
    %72 = vmatpush1.msra.mxu0 0.0
    %73 = vmatprep.subr.mxu0 0.0
    %74 = vmatpush1.msra.mxu0 0.0
    %75 = vmatprep.subr.mxu0 0.0
    %76 = vmatpush1.msra.mxu0 0.0
    %77 = vmatprep.subr.mxu0 0.0
    %78 = vmatpush1.msra.mxu0 0.0
    %79 = vmatprep.subr.mxu0 0.0
    %80 = vmatpush1.msra.mxu0 0.0
    %81 = vmatprep.subr.mxu0 0.0
    %82 = vmatpush1.msra.mxu0 0.0
    %83 = vmatprep.subr.mxu0 0.0
    %84 = vmatpush1.msra.mxu0 0.0
    %85 = vmatprep.subr.mxu0 0.0
    %86 = vmatpush1.msra.mxu0 0.0
    %87 = vmatprep.subr.mxu0 0.0
    %88 = vmatpush1.msra.mxu0 0.0
    %89 = vmatprep.subr.mxu0 0.0
    %90 = vmatpush1.msra.mxu0 0.0
    %91 = vmatprep.subr.mxu0 0.0
    %92 = vmatpush1.msra.mxu0 0.0
    %93 = vmatprep.subr.mxu0 0.0
    %94 = vmatpush1.msra.mxu0 0.0
    %95 = vmatprep.subr.mxu0 0.0
    %96 = vmatpush1.msra.mxu0 0.0
    %97 = vmatprep.subr.mxu0 0.0
    %98 = vmatpush1.msra.mxu0 0.0
    %99 = vmatprep.subr.mxu0 0.0
    %100 = vmatpush1.msra.mxu0 0.0
    %101 = vmatprep.subr.mxu0 0.0
    %102 = vmatpush1.msra.mxu0 0.0
    %103 = vmatprep.subr.mxu0 0.0
    %104 = vmatpush1.msra.mxu0 0.0
    %105 = vmatprep.subr.mxu0 0.0
    %106 = vmatpush1.msra.mxu0 0.0
    %107 = vmatprep.subr.mxu0 0.0
    %108 = vmatpush1.msra.mxu0 0.0
    %109 = vmatprep.subr.mxu0 0.0
    %110 = vmatpush1.msra.mxu0 0.0
    %111 = vmatprep.subr.mxu0 0.0
    %112 = vmatpush1.msra.mxu0 0.0
    %113 = vmatprep.subr.mxu0 0.0
    %114 = vmatpush1.msra.mxu0 0.0
    %115 = vmatprep.subr.mxu0 0.0
    %116 = vmatpush1.msra.mxu0 0.0
    %117 = vmatprep.mubr.f32.mxu0 0.0
    %v118 = vand.u32 %v50, 4294901760
    %v119 = vsub.f32 %v50, %v118
    %v120 = vand.u32 %v119, 4294901760
    %v121 = vsub.f32 %v119, %v120
    %v122 = vand.u32 %v121, 4294901760
    %123 = vmatmul.mubr.f32.gmra.mrb[0].mxu0 %v122
    %v124 = vpop.f32.mrb[0].mxu0
    %v125 = vadd.f32 %v46, %v124
    %v126 = vpop.f32.mrb[0].mxu0
    %127 = vdwg.mxu0
    %128 = vmatprep.subr.mxu0 0.0
    %v129 = vand.u32 %v40, 4294901760
    %v130 = vsub.f32 %v40, %v129
    %v131 = vand.u32 %v130, 4294901760
    %v132 = vsub.f32 %v130, %v131
    %v133 = vand.u32 %v132, 4294901760
    %134 = vmatpush1.msra.mxu0 %v133
    %135 = vmatprep.subr.mxu0 0.0
    %136 = vmatpush1.msra.mxu0 0.0
    %137 = vmatprep.subr.mxu0 0.0
    %138 = vmatpush1.msra.mxu0 0.0
    %139 = vmatprep.subr.mxu0 0.0
    %140 = vmatpush1.msra.mxu0 0.0
    %141 = vmatprep.subr.mxu0 0.0
    %142 = vmatpush1.msra.mxu0 0.0
    %143 = vmatprep.subr.mxu0 0.0
    %144 = vmatpush1.msra.mxu0 0.0
    %145 = vmatprep.subr.mxu0 0.0
    %146 = vmatpush1.msra.mxu0 0.0
    %147 = vmatprep.subr.mxu0 0.0
    %148 = vmatpush1.msra.mxu0 0.0
    %149 = vmatprep.subr.mxu0 0.0
    %150 = vmatpush1.msra.mxu0 0.0
    %151 = vmatprep.subr.mxu0 0.0
    %152 = vmatpush1.msra.mxu0 0.0
    %153 = vmatprep.subr.mxu0 0.0
    %154 = vmatpush1.msra.mxu0 0.0
    %155 = vmatprep.subr.mxu0 0.0
    %156 = vmatpush1.msra.mxu0 0.0
    %157 = vmatprep.subr.mxu0 0.0
    %158 = vmatpush1.msra.mxu0 0.0
    %159 = vmatprep.subr.mxu0 0.0
    %160 = vmatpush1.msra.mxu0 0.0
    %161 = vmatprep.subr.mxu0 0.0
    %162 = vmatpush1.msra.mxu0 0.0
    %163 = vmatprep.subr.mxu0 0.0
    %164 = vmatpush1.msra.mxu0 0.0
    %165 = vmatprep.subr.mxu0 0.0
    %166 = vmatpush1.msra.mxu0 0.0
    %167 = vmatprep.subr.mxu0 0.0
    %168 = vmatpush1.msra.mxu0 0.0
    %169 = vmatprep.subr.mxu0 0.0
    %170 = vmatpush1.msra.mxu0 0.0
    %171 = vmatprep.subr.mxu0 0.0
    %172 = vmatpush1.msra.mxu0 0.0
    %173 = vmatprep.subr.mxu0 0.0
    %174 = vmatpush1.msra.mxu0 0.0
    %175 = vmatprep.subr.mxu0 0.0
    %176 = vmatpush1.msra.mxu0 0.0
    %177 = vmatprep.subr.mxu0 0.0
    %178 = vmatpush1.msra.mxu0 0.0
    %179 = vmatprep.subr.mxu0 0.0
    %180 = vmatpush1.msra.mxu0 0.0
    %181 = vmatprep.subr.mxu0 0.0
    %182 = vmatpush1.msra.mxu0 0.0
    %183 = vmatprep.subr.mxu0 0.0
    %184 = vmatpush1.msra.mxu0 0.0
    %185 = vmatprep.subr.mxu0 0.0
    %186 = vmatpush1.msra.mxu0 0.0
    %187 = vmatprep.subr.mxu0 0.0
    %188 = vmatpush1.msra.mxu0 0.0
    %189 = vmatprep.subr.mxu0 0.0
    %190 = vmatpush1.msra.mxu0 0.0
    %191 = vmatprep.subr.mxu0 0.0
    %192 = vmatpush1.msra.mxu0 0.0
    %193 = vmatprep.subr.mxu0 0.0
    %194 = vmatpush1.msra.mxu0 0.0
    %195 = vmatprep.subr.mxu0 0.0
    %196 = vmatpush1.msra.mxu0 0.0
    %197 = vmatprep.mubr.f32.mxu0 0.0
    %v198 = vand.u32 %v50, 4294901760
    %199 = vmatmul.mubr.f32.gmra.mrb[0].mxu0 %v198
    %v200 = vpop.f32.mrb[0].mxu0
    %v201 = vadd.f32 %v125, %v200
    %v202 = vpop.f32.mrb[0].mxu0
    %203 = vdwg.mxu0
    %204 = vmatprep.subr.mxu0 0.0
    %v205 = vand.u32 %v40, 4294901760
    %v206 = vsub.f32 %v40, %v205
    %207 = vmatpush1.msra.mxu0 %v206
    %208 = vmatprep.subr.mxu0 0.0
    %209 = vmatpush1.msra.mxu0 0.0
    %210 = vmatprep.subr.mxu0 0.0
    %211 = vmatpush1.msra.mxu0 0.0
    %212 = vmatprep.subr.mxu0 0.0
    %213 = vmatpush1.msra.mxu0 0.0
    %214 = vmatprep.subr.mxu0 0.0
    %215 = vmatpush1.msra.mxu0 0.0
    %216 = vmatprep.subr.mxu0 0.0
    %217 = vmatpush1.msra.mxu0 0.0
    %218 = vmatprep.subr.mxu0 0.0
    %219 = vmatpush1.msra.mxu0 0.0
    %220 = vmatprep.subr.mxu0 0.0
    %221 = vmatpush1.msra.mxu0 0.0
    %222 = vmatprep.subr.mxu0 0.0
    %223 = vmatpush1.msra.mxu0 0.0
    %224 = vmatprep.subr.mxu0 0.0
    %225 = vmatpush1.msra.mxu0 0.0
    %226 = vmatprep.subr.mxu0 0.0
    %227 = vmatpush1.msra.mxu0 0.0
    %228 = vmatprep.subr.mxu0 0.0
    %229 = vmatpush1.msra.mxu0 0.0
    %230 = vmatprep.subr.mxu0 0.0
    %231 = vmatpush1.msra.mxu0 0.0
    %232 = vmatprep.subr.mxu0 0.0
    %233 = vmatpush1.msra.mxu0 0.0
    %234 = vmatprep.subr.mxu0 0.0
    %235 = vmatpush1.msra.mxu0 0.0
    %236 = vmatprep.subr.mxu0 0.0
    %237 = vmatpush1.msra.mxu0 0.0
    %238 = vmatprep.subr.mxu0 0.0
    %239 = vmatpush1.msra.mxu0 0.0
    %240 = vmatprep.subr.mxu0 0.0
    %241 = vmatpush1.msra.mxu0 0.0
    %242 = vmatprep.subr.mxu0 0.0
    %243 = vmatpush1.msra.mxu0 0.0
    %244 = vmatprep.subr.mxu0 0.0
    %245 = vmatpush1.msra.mxu0 0.0
    %246 = vmatprep.subr.mxu0 0.0
    %247 = vmatpush1.msra.mxu0 0.0
    %248 = vmatprep.subr.mxu0 0.0
    %249 = vmatpush1.msra.mxu0 0.0
    %250 = vmatprep.subr.mxu0 0.0
    %251 = vmatpush1.msra.mxu0 0.0
    %252 = vmatprep.subr.mxu0 0.0
    %253 = vmatpush1.msra.mxu0 0.0
    %254 = vmatprep.subr.mxu0 0.0
    %255 = vmatpush1.msra.mxu0 0.0
    %256 = vmatprep.subr.mxu0 0.0
    %257 = vmatpush1.msra.mxu0 0.0
    %258 = vmatprep.subr.mxu0 0.0
    %259 = vmatpush1.msra.mxu0 0.0
    %260 = vmatprep.subr.mxu0 0.0
    %261 = vmatpush1.msra.mxu0 0.0
    %262 = vmatprep.subr.mxu0 0.0
    %263 = vmatpush1.msra.mxu0 0.0
    %264 = vmatprep.subr.mxu0 0.0
    %265 = vmatpush1.msra.mxu0 0.0
    %266 = vmatprep.subr.mxu0 0.0
    %267 = vmatpush1.msra.mxu0 0.0
    %268 = vmatprep.subr.mxu0 0.0
    %269 = vmatpush1.msra.mxu0 0.0
    %270 = vmatprep.mubr.f32.mxu0 0.0
    %v271 = vand.u32 %v50, 4294901760
    %v272 = vsub.f32 %v50, %v271
    %273 = vmatmul.mubr.f32.gmra.mrb[0].mxu0 %v272
    %v274 = vpop.f32.mrb[0].mxu0
    %v275 = vadd.f32 %v201, %v274
    %v276 = vpop.f32.mrb[0].mxu0
    %277 = vdwg.mxu0
    %278 = vmatprep.subr.mxu0 0.0
    %v279 = vand.u32 %v40, 4294901760
    %280 = vmatpush1.msra.mxu0 %v279
    %281 = vmatprep.subr.mxu0 0.0
    %282 = vmatpush1.msra.mxu0 0.0
    %283 = vmatprep.subr.mxu0 0.0
    %284 = vmatpush1.msra.mxu0 0.0
    %285 = vmatprep.subr.mxu0 0.0
    %286 = vmatpush1.msra.mxu0 0.0
    %287 = vmatprep.subr.mxu0 0.0
    %288 = vmatpush1.msra.mxu0 0.0
    %289 = vmatprep.subr.mxu0 0.0
    %290 = vmatpush1.msra.mxu0 0.0
    %291 = vmatprep.subr.mxu0 0.0
    %292 = vmatpush1.msra.mxu0 0.0
    %293 = vmatprep.subr.mxu0 0.0
    %294 = vmatpush1.msra.mxu0 0.0
    %295 = vmatprep.subr.mxu0 0.0
    %296 = vmatpush1.msra.mxu0 0.0
    %297 = vmatprep.subr.mxu0 0.0
    %298 = vmatpush1.msra.mxu0 0.0
    %299 = vmatprep.subr.mxu0 0.0
    %300 = vmatpush1.msra.mxu0 0.0
    %301 = vmatprep.subr.mxu0 0.0
    %302 = vmatpush1.msra.mxu0 0.0
    %303 = vmatprep.subr.mxu0 0.0
    %304 = vmatpush1.msra.mxu0 0.0
    %305 = vmatprep.subr.mxu0 0.0
    %306 = vmatpush1.msra.mxu0 0.0
    %307 = vmatprep.subr.mxu0 0.0
    %308 = vmatpush1.msra.mxu0 0.0
    %309 = vmatprep.subr.mxu0 0.0
    %310 = vmatpush1.msra.mxu0 0.0
    %311 = vmatprep.subr.mxu0 0.0
    %312 = vmatpush1.msra.mxu0 0.0
    %313 = vmatprep.subr.mxu0 0.0
    %314 = vmatpush1.msra.mxu0 0.0
    %315 = vmatprep.subr.mxu0 0.0
    %316 = vmatpush1.msra.mxu0 0.0
    %317 = vmatprep.subr.mxu0 0.0
    %318 = vmatpush1.msra.mxu0 0.0
    %319 = vmatprep.subr.mxu0 0.0
    %320 = vmatpush1.msra.mxu0 0.0
    %321 = vmatprep.subr.mxu0 0.0
    %322 = vmatpush1.msra.mxu0 0.0
    %323 = vmatprep.subr.mxu0 0.0
    %324 = vmatpush1.msra.mxu0 0.0
    %325 = vmatprep.subr.mxu0 0.0
    %326 = vmatpush1.msra.mxu0 0.0
    %327 = vmatprep.subr.mxu0 0.0
    %328 = vmatpush1.msra.mxu0 0.0
    %329 = vmatprep.subr.mxu0 0.0
    %330 = vmatpush1.msra.mxu0 0.0
    %331 = vmatprep.subr.mxu0 0.0
    %332 = vmatpush1.msra.mxu0 0.0
    %333 = vmatprep.subr.mxu0 0.0
    %334 = vmatpush1.msra.mxu0 0.0
    %335 = vmatprep.subr.mxu0 0.0
    %336 = vmatpush1.msra.mxu0 0.0
    %337 = vmatprep.subr.mxu0 0.0
    %338 = vmatpush1.msra.mxu0 0.0
    %339 = vmatprep.subr.mxu0 0.0
    %340 = vmatpush1.msra.mxu0 0.0
    %341 = vmatprep.subr.mxu0 0.0
    %342 = vmatpush1.msra.mxu0 0.0
    %343 = vmatprep.mubr.f32.mxu0 0.0
    %v344 = vand.u32 %v50, 4294901760
    %v345 = vsub.f32 %v50, %v344
    %v346 = vand.u32 %v345, 4294901760
    %347 = vmatmul.mubr.f32.gmra.mrb[0].mxu0 %v346
    %v348 = vpop.f32.mrb[0].mxu0
    %v349 = vadd.f32 %v275, %v348
    %v350 = vpop.f32.mrb[0].mxu0
    %351 = vdwg.mxu0
    %352 = vmatprep.subr.mxu0 0.0
    %v353 = vand.u32 %v40, 4294901760
    %v354 = vsub.f32 %v40, %v353
    %v355 = vand.u32 %v354, 4294901760
    %356 = vmatpush1.msra.mxu0 %v355
    %357 = vmatprep.subr.mxu0 0.0
    %358 = vmatpush1.msra.mxu0 0.0
    %359 = vmatprep.subr.mxu0 0.0
    %360 = vmatpush1.msra.mxu0 0.0
    %361 = vmatprep.subr.mxu0 0.0
    %362 = vmatpush1.msra.mxu0 0.0
    %363 = vmatprep.subr.mxu0 0.0
    %364 = vmatpush1.msra.mxu0 0.0
    %365 = vmatprep.subr.mxu0 0.0
    %366 = vmatpush1.msra.mxu0 0.0
    %367 = vmatprep.subr.mxu0 0.0
    %368 = vmatpush1.msra.mxu0 0.0
    %369 = vmatprep.subr.mxu0 0.0
    %370 = vmatpush1.msra.mxu0 0.0
    %371 = vmatprep.subr.mxu0 0.0
    %372 = vmatpush1.msra.mxu0 0.0
    %373 = vmatprep.subr.mxu0 0.0
    %374 = vmatpush1.msra.mxu0 0.0
    %375 = vmatprep.subr.mxu0 0.0
    %376 = vmatpush1.msra.mxu0 0.0
    %377 = vmatprep.subr.mxu0 0.0
    %378 = vmatpush1.msra.mxu0 0.0
    %379 = vmatprep.subr.mxu0 0.0
    %380 = vmatpush1.msra.mxu0 0.0
    %381 = vmatprep.subr.mxu0 0.0
    %382 = vmatpush1.msra.mxu0 0.0
    %383 = vmatprep.subr.mxu0 0.0
    %384 = vmatpush1.msra.mxu0 0.0
    %385 = vmatprep.subr.mxu0 0.0
    %386 = vmatpush1.msra.mxu0 0.0
    %387 = vmatprep.subr.mxu0 0.0
    %388 = vmatpush1.msra.mxu0 0.0
    %389 = vmatprep.subr.mxu0 0.0
    %390 = vmatpush1.msra.mxu0 0.0
    %391 = vmatprep.subr.mxu0 0.0
    %392 = vmatpush1.msra.mxu0 0.0
    %393 = vmatprep.subr.mxu0 0.0
    %394 = vmatpush1.msra.mxu0 0.0
    %395 = vmatprep.subr.mxu0 0.0
    %396 = vmatpush1.msra.mxu0 0.0
    %397 = vmatprep.subr.mxu0 0.0
    %398 = vmatpush1.msra.mxu0 0.0
    %399 = vmatprep.subr.mxu0 0.0
    %400 = vmatpush1.msra.mxu0 0.0
    %401 = vmatprep.subr.mxu0 0.0
    %402 = vmatpush1.msra.mxu0 0.0
    %403 = vmatprep.subr.mxu0 0.0
    %404 = vmatpush1.msra.mxu0 0.0
    %405 = vmatprep.subr.mxu0 0.0
    %406 = vmatpush1.msra.mxu0 0.0
    %407 = vmatprep.subr.mxu0 0.0
    %408 = vmatpush1.msra.mxu0 0.0
    %409 = vmatprep.subr.mxu0 0.0
    %410 = vmatpush1.msra.mxu0 0.0
    %411 = vmatprep.subr.mxu0 0.0
    %412 = vmatpush1.msra.mxu0 0.0
    %413 = vmatprep.subr.mxu0 0.0
    %414 = vmatpush1.msra.mxu0 0.0
    %415 = vmatprep.subr.mxu0 0.0
    %416 = vmatpush1.msra.mxu0 0.0
    %417 = vmatprep.subr.mxu0 0.0
    %418 = vmatpush1.msra.mxu0 0.0
    %419 = vmatprep.mubr.f32.mxu0 0.0
    %v420 = vand.u32 %v50, 4294901760
    %421 = vmatmul.mubr.f32.gmra.mrb[0].mxu0 %v420
    %v422 = vpop.f32.mrb[0].mxu0
    %v423 = vadd.f32 %v349, %v422
    %v424 = vpop.f32.mrb[0].mxu0
    %425 = vdwg.mxu0
    %426 = vmatprep.subr.mxu0 0.0
    %v427 = vand.u32 %v40, 4294901760
    %428 = vmatpush1.msra.mxu0 %v427
    %429 = vmatprep.subr.mxu0 0.0
    %430 = vmatpush1.msra.mxu0 0.0
    %431 = vmatprep.subr.mxu0 0.0
    %432 = vmatpush1.msra.mxu0 0.0
    %433 = vmatprep.subr.mxu0 0.0
    %434 = vmatpush1.msra.mxu0 0.0
    %435 = vmatprep.subr.mxu0 0.0
    %436 = vmatpush1.msra.mxu0 0.0
    %437 = vmatprep.subr.mxu0 0.0
    %438 = vmatpush1.msra.mxu0 0.0
    %439 = vmatprep.subr.mxu0 0.0
    %440 = vmatpush1.msra.mxu0 0.0
    %441 = vmatprep.subr.mxu0 0.0
    %442 = vmatpush1.msra.mxu0 0.0
    %443 = vmatprep.subr.mxu0 0.0
    %444 = vmatpush1.msra.mxu0 0.0
    %445 = vmatprep.subr.mxu0 0.0
    %446 = vmatpush1.msra.mxu0 0.0
    %447 = vmatprep.subr.mxu0 0.0
    %448 = vmatpush1.msra.mxu0 0.0
    %449 = vmatprep.subr.mxu0 0.0
    %450 = vmatpush1.msra.mxu0 0.0
    %451 = vmatprep.subr.mxu0 0.0
    %452 = vmatpush1.msra.mxu0 0.0
    %453 = vmatprep.subr.mxu0 0.0
    %454 = vmatpush1.msra.mxu0 0.0
    %455 = vmatprep.subr.mxu0 0.0
    %456 = vmatpush1.msra.mxu0 0.0
    %457 = vmatprep.subr.mxu0 0.0
    %458 = vmatpush1.msra.mxu0 0.0
    %459 = vmatprep.subr.mxu0 0.0
    %460 = vmatpush1.msra.mxu0 0.0
    %461 = vmatprep.subr.mxu0 0.0
    %462 = vmatpush1.msra.mxu0 0.0
    %463 = vmatprep.subr.mxu0 0.0
    %464 = vmatpush1.msra.mxu0 0.0
    %465 = vmatprep.subr.mxu0 0.0
    %466 = vmatpush1.msra.mxu0 0.0
    %467 = vmatprep.subr.mxu0 0.0
    %468 = vmatpush1.msra.mxu0 0.0
    %469 = vmatprep.subr.mxu0 0.0
    %470 = vmatpush1.msra.mxu0 0.0
    %471 = vmatprep.subr.mxu0 0.0
    %472 = vmatpush1.msra.mxu0 0.0
    %473 = vmatprep.subr.mxu0 0.0
    %474 = vmatpush1.msra.mxu0 0.0
    %475 = vmatprep.subr.mxu0 0.0
    %476 = vmatpush1.msra.mxu0 0.0
    %477 = vmatprep.subr.mxu0 0.0
    %478 = vmatpush1.msra.mxu0 0.0
    %479 = vmatprep.subr.mxu0 0.0
    %480 = vmatpush1.msra.mxu0 0.0
    %481 = vmatprep.subr.mxu0 0.0
    %482 = vmatpush1.msra.mxu0 0.0
    %483 = vmatprep.subr.mxu0 0.0
    %484 = vmatpush1.msra.mxu0 0.0
    %485 = vmatprep.subr.mxu0 0.0
    %486 = vmatpush1.msra.mxu0 0.0
    %487 = vmatprep.subr.mxu0 0.0
    %488 = vmatpush1.msra.mxu0 0.0
    %489 = vmatprep.subr.mxu0 0.0
    %490 = vmatpush1.msra.mxu0 0.0
    %491 = vmatprep.mubr.f32.mxu0 0.0
    %v492 = vand.u32 %v50, 4294901760
    %493 = vmatmul.mubr.f32.gmra.mrb[0].mxu0 %v492
    %v494 = vpop.f32.mrb[0].mxu0
    %v495 = vadd.f32 %v423, %v494
    %v496 = vpop.f32.mrb[0].mxu0
    %497 = vdwg.mxu0
    %v498 = vmax.f32 %v495, 0.0
    %v499 = vld [vmem:[%s3] sm:$0xff]
    %v500 = vld [vmem:[%s3 + $0x8] sm:$0xff]
    %v501 = vld [vmem:[%s3 + $0x10] sm:$0xff]
    %v502 = vld [vmem:[%s3 + $0x18] sm:$0xff]
    %v503 = vld [vmem:[%s3 + $0x20] sm:$0xff]
    %v504 = vld [vmem:[%s3 + $0x28] sm:$0xff]
    %v505 = vld [vmem:[%s3 + $0x30] sm:$0xff]
    %v506 = vld [vmem:[%s3 + $0x38] sm:$0xff]
    %v507 = vld [vmem:[%s3 + $0x40] sm:$0xff]
    %v508 = vld [vmem:[%s3 + $0x48] sm:$0xff]
    %v509 = vld [vmem:[%s3 + $0x50] sm:$0xff]
    %v510 = vld [vmem:[%s3 + $0x58] sm:$0xff]
    %v511 = vld [vmem:[%s3 + $0x60] sm:$0xff]
    %v512 = vld [vmem:[%s3 + $0x68] sm:$0xff]
    %v513 = vld [vmem:[%s3 + $0x70] sm:$0xff]
    %v514 = vld [vmem:[%s3 + $0x78] sm:$0xff]
    %v515 = vld [vmem:[%s3 + $0x80] sm:$0xff]
    %v516 = vld [vmem:[%s3 + $0x88] sm:$0xff]
    %v517 = vld [vmem:[%s3 + $0x90] sm:$0x3]
    %v518 = vld [vmem:[%s3 + $0x98] sm:$0x3]
    %v519 = vld [vmem:[%s3 + $0xa0] sm:$0x3]
    %v520 = vld [vmem:[%s4] sm:$0x7]
    %v522 = vlaneseq
    %v523 = vshrl.u32 %v522, 7
    %v524 = vsub.s32 0, %v523
    %v525 = vrot.slane %v520, %v524
    %v526 = vlaneseq
    %v527 = vshrl.u32 %v526, 7
    %v528 = vsub.s32 1, %v527
    %v529 = vrot.slane %v520, %v528
    %v530 = vlaneseq
    %v531 = vshrl.u32 %v530, 7
    %v532 = vsub.s32 2, %v531
    %v533 = vrot.slane %v520, %v532
    %vm537 = vcmask 408576
    %v539 = vsel %vm537, %v498, 0
    %vm541 = vcmask 1041408
    %v543 = vsel %vm541, %v517, 0
    %v546 = vsel %vm541, %v518, 0
    %v549 = vsel %vm541, %v519, 0
    %v551 = vand.u32 %v500, 4294901760
    %552 = vmatprep.subr.mxu0 %v551
    %v553 = vand.u32 %v499, 4294901760
    %554 = vmatpush1.msra.mxu0 %v553
    %v555 = vand.u32 %v503, 4294901760
    %556 = vmatprep.subr.mxu0 %v555
    %v557 = vand.u32 %v502, 4294901760
    %558 = vmatpush1.msra.mxu0 %v557
    %v559 = vand.u32 %v506, 4294901760
    %560 = vmatprep.subr.mxu0 %v559
    %v561 = vand.u32 %v505, 4294901760
    %562 = vmatpush1.msra.mxu0 %v561
    %v563 = vand.u32 %v509, 4294901760
    %564 = vmatprep.subr.mxu0 %v563
    %v565 = vand.u32 %v508, 4294901760
    %566 = vmatpush1.msra.mxu0 %v565
    %v567 = vand.u32 %v512, 4294901760
    %568 = vmatprep.subr.mxu0 %v567
    %v569 = vand.u32 %v511, 4294901760
    %570 = vmatpush1.msra.mxu0 %v569
    %v571 = vand.u32 %v515, 4294901760
    %572 = vmatprep.subr.mxu0 %v571
    %v573 = vand.u32 %v514, 4294901760
    %574 = vmatpush1.msra.mxu0 %v573
    %v575 = vand.u32 %v546, 4294901760
    %576 = vmatprep.subr.mxu0 %v575
    %v577 = vand.u32 %v543, 4294901760
    %578 = vmatpush1.msra.mxu0 %v577
    %579 = vmatprep.subr.mxu0 0.0
    %580 = vmatpush1.msra.mxu0 0.0
    %581 = vmatprep.subr.mxu0 0.0
    %582 = vmatpush1.msra.mxu0 0.0
    %583 = vmatprep.subr.mxu0 0.0
    %584 = vmatpush1.msra.mxu0 0.0
    %585 = vmatprep.subr.mxu0 0.0
    %586 = vmatpush1.msra.mxu0 0.0
    %587 = vmatprep.subr.mxu0 0.0
    %588 = vmatpush1.msra.mxu0 0.0
    %589 = vmatprep.subr.mxu0 0.0
    %590 = vmatpush1.msra.mxu0 0.0
    %591 = vmatprep.subr.mxu0 0.0
    %592 = vmatpush1.msra.mxu0 0.0
    %593 = vmatprep.subr.mxu0 0.0
    %594 = vmatpush1.msra.mxu0 0.0
    %595 = vmatprep.subr.mxu0 0.0
    %596 = vmatpush1.msra.mxu0 0.0
    %597 = vmatprep.subr.mxu0 0.0
    %598 = vmatpush1.msra.mxu0 0.0
    %599 = vmatprep.subr.mxu0 0.0
    %600 = vmatpush1.msra.mxu0 0.0
    %601 = vmatprep.subr.mxu0 0.0
    %602 = vmatpush1.msra.mxu0 0.0
    %603 = vmatprep.subr.mxu0 0.0
    %604 = vmatpush1.msra.mxu0 0.0
    %605 = vmatprep.subr.mxu0 0.0
    %606 = vmatpush1.msra.mxu0 0.0
    %607 = vmatprep.subr.mxu0 0.0
    %608 = vmatpush1.msra.mxu0 0.0
    %609 = vmatprep.subr.mxu0 0.0
    %610 = vmatpush1.msra.mxu0 0.0
    %611 = vmatprep.subr.mxu0 0.0
    %612 = vmatpush1.msra.mxu0 0.0
    %613 = vmatprep.subr.mxu0 0.0
    %614 = vmatpush1.msra.mxu0 0.0
    %615 = vmatprep.subr.mxu0 0.0
    %616 = vmatpush1.msra.mxu0 0.0
    %617 = vmatprep.subr.mxu0 0.0
    %618 = vmatpush1.msra.mxu0 0.0
    %619 = vmatprep.subr.mxu0 0.0
    %620 = vmatpush1.msra.mxu0 0.0
    %621 = vmatprep.subr.mxu0 0.0
    %622 = vmatpush1.msra.mxu0 0.0
    %623 = vmatprep.subr.mxu0 0.0
    %624 = vmatpush1.msra.mxu0 0.0
    %625 = vmatprep.subr.mxu0 0.0
    %626 = vmatpush1.msra.mxu0 0.0
    %627 = vmatprep.subr.mxu0 0.0
    %628 = vmatpush1.msra.mxu0 0.0
    %629 = vmatprep.mubr.f32.mxu0 0.0
    %v630 = vand.u32 %v539, 4294901760
    %v631 = vsub.f32 %v539, %v630
    %v632 = vand.u32 %v631, 4294901760
    %v633 = vsub.f32 %v631, %v632
    %v634 = vand.u32 %v633, 4294901760
    %635 = vmatmul.mubr.f32.gmra.mrb[0].mxu0 %v634
    %v636 = vpop.f32.mrb[0].mxu0
    %v637 = vadd.f32 %v525, %v636
    %v638 = vpop.f32.mrb[0].mxu0
    %v639 = vadd.f32 %v529, %v638
    %640 = vdwg.mxu0
    %v641 = vand.u32 %v500, 4294901760
    %v642 = vsub.f32 %v500, %v641
    %v643 = vand.u32 %v642, 4294901760
    %v644 = vsub.f32 %v642, %v643
    %v645 = vand.u32 %v644, 4294901760
    %646 = vmatprep.subr.mxu0 %v645
    %v647 = vand.u32 %v499, 4294901760
    %v648 = vsub.f32 %v499, %v647
    %v649 = vand.u32 %v648, 4294901760
    %v650 = vsub.f32 %v648, %v649
    %v651 = vand.u32 %v650, 4294901760
    %652 = vmatpush1.msra.mxu0 %v651
    %v653 = vand.u32 %v503, 4294901760
    %v654 = vsub.f32 %v503, %v653
    %v655 = vand.u32 %v654, 4294901760
    %v656 = vsub.f32 %v654, %v655
    %v657 = vand.u32 %v656, 4294901760
    %658 = vmatprep.subr.mxu0 %v657
    %v659 = vand.u32 %v502, 4294901760
    %v660 = vsub.f32 %v502, %v659
    %v661 = vand.u32 %v660, 4294901760
    %v662 = vsub.f32 %v660, %v661
    %v663 = vand.u32 %v662, 4294901760
    %664 = vmatpush1.msra.mxu0 %v663
    %v665 = vand.u32 %v506, 4294901760
    %v666 = vsub.f32 %v506, %v665
    %v667 = vand.u32 %v666, 4294901760
    %v668 = vsub.f32 %v666, %v667
    %v669 = vand.u32 %v668, 4294901760
    %670 = vmatprep.subr.mxu0 %v669
    %v671 = vand.u32 %v505, 4294901760
    %v672 = vsub.f32 %v505, %v671
    %v673 = vand.u32 %v672, 4294901760
    %v674 = vsub.f32 %v672, %v673
    %v675 = vand.u32 %v674, 4294901760
    %676 = vmatpush1.msra.mxu0 %v675
    %v677 = vand.u32 %v509, 4294901760
    %v678 = vsub.f32 %v509, %v677
    %v679 = vand.u32 %v678, 4294901760
    %v680 = vsub.f32 %v678, %v679
    %v681 = vand.u32 %v680, 4294901760
    %682 = vmatprep.subr.mxu0 %v681
    %v683 = vand.u32 %v508, 4294901760
    %v684 = vsub.f32 %v508, %v683
    %v685 = vand.u32 %v684, 4294901760
    %v686 = vsub.f32 %v684, %v685
    %v687 = vand.u32 %v686, 4294901760
    %688 = vmatpush1.msra.mxu0 %v687
    %v689 = vand.u32 %v512, 4294901760
    %v690 = vsub.f32 %v512, %v689
    %v691 = vand.u32 %v690, 4294901760
    %v692 = vsub.f32 %v690, %v691
    %v693 = vand.u32 %v692, 4294901760
    %694 = vmatprep.subr.mxu0 %v693
    %v695 = vand.u32 %v511, 4294901760
    %v696 = vsub.f32 %v511, %v695
    %v697 = vand.u32 %v696, 4294901760
    %v698 = vsub.f32 %v696, %v697
    %v699 = vand.u32 %v698, 4294901760
    %700 = vmatpush1.msra.mxu0 %v699
    %v701 = vand.u32 %v515, 4294901760
    %v702 = vsub.f32 %v515, %v701
    %v703 = vand.u32 %v702, 4294901760
    %v704 = vsub.f32 %v702, %v703
    %v705 = vand.u32 %v704, 4294901760
    %706 = vmatprep.subr.mxu0 %v705
    %v707 = vand.u32 %v514, 4294901760
    %v708 = vsub.f32 %v514, %v707
    %v709 = vand.u32 %v708, 4294901760
    %v710 = vsub.f32 %v708, %v709
    %v711 = vand.u32 %v710, 4294901760
    %712 = vmatpush1.msra.mxu0 %v711
    %v713 = vand.u32 %v546, 4294901760
    %v714 = vsub.f32 %v546, %v713
    %v715 = vand.u32 %v714, 4294901760
    %v716 = vsub.f32 %v714, %v715
    %v717 = vand.u32 %v716, 4294901760
    %718 = vmatprep.subr.mxu0 %v717
    %v719 = vand.u32 %v543, 4294901760
    %v720 = vsub.f32 %v543, %v719
    %v721 = vand.u32 %v720, 4294901760
    %v722 = vsub.f32 %v720, %v721
    %v723 = vand.u32 %v722, 4294901760
    %724 = vmatpush1.msra.mxu0 %v723
    %725 = vmatprep.subr.mxu0 0.0
    %726 = vmatpush1.msra.mxu0 0.0
    %727 = vmatprep.subr.mxu0 0.0
    %728 = vmatpush1.msra.mxu0 0.0
    %729 = vmatprep.subr.mxu0 0.0
    %730 = vmatpush1.msra.mxu0 0.0
    %731 = vmatprep.subr.mxu0 0.0
    %732 = vmatpush1.msra.mxu0 0.0
    %733 = vmatprep.subr.mxu0 0.0
    %734 = vmatpush1.msra.mxu0 0.0
    %735 = vmatprep.subr.mxu0 0.0
    %736 = vmatpush1.msra.mxu0 0.0
    %737 = vmatprep.subr.mxu0 0.0
    %738 = vmatpush1.msra.mxu0 0.0
    %739 = vmatprep.subr.mxu0 0.0
    %740 = vmatpush1.msra.mxu0 0.0
    %741 = vmatprep.subr.mxu0 0.0
    %742 = vmatpush1.msra.mxu0 0.0
    %743 = vmatprep.subr.mxu0 0.0
    %744 = vmatpush1.msra.mxu0 0.0
    %745 = vmatprep.subr.mxu0 0.0
    %746 = vmatpush1.msra.mxu0 0.0
    %747 = vmatprep.subr.mxu0 0.0
    %748 = vmatpush1.msra.mxu0 0.0
    %749 = vmatprep.subr.mxu0 0.0
    %750 = vmatpush1.msra.mxu0 0.0
    %751 = vmatprep.subr.mxu0 0.0
    %752 = vmatpush1.msra.mxu0 0.0
    %753 = vmatprep.subr.mxu0 0.0
    %754 = vmatpush1.msra.mxu0 0.0
    %755 = vmatprep.subr.mxu0 0.0
    %756 = vmatpush1.msra.mxu0 0.0
    %757 = vmatprep.subr.mxu0 0.0
    %758 = vmatpush1.msra.mxu0 0.0
    %759 = vmatprep.subr.mxu0 0.0
    %760 = vmatpush1.msra.mxu0 0.0
    %761 = vmatprep.subr.mxu0 0.0
    %762 = vmatpush1.msra.mxu0 0.0
    %763 = vmatprep.subr.mxu0 0.0
    %764 = vmatpush1.msra.mxu0 0.0
    %765 = vmatprep.subr.mxu0 0.0
    %766 = vmatpush1.msra.mxu0 0.0
    %767 = vmatprep.subr.mxu0 0.0
    %768 = vmatpush1.msra.mxu0 0.0
    %769 = vmatprep.subr.mxu0 0.0
    %770 = vmatpush1.msra.mxu0 0.0
    %771 = vmatprep.subr.mxu0 0.0
    %772 = vmatpush1.msra.mxu0 0.0
    %773 = vmatprep.subr.mxu0 0.0
    %774 = vmatpush1.msra.mxu0 0.0
    %775 = vmatprep.mubr.f32.mxu0 0.0
    %v776 = vand.u32 %v539, 4294901760
    %777 = vmatmul.mubr.f32.gmra.mrb[0].mxu0 %v776
    %v778 = vpop.f32.mrb[0].mxu0
    %v779 = vadd.f32 %v637, %v778
    %v780 = vpop.f32.mrb[0].mxu0
    %v781 = vadd.f32 %v639, %v780
    %782 = vdwg.mxu0
    %v783 = vand.u32 %v500, 4294901760
    %v784 = vsub.f32 %v500, %v783
    %785 = vmatprep.subr.mxu0 %v784
    %v786 = vand.u32 %v499, 4294901760
    %v787 = vsub.f32 %v499, %v786
    %788 = vmatpush1.msra.mxu0 %v787
    %v789 = vand.u32 %v503, 4294901760
    %v790 = vsub.f32 %v503, %v789
    %791 = vmatprep.subr.mxu0 %v790
    %v792 = vand.u32 %v502, 4294901760
    %v793 = vsub.f32 %v502, %v792
    %794 = vmatpush1.msra.mxu0 %v793
    %v795 = vand.u32 %v506, 4294901760
    %v796 = vsub.f32 %v506, %v795
    %797 = vmatprep.subr.mxu0 %v796
    %v798 = vand.u32 %v505, 4294901760
    %v799 = vsub.f32 %v505, %v798
    %800 = vmatpush1.msra.mxu0 %v799
    %v801 = vand.u32 %v509, 4294901760
    %v802 = vsub.f32 %v509, %v801
    %803 = vmatprep.subr.mxu0 %v802
    %v804 = vand.u32 %v508, 4294901760
    %v805 = vsub.f32 %v508, %v804
    %806 = vmatpush1.msra.mxu0 %v805
    %v807 = vand.u32 %v512, 4294901760
    %v808 = vsub.f32 %v512, %v807
    %809 = vmatprep.subr.mxu0 %v808
    %v810 = vand.u32 %v511, 4294901760
    %v811 = vsub.f32 %v511, %v810
    %812 = vmatpush1.msra.mxu0 %v811
    %v813 = vand.u32 %v515, 4294901760
    %v814 = vsub.f32 %v515, %v813
    %815 = vmatprep.subr.mxu0 %v814
    %v816 = vand.u32 %v514, 4294901760
    %v817 = vsub.f32 %v514, %v816
    %818 = vmatpush1.msra.mxu0 %v817
    %v819 = vand.u32 %v546, 4294901760
    %v820 = vsub.f32 %v546, %v819
    %821 = vmatprep.subr.mxu0 %v820
    %v822 = vand.u32 %v543, 4294901760
    %v823 = vsub.f32 %v543, %v822
    %824 = vmatpush1.msra.mxu0 %v823
    %825 = vmatprep.subr.mxu0 0.0
    %826 = vmatpush1.msra.mxu0 0.0
    %827 = vmatprep.subr.mxu0 0.0
    %828 = vmatpush1.msra.mxu0 0.0
    %829 = vmatprep.subr.mxu0 0.0
    %830 = vmatpush1.msra.mxu0 0.0
    %831 = vmatprep.subr.mxu0 0.0
    %832 = vmatpush1.msra.mxu0 0.0
    %833 = vmatprep.subr.mxu0 0.0
    %834 = vmatpush1.msra.mxu0 0.0
    %835 = vmatprep.subr.mxu0 0.0
    %836 = vmatpush1.msra.mxu0 0.0
    %837 = vmatprep.subr.mxu0 0.0
    %838 = vmatpush1.msra.mxu0 0.0
    %839 = vmatprep.subr.mxu0 0.0
    %840 = vmatpush1.msra.mxu0 0.0
    %841 = vmatprep.subr.mxu0 0.0
    %842 = vmatpush1.msra.mxu0 0.0
    %843 = vmatprep.subr.mxu0 0.0
    %844 = vmatpush1.msra.mxu0 0.0
    %845 = vmatprep.subr.mxu0 0.0
    %846 = vmatpush1.msra.mxu0 0.0
    %847 = vmatprep.subr.mxu0 0.0
    %848 = vmatpush1.msra.mxu0 0.0
    %849 = vmatprep.subr.mxu0 0.0
    %850 = vmatpush1.msra.mxu0 0.0
    %851 = vmatprep.subr.mxu0 0.0
    %852 = vmatpush1.msra.mxu0 0.0
    %853 = vmatprep.subr.mxu0 0.0
    %854 = vmatpush1.msra.mxu0 0.0
    %855 = vmatprep.subr.mxu0 0.0
    %856 = vmatpush1.msra.mxu0 0.0
    %857 = vmatprep.subr.mxu0 0.0
    %858 = vmatpush1.msra.mxu0 0.0
    %859 = vmatprep.subr.mxu0 0.0
    %860 = vmatpush1.msra.mxu0 0.0
    %861 = vmatprep.subr.mxu0 0.0
    %862 = vmatpush1.msra.mxu0 0.0
    %863 = vmatprep.subr.mxu0 0.0
    %864 = vmatpush1.msra.mxu0 0.0
    %865 = vmatprep.subr.mxu0 0.0
    %866 = vmatpush1.msra.mxu0 0.0
    %867 = vmatprep.subr.mxu0 0.0
    %868 = vmatpush1.msra.mxu0 0.0
    %869 = vmatprep.subr.mxu0 0.0
    %870 = vmatpush1.msra.mxu0 0.0
    %871 = vmatprep.subr.mxu0 0.0
    %872 = vmatpush1.msra.mxu0 0.0
    %873 = vmatprep.subr.mxu0 0.0
    %874 = vmatpush1.msra.mxu0 0.0
    %875 = vmatprep.mubr.f32.mxu0 0.0
    %v876 = vand.u32 %v539, 4294901760
    %v877 = vsub.f32 %v539, %v876
    %878 = vmatmul.mubr.f32.gmra.mrb[0].mxu0 %v877
    %v879 = vpop.f32.mrb[0].mxu0
    %v880 = vadd.f32 %v779, %v879
    %v881 = vpop.f32.mrb[0].mxu0
    %v882 = vadd.f32 %v781, %v881
    %883 = vdwg.mxu0
    %v884 = vand.u32 %v500, 4294901760
    %885 = vmatprep.subr.mxu0 %v884
    %v886 = vand.u32 %v499, 4294901760
    %887 = vmatpush1.msra.mxu0 %v886
    %v888 = vand.u32 %v503, 4294901760
    %889 = vmatprep.subr.mxu0 %v888
    %v890 = vand.u32 %v502, 4294901760
    %891 = vmatpush1.msra.mxu0 %v890
    %v892 = vand.u32 %v506, 4294901760
    %893 = vmatprep.subr.mxu0 %v892
    %v894 = vand.u32 %v505, 4294901760
    %895 = vmatpush1.msra.mxu0 %v894
    %v896 = vand.u32 %v509, 4294901760
    %897 = vmatprep.subr.mxu0 %v896
    %v898 = vand.u32 %v508, 4294901760
    %899 = vmatpush1.msra.mxu0 %v898
    %v900 = vand.u32 %v512, 4294901760
    %901 = vmatprep.subr.mxu0 %v900
    %v902 = vand.u32 %v511, 4294901760
    %903 = vmatpush1.msra.mxu0 %v902
    %v904 = vand.u32 %v515, 4294901760
    %905 = vmatprep.subr.mxu0 %v904
    %v906 = vand.u32 %v514, 4294901760
    %907 = vmatpush1.msra.mxu0 %v906
    %v908 = vand.u32 %v546, 4294901760
    %909 = vmatprep.subr.mxu0 %v908
    %v910 = vand.u32 %v543, 4294901760
    %911 = vmatpush1.msra.mxu0 %v910
    %912 = vmatprep.subr.mxu0 0.0
    %913 = vmatpush1.msra.mxu0 0.0
    %914 = vmatprep.subr.mxu0 0.0
    %915 = vmatpush1.msra.mxu0 0.0
    %916 = vmatprep.subr.mxu0 0.0
    %917 = vmatpush1.msra.mxu0 0.0
    %918 = vmatprep.subr.mxu0 0.0
    %919 = vmatpush1.msra.mxu0 0.0
    %920 = vmatprep.subr.mxu0 0.0
    %921 = vmatpush1.msra.mxu0 0.0
    %922 = vmatprep.subr.mxu0 0.0
    %923 = vmatpush1.msra.mxu0 0.0
    %924 = vmatprep.subr.mxu0 0.0
    %925 = vmatpush1.msra.mxu0 0.0
    %926 = vmatprep.subr.mxu0 0.0
    %927 = vmatpush1.msra.mxu0 0.0
    %928 = vmatprep.subr.mxu0 0.0
    %929 = vmatpush1.msra.mxu0 0.0
    %930 = vmatprep.subr.mxu0 0.0
    %931 = vmatpush1.msra.mxu0 0.0
    %932 = vmatprep.subr.mxu0 0.0
    %933 = vmatpush1.msra.mxu0 0.0
    %934 = vmatprep.subr.mxu0 0.0
    %935 = vmatpush1.msra.mxu0 0.0
    %936 = vmatprep.subr.mxu0 0.0
    %937 = vmatpush1.msra.mxu0 0.0
    %938 = vmatprep.subr.mxu0 0.0
    %939 = vmatpush1.msra.mxu0 0.0
    %940 = vmatprep.subr.mxu0 0.0
    %941 = vmatpush1.msra.mxu0 0.0
    %942 = vmatprep.subr.mxu0 0.0
    %943 = vmatpush1.msra.mxu0 0.0
    %944 = vmatprep.subr.mxu0 0.0
    %945 = vmatpush1.msra.mxu0 0.0
    %946 = vmatprep.subr.mxu0 0.0
    %947 = vmatpush1.msra.mxu0 0.0
    %948 = vmatprep.subr.mxu0 0.0
    %949 = vmatpush1.msra.mxu0 0.0
    %950 = vmatprep.subr.mxu0 0.0
    %951 = vmatpush1.msra.mxu0 0.0
    %952 = vmatprep.subr.mxu0 0.0
    %953 = vmatpush1.msra.mxu0 0.0
    %954 = vmatprep.subr.mxu0 0.0
    %955 = vmatpush1.msra.mxu0 0.0
    %956 = vmatprep.subr.mxu0 0.0
    %957 = vmatpush1.msra.mxu0 0.0
    %958 = vmatprep.subr.mxu0 0.0
    %959 = vmatpush1.msra.mxu0 0.0
    %960 = vmatprep.subr.mxu0 0.0
    %961 = vmatpush1.msra.mxu0 0.0
    %962 = vmatprep.mubr.f32.mxu0 0.0
    %v963 = vand.u32 %v539, 4294901760
    %v964 = vsub.f32 %v539, %v963
    %v965 = vand.u32 %v964, 4294901760
    %966 = vmatmul.mubr.f32.gmra.mrb[0].mxu0 %v965
    %v967 = vpop.f32.mrb[0].mxu0
    %v968 = vadd.f32 %v880, %v967
    %v969 = vpop.f32.mrb[0].mxu0
    %v970 = vadd.f32 %v882, %v969
    %971 = vdwg.mxu0
    %v972 = vand.u32 %v500, 4294901760
    %v973 = vsub.f32 %v500, %v972
    %v974 = vand.u32 %v973, 4294901760
    %975 = vmatprep.subr.mxu0 %v974
    %v976 = vand.u32 %v499, 4294901760
    %v977 = vsub.f32 %v499, %v976
    %v978 = vand.u32 %v977, 4294901760
    %979 = vmatpush1.msra.mxu0 %v978
    %v980 = vand.u32 %v503, 4294901760
    %v981 = vsub.f32 %v503, %v980
    %v982 = vand.u32 %v981, 4294901760
    %983 = vmatprep.subr.mxu0 %v982
    %v984 = vand.u32 %v502, 4294901760
    %v985 = vsub.f32 %v502, %v984
    %v986 = vand.u32 %v985, 4294901760
    %987 = vmatpush1.msra.mxu0 %v986
    %v988 = vand.u32 %v506, 4294901760
    %v989 = vsub.f32 %v506, %v988
    %v990 = vand.u32 %v989, 4294901760
    %991 = vmatprep.subr.mxu0 %v990
    %v992 = vand.u32 %v505, 4294901760
    %v993 = vsub.f32 %v505, %v992
    %v994 = vand.u32 %v993, 4294901760
    %995 = vmatpush1.msra.mxu0 %v994
    %v996 = vand.u32 %v509, 4294901760
    %v997 = vsub.f32 %v509, %v996
    %v998 = vand.u32 %v997, 4294901760
    %999 = vmatprep.subr.mxu0 %v998
    %v1000 = vand.u32 %v508, 4294901760
    %v1001 = vsub.f32 %v508, %v1000
    %v1002 = vand.u32 %v1001, 4294901760
    %1003 = vmatpush1.msra.mxu0 %v1002
    %v1004 = vand.u32 %v512, 4294901760
    %v1005 = vsub.f32 %v512, %v1004
    %v1006 = vand.u32 %v1005, 4294901760
    %1007 = vmatprep.subr.mxu0 %v1006
    %v1008 = vand.u32 %v511, 4294901760
    %v1009 = vsub.f32 %v511, %v1008
    %v1010 = vand.u32 %v1009, 4294901760
    %1011 = vmatpush1.msra.mxu0 %v1010
    %v1012 = vand.u32 %v515, 4294901760
    %v1013 = vsub.f32 %v515, %v1012
    %v1014 = vand.u32 %v1013, 4294901760
    %1015 = vmatprep.subr.mxu0 %v1014
    %v1016 = vand.u32 %v514, 4294901760
    %v1017 = vsub.f32 %v514, %v1016
    %v1018 = vand.u32 %v1017, 4294901760
    %1019 = vmatpush1.msra.mxu0 %v1018
    %v1020 = vand.u32 %v546, 4294901760
    %v1021 = vsub.f32 %v546, %v1020
    %v1022 = vand.u32 %v1021, 4294901760
    %1023 = vmatprep.subr.mxu0 %v1022
    %v1024 = vand.u32 %v543, 4294901760
    %v1025 = vsub.f32 %v543, %v1024
    %v1026 = vand.u32 %v1025, 4294901760
    %1027 = vmatpush1.msra.mxu0 %v1026
    %1028 = vmatprep.subr.mxu0 0.0
    %1029 = vmatpush1.msra.mxu0 0.0
    %1030 = vmatprep.subr.mxu0 0.0
    %1031 = vmatpush1.msra.mxu0 0.0
    %1032 = vmatprep.subr.mxu0 0.0
    %1033 = vmatpush1.msra.mxu0 0.0
    %1034 = vmatprep.subr.mxu0 0.0
    %1035 = vmatpush1.msra.mxu0 0.0
    %1036 = vmatprep.subr.mxu0 0.0
    %1037 = vmatpush1.msra.mxu0 0.0
    %1038 = vmatprep.subr.mxu0 0.0
    %1039 = vmatpush1.msra.mxu0 0.0
    %1040 = vmatprep.subr.mxu0 0.0
    %1041 = vmatpush1.msra.mxu0 0.0
    %1042 = vmatprep.subr.mxu0 0.0
    %1043 = vmatpush1.msra.mxu0 0.0
    %1044 = vmatprep.subr.mxu0 0.0
    %1045 = vmatpush1.msra.mxu0 0.0
    %1046 = vmatprep.subr.mxu0 0.0
    %1047 = vmatpush1.msra.mxu0 0.0
    %1048 = vmatprep.subr.mxu0 0.0
    %1049 = vmatpush1.msra.mxu0 0.0
    %1050 = vmatprep.subr.mxu0 0.0
    %1051 = vmatpush1.msra.mxu0 0.0
    %1052 = vmatprep.subr.mxu0 0.0
    %1053 = vmatpush1.msra.mxu0 0.0
    %1054 = vmatprep.subr.mxu0 0.0
    %1055 = vmatpush1.msra.mxu0 0.0
    %1056 = vmatprep.subr.mxu0 0.0
    %1057 = vmatpush1.msra.mxu0 0.0
    %1058 = vmatprep.subr.mxu0 0.0
    %1059 = vmatpush1.msra.mxu0 0.0
    %1060 = vmatprep.subr.mxu0 0.0
    %1061 = vmatpush1.msra.mxu0 0.0
    %1062 = vmatprep.subr.mxu0 0.0
    %1063 = vmatpush1.msra.mxu0 0.0
    %1064 = vmatprep.subr.mxu0 0.0
    %1065 = vmatpush1.msra.mxu0 0.0
    %1066 = vmatprep.subr.mxu0 0.0
    %1067 = vmatpush1.msra.mxu0 0.0
    %1068 = vmatprep.subr.mxu0 0.0
    %1069 = vmatpush1.msra.mxu0 0.0
    %1070 = vmatprep.subr.mxu0 0.0
    %1071 = vmatpush1.msra.mxu0 0.0
    %1072 = vmatprep.subr.mxu0 0.0
    %1073 = vmatpush1.msra.mxu0 0.0
    %1074 = vmatprep.subr.mxu0 0.0
    %1075 = vmatpush1.msra.mxu0 0.0
    %1076 = vmatprep.subr.mxu0 0.0
    %1077 = vmatpush1.msra.mxu0 0.0
    %1078 = vmatprep.mubr.f32.mxu0 0.0
    %v1079 = vand.u32 %v539, 4294901760
    %1080 = vmatmul.mubr.f32.gmra.mrb[0].mxu0 %v1079
    %v1081 = vpop.f32.mrb[0].mxu0
    %v1082 = vadd.f32 %v968, %v1081
    %v1083 = vpop.f32.mrb[0].mxu0
    %v1084 = vadd.f32 %v970, %v1083
    %1085 = vdwg.mxu0
    %v1086 = vand.u32 %v500, 4294901760
    %1087 = vmatprep.subr.mxu0 %v1086
    %v1088 = vand.u32 %v499, 4294901760
    %1089 = vmatpush1.msra.mxu0 %v1088
    %v1090 = vand.u32 %v503, 4294901760
    %1091 = vmatprep.subr.mxu0 %v1090
    %v1092 = vand.u32 %v502, 4294901760
    %1093 = vmatpush1.msra.mxu0 %v1092
    %v1094 = vand.u32 %v506, 4294901760
    %1095 = vmatprep.subr.mxu0 %v1094
    %v1096 = vand.u32 %v505, 4294901760
    %1097 = vmatpush1.msra.mxu0 %v1096
    %v1098 = vand.u32 %v509, 4294901760
    %1099 = vmatprep.subr.mxu0 %v1098
    %v1100 = vand.u32 %v508, 4294901760
    %1101 = vmatpush1.msra.mxu0 %v1100
    %v1102 = vand.u32 %v512, 4294901760
    %1103 = vmatprep.subr.mxu0 %v1102
    %v1104 = vand.u32 %v511, 4294901760
    %1105 = vmatpush1.msra.mxu0 %v1104
    %v1106 = vand.u32 %v515, 4294901760
    %1107 = vmatprep.subr.mxu0 %v1106
    %v1108 = vand.u32 %v514, 4294901760
    %1109 = vmatpush1.msra.mxu0 %v1108
    %v1110 = vand.u32 %v546, 4294901760
    %1111 = vmatprep.subr.mxu0 %v1110
    %v1112 = vand.u32 %v543, 4294901760
    %1113 = vmatpush1.msra.mxu0 %v1112
    %1114 = vmatprep.subr.mxu0 0.0
    %1115 = vmatpush1.msra.mxu0 0.0
    %1116 = vmatprep.subr.mxu0 0.0
    %1117 = vmatpush1.msra.mxu0 0.0
    %1118 = vmatprep.subr.mxu0 0.0
    %1119 = vmatpush1.msra.mxu0 0.0
    %1120 = vmatprep.subr.mxu0 0.0
    %1121 = vmatpush1.msra.mxu0 0.0
    %1122 = vmatprep.subr.mxu0 0.0
    %1123 = vmatpush1.msra.mxu0 0.0
    %1124 = vmatprep.subr.mxu0 0.0
    %1125 = vmatpush1.msra.mxu0 0.0
    %1126 = vmatprep.subr.mxu0 0.0
    %1127 = vmatpush1.msra.mxu0 0.0
    %1128 = vmatprep.subr.mxu0 0.0
    %1129 = vmatpush1.msra.mxu0 0.0
    %1130 = vmatprep.subr.mxu0 0.0
    %1131 = vmatpush1.msra.mxu0 0.0
    %1132 = vmatprep.subr.mxu0 0.0
    %1133 = vmatpush1.msra.mxu0 0.0
    %1134 = vmatprep.subr.mxu0 0.0
    %1135 = vmatpush1.msra.mxu0 0.0
    %1136 = vmatprep.subr.mxu0 0.0
    %1137 = vmatpush1.msra.mxu0 0.0
    %1138 = vmatprep.subr.mxu0 0.0
    %1139 = vmatpush1.msra.mxu0 0.0
    %1140 = vmatprep.subr.mxu0 0.0
    %1141 = vmatpush1.msra.mxu0 0.0
    %1142 = vmatprep.subr.mxu0 0.0
    %1143 = vmatpush1.msra.mxu0 0.0
    %1144 = vmatprep.subr.mxu0 0.0
    %1145 = vmatpush1.msra.mxu0 0.0
    %1146 = vmatprep.subr.mxu0 0.0
    %1147 = vmatpush1.msra.mxu0 0.0
    %1148 = vmatprep.subr.mxu0 0.0
    %1149 = vmatpush1.msra.mxu0 0.0
    %1150 = vmatprep.subr.mxu0 0.0
    %1151 = vmatpush1.msra.mxu0 0.0
    %1152 = vmatprep.subr.mxu0 0.0
    %1153 = vmatpush1.msra.mxu0 0.0
    %1154 = vmatprep.subr.mxu0 0.0
    %1155 = vmatpush1.msra.mxu0 0.0
    %1156 = vmatprep.subr.mxu0 0.0
    %1157 = vmatpush1.msra.mxu0 0.0
    %1158 = vmatprep.subr.mxu0 0.0
    %1159 = vmatpush1.msra.mxu0 0.0
    %1160 = vmatprep.subr.mxu0 0.0
    %1161 = vmatpush1.msra.mxu0 0.0
    %1162 = vmatprep.subr.mxu0 0.0
    %1163 = vmatpush1.msra.mxu0 0.0
    %1164 = vmatprep.mubr.f32.mxu0 0.0
    %v1165 = vand.u32 %v539, 4294901760
    %1166 = vmatmul.mubr.f32.gmra.mrb[0].mxu0 %v1165
    %v1167 = vpop.f32.mrb[0].mxu0
    %v1168 = vadd.f32 %v1082, %v1167
    %v1169 = vpop.f32.mrb[0].mxu0
    %v1170 = vadd.f32 %v1084, %v1169
    %1171 = vdwg.mxu0
    %1172 = vmatprep.subr.mxu0 0.0
    %v1173 = vand.u32 %v501, 4294901760
    %1174 = vmatpush1.msra.mxu0 %v1173
    %1175 = vmatprep.subr.mxu0 0.0
    %v1176 = vand.u32 %v504, 4294901760
    %1177 = vmatpush1.msra.mxu0 %v1176
    %1178 = vmatprep.subr.mxu0 0.0
    %v1179 = vand.u32 %v507, 4294901760
    %1180 = vmatpush1.msra.mxu0 %v1179
    %1181 = vmatprep.subr.mxu0 0.0
    %v1182 = vand.u32 %v510, 4294901760
    %1183 = vmatpush1.msra.mxu0 %v1182
    %1184 = vmatprep.subr.mxu0 0.0
    %v1185 = vand.u32 %v513, 4294901760
    %1186 = vmatpush1.msra.mxu0 %v1185
    %1187 = vmatprep.subr.mxu0 0.0
    %v1188 = vand.u32 %v516, 4294901760
    %1189 = vmatpush1.msra.mxu0 %v1188
    %1190 = vmatprep.subr.mxu0 0.0
    %v1191 = vand.u32 %v549, 4294901760
    %1192 = vmatpush1.msra.mxu0 %v1191
    %1193 = vmatprep.subr.mxu0 0.0
    %1194 = vmatpush1.msra.mxu0 0.0
    %1195 = vmatprep.subr.mxu0 0.0
    %1196 = vmatpush1.msra.mxu0 0.0
    %1197 = vmatprep.subr.mxu0 0.0
    %1198 = vmatpush1.msra.mxu0 0.0
    %1199 = vmatprep.subr.mxu0 0.0
    %1200 = vmatpush1.msra.mxu0 0.0
    %1201 = vmatprep.subr.mxu0 0.0
    %1202 = vmatpush1.msra.mxu0 0.0
    %1203 = vmatprep.subr.mxu0 0.0
    %1204 = vmatpush1.msra.mxu0 0.0
    %1205 = vmatprep.subr.mxu0 0.0
    %1206 = vmatpush1.msra.mxu0 0.0
    %1207 = vmatprep.subr.mxu0 0.0
    %1208 = vmatpush1.msra.mxu0 0.0
    %1209 = vmatprep.subr.mxu0 0.0
    %1210 = vmatpush1.msra.mxu0 0.0
    %1211 = vmatprep.subr.mxu0 0.0
    %1212 = vmatpush1.msra.mxu0 0.0
    %1213 = vmatprep.subr.mxu0 0.0
    %1214 = vmatpush1.msra.mxu0 0.0
    %1215 = vmatprep.subr.mxu0 0.0
    %1216 = vmatpush1.msra.mxu0 0.0
    %1217 = vmatprep.subr.mxu0 0.0
    %1218 = vmatpush1.msra.mxu0 0.0
    %1219 = vmatprep.subr.mxu0 0.0
    %1220 = vmatpush1.msra.mxu0 0.0
    %1221 = vmatprep.subr.mxu0 0.0
    %1222 = vmatpush1.msra.mxu0 0.0
    %1223 = vmatprep.subr.mxu0 0.0
    %1224 = vmatpush1.msra.mxu0 0.0
    %1225 = vmatprep.subr.mxu0 0.0
    %1226 = vmatpush1.msra.mxu0 0.0
    %1227 = vmatprep.subr.mxu0 0.0
    %1228 = vmatpush1.msra.mxu0 0.0
    %1229 = vmatprep.subr.mxu0 0.0
    %1230 = vmatpush1.msra.mxu0 0.0
    %1231 = vmatprep.subr.mxu0 0.0
    %1232 = vmatpush1.msra.mxu0 0.0
    %1233 = vmatprep.subr.mxu0 0.0
    %1234 = vmatpush1.msra.mxu0 0.0
    %1235 = vmatprep.subr.mxu0 0.0
    %1236 = vmatpush1.msra.mxu0 0.0
    %1237 = vmatprep.subr.mxu0 0.0
    %1238 = vmatpush1.msra.mxu0 0.0
    %1239 = vmatprep.subr.mxu0 0.0
    %1240 = vmatpush1.msra.mxu0 0.0
    %1241 = vmatprep.subr.mxu0 0.0
    %1242 = vmatpush1.msra.mxu0 0.0
    %1243 = vmatprep.mubr.f32.mxu0 0.0
    %v1244 = vand.u32 %v539, 4294901760
    %v1245 = vsub.f32 %v539, %v1244
    %v1246 = vand.u32 %v1245, 4294901760
    %v1247 = vsub.f32 %v1245, %v1246
    %v1248 = vand.u32 %v1247, 4294901760
    %1249 = vmatmul.mubr.f32.gmra.mrb[0].mxu0 %v1248
    %v1250 = vpop.f32.mrb[0].mxu0
    %v1251 = vadd.f32 %v533, %v1250
    %v1252 = vpop.f32.mrb[0].mxu0
    %1253 = vdwg.mxu0
    %1254 = vmatprep.subr.mxu0 0.0
    %v1255 = vand.u32 %v501, 4294901760
    %v1256 = vsub.f32 %v501, %v1255
    %v1257 = vand.u32 %v1256, 4294901760
    %v1258 = vsub.f32 %v1256, %v1257
    %v1259 = vand.u32 %v1258, 4294901760
    %1260 = vmatpush1.msra.mxu0 %v1259
    %1261 = vmatprep.subr.mxu0 0.0
    %v1262 = vand.u32 %v504, 4294901760
    %v1263 = vsub.f32 %v504, %v1262
    %v1264 = vand.u32 %v1263, 4294901760
    %v1265 = vsub.f32 %v1263, %v1264
    %v1266 = vand.u32 %v1265, 4294901760
    %1267 = vmatpush1.msra.mxu0 %v1266
    %1268 = vmatprep.subr.mxu0 0.0
    %v1269 = vand.u32 %v507, 4294901760
    %v1270 = vsub.f32 %v507, %v1269
    %v1271 = vand.u32 %v1270, 4294901760
    %v1272 = vsub.f32 %v1270, %v1271
    %v1273 = vand.u32 %v1272, 4294901760
    %1274 = vmatpush1.msra.mxu0 %v1273
    %1275 = vmatprep.subr.mxu0 0.0
    %v1276 = vand.u32 %v510, 4294901760
    %v1277 = vsub.f32 %v510, %v1276
    %v1278 = vand.u32 %v1277, 4294901760
    %v1279 = vsub.f32 %v1277, %v1278
    %v1280 = vand.u32 %v1279, 4294901760
    %1281 = vmatpush1.msra.mxu0 %v1280
    %1282 = vmatprep.subr.mxu0 0.0
    %v1283 = vand.u32 %v513, 4294901760
    %v1284 = vsub.f32 %v513, %v1283
    %v1285 = vand.u32 %v1284, 4294901760
    %v1286 = vsub.f32 %v1284, %v1285
    %v1287 = vand.u32 %v1286, 4294901760
    %1288 = vmatpush1.msra.mxu0 %v1287
    %1289 = vmatprep.subr.mxu0 0.0
    %v1290 = vand.u32 %v516, 4294901760
    %v1291 = vsub.f32 %v516, %v1290
    %v1292 = vand.u32 %v1291, 4294901760
    %v1293 = vsub.f32 %v1291, %v1292
    %v1294 = vand.u32 %v1293, 4294901760
    %1295 = vmatpush1.msra.mxu0 %v1294
    %1296 = vmatprep.subr.mxu0 0.0
    %v1297 = vand.u32 %v549, 4294901760
    %v1298 = vsub.f32 %v549, %v1297
    %v1299 = vand.u32 %v1298, 4294901760
    %v1300 = vsub.f32 %v1298, %v1299
    %v1301 = vand.u32 %v1300, 4294901760
    %1302 = vmatpush1.msra.mxu0 %v1301
    %1303 = vmatprep.subr.mxu0 0.0
    %1304 = vmatpush1.msra.mxu0 0.0
    %1305 = vmatprep.subr.mxu0 0.0
    %1306 = vmatpush1.msra.mxu0 0.0
    %1307 = vmatprep.subr.mxu0 0.0
    %1308 = vmatpush1.msra.mxu0 0.0
    %1309 = vmatprep.subr.mxu0 0.0
    %1310 = vmatpush1.msra.mxu0 0.0
    %1311 = vmatprep.subr.mxu0 0.0
    %1312 = vmatpush1.msra.mxu0 0.0
    %1313 = vmatprep.subr.mxu0 0.0
    %1314 = vmatpush1.msra.mxu0 0.0
    %1315 = vmatprep.subr.mxu0 0.0
    %1316 = vmatpush1.msra.mxu0 0.0
    %1317 = vmatprep.subr.mxu0 0.0
    %1318 = vmatpush1.msra.mxu0 0.0
    %1319 = vmatprep.subr.mxu0 0.0
    %1320 = vmatpush1.msra.mxu0 0.0
    %1321 = vmatprep.subr.mxu0 0.0
    %1322 = vmatpush1.msra.mxu0 0.0
    %1323 = vmatprep.subr.mxu0 0.0
    %1324 = vmatpush1.msra.mxu0 0.0
    %1325 = vmatprep.subr.mxu0 0.0
    %1326 = vmatpush1.msra.mxu0 0.0
    %1327 = vmatprep.subr.mxu0 0.0
    %1328 = vmatpush1.msra.mxu0 0.0
    %1329 = vmatprep.subr.mxu0 0.0
    %1330 = vmatpush1.msra.mxu0 0.0
    %1331 = vmatprep.subr.mxu0 0.0
    %1332 = vmatpush1.msra.mxu0 0.0
    %1333 = vmatprep.subr.mxu0 0.0
    %1334 = vmatpush1.msra.mxu0 0.0
    %1335 = vmatprep.subr.mxu0 0.0
    %1336 = vmatpush1.msra.mxu0 0.0
    %1337 = vmatprep.subr.mxu0 0.0
    %1338 = vmatpush1.msra.mxu0 0.0
    %1339 = vmatprep.subr.mxu0 0.0
    %1340 = vmatpush1.msra.mxu0 0.0
    %1341 = vmatprep.subr.mxu0 0.0
    %1342 = vmatpush1.msra.mxu0 0.0
    %1343 = vmatprep.subr.mxu0 0.0
    %1344 = vmatpush1.msra.mxu0 0.0
    %1345 = vmatprep.subr.mxu0 0.0
    %1346 = vmatpush1.msra.mxu0 0.0
    %1347 = vmatprep.subr.mxu0 0.0
    %1348 = vmatpush1.msra.mxu0 0.0
    %1349 = vmatprep.subr.mxu0 0.0
    %1350 = vmatpush1.msra.mxu0 0.0
    %1351 = vmatprep.subr.mxu0 0.0
    %1352 = vmatpush1.msra.mxu0 0.0
    %1353 = vmatprep.mubr.f32.mxu0 0.0
    %v1354 = vand.u32 %v539, 4294901760
    %1355 = vmatmul.mubr.f32.gmra.mrb[0].mxu0 %v1354
    %v1356 = vpop.f32.mrb[0].mxu0
    %v1357 = vadd.f32 %v1251, %v1356
    %v1358 = vpop.f32.mrb[0].mxu0
    %1359 = vdwg.mxu0
    %1360 = vmatprep.subr.mxu0 0.0
    %v1361 = vand.u32 %v501, 4294901760
    %v1362 = vsub.f32 %v501, %v1361
    %1363 = vmatpush1.msra.mxu0 %v1362
    %1364 = vmatprep.subr.mxu0 0.0
    %v1365 = vand.u32 %v504, 4294901760
    %v1366 = vsub.f32 %v504, %v1365
    %1367 = vmatpush1.msra.mxu0 %v1366
    %1368 = vmatprep.subr.mxu0 0.0
    %v1369 = vand.u32 %v507, 4294901760
    %v1370 = vsub.f32 %v507, %v1369
    %1371 = vmatpush1.msra.mxu0 %v1370
    %1372 = vmatprep.subr.mxu0 0.0
    %v1373 = vand.u32 %v510, 4294901760
    %v1374 = vsub.f32 %v510, %v1373
    %1375 = vmatpush1.msra.mxu0 %v1374
    %1376 = vmatprep.subr.mxu0 0.0
    %v1377 = vand.u32 %v513, 4294901760
    %v1378 = vsub.f32 %v513, %v1377
    %1379 = vmatpush1.msra.mxu0 %v1378
    %1380 = vmatprep.subr.mxu0 0.0
    %v1381 = vand.u32 %v516, 4294901760
    %v1382 = vsub.f32 %v516, %v1381
    %1383 = vmatpush1.msra.mxu0 %v1382
    %1384 = vmatprep.subr.mxu0 0.0
    %v1385 = vand.u32 %v549, 4294901760
    %v1386 = vsub.f32 %v549, %v1385
    %1387 = vmatpush1.msra.mxu0 %v1386
    %1388 = vmatprep.subr.mxu0 0.0
    %1389 = vmatpush1.msra.mxu0 0.0
    %1390 = vmatprep.subr.mxu0 0.0
    %1391 = vmatpush1.msra.mxu0 0.0
    %1392 = vmatprep.subr.mxu0 0.0
    %1393 = vmatpush1.msra.mxu0 0.0
    %1394 = vmatprep.subr.mxu0 0.0
    %1395 = vmatpush1.msra.mxu0 0.0
    %1396 = vmatprep.subr.mxu0 0.0
    %1397 = vmatpush1.msra.mxu0 0.0
    %1398 = vmatprep.subr.mxu0 0.0
    %1399 = vmatpush1.msra.mxu0 0.0
    %1400 = vmatprep.subr.mxu0 0.0
    %1401 = vmatpush1.msra.mxu0 0.0
    %1402 = vmatprep.subr.mxu0 0.0
    %1403 = vmatpush1.msra.mxu0 0.0
    %1404 = vmatprep.subr.mxu0 0.0
    %1405 = vmatpush1.msra.mxu0 0.0
    %1406 = vmatprep.subr.mxu0 0.0
    %1407 = vmatpush1.msra.mxu0 0.0
    %1408 = vmatprep.subr.mxu0 0.0
    %1409 = vmatpush1.msra.mxu0 0.0
    %1410 = vmatprep.subr.mxu0 0.0
    %1411 = vmatpush1.msra.mxu0 0.0
    %1412 = vmatprep.subr.mxu0 0.0
    %1413 = vmatpush1.msra.mxu0 0.0
    %1414 = vmatprep.subr.mxu0 0.0
    %1415 = vmatpush1.msra.mxu0 0.0
    %1416 = vmatprep.subr.mxu0 0.0
    %1417 = vmatpush1.msra.mxu0 0.0
    %1418 = vmatprep.subr.mxu0 0.0
    %1419 = vmatpush1.msra.mxu0 0.0
    %1420 = vmatprep.subr.mxu0 0.0
    %1421 = vmatpush1.msra.mxu0 0.0
    %1422 = vmatprep.subr.mxu0 0.0
    %1423 = vmatpush1.msra.mxu0 0.0
    %1424 = vmatprep.subr.mxu0 0.0
    %1425 = vmatpush1.msra.mxu0 0.0
    %1426 = vmatprep.subr.mxu0 0.0
    %1427 = vmatpush1.msra.mxu0 0.0
    %1428 = vmatprep.subr.mxu0 0.0
    %1429 = vmatpush1.msra.mxu0 0.0
    %1430 = vmatprep.subr.mxu0 0.0
    %1431 = vmatpush1.msra.mxu0 0.0
    %1432 = vmatprep.subr.mxu0 0.0
    %1433 = vmatpush1.msra.mxu0 0.0
    %1434 = vmatprep.subr.mxu0 0.0
    %1435 = vmatpush1.msra.mxu0 0.0
    %1436 = vmatprep.subr.mxu0 0.0
    %1437 = vmatpush1.msra.mxu0 0.0
    %1438 = vmatprep.mubr.f32.mxu0 0.0
    %v1439 = vand.u32 %v539, 4294901760
    %v1440 = vsub.f32 %v539, %v1439
    %1441 = vmatmul.mubr.f32.gmra.mrb[0].mxu0 %v1440
    %v1442 = vpop.f32.mrb[0].mxu0
    %v1443 = vadd.f32 %v1357, %v1442
    %v1444 = vpop.f32.mrb[0].mxu0
    %1445 = vdwg.mxu0
    %1446 = vmatprep.subr.mxu0 0.0
    %v1447 = vand.u32 %v501, 4294901760
    %1448 = vmatpush1.msra.mxu0 %v1447
    %1449 = vmatprep.subr.mxu0 0.0
    %v1450 = vand.u32 %v504, 4294901760
    %1451 = vmatpush1.msra.mxu0 %v1450
    %1452 = vmatprep.subr.mxu0 0.0
    %v1453 = vand.u32 %v507, 4294901760
    %1454 = vmatpush1.msra.mxu0 %v1453
    %1455 = vmatprep.subr.mxu0 0.0
    %v1456 = vand.u32 %v510, 4294901760
    %1457 = vmatpush1.msra.mxu0 %v1456
    %1458 = vmatprep.subr.mxu0 0.0
    %v1459 = vand.u32 %v513, 4294901760
    %1460 = vmatpush1.msra.mxu0 %v1459
    %1461 = vmatprep.subr.mxu0 0.0
    %v1462 = vand.u32 %v516, 4294901760
    %1463 = vmatpush1.msra.mxu0 %v1462
    %1464 = vmatprep.subr.mxu0 0.0
    %v1465 = vand.u32 %v549, 4294901760
    %1466 = vmatpush1.msra.mxu0 %v1465
    %1467 = vmatprep.subr.mxu0 0.0
    %1468 = vmatpush1.msra.mxu0 0.0
    %1469 = vmatprep.subr.mxu0 0.0
    %1470 = vmatpush1.msra.mxu0 0.0
    %1471 = vmatprep.subr.mxu0 0.0
    %1472 = vmatpush1.msra.mxu0 0.0
    %1473 = vmatprep.subr.mxu0 0.0
    %1474 = vmatpush1.msra.mxu0 0.0
    %1475 = vmatprep.subr.mxu0 0.0
    %1476 = vmatpush1.msra.mxu0 0.0
    %1477 = vmatprep.subr.mxu0 0.0
    %1478 = vmatpush1.msra.mxu0 0.0
    %1479 = vmatprep.subr.mxu0 0.0
    %1480 = vmatpush1.msra.mxu0 0.0
    %1481 = vmatprep.subr.mxu0 0.0
    %1482 = vmatpush1.msra.mxu0 0.0
    %1483 = vmatprep.subr.mxu0 0.0
    %1484 = vmatpush1.msra.mxu0 0.0
    %1485 = vmatprep.subr.mxu0 0.0
    %1486 = vmatpush1.msra.mxu0 0.0
    %1487 = vmatprep.subr.mxu0 0.0
    %1488 = vmatpush1.msra.mxu0 0.0
    %1489 = vmatprep.subr.mxu0 0.0
    %1490 = vmatpush1.msra.mxu0 0.0
    %1491 = vmatprep.subr.mxu0 0.0
    %1492 = vmatpush1.msra.mxu0 0.0
    %1493 = vmatprep.subr.mxu0 0.0
    %1494 = vmatpush1.msra.mxu0 0.0
    %1495 = vmatprep.subr.mxu0 0.0
    %1496 = vmatpush1.msra.mxu0 0.0
    %1497 = vmatprep.subr.mxu0 0.0
    %1498 = vmatpush1.msra.mxu0 0.0
    %1499 = vmatprep.subr.mxu0 0.0
    %1500 = vmatpush1.msra.mxu0 0.0
    %1501 = vmatprep.subr.mxu0 0.0
    %1502 = vmatpush1.msra.mxu0 0.0
    %1503 = vmatprep.subr.mxu0 0.0
    %1504 = vmatpush1.msra.mxu0 0.0
    %1505 = vmatprep.subr.mxu0 0.0
    %1506 = vmatpush1.msra.mxu0 0.0
    %1507 = vmatprep.subr.mxu0 0.0
    %1508 = vmatpush1.msra.mxu0 0.0
    %1509 = vmatprep.subr.mxu0 0.0
    %1510 = vmatpush1.msra.mxu0 0.0
    %1511 = vmatprep.subr.mxu0 0.0
    %1512 = vmatpush1.msra.mxu0 0.0
    %1513 = vmatprep.subr.mxu0 0.0
    %1514 = vmatpush1.msra.mxu0 0.0
    %1515 = vmatprep.subr.mxu0 0.0
    %1516 = vmatpush1.msra.mxu0 0.0
    %1517 = vmatprep.mubr.f32.mxu0 0.0
    %v1518 = vand.u32 %v539, 4294901760
    %v1519 = vsub.f32 %v539, %v1518
    %v1520 = vand.u32 %v1519, 4294901760
    %1521 = vmatmul.mubr.f32.gmra.mrb[0].mxu0 %v1520
    %v1522 = vpop.f32.mrb[0].mxu0
    %v1523 = vadd.f32 %v1443, %v1522
    %v1524 = vpop.f32.mrb[0].mxu0
    %1525 = vdwg.mxu0
    %1526 = vmatprep.subr.mxu0 0.0
    %v1527 = vand.u32 %v501, 4294901760
    %v1528 = vsub.f32 %v501, %v1527
    %v1529 = vand.u32 %v1528, 4294901760
    %1530 = vmatpush1.msra.mxu0 %v1529
    %1531 = vmatprep.subr.mxu0 0.0
    %v1532 = vand.u32 %v504, 4294901760
    %v1533 = vsub.f32 %v504, %v1532
    %v1534 = vand.u32 %v1533, 4294901760
    %1535 = vmatpush1.msra.mxu0 %v1534
    %1536 = vmatprep.subr.mxu0 0.0
    %v1537 = vand.u32 %v507, 4294901760
    %v1538 = vsub.f32 %v507, %v1537
    %v1539 = vand.u32 %v1538, 4294901760
    %1540 = vmatpush1.msra.mxu0 %v1539
    %1541 = vmatprep.subr.mxu0 0.0
    %v1542 = vand.u32 %v510, 4294901760
    %v1543 = vsub.f32 %v510, %v1542
    %v1544 = vand.u32 %v1543, 4294901760
    %1545 = vmatpush1.msra.mxu0 %v1544
    %1546 = vmatprep.subr.mxu0 0.0
    %v1547 = vand.u32 %v513, 4294901760
    %v1548 = vsub.f32 %v513, %v1547
    %v1549 = vand.u32 %v1548, 4294901760
    %1550 = vmatpush1.msra.mxu0 %v1549
    %1551 = vmatprep.subr.mxu0 0.0
    %v1552 = vand.u32 %v516, 4294901760
    %v1553 = vsub.f32 %v516, %v1552
    %v1554 = vand.u32 %v1553, 4294901760
    %1555 = vmatpush1.msra.mxu0 %v1554
    %1556 = vmatprep.subr.mxu0 0.0
    %v1557 = vand.u32 %v549, 4294901760
    %v1558 = vsub.f32 %v549, %v1557
    %v1559 = vand.u32 %v1558, 4294901760
    %1560 = vmatpush1.msra.mxu0 %v1559
    %1561 = vmatprep.subr.mxu0 0.0
    %1562 = vmatpush1.msra.mxu0 0.0
    %1563 = vmatprep.subr.mxu0 0.0
    %1564 = vmatpush1.msra.mxu0 0.0
    %1565 = vmatprep.subr.mxu0 0.0
    %1566 = vmatpush1.msra.mxu0 0.0
    %1567 = vmatprep.subr.mxu0 0.0
    %1568 = vmatpush1.msra.mxu0 0.0
    %1569 = vmatprep.subr.mxu0 0.0
    %1570 = vmatpush1.msra.mxu0 0.0
    %1571 = vmatprep.subr.mxu0 0.0
    %1572 = vmatpush1.msra.mxu0 0.0
    %1573 = vmatprep.subr.mxu0 0.0
    %1574 = vmatpush1.msra.mxu0 0.0
    %1575 = vmatprep.subr.mxu0 0.0
    %1576 = vmatpush1.msra.mxu0 0.0
    %1577 = vmatprep.subr.mxu0 0.0
    %1578 = vmatpush1.msra.mxu0 0.0
    %1579 = vmatprep.subr.mxu0 0.0
    %1580 = vmatpush1.msra.mxu0 0.0
    %1581 = vmatprep.subr.mxu0 0.0
    %1582 = vmatpush1.msra.mxu0 0.0
    %1583 = vmatprep.subr.mxu0 0.0
    %1584 = vmatpush1.msra.mxu0 0.0
    %1585 = vmatprep.subr.mxu0 0.0
    %1586 = vmatpush1.msra.mxu0 0.0
    %1587 = vmatprep.subr.mxu0 0.0
    %1588 = vmatpush1.msra.mxu0 0.0
    %1589 = vmatprep.subr.mxu0 0.0
    %1590 = vmatpush1.msra.mxu0 0.0
    %1591 = vmatprep.subr.mxu0 0.0
    %1592 = vmatpush1.msra.mxu0 0.0
    %1593 = vmatprep.subr.mxu0 0.0
    %1594 = vmatpush1.msra.mxu0 0.0
    %1595 = vmatprep.subr.mxu0 0.0
    %1596 = vmatpush1.msra.mxu0 0.0
    %1597 = vmatprep.subr.mxu0 0.0
    %1598 = vmatpush1.msra.mxu0 0.0
    %1599 = vmatprep.subr.mxu0 0.0
    %1600 = vmatpush1.msra.mxu0 0.0
    %1601 = vmatprep.subr.mxu0 0.0
    %1602 = vmatpush1.msra.mxu0 0.0
    %1603 = vmatprep.subr.mxu0 0.0
    %1604 = vmatpush1.msra.mxu0 0.0
    %1605 = vmatprep.subr.mxu0 0.0
    %1606 = vmatpush1.msra.mxu0 0.0
    %1607 = vmatprep.subr.mxu0 0.0
    %1608 = vmatpush1.msra.mxu0 0.0
    %1609 = vmatprep.subr.mxu0 0.0
    %1610 = vmatpush1.msra.mxu0 0.0
    %1611 = vmatprep.mubr.f32.mxu0 0.0
    %v1612 = vand.u32 %v539, 4294901760
    %1613 = vmatmul.mubr.f32.gmra.mrb[0].mxu0 %v1612
    %v1614 = vpop.f32.mrb[0].mxu0
    %v1615 = vadd.f32 %v1523, %v1614
    %v1616 = vpop.f32.mrb[0].mxu0
    %1617 = vdwg.mxu0
    %1618 = vmatprep.subr.mxu0 0.0
    %v1619 = vand.u32 %v501, 4294901760
    %1620 = vmatpush1.msra.mxu0 %v1619
    %1621 = vmatprep.subr.mxu0 0.0
    %v1622 = vand.u32 %v504, 4294901760
    %1623 = vmatpush1.msra.mxu0 %v1622
    %1624 = vmatprep.subr.mxu0 0.0
    %v1625 = vand.u32 %v507, 4294901760
    %1626 = vmatpush1.msra.mxu0 %v1625
    %1627 = vmatprep.subr.mxu0 0.0
    %v1628 = vand.u32 %v510, 4294901760
    %1629 = vmatpush1.msra.mxu0 %v1628
    %1630 = vmatprep.subr.mxu0 0.0
    %v1631 = vand.u32 %v513, 4294901760
    %1632 = vmatpush1.msra.mxu0 %v1631
    %1633 = vmatprep.subr.mxu0 0.0
    %v1634 = vand.u32 %v516, 4294901760
    %1635 = vmatpush1.msra.mxu0 %v1634
    %1636 = vmatprep.subr.mxu0 0.0
    %v1637 = vand.u32 %v549, 4294901760
    %1638 = vmatpush1.msra.mxu0 %v1637
    %1639 = vmatprep.subr.mxu0 0.0
    %1640 = vmatpush1.msra.mxu0 0.0
    %1641 = vmatprep.subr.mxu0 0.0
    %1642 = vmatpush1.msra.mxu0 0.0
    %1643 = vmatprep.subr.mxu0 0.0
    %1644 = vmatpush1.msra.mxu0 0.0
    %1645 = vmatprep.subr.mxu0 0.0
    %1646 = vmatpush1.msra.mxu0 0.0
    %1647 = vmatprep.subr.mxu0 0.0
    %1648 = vmatpush1.msra.mxu0 0.0
    %1649 = vmatprep.subr.mxu0 0.0
    %1650 = vmatpush1.msra.mxu0 0.0
    %1651 = vmatprep.subr.mxu0 0.0
    %1652 = vmatpush1.msra.mxu0 0.0
    %1653 = vmatprep.subr.mxu0 0.0
    %1654 = vmatpush1.msra.mxu0 0.0
    %1655 = vmatprep.subr.mxu0 0.0
    %1656 = vmatpush1.msra.mxu0 0.0
    %1657 = vmatprep.subr.mxu0 0.0
    %1658 = vmatpush1.msra.mxu0 0.0
    %1659 = vmatprep.subr.mxu0 0.0
    %1660 = vmatpush1.msra.mxu0 0.0
    %1661 = vmatprep.subr.mxu0 0.0
    %1662 = vmatpush1.msra.mxu0 0.0
    %1663 = vmatprep.subr.mxu0 0.0
    %1664 = vmatpush1.msra.mxu0 0.0
    %1665 = vmatprep.subr.mxu0 0.0
    %1666 = vmatpush1.msra.mxu0 0.0
    %1667 = vmatprep.subr.mxu0 0.0
    %1668 = vmatpush1.msra.mxu0 0.0
    %1669 = vmatprep.subr.mxu0 0.0
    %1670 = vmatpush1.msra.mxu0 0.0
    %1671 = vmatprep.subr.mxu0 0.0
    %1672 = vmatpush1.msra.mxu0 0.0
    %1673 = vmatprep.subr.mxu0 0.0
    %1674 = vmatpush1.msra.mxu0 0.0
    %1675 = vmatprep.subr.mxu0 0.0
    %1676 = vmatpush1.msra.mxu0 0.0
    %1677 = vmatprep.subr.mxu0 0.0
    %1678 = vmatpush1.msra.mxu0 0.0
    %1679 = vmatprep.subr.mxu0 0.0
    %1680 = vmatpush1.msra.mxu0 0.0
    %1681 = vmatprep.subr.mxu0 0.0
    %1682 = vmatpush1.msra.mxu0 0.0
    %1683 = vmatprep.subr.mxu0 0.0
    %1684 = vmatpush1.msra.mxu0 0.0
    %1685 = vmatprep.subr.mxu0 0.0
    %1686 = vmatpush1.msra.mxu0 0.0
    %1687 = vmatprep.subr.mxu0 0.0
    %1688 = vmatpush1.msra.mxu0 0.0
    %1689 = vmatprep.mubr.f32.mxu0 0.0
    %v1690 = vand.u32 %v539, 4294901760
    %1691 = vmatmul.mubr.f32.gmra.mrb[0].mxu0 %v1690
    %v1692 = vpop.f32.mrb[0].mxu0
    %v1693 = vadd.f32 %v1615, %v1692
    %v1694 = vpop.f32.mrb[0].mxu0
    %1695 = vdwg.mxu0
    %v1696 = vmax.f32 %v1168, 0.0
    %v1697 = vmax.f32 %v1170, 0.0
    %v1698 = vmax.f32 %v1693, 0.0
    %v1702 = vcombine.low %v1696, %v1697
    %v1704 = vunpack.c.l.s4 1983009808
    %v1705 = vunpack.c.0.s8 %v1704
    %v1706 = vlaneseq
    %v1707 = vshrl.u32 %v1706, 7
    %v1708 = vsub.s32 %v1705, %v1707
    %v1709 = vrot.slane %v1702, %v1708
    %v1711 = vunpack.c.l.s4 1983009808
    %v1712 = vunpack.c.0.s8 %v1711
    %v1713 = vlaneseq
    %v1714 = vshrl.u32 %v1713, 7
    %v1715 = vsub.s32 %v1712, %v1714
    %v1716 = vrot.slane %v1698, %v1715
    %v1717 = vcombine.low %v1709, %v1716
    %vm1719 = vcmask 1043458
    %vm1720 = vmor %vm1719, %vm541
    %vm1721 = vcmask 881668
    %vm1722 = vmor %vm1721, %vm1720
    %1723 = vst.msk [vmem:[#allocation2] sm:$0x3f] %vm1722, %v1717
    %vm1724 = vcmask 424960
    %1725 = vst.msk [vmem:[#allocation3] sm:$0xff] %vm1724, 0.0
    %1726 = vst.msk [vmem:[#allocation3 + $0x8] sm:$0xff] %vm1724, 0.0
    %1727 = vst.msk [vmem:[#allocation3 + $0x10] sm:$0xff] %vm1724, 0.0
    %vm1728 = vcmask 418816
    %1729 = vst.msk [vmem:[#allocation3 + $0x18] sm:$0x3] %vm1728, 0.0
    %vm1730 = vcmask 523264
    %1731 = vst.msk [vmem:[#allocation5] sm:$0xff] %vm1730, 0.0
    %1732 = vst.msk [vmem:[#allocation5 + $0x8] sm:$0xff] %vm1730, 0.0
    %1733 = vst.msk [vmem:[#allocation5 + $0x10] sm:$0xff] %vm1730, 0.0
    %1734 = vst.msk [vmem:[#allocation5 + $0x18] sm:$0xff] %vm1730, 0.0
    %vm1735 = vcmask 621568
    %1736 = vst.msk [vmem:[#allocation7] sm:$0xff] %vm1735, 0.0
    %1737 = vst.msk [vmem:[#allocation7 + $0x8] sm:$0xff] %vm1735, 0.0
    %1738 = vst.msk [vmem:[#allocation7 + $0x10] sm:$0xff] %vm1735, 0.0
    %1739 = vst.msk [vmem:[#allocation7 + $0x18] sm:$0xff] %vm1735, 0.0
    %vm1740 = vcmask 619520
    %1741 = vst.msk [vmem:[#allocation7 + $0x20] sm:$0x3f] %vm1740, 0.0
    %v1742 = vld [vmem:[#allocation2] sm:$0x1]
    %vm1743 = vcmask 417792
    %1744 = vst.msk [vmem:[#allocation3 + $0x3] sm:$0x1] %vm1743, %v1742
    %v1745 = vld [vmem:[#allocation2] sm:$0x1]
    %v1747 = vlaneseq
    %v1748 = vshrl.u32 %v1747, 7
    %v1749 = vsub.s32 0, %v1748
    %v1750 = vrot.slane %v1745, %v1749
    %1751 = vrot.lane.b32.xlu0 %v1750, 76
    %v1752 = vpop.permute.xlu0 %1751
    %1754 = vst.msk [vmem:[#allocation3 + $0x4] sm:$0x1] %vm1743, %v1752
    %v1755 = vld [vmem:[#allocation2] sm:$0x5]
    %v1757 = vlaneseq
    %v1758 = vshrl.u32 %v1757, 7
    %v1759 = vsub.s32 0, %v1758
    %v1760 = vrot.slane %v1755, %v1759
    %v1761 = vlaneseq
    %v1762 = vshrl.u32 %v1761, 7
    %v1763 = vsub.s32 2, %v1762
    %v1764 = vrot.slane %v1755, %v1763
    %1765 = vrot.lane.b32.xlu0 %v1760, 24
    %v1766 = vpop.permute.xlu0 %1765
    %1767 = vrot.lane.b32.xlu0 %v1764, 24
    %v1768 = vpop.permute.xlu0 %1767
    %vm1769 = vcmask 195584
    %v1770 = vsel %vm1769, %v1766, %v1768
    %1772 = vst.msk [vmem:[#allocation3 + $0x5] sm:$0x1] %vm1743, %v1770
    %v1773 = vld [vmem:[#allocation2 + $0x2] sm:$0x1]
    %v1775 = vlaneseq
    %v1776 = vshrl.u32 %v1775, 7
    %v1777 = vsub.s32 0, %v1776
    %v1778 = vrot.slane %v1773, %v1777
    %1779 = vrot.lane.b32.xlu0 %v1778, 100
    %v1780 = vpop.permute.xlu0 %1779
    %1782 = vst.msk [vmem:[#allocation3 + $0x6] sm:$0x1] %vm1743, %v1780
    %v1783 = vld [vmem:[#allocation2 + $0x2] sm:$0x5]
    %v1785 = vlaneseq
    %v1786 = vshrl.u32 %v1785, 7
    %v1787 = vsub.s32 0, %v1786
    %v1788 = vrot.slane %v1783, %v1787
    %v1789 = vlaneseq
    %v1790 = vshrl.u32 %v1789, 7
    %v1791 = vsub.s32 2, %v1790
    %v1792 = vrot.slane %v1783, %v1791
    %1793 = vrot.lane.b32.xlu0 %v1788, 48
    %v1794 = vpop.permute.xlu0 %1793
    %1795 = vrot.lane.b32.xlu0 %v1792, 48
    %v1796 = vpop.permute.xlu0 %1795
    %vm1797 = vcmask 392192
    %v1798 = vsel %vm1797, %v1794, %v1796
    %1800 = vst.msk [vmem:[#allocation3 + $0x7] sm:$0x1] %vm1743, %v1798
    %v1801 = vld [vmem:[#allocation2 + $0x4] sm:$0x1]
    %v1803 = vlaneseq
    %v1804 = vshrl.u32 %v1803, 7
    %v1805 = vsub.s32 0, %v1804
    %v1806 = vrot.slane %v1801, %v1805
    %1807 = vrot.lane.b32.xlu0 %v1806, 124
    %v1808 = vpop.permute.xlu0 %1807
    %1810 = vst.msk [vmem:[#allocation3 + $0x8] sm:$0x1] %vm1743, %v1808
    %v1811 = vld [vmem:[#allocation2 + $0x4] sm:$0x1]
    %v1813 = vlaneseq
    %v1814 = vshrl.u32 %v1813, 7
    %v1815 = vsub.s32 0, %v1814
    %v1816 = vrot.slane %v1811, %v1815
    %1817 = vrot.lane.b32.xlu0 %v1816, 72
    %v1818 = vpop.permute.xlu0 %1817
    %1820 = vst.msk [vmem:[#allocation3 + $0x9] sm:$0x1] %vm1743, %v1818
    %v1821 = vld [vmem:[#allocation2 + $0x1] sm:$0x1]
    %1822 = vst.msk [vmem:[#allocation3 + $0x10] sm:$0x1] %vm1743, %v1821
    %v1823 = vld [vmem:[#allocation2 + $0x1] sm:$0x1]
    %v1825 = vlaneseq
    %v1826 = vshrl.u32 %v1825, 7
    %v1827 = vsub.s32 0, %v1826
    %v1828 = vrot.slane %v1823, %v1827
    %1829 = vrot.lane.b32.xlu0 %v1828, 76
    %v1830 = vpop.permute.xlu0 %1829
    %1832 = vst.msk [vmem:[#allocation3 + $0x11] sm:$0x1] %vm1743, %v1830
    %v1833 = vld [vmem:[#allocation2 + $0x1] sm:$0x5]
    %v1835 = vlaneseq
    %v1836 = vshrl.u32 %v1835, 7
    %v1837 = vsub.s32 0, %v1836
    %v1838 = vrot.slane %v1833, %v1837
    %v1839 = vlaneseq
    %v1840 = vshrl.u32 %v1839, 7
    %v1841 = vsub.s32 2, %v1840
    %v1842 = vrot.slane %v1833, %v1841
    %1843 = vrot.lane.b32.xlu0 %v1838, 24
    %v1844 = vpop.permute.xlu0 %1843
    %1845 = vrot.lane.b32.xlu0 %v1842, 24
    %v1846 = vpop.permute.xlu0 %1845
    %v1847 = vsel %vm1769, %v1844, %v1846
    %1849 = vst.msk [vmem:[#allocation3 + $0x12] sm:$0x1] %vm1743, %v1847
    %v1850 = vld [vmem:[#allocation2 + $0x3] sm:$0x1]
    %v1852 = vlaneseq
    %v1853 = vshrl.u32 %v1852, 7
    %v1854 = vsub.s32 0, %v1853
    %v1855 = vrot.slane %v1850, %v1854
    %1856 = vrot.lane.b32.xlu0 %v1855, 100
    %v1857 = vpop.permute.xlu0 %1856
    %1859 = vst.msk [vmem:[#allocation3 + $0x13] sm:$0x1] %vm1743, %v1857
    %v1860 = vld [vmem:[#allocation2 + $0x3] sm:$0x5]
    %v1862 = vlaneseq
    %v1863 = vshrl.u32 %v1862, 7
    %v1864 = vsub.s32 0, %v1863
    %v1865 = vrot.slane %v1860, %v1864
    %v1866 = vlaneseq
    %v1867 = vshrl.u32 %v1866, 7
    %v1868 = vsub.s32 2, %v1867
    %v1869 = vrot.slane %v1860, %v1868
    %1870 = vrot.lane.b32.xlu0 %v1865, 48
    %v1871 = vpop.permute.xlu0 %1870
    %1872 = vrot.lane.b32.xlu0 %v1869, 48
    %v1873 = vpop.permute.xlu0 %1872
    %v1874 = vsel %vm1797, %v1871, %v1873
    %1876 = vst.msk [vmem:[#allocation3 + $0x14] sm:$0x1] %vm1743, %v1874
    %v1877 = vld [vmem:[#allocation2 + $0x5] sm:$0x1]
    %v1879 = vlaneseq
    %v1880 = vshrl.u32 %v1879, 7
    %v1881 = vsub.s32 0, %v1880
    %v1882 = vrot.slane %v1877, %v1881
    %1883 = vrot.lane.b32.xlu0 %v1882, 124
    %v1884 = vpop.permute.xlu0 %1883
    %1886 = vst.msk [vmem:[#allocation3 + $0x15] sm:$0x1] %vm1743, %v1884
    %v1887 = vld [vmem:[#allocation2 + $0x5] sm:$0x1]
    %v1889 = vlaneseq
    %v1890 = vshrl.u32 %v1889, 7
    %v1891 = vsub.s32 0, %v1890
    %v1892 = vrot.slane %v1887, %v1891
    %1893 = vrot.lane.b32.xlu0 %v1892, 72
    %v1894 = vpop.permute.xlu0 %1893
    %1896 = vst.msk [vmem:[#allocation3 + $0x16] sm:$0x1] %vm1743, %v1894
    %v1897 = vld [vmem:[#allocation3] sm:$0xff]
    %v1898 = vld [vmem:[#allocation3 + $0x8] sm:$0x3]
    %1899 = vst.msk [vmem:[#allocation4] sm:$0xff] %vm1724, %v1897
    %1900 = vst.msk [vmem:[#allocation4 + $0x10] sm:$0x3] %vm1728, %v1898
    %v1901 = vld [vmem:[#allocation3 + $0x1] sm:$0xff]
    %v1902 = vld [vmem:[#allocation3 + $0x9] sm:$0x3]
    %1905 = vrot.lane.b32.xlu0 %v1901, 52
    %v1906 = vpop.permute.xlu0 %1905
    %1907 = vrot.lane.b32.xlu0 %v1902, 52
    %v1908 = vpop.permute.xlu0 %1907
    %vm1911 = vcmask 851360
    %1912 = vst.msk [vmem:[#allocation4] sm:$0xff] %vm1911, %v1906
    %vm1913 = vcmask 845216
    %1914 = vst.msk [vmem:[#allocation4 + $0x10] sm:$0x3] %vm1913, %v1908
    %v1915 = vld [vmem:[#allocation3 + $0x2] sm:$0xff]
    %v1916 = vld [vmem:[#allocation3 + $0xa] sm:$0x3]
    %1919 = vrot.lane.b32.xlu0 %v1915, 104
    %v1920 = vpop.permute.xlu0 %1919
    %1921 = vrot.lane.b32.xlu0 %v1916, 104
    %v1922 = vpop.permute.xlu0 %1921
    %vm1925 = vcmask 1048384
    %1926 = vst.msk [vmem:[#allocation4] sm:$0xff] %vm1925, %v1920
    %vm1927 = vcmask 228352
    %1928 = vst.msk [vmem:[#allocation4 + $0x8] sm:$0xff] %vm1927, %v1920
    %vm1929 = vcmask 1042240
    %1930 = vst.msk [vmem:[#allocation4 + $0x10] sm:$0x3] %vm1929, %v1922
    %vm1931 = vcmask 222208
    %1932 = vst.msk [vmem:[#allocation4 + $0x18] sm:$0x3] %vm1931, %v1922
    %v1933 = vld [vmem:[#allocation3 + $0x3] sm:$0xff]
    %v1934 = vld [vmem:[#allocation3 + $0xb] sm:$0x3]
    %1937 = vrot.lane.b32.xlu0 %v1933, 28
    %v1938 = vpop.permute.xlu0 %1937
    %1939 = vrot.lane.b32.xlu0 %v1934, 28
    %v1940 = vpop.permute.xlu0 %1939
    %vm1943 = vcmask 654560
    %1944 = vst.msk [vmem:[#allocation4 + $0x8] sm:$0xff] %vm1943, %v1938
    %vm1945 = vcmask 648416
    %1946 = vst.msk [vmem:[#allocation4 + $0x18] sm:$0x3] %vm1945, %v1940
    %v1947 = vld [vmem:[#allocation3 + $0xd] sm:$0xff]
    %v1948 = vld [vmem:[#allocation3 + $0x15] sm:$0x3]
    %v1951 = vrot.slane %v1947, 6
    %v1952 = vrot.slane %v1948, 6
    %v1953 = vsel %vm541, %v1951, %v1952
    %vm1956 = vcmask 424962
    %1957 = vst.msk [vmem:[#allocation4 + $0x10] sm:$0xfc] %vm1956, %v1951
    %vm1958 = vcmask 420864
    %1959 = vst.msk [vmem:[#allocation4 + $0x20] sm:$0xf] %vm1958, %v1953
    %v1960 = vld [vmem:[#allocation3 + $0xe] sm:$0xff]
    %v1961 = vld [vmem:[#allocation3 + $0x16] sm:$0x3]
    %v1964 = vrot.slane %v1960, 6
    %v1965 = vrot.slane %v1961, 6
    %v1966 = vsel %vm541, %v1964, %v1965
    %1967 = vrot.lane.b32.xlu0 %v1964, 52
    %v1968 = vpop.permute.xlu0 %1967
    %1969 = vrot.lane.b32.xlu0 %v1966, 52
    %v1970 = vpop.permute.xlu0 %1969
    %vm1973 = vcmask 851362
    %1974 = vst.msk [vmem:[#allocation4 + $0x10] sm:$0xfc] %vm1973, %v1968
    %vm1975 = vcmask 847264
    %1976 = vst.msk [vmem:[#allocation4 + $0x20] sm:$0xf] %vm1975, %v1970
    %v1977 = vld [vmem:[#allocation3 + $0xf] sm:$0xff]
    %v1978 = vld [vmem:[#allocation3 + $0x17] sm:$0x3]
    %v1981 = vrot.slane %v1977, 6
    %v1982 = vrot.slane %v1978, 6
    %v1983 = vsel %vm541, %v1981, %v1982
    %1984 = vrot.lane.b32.xlu0 %v1981, 104
    %v1985 = vpop.permute.xlu0 %1984
    %1986 = vrot.lane.b32.xlu0 %v1983, 104
    %v1987 = vpop.permute.xlu0 %1986
    %vm1990 = vcmask 1048386
    %1991 = vst.msk [vmem:[#allocation4 + $0x10] sm:$0xfc] %vm1990, %v1985
    %vm1992 = vcmask 228354
    %1993 = vst.msk [vmem:[#allocation4 + $0x18] sm:$0xfc] %vm1992, %v1985
    %vm1994 = vcmask 1044288
    %1995 = vst.msk [vmem:[#allocation4 + $0x20] sm:$0xf] %vm1994, %v1987
    %vm1996 = vcmask 224256
    %1997 = vst.msk [vmem:[#allocation4 + $0x28] sm:$0xf] %vm1996, %v1987
    %v1998 = vld [vmem:[#allocation3 + $0x10] sm:$0xff]
    %v1999 = vld [vmem:[#allocation3 + $0x18] sm:$0x3]
    %v2002 = vrot.slane %v1998, 6
    %v2003 = vrot.slane %v1999, 6
    %v2004 = vsel %vm541, %v2002, %v2003
    %2005 = vrot.lane.b32.xlu0 %v2002, 28
    %v2006 = vpop.permute.xlu0 %2005
    %2007 = vrot.lane.b32.xlu0 %v2004, 28
    %v2008 = vpop.permute.xlu0 %2007
    %vm2011 = vcmask 654562
    %2012 = vst.msk [vmem:[#allocation4 + $0x18] sm:$0xfc] %vm2011, %v2006
    %vm2013 = vcmask 650464
    %2014 = vst.msk [vmem:[#allocation4 + $0x28] sm:$0xf] %vm2013, %v2008
    %v2015 = vld [vmem:[#allocation4] sm:$0xff]
    %v2016 = vld [vmem:[#allocation4 + $0x8] sm:$0xff]
    %v2017 = vld [vmem:[#allocation4 + $0x10] sm:$0xff]
    %v2018 = vld [vmem:[#allocation4 + $0x18] sm:$0xff]
    %v2019 = vld [vmem:[#allocation4 + $0x20] sm:$0xf]
    %v2020 = vld [vmem:[#allocation4 + $0x28] sm:$0xf]
    %v2021 = vld [vmem:[%s5] sm:$0xff]
    %v2022 = vld [vmem:[%s5 + $0x8] sm:$0xff]
    %v2023 = vld [vmem:[%s5 + $0x10] sm:$0xff]
    %v2024 = vld [vmem:[%s5 + $0x18] sm:$0xff]
    %v2025 = vld [vmem:[%s5 + $0x20] sm:$0xff]
    %v2026 = vld [vmem:[%s5 + $0x28] sm:$0xff]
    %v2027 = vld [vmem:[%s5 + $0x30] sm:$0xff]
    %v2028 = vld [vmem:[%s5 + $0x38] sm:$0xff]
    %v2029 = vld [vmem:[%s5 + $0x40] sm:$0xff]
    %v2030 = vld [vmem:[%s5 + $0x48] sm:$0xff]
    %v2031 = vld [vmem:[%s5 + $0x50] sm:$0xff]
    %v2032 = vld [vmem:[%s5 + $0x58] sm:$0xff]
    %v2033 = vld [vmem:[%s5 + $0x60] sm:$0xff]
    %v2034 = vld [vmem:[%s5 + $0x68] sm:$0xff]
    %v2035 = vld [vmem:[%s5 + $0x70] sm:$0xff]
    %v2036 = vld [vmem:[%s5 + $0x78] sm:$0xff]
    %v2037 = vld [vmem:[%s5 + $0x80] sm:$0xff]
    %v2038 = vld [vmem:[%s5 + $0x88] sm:$0xff]
    %v2039 = vld [vmem:[%s5 + $0x90] sm:$0xff]
    %v2040 = vld [vmem:[%s5 + $0x98] sm:$0xff]
    %v2041 = vld [vmem:[%s5 + $0xa0] sm:$0xff]
    %v2042 = vld [vmem:[%s5 + $0xa8] sm:$0xff]
    %v2043 = vld [vmem:[%s5 + $0xb0] sm:$0xff]
    %v2044 = vld [vmem:[%s5 + $0xb8] sm:$0xff]
    %v2045 = vld [vmem:[%s5 + $0xc0] sm:$0xff]
    %v2046 = vld [vmem:[%s5 + $0xc8] sm:$0xff]
    %v2047 = vld [vmem:[%s6] sm:$0x1]
    %v2049 = vlaneseq
    %v2050 = vshrl.u32 %v2049, 7
    %v2051 = vsub.s32 0, %v2050
    %v2052 = vrot.slane %v2047, %v2051
    %vm2054 = vcmask 654336
    %v2056 = vsel %vm2054, %v2016, 0
    %v2059 = vsel %vm2054, %v2018, 0
    %v2062 = vsel %vm2054, %v2020, 0
    %2064 = vmatprep.subr.mxu0 0.0
    %v2065 = vand.u32 %v2021, 4294901760
    %2066 = vmatpush1.msra.mxu0 %v2065
    %2067 = vmatprep.subr.mxu0 0.0
    %v2068 = vand.u32 %v2022, 4294901760
    %2069 = vmatpush1.msra.mxu0 %v2068
    %2070 = vmatprep.subr.mxu0 0.0
    %v2071 = vand.u32 %v2023, 4294901760
    %2072 = vmatpush1.msra.mxu0 %v2071
    %2073 = vmatprep.subr.mxu0 0.0
    %v2074 = vand.u32 %v2024, 4294901760
    %2075 = vmatpush1.msra.mxu0 %v2074
    %2076 = vmatprep.subr.mxu0 0.0
    %v2077 = vand.u32 %v2025, 4294901760
    %2078 = vmatpush1.msra.mxu0 %v2077
    %2079 = vmatprep.subr.mxu0 0.0
    %v2080 = vand.u32 %v2026, 4294901760
    %2081 = vmatpush1.msra.mxu0 %v2080
    %2082 = vmatprep.subr.mxu0 0.0
    %v2083 = vand.u32 %v2027, 4294901760
    %2084 = vmatpush1.msra.mxu0 %v2083
    %2085 = vmatprep.subr.mxu0 0.0
    %v2086 = vand.u32 %v2028, 4294901760
    %2087 = vmatpush1.msra.mxu0 %v2086
    %2088 = vmatprep.subr.mxu0 0.0
    %v2089 = vand.u32 %v2029, 4294901760
    %2090 = vmatpush1.msra.mxu0 %v2089
    %2091 = vmatprep.subr.mxu0 0.0
    %v2092 = vand.u32 %v2030, 4294901760
    %2093 = vmatpush1.msra.mxu0 %v2092
    %2094 = vmatprep.subr.mxu0 0.0
    %v2095 = vand.u32 %v2031, 4294901760
    %2096 = vmatpush1.msra.mxu0 %v2095
    %2097 = vmatprep.subr.mxu0 0.0
    %v2098 = vand.u32 %v2032, 4294901760
    %2099 = vmatpush1.msra.mxu0 %v2098
    %2100 = vmatprep.subr.mxu0 0.0
    %v2101 = vand.u32 %v2033, 4294901760
    %2102 = vmatpush1.msra.mxu0 %v2101
    %2103 = vmatprep.subr.mxu0 0.0
    %v2104 = vand.u32 %v2034, 4294901760
    %2105 = vmatpush1.msra.mxu0 %v2104
    %2106 = vmatprep.subr.mxu0 0.0
    %v2107 = vand.u32 %v2035, 4294901760
    %2108 = vmatpush1.msra.mxu0 %v2107
    %2109 = vmatprep.subr.mxu0 0.0
    %v2110 = vand.u32 %v2036, 4294901760
    %2111 = vmatpush1.msra.mxu0 %v2110
    %2112 = vmatprep.subr.mxu0 0.0
    %v2113 = vand.u32 %v2037, 4294901760
    %2114 = vmatpush1.msra.mxu0 %v2113
    %2115 = vmatprep.subr.mxu0 0.0
    %v2116 = vand.u32 %v2038, 4294901760
    %2117 = vmatpush1.msra.mxu0 %v2116
    %2118 = vmatprep.subr.mxu0 0.0
    %v2119 = vand.u32 %v2039, 4294901760
    %2120 = vmatpush1.msra.mxu0 %v2119
    %2121 = vmatprep.subr.mxu0 0.0
    %v2122 = vand.u32 %v2040, 4294901760
    %2123 = vmatpush1.msra.mxu0 %v2122
    %2124 = vmatprep.subr.mxu0 0.0
    %v2125 = vand.u32 %v2041, 4294901760
    %2126 = vmatpush1.msra.mxu0 %v2125
    %2127 = vmatprep.subr.mxu0 0.0
    %v2128 = vand.u32 %v2042, 4294901760
    %2129 = vmatpush1.msra.mxu0 %v2128
    %2130 = vmatprep.subr.mxu0 0.0
    %v2131 = vand.u32 %v2043, 4294901760
    %2132 = vmatpush1.msra.mxu0 %v2131
    %2133 = vmatprep.subr.mxu0 0.0
    %v2134 = vand.u32 %v2044, 4294901760
    %2135 = vmatpush1.msra.mxu0 %v2134
    %2136 = vmatprep.subr.mxu0 0.0
    %v2137 = vand.u32 %v2045, 4294901760
    %2138 = vmatpush1.msra.mxu0 %v2137
    %2139 = vmatprep.subr.mxu0 0.0
    %v2140 = vand.u32 %v2046, 4294901760
    %2141 = vmatpush1.msra.mxu0 %v2140
    %2142 = vmatprep.subr.mxu0 0.0
    %2143 = vmatpush1.msra.mxu0 0.0
    %2144 = vmatprep.subr.mxu0 0.0
    %2145 = vmatpush1.msra.mxu0 0.0
    %2146 = vmatprep.subr.mxu0 0.0
    %2147 = vmatpush1.msra.mxu0 0.0
    %2148 = vmatprep.subr.mxu0 0.0
    %2149 = vmatpush1.msra.mxu0 0.0
    %2150 = vmatprep.subr.mxu0 0.0
    %2151 = vmatpush1.msra.mxu0 0.0
    %2152 = vmatprep.subr.mxu0 0.0
    %2153 = vmatpush1.msra.mxu0 0.0
    %v2154 = vand.u32 %v2056, 4294901760
    %v2155 = vsub.f32 %v2056, %v2154
    %v2156 = vand.u32 %v2155, 4294901760
    %v2157 = vsub.f32 %v2155, %v2156
    %v2158 = vand.u32 %v2157, 4294901760
    %2159 = vmatprep.mubr.f32.mxu0 %v2158
    %v2160 = vand.u32 %v2015, 4294901760
    %v2161 = vsub.f32 %v2015, %v2160
    %v2162 = vand.u32 %v2161, 4294901760
    %v2163 = vsub.f32 %v2161, %v2162
    %v2164 = vand.u32 %v2163, 4294901760
    %2165 = vmatmul.mubr.f32.gmra.mrb[0].mxu0 %v2164
    %v2166 = vpop.f32.mrb[0].mxu0
    %v2167 = vadd.f32 %v2052, %v2166
    %v2168 = vpop.f32.mrb[0].mxu0
    %v2169 = vand.u32 %v2059, 4294901760
    %v2170 = vsub.f32 %v2059, %v2169
    %v2171 = vand.u32 %v2170, 4294901760
    %v2172 = vsub.f32 %v2170, %v2171
    %v2173 = vand.u32 %v2172, 4294901760
    %2174 = vmatprep.mubr.f32.mxu0 %v2173
    %v2175 = vand.u32 %v2017, 4294901760
    %v2176 = vsub.f32 %v2017, %v2175
    %v2177 = vand.u32 %v2176, 4294901760
    %v2178 = vsub.f32 %v2176, %v2177
    %v2179 = vand.u32 %v2178, 4294901760
    %2180 = vmatmul.mubr.f32.gmra.mrb[0].mxu0 %v2179
    %v2181 = vpop.f32.mrb[0].mxu0
    %v2182 = vadd.f32 %v2052, %v2181
    %v2183 = vpop.f32.mrb[0].mxu0
    %v2184 = vand.u32 %v2062, 4294901760
    %v2185 = vsub.f32 %v2062, %v2184
    %v2186 = vand.u32 %v2185, 4294901760
    %v2187 = vsub.f32 %v2185, %v2186
    %v2188 = vand.u32 %v2187, 4294901760
    %2189 = vmatprep.mubr.f32.mxu0 %v2188
    %v2190 = vand.u32 %v2019, 4294901760
    %v2191 = vsub.f32 %v2019, %v2190
    %v2192 = vand.u32 %v2191, 4294901760
    %v2193 = vsub.f32 %v2191, %v2192
    %v2194 = vand.u32 %v2193, 4294901760
    %2195 = vmatmul.mubr.f32.gmra.mrb[0].mxu0 %v2194
    %v2196 = vpop.f32.mrb[0].mxu0
    %v2197 = vadd.f32 %v2052, %v2196
    %v2198 = vpop.f32.mrb[0].mxu0
    %2199 = vdwg.mxu0
    %2200 = vmatprep.subr.mxu0 0.0
    %v2201 = vand.u32 %v2021, 4294901760
    %v2202 = vsub.f32 %v2021, %v2201
    %v2203 = vand.u32 %v2202, 4294901760
    %v2204 = vsub.f32 %v2202, %v2203
    %v2205 = vand.u32 %v2204, 4294901760
    %2206 = vmatpush1.msra.mxu0 %v2205
    %2207 = vmatprep.subr.mxu0 0.0
    %v2208 = vand.u32 %v2022, 4294901760
    %v2209 = vsub.f32 %v2022, %v2208
    %v2210 = vand.u32 %v2209, 4294901760
    %v2211 = vsub.f32 %v2209, %v2210
    %v2212 = vand.u32 %v2211, 4294901760
    %2213 = vmatpush1.msra.mxu0 %v2212
    %2214 = vmatprep.subr.mxu0 0.0
    %v2215 = vand.u32 %v2023, 4294901760
    %v2216 = vsub.f32 %v2023, %v2215
    %v2217 = vand.u32 %v2216, 4294901760
    %v2218 = vsub.f32 %v2216, %v2217
    %v2219 = vand.u32 %v2218, 4294901760
    %2220 = vmatpush1.msra.mxu0 %v2219
    %2221 = vmatprep.subr.mxu0 0.0
    %v2222 = vand.u32 %v2024, 4294901760
    %v2223 = vsub.f32 %v2024, %v2222
    %v2224 = vand.u32 %v2223, 4294901760
    %v2225 = vsub.f32 %v2223, %v2224
    %v2226 = vand.u32 %v2225, 4294901760
    %2227 = vmatpush1.msra.mxu0 %v2226
    %2228 = vmatprep.subr.mxu0 0.0
    %v2229 = vand.u32 %v2025, 4294901760
    %v2230 = vsub.f32 %v2025, %v2229
    %v2231 = vand.u32 %v2230, 4294901760
    %v2232 = vsub.f32 %v2230, %v2231
    %v2233 = vand.u32 %v2232, 4294901760
    %2234 = vmatpush1.msra.mxu0 %v2233
    %2235 = vmatprep.subr.mxu0 0.0
    %v2236 = vand.u32 %v2026, 4294901760
    %v2237 = vsub.f32 %v2026, %v2236
    %v2238 = vand.u32 %v2237, 4294901760
    %v2239 = vsub.f32 %v2237, %v2238
    %v2240 = vand.u32 %v2239, 4294901760
    %2241 = vmatpush1.msra.mxu0 %v2240
    %2242 = vmatprep.subr.mxu0 0.0
    %v2243 = vand.u32 %v2027, 4294901760
    %v2244 = vsub.f32 %v2027, %v2243
    %v2245 = vand.u32 %v2244, 4294901760
    %v2246 = vsub.f32 %v2244, %v2245
    %v2247 = vand.u32 %v2246, 4294901760
    %2248 = vmatpush1.msra.mxu0 %v2247
    %2249 = vmatprep.subr.mxu0 0.0
    %v2250 = vand.u32 %v2028, 4294901760
    %v2251 = vsub.f32 %v2028, %v2250
    %v2252 = vand.u32 %v2251, 4294901760
    %v2253 = vsub.f32 %v2251, %v2252
    %v2254 = vand.u32 %v2253, 4294901760
    %2255 = vmatpush1.msra.mxu0 %v2254
    %2256 = vmatprep.subr.mxu0 0.0
    %v2257 = vand.u32 %v2029, 4294901760
    %v2258 = vsub.f32 %v2029, %v2257
    %v2259 = vand.u32 %v2258, 4294901760
    %v2260 = vsub.f32 %v2258, %v2259
    %v2261 = vand.u32 %v2260, 4294901760
    %2262 = vmatpush1.msra.mxu0 %v2261
    %2263 = vmatprep.subr.mxu0 0.0
    %v2264 = vand.u32 %v2030, 4294901760
    %v2265 = vsub.f32 %v2030, %v2264
    %v2266 = vand.u32 %v2265, 4294901760
    %v2267 = vsub.f32 %v2265, %v2266
    %v2268 = vand.u32 %v2267, 4294901760
    %2269 = vmatpush1.msra.mxu0 %v2268
    %2270 = vmatprep.subr.mxu0 0.0
    %v2271 = vand.u32 %v2031, 4294901760
    %v2272 = vsub.f32 %v2031, %v2271
    %v2273 = vand.u32 %v2272, 4294901760
    %v2274 = vsub.f32 %v2272, %v2273
    %v2275 = vand.u32 %v2274, 4294901760
    %2276 = vmatpush1.msra.mxu0 %v2275
    %2277 = vmatprep.subr.mxu0 0.0
    %v2278 = vand.u32 %v2032, 4294901760
    %v2279 = vsub.f32 %v2032, %v2278
    %v2280 = vand.u32 %v2279, 4294901760
    %v2281 = vsub.f32 %v2279, %v2280
    %v2282 = vand.u32 %v2281, 4294901760
    %2283 = vmatpush1.msra.mxu0 %v2282
    %2284 = vmatprep.subr.mxu0 0.0
    %v2285 = vand.u32 %v2033, 4294901760
    %v2286 = vsub.f32 %v2033, %v2285
    %v2287 = vand.u32 %v2286, 4294901760
    %v2288 = vsub.f32 %v2286, %v2287
    %v2289 = vand.u32 %v2288, 4294901760
    %2290 = vmatpush1.msra.mxu0 %v2289
    %2291 = vmatprep.subr.mxu0 0.0
    %v2292 = vand.u32 %v2034, 4294901760
    %v2293 = vsub.f32 %v2034, %v2292
    %v2294 = vand.u32 %v2293, 4294901760
    %v2295 = vsub.f32 %v2293, %v2294
    %v2296 = vand.u32 %v2295, 4294901760
    %2297 = vmatpush1.msra.mxu0 %v2296
    %2298 = vmatprep.subr.mxu0 0.0
    %v2299 = vand.u32 %v2035, 4294901760
    %v2300 = vsub.f32 %v2035, %v2299
    %v2301 = vand.u32 %v2300, 4294901760
    %v2302 = vsub.f32 %v2300, %v2301
    %v2303 = vand.u32 %v2302, 4294901760
    %2304 = vmatpush1.msra.mxu0 %v2303
    %2305 = vmatprep.subr.mxu0 0.0
    %v2306 = vand.u32 %v2036, 4294901760
    %v2307 = vsub.f32 %v2036, %v2306
    %v2308 = vand.u32 %v2307, 4294901760
    %v2309 = vsub.f32 %v2307, %v2308
    %v2310 = vand.u32 %v2309, 4294901760
    %2311 = vmatpush1.msra.mxu0 %v2310
    %2312 = vmatprep.subr.mxu0 0.0
    %v2313 = vand.u32 %v2037, 4294901760
    %v2314 = vsub.f32 %v2037, %v2313
    %v2315 = vand.u32 %v2314, 4294901760
    %v2316 = vsub.f32 %v2314, %v2315
    %v2317 = vand.u32 %v2316, 4294901760
    %2318 = vmatpush1.msra.mxu0 %v2317
    %2319 = vmatprep.subr.mxu0 0.0
    %v2320 = vand.u32 %v2038, 4294901760
    %v2321 = vsub.f32 %v2038, %v2320
    %v2322 = vand.u32 %v2321, 4294901760
    %v2323 = vsub.f32 %v2321, %v2322
    %v2324 = vand.u32 %v2323, 4294901760
    %2325 = vmatpush1.msra.mxu0 %v2324
    %2326 = vmatprep.subr.mxu0 0.0
    %v2327 = vand.u32 %v2039, 4294901760
    %v2328 = vsub.f32 %v2039, %v2327
    %v2329 = vand.u32 %v2328, 4294901760
    %v2330 = vsub.f32 %v2328, %v2329
    %v2331 = vand.u32 %v2330, 4294901760
    %2332 = vmatpush1.msra.mxu0 %v2331
    %2333 = vmatprep.subr.mxu0 0.0
    %v2334 = vand.u32 %v2040, 4294901760
    %v2335 = vsub.f32 %v2040, %v2334
    %v2336 = vand.u32 %v2335, 4294901760
    %v2337 = vsub.f32 %v2335, %v2336
    %v2338 = vand.u32 %v2337, 4294901760
    %2339 = vmatpush1.msra.mxu0 %v2338
    %2340 = vmatprep.subr.mxu0 0.0
    %v2341 = vand.u32 %v2041, 4294901760
    %v2342 = vsub.f32 %v2041, %v2341
    %v2343 = vand.u32 %v2342, 4294901760
    %v2344 = vsub.f32 %v2342, %v2343
    %v2345 = vand.u32 %v2344, 4294901760
    %2346 = vmatpush1.msra.mxu0 %v2345
    %2347 = vmatprep.subr.mxu0 0.0
    %v2348 = vand.u32 %v2042, 4294901760
    %v2349 = vsub.f32 %v2042, %v2348
    %v2350 = vand.u32 %v2349, 4294901760
    %v2351 = vsub.f32 %v2349, %v2350
    %v2352 = vand.u32 %v2351, 4294901760
    %2353 = vmatpush1.msra.mxu0 %v2352
    %2354 = vmatprep.subr.mxu0 0.0
    %v2355 = vand.u32 %v2043, 4294901760
    %v2356 = vsub.f32 %v2043, %v2355
    %v2357 = vand.u32 %v2356, 4294901760
    %v2358 = vsub.f32 %v2356, %v2357
    %v2359 = vand.u32 %v2358, 4294901760
    %2360 = vmatpush1.msra.mxu0 %v2359
    %2361 = vmatprep.subr.mxu0 0.0
    %v2362 = vand.u32 %v2044, 4294901760
    %v2363 = vsub.f32 %v2044, %v2362
    %v2364 = vand.u32 %v2363, 4294901760
    %v2365 = vsub.f32 %v2363, %v2364
    %v2366 = vand.u32 %v2365, 4294901760
    %2367 = vmatpush1.msra.mxu0 %v2366
    %2368 = vmatprep.subr.mxu0 0.0
    %v2369 = vand.u32 %v2045, 4294901760
    %v2370 = vsub.f32 %v2045, %v2369
    %v2371 = vand.u32 %v2370, 4294901760
    %v2372 = vsub.f32 %v2370, %v2371
    %v2373 = vand.u32 %v2372, 4294901760
    %2374 = vmatpush1.msra.mxu0 %v2373
    %2375 = vmatprep.subr.mxu0 0.0
    %v2376 = vand.u32 %v2046, 4294901760
    %v2377 = vsub.f32 %v2046, %v2376
    %v2378 = vand.u32 %v2377, 4294901760
    %v2379 = vsub.f32 %v2377, %v2378
    %v2380 = vand.u32 %v2379, 4294901760
    %2381 = vmatpush1.msra.mxu0 %v2380
    %2382 = vmatprep.subr.mxu0 0.0
    %2383 = vmatpush1.msra.mxu0 0.0
    %2384 = vmatprep.subr.mxu0 0.0
    %2385 = vmatpush1.msra.mxu0 0.0
    %2386 = vmatprep.subr.mxu0 0.0
    %2387 = vmatpush1.msra.mxu0 0.0
    %2388 = vmatprep.subr.mxu0 0.0
    %2389 = vmatpush1.msra.mxu0 0.0
    %2390 = vmatprep.subr.mxu0 0.0
    %2391 = vmatpush1.msra.mxu0 0.0
    %2392 = vmatprep.subr.mxu0 0.0
    %2393 = vmatpush1.msra.mxu0 0.0
    %v2394 = vand.u32 %v2056, 4294901760
    %2395 = vmatprep.mubr.f32.mxu0 %v2394
    %v2396 = vand.u32 %v2015, 4294901760
    %2397 = vmatmul.mubr.f32.gmra.mrb[0].mxu0 %v2396
    %v2398 = vpop.f32.mrb[0].mxu0
    %v2399 = vadd.f32 %v2167, %v2398
    %v2400 = vpop.f32.mrb[0].mxu0
    %v2401 = vand.u32 %v2059, 4294901760
    %2402 = vmatprep.mubr.f32.mxu0 %v2401
    %v2403 = vand.u32 %v2017, 4294901760
    %2404 = vmatmul.mubr.f32.gmra.mrb[0].mxu0 %v2403
    %v2405 = vpop.f32.mrb[0].mxu0
    %v2406 = vadd.f32 %v2182, %v2405
    %v2407 = vpop.f32.mrb[0].mxu0
    %v2408 = vand.u32 %v2062, 4294901760
    %2409 = vmatprep.mubr.f32.mxu0 %v2408
    %v2410 = vand.u32 %v2019, 4294901760
    %2411 = vmatmul.mubr.f32.gmra.mrb[0].mxu0 %v2410
    %v2412 = vpop.f32.mrb[0].mxu0
    %v2413 = vadd.f32 %v2197, %v2412
    %v2414 = vpop.f32.mrb[0].mxu0
    %2415 = vdwg.mxu0
    %2416 = vmatprep.subr.mxu0 0.0
    %v2417 = vand.u32 %v2021, 4294901760
    %v2418 = vsub.f32 %v2021, %v2417
    %2419 = vmatpush1.msra.mxu0 %v2418
    %2420 = vmatprep.subr.mxu0 0.0
    %v2421 = vand.u32 %v2022, 4294901760
    %v2422 = vsub.f32 %v2022, %v2421
    %2423 = vmatpush1.msra.mxu0 %v2422
    %2424 = vmatprep.subr.mxu0 0.0
    %v2425 = vand.u32 %v2023, 4294901760
    %v2426 = vsub.f32 %v2023, %v2425
    %2427 = vmatpush1.msra.mxu0 %v2426
    %2428 = vmatprep.subr.mxu0 0.0
    %v2429 = vand.u32 %v2024, 4294901760
    %v2430 = vsub.f32 %v2024, %v2429
    %2431 = vmatpush1.msra.mxu0 %v2430
    %2432 = vmatprep.subr.mxu0 0.0
    %v2433 = vand.u32 %v2025, 4294901760
    %v2434 = vsub.f32 %v2025, %v2433
    %2435 = vmatpush1.msra.mxu0 %v2434
    %2436 = vmatprep.subr.mxu0 0.0
    %v2437 = vand.u32 %v2026, 4294901760
    %v2438 = vsub.f32 %v2026, %v2437
    %2439 = vmatpush1.msra.mxu0 %v2438
    %2440 = vmatprep.subr.mxu0 0.0
    %v2441 = vand.u32 %v2027, 4294901760
    %v2442 = vsub.f32 %v2027, %v2441
    %2443 = vmatpush1.msra.mxu0 %v2442
    %2444 = vmatprep.subr.mxu0 0.0
    %v2445 = vand.u32 %v2028, 4294901760
    %v2446 = vsub.f32 %v2028, %v2445
    %2447 = vmatpush1.msra.mxu0 %v2446
    %2448 = vmatprep.subr.mxu0 0.0
    %v2449 = vand.u32 %v2029, 4294901760
    %v2450 = vsub.f32 %v2029, %v2449
    %2451 = vmatpush1.msra.mxu0 %v2450
    %2452 = vmatprep.subr.mxu0 0.0
    %v2453 = vand.u32 %v2030, 4294901760
    %v2454 = vsub.f32 %v2030, %v2453
    %2455 = vmatpush1.msra.mxu0 %v2454
    %2456 = vmatprep.subr.mxu0 0.0
    %v2457 = vand.u32 %v2031, 4294901760
    %v2458 = vsub.f32 %v2031, %v2457
    %2459 = vmatpush1.msra.mxu0 %v2458
    %2460 = vmatprep.subr.mxu0 0.0
    %v2461 = vand.u32 %v2032, 4294901760
    %v2462 = vsub.f32 %v2032, %v2461
    %2463 = vmatpush1.msra.mxu0 %v2462
    %2464 = vmatprep.subr.mxu0 0.0
    %v2465 = vand.u32 %v2033, 4294901760
    %v2466 = vsub.f32 %v2033, %v2465
    %2467 = vmatpush1.msra.mxu0 %v2466
    %2468 = vmatprep.subr.mxu0 0.0
    %v2469 = vand.u32 %v2034, 4294901760
    %v2470 = vsub.f32 %v2034, %v2469
    %2471 = vmatpush1.msra.mxu0 %v2470
    %2472 = vmatprep.subr.mxu0 0.0
    %v2473 = vand.u32 %v2035, 4294901760
    %v2474 = vsub.f32 %v2035, %v2473
    %2475 = vmatpush1.msra.mxu0 %v2474
    %2476 = vmatprep.subr.mxu0 0.0
    %v2477 = vand.u32 %v2036, 4294901760
    %v2478 = vsub.f32 %v2036, %v2477
    %2479 = vmatpush1.msra.mxu0 %v2478
    %2480 = vmatprep.subr.mxu0 0.0
    %v2481 = vand.u32 %v2037, 4294901760
    %v2482 = vsub.f32 %v2037, %v2481
    %2483 = vmatpush1.msra.mxu0 %v2482
    %2484 = vmatprep.subr.mxu0 0.0
    %v2485 = vand.u32 %v2038, 4294901760
    %v2486 = vsub.f32 %v2038, %v2485
    %2487 = vmatpush1.msra.mxu0 %v2486
    %2488 = vmatprep.subr.mxu0 0.0
    %v2489 = vand.u32 %v2039, 4294901760
    %v2490 = vsub.f32 %v2039, %v2489
    %2491 = vmatpush1.msra.mxu0 %v2490
    %2492 = vmatprep.subr.mxu0 0.0
    %v2493 = vand.u32 %v2040, 4294901760
    %v2494 = vsub.f32 %v2040, %v2493
    %2495 = vmatpush1.msra.mxu0 %v2494
    %2496 = vmatprep.subr.mxu0 0.0
    %v2497 = vand.u32 %v2041, 4294901760
    %v2498 = vsub.f32 %v2041, %v2497
    %2499 = vmatpush1.msra.mxu0 %v2498
    %2500 = vmatprep.subr.mxu0 0.0
    %v2501 = vand.u32 %v2042, 4294901760
    %v2502 = vsub.f32 %v2042, %v2501
    %2503 = vmatpush1.msra.mxu0 %v2502
    %2504 = vmatprep.subr.mxu0 0.0
    %v2505 = vand.u32 %v2043, 4294901760
    %v2506 = vsub.f32 %v2043, %v2505
    %2507 = vmatpush1.msra.mxu0 %v2506
    %2508 = vmatprep.subr.mxu0 0.0
    %v2509 = vand.u32 %v2044, 4294901760
    %v2510 = vsub.f32 %v2044, %v2509
    %2511 = vmatpush1.msra.mxu0 %v2510
    %2512 = vmatprep.subr.mxu0 0.0
    %v2513 = vand.u32 %v2045, 4294901760
    %v2514 = vsub.f32 %v2045, %v2513
    %2515 = vmatpush1.msra.mxu0 %v2514
    %2516 = vmatprep.subr.mxu0 0.0
    %v2517 = vand.u32 %v2046, 4294901760
    %v2518 = vsub.f32 %v2046, %v2517
    %2519 = vmatpush1.msra.mxu0 %v2518
    %2520 = vmatprep.subr.mxu0 0.0
    %2521 = vmatpush1.msra.mxu0 0.0
    %2522 = vmatprep.subr.mxu0 0.0
    %2523 = vmatpush1.msra.mxu0 0.0
    %2524 = vmatprep.subr.mxu0 0.0
    %2525 = vmatpush1.msra.mxu0 0.0
    %2526 = vmatprep.subr.mxu0 0.0
    %2527 = vmatpush1.msra.mxu0 0.0
    %2528 = vmatprep.subr.mxu0 0.0
    %2529 = vmatpush1.msra.mxu0 0.0
    %2530 = vmatprep.subr.mxu0 0.0
    %2531 = vmatpush1.msra.mxu0 0.0
    %v2532 = vand.u32 %v2056, 4294901760
    %v2533 = vsub.f32 %v2056, %v2532
    %2534 = vmatprep.mubr.f32.mxu0 %v2533
    %v2535 = vand.u32 %v2015, 4294901760
    %v2536 = vsub.f32 %v2015, %v2535
    %2537 = vmatmul.mubr.f32.gmra.mrb[0].mxu0 %v2536
    %v2538 = vpop.f32.mrb[0].mxu0
    %v2539 = vadd.f32 %v2399, %v2538
    %v2540 = vpop.f32.mrb[0].mxu0
    %v2541 = vand.u32 %v2059, 4294901760
    %v2542 = vsub.f32 %v2059, %v2541
    %2543 = vmatprep.mubr.f32.mxu0 %v2542
    %v2544 = vand.u32 %v2017, 4294901760
    %v2545 = vsub.f32 %v2017, %v2544
    %2546 = vmatmul.mubr.f32.gmra.mrb[0].mxu0 %v2545
    %v2547 = vpop.f32.mrb[0].mxu0
    %v2548 = vadd.f32 %v2406, %v2547
    %v2549 = vpop.f32.mrb[0].mxu0
    %v2550 = vand.u32 %v2062, 4294901760
    %v2551 = vsub.f32 %v2062, %v2550
    %2552 = vmatprep.mubr.f32.mxu0 %v2551
    %v2553 = vand.u32 %v2019, 4294901760
    %v2554 = vsub.f32 %v2019, %v2553
    %2555 = vmatmul.mubr.f32.gmra.mrb[0].mxu0 %v2554
    %v2556 = vpop.f32.mrb[0].mxu0
    %v2557 = vadd.f32 %v2413, %v2556
    %v2558 = vpop.f32.mrb[0].mxu0
    %2559 = vdwg.mxu0
    %2560 = vmatprep.subr.mxu0 0.0
    %v2561 = vand.u32 %v2021, 4294901760
    %2562 = vmatpush1.msra.mxu0 %v2561
    %2563 = vmatprep.subr.mxu0 0.0
    %v2564 = vand.u32 %v2022, 4294901760
    %2565 = vmatpush1.msra.mxu0 %v2564
    %2566 = vmatprep.subr.mxu0 0.0
    %v2567 = vand.u32 %v2023, 4294901760
    %2568 = vmatpush1.msra.mxu0 %v2567
    %2569 = vmatprep.subr.mxu0 0.0
    %v2570 = vand.u32 %v2024, 4294901760
    %2571 = vmatpush1.msra.mxu0 %v2570
    %2572 = vmatprep.subr.mxu0 0.0
    %v2573 = vand.u32 %v2025, 4294901760
    %2574 = vmatpush1.msra.mxu0 %v2573
    %2575 = vmatprep.subr.mxu0 0.0
    %v2576 = vand.u32 %v2026, 4294901760
    %2577 = vmatpush1.msra.mxu0 %v2576
    %2578 = vmatprep.subr.mxu0 0.0
    %v2579 = vand.u32 %v2027, 4294901760
    %2580 = vmatpush1.msra.mxu0 %v2579
    %2581 = vmatprep.subr.mxu0 0.0
    %v2582 = vand.u32 %v2028, 4294901760
    %2583 = vmatpush1.msra.mxu0 %v2582
    %2584 = vmatprep.subr.mxu0 0.0
    %v2585 = vand.u32 %v2029, 4294901760
    %2586 = vmatpush1.msra.mxu0 %v2585
    %2587 = vmatprep.subr.mxu0 0.0
    %v2588 = vand.u32 %v2030, 4294901760
    %2589 = vmatpush1.msra.mxu0 %v2588
    %2590 = vmatprep.subr.mxu0 0.0
    %v2591 = vand.u32 %v2031, 4294901760
    %2592 = vmatpush1.msra.mxu0 %v2591
    %2593 = vmatprep.subr.mxu0 0.0
    %v2594 = vand.u32 %v2032, 4294901760
    %2595 = vmatpush1.msra.mxu0 %v2594
    %2596 = vmatprep.subr.mxu0 0.0
    %v2597 = vand.u32 %v2033, 4294901760
    %2598 = vmatpush1.msra.mxu0 %v2597
    %2599 = vmatprep.subr.mxu0 0.0
    %v2600 = vand.u32 %v2034, 4294901760
    %2601 = vmatpush1.msra.mxu0 %v2600
    %2602 = vmatprep.subr.mxu0 0.0
    %v2603 = vand.u32 %v2035, 4294901760
    %2604 = vmatpush1.msra.mxu0 %v2603
    %2605 = vmatprep.subr.mxu0 0.0
    %v2606 = vand.u32 %v2036, 4294901760
    %2607 = vmatpush1.msra.mxu0 %v2606
    %2608 = vmatprep.subr.mxu0 0.0
    %v2609 = vand.u32 %v2037, 4294901760
    %2610 = vmatpush1.msra.mxu0 %v2609
    %2611 = vmatprep.subr.mxu0 0.0
    %v2612 = vand.u32 %v2038, 4294901760
    %2613 = vmatpush1.msra.mxu0 %v2612
    %2614 = vmatprep.subr.mxu0 0.0
    %v2615 = vand.u32 %v2039, 4294901760
    %2616 = vmatpush1.msra.mxu0 %v2615
    %2617 = vmatprep.subr.mxu0 0.0
    %v2618 = vand.u32 %v2040, 4294901760
    %2619 = vmatpush1.msra.mxu0 %v2618
    %2620 = vmatprep.subr.mxu0 0.0
    %v2621 = vand.u32 %v2041, 4294901760
    %2622 = vmatpush1.msra.mxu0 %v2621
    %2623 = vmatprep.subr.mxu0 0.0
    %v2624 = vand.u32 %v2042, 4294901760
    %2625 = vmatpush1.msra.mxu0 %v2624
    %2626 = vmatprep.subr.mxu0 0.0
    %v2627 = vand.u32 %v2043, 4294901760
    %2628 = vmatpush1.msra.mxu0 %v2627
    %2629 = vmatprep.subr.mxu0 0.0
    %v2630 = vand.u32 %v2044, 4294901760
    %2631 = vmatpush1.msra.mxu0 %v2630
    %2632 = vmatprep.subr.mxu0 0.0
    %v2633 = vand.u32 %v2045, 4294901760
    %2634 = vmatpush1.msra.mxu0 %v2633
    %2635 = vmatprep.subr.mxu0 0.0
    %v2636 = vand.u32 %v2046, 4294901760
    %2637 = vmatpush1.msra.mxu0 %v2636
    %2638 = vmatprep.subr.mxu0 0.0
    %2639 = vmatpush1.msra.mxu0 0.0
    %2640 = vmatprep.subr.mxu0 0.0
    %2641 = vmatpush1.msra.mxu0 0.0
    %2642 = vmatprep.subr.mxu0 0.0
    %2643 = vmatpush1.msra.mxu0 0.0
    %2644 = vmatprep.subr.mxu0 0.0
    %2645 = vmatpush1.msra.mxu0 0.0
    %2646 = vmatprep.subr.mxu0 0.0
    %2647 = vmatpush1.msra.mxu0 0.0
    %2648 = vmatprep.subr.mxu0 0.0
    %2649 = vmatpush1.msra.mxu0 0.0
    %v2650 = vand.u32 %v2056, 4294901760
    %v2651 = vsub.f32 %v2056, %v2650
    %v2652 = vand.u32 %v2651, 4294901760
    %2653 = vmatprep.mubr.f32.mxu0 %v2652
    %v2654 = vand.u32 %v2015, 4294901760
    %v2655 = vsub.f32 %v2015, %v2654
    %v2656 = vand.u32 %v2655, 4294901760
    %2657 = vmatmul.mubr.f32.gmra.mrb[0].mxu0 %v2656
    %v2658 = vpop.f32.mrb[0].mxu0
    %v2659 = vadd.f32 %v2539, %v2658
    %v2660 = vpop.f32.mrb[0].mxu0
    %v2661 = vand.u32 %v2059, 4294901760
    %v2662 = vsub.f32 %v2059, %v2661
    %v2663 = vand.u32 %v2662, 4294901760
    %2664 = vmatprep.mubr.f32.mxu0 %v2663
    %v2665 = vand.u32 %v2017, 4294901760
    %v2666 = vsub.f32 %v2017, %v2665
    %v2667 = vand.u32 %v2666, 4294901760
    %2668 = vmatmul.mubr.f32.gmra.mrb[0].mxu0 %v2667
    %v2669 = vpop.f32.mrb[0].mxu0
    %v2670 = vadd.f32 %v2548, %v2669
    %v2671 = vpop.f32.mrb[0].mxu0
    %v2672 = vand.u32 %v2062, 4294901760
    %v2673 = vsub.f32 %v2062, %v2672
    %v2674 = vand.u32 %v2673, 4294901760
    %2675 = vmatprep.mubr.f32.mxu0 %v2674
    %v2676 = vand.u32 %v2019, 4294901760
    %v2677 = vsub.f32 %v2019, %v2676
    %v2678 = vand.u32 %v2677, 4294901760
    %2679 = vmatmul.mubr.f32.gmra.mrb[0].mxu0 %v2678
    %v2680 = vpop.f32.mrb[0].mxu0
    %v2681 = vadd.f32 %v2557, %v2680
    %v2682 = vpop.f32.mrb[0].mxu0
    %2683 = vdwg.mxu0
    %2684 = vmatprep.subr.mxu0 0.0
    %v2685 = vand.u32 %v2021, 4294901760
    %v2686 = vsub.f32 %v2021, %v2685
    %v2687 = vand.u32 %v2686, 4294901760
    %2688 = vmatpush1.msra.mxu0 %v2687
    %2689 = vmatprep.subr.mxu0 0.0
    %v2690 = vand.u32 %v2022, 4294901760
    %v2691 = vsub.f32 %v2022, %v2690
    %v2692 = vand.u32 %v2691, 4294901760
    %2693 = vmatpush1.msra.mxu0 %v2692
    %2694 = vmatprep.subr.mxu0 0.0
    %v2695 = vand.u32 %v2023, 4294901760
    %v2696 = vsub.f32 %v2023, %v2695
    %v2697 = vand.u32 %v2696, 4294901760
    %2698 = vmatpush1.msra.mxu0 %v2697
    %2699 = vmatprep.subr.mxu0 0.0
    %v2700 = vand.u32 %v2024, 4294901760
    %v2701 = vsub.f32 %v2024, %v2700
    %v2702 = vand.u32 %v2701, 4294901760
    %2703 = vmatpush1.msra.mxu0 %v2702
    %2704 = vmatprep.subr.mxu0 0.0
    %v2705 = vand.u32 %v2025, 4294901760
    %v2706 = vsub.f32 %v2025, %v2705
    %v2707 = vand.u32 %v2706, 4294901760
    %2708 = vmatpush1.msra.mxu0 %v2707
    %2709 = vmatprep.subr.mxu0 0.0
    %v2710 = vand.u32 %v2026, 4294901760
    %v2711 = vsub.f32 %v2026, %v2710
    %v2712 = vand.u32 %v2711, 4294901760
    %2713 = vmatpush1.msra.mxu0 %v2712
    %2714 = vmatprep.subr.mxu0 0.0
    %v2715 = vand.u32 %v2027, 4294901760
    %v2716 = vsub.f32 %v2027, %v2715
    %v2717 = vand.u32 %v2716, 4294901760
    %2718 = vmatpush1.msra.mxu0 %v2717
    %2719 = vmatprep.subr.mxu0 0.0
    %v2720 = vand.u32 %v2028, 4294901760
    %v2721 = vsub.f32 %v2028, %v2720
    %v2722 = vand.u32 %v2721, 4294901760
    %2723 = vmatpush1.msra.mxu0 %v2722
    %2724 = vmatprep.subr.mxu0 0.0
    %v2725 = vand.u32 %v2029, 4294901760
    %v2726 = vsub.f32 %v2029, %v2725
    %v2727 = vand.u32 %v2726, 4294901760
    %2728 = vmatpush1.msra.mxu0 %v2727
    %2729 = vmatprep.subr.mxu0 0.0
    %v2730 = vand.u32 %v2030, 4294901760
    %v2731 = vsub.f32 %v2030, %v2730
    %v2732 = vand.u32 %v2731, 4294901760
    %2733 = vmatpush1.msra.mxu0 %v2732
    %2734 = vmatprep.subr.mxu0 0.0
    %v2735 = vand.u32 %v2031, 4294901760
    %v2736 = vsub.f32 %v2031, %v2735
    %v2737 = vand.u32 %v2736, 4294901760
    %2738 = vmatpush1.msra.mxu0 %v2737
    %2739 = vmatprep.subr.mxu0 0.0
    %v2740 = vand.u32 %v2032, 4294901760
    %v2741 = vsub.f32 %v2032, %v2740
    %v2742 = vand.u32 %v2741, 4294901760
    %2743 = vmatpush1.msra.mxu0 %v2742
    %2744 = vmatprep.subr.mxu0 0.0
    %v2745 = vand.u32 %v2033, 4294901760
    %v2746 = vsub.f32 %v2033, %v2745
    %v2747 = vand.u32 %v2746, 4294901760
    %2748 = vmatpush1.msra.mxu0 %v2747
    %2749 = vmatprep.subr.mxu0 0.0
    %v2750 = vand.u32 %v2034, 4294901760
    %v2751 = vsub.f32 %v2034, %v2750
    %v2752 = vand.u32 %v2751, 4294901760
    %2753 = vmatpush1.msra.mxu0 %v2752
    %2754 = vmatprep.subr.mxu0 0.0
    %v2755 = vand.u32 %v2035, 4294901760
    %v2756 = vsub.f32 %v2035, %v2755
    %v2757 = vand.u32 %v2756, 4294901760
    %2758 = vmatpush1.msra.mxu0 %v2757
    %2759 = vmatprep.subr.mxu0 0.0
    %v2760 = vand.u32 %v2036, 4294901760
    %v2761 = vsub.f32 %v2036, %v2760
    %v2762 = vand.u32 %v2761, 4294901760
    %2763 = vmatpush1.msra.mxu0 %v2762
    %2764 = vmatprep.subr.mxu0 0.0
    %v2765 = vand.u32 %v2037, 4294901760
    %v2766 = vsub.f32 %v2037, %v2765
    %v2767 = vand.u32 %v2766, 4294901760
    %2768 = vmatpush1.msra.mxu0 %v2767
    %2769 = vmatprep.subr.mxu0 0.0
    %v2770 = vand.u32 %v2038, 4294901760
    %v2771 = vsub.f32 %v2038, %v2770
    %v2772 = vand.u32 %v2771, 4294901760
    %2773 = vmatpush1.msra.mxu0 %v2772
    %2774 = vmatprep.subr.mxu0 0.0
    %v2775 = vand.u32 %v2039, 4294901760
    %v2776 = vsub.f32 %v2039, %v2775
    %v2777 = vand.u32 %v2776, 4294901760
    %2778 = vmatpush1.msra.mxu0 %v2777
    %2779 = vmatprep.subr.mxu0 0.0
    %v2780 = vand.u32 %v2040, 4294901760
    %v2781 = vsub.f32 %v2040, %v2780
    %v2782 = vand.u32 %v2781, 4294901760
    %2783 = vmatpush1.msra.mxu0 %v2782
    %2784 = vmatprep.subr.mxu0 0.0
    %v2785 = vand.u32 %v2041, 4294901760
    %v2786 = vsub.f32 %v2041, %v2785
    %v2787 = vand.u32 %v2786, 4294901760
    %2788 = vmatpush1.msra.mxu0 %v2787
    %2789 = vmatprep.subr.mxu0 0.0
    %v2790 = vand.u32 %v2042, 4294901760
    %v2791 = vsub.f32 %v2042, %v2790
    %v2792 = vand.u32 %v2791, 4294901760
    %2793 = vmatpush1.msra.mxu0 %v2792
    %2794 = vmatprep.subr.mxu0 0.0
    %v2795 = vand.u32 %v2043, 4294901760
    %v2796 = vsub.f32 %v2043, %v2795
    %v2797 = vand.u32 %v2796, 4294901760
    %2798 = vmatpush1.msra.mxu0 %v2797
    %2799 = vmatprep.subr.mxu0 0.0
    %v2800 = vand.u32 %v2044, 4294901760
    %v2801 = vsub.f32 %v2044, %v2800
    %v2802 = vand.u32 %v2801, 4294901760
    %2803 = vmatpush1.msra.mxu0 %v2802
    %2804 = vmatprep.subr.mxu0 0.0
    %v2805 = vand.u32 %v2045, 4294901760
    %v2806 = vsub.f32 %v2045, %v2805
    %v2807 = vand.u32 %v2806, 4294901760
    %2808 = vmatpush1.msra.mxu0 %v2807
    %2809 = vmatprep.subr.mxu0 0.0
    %v2810 = vand.u32 %v2046, 4294901760
    %v2811 = vsub.f32 %v2046, %v2810
    %v2812 = vand.u32 %v2811, 4294901760
    %2813 = vmatpush1.msra.mxu0 %v2812
    %2814 = vmatprep.subr.mxu0 0.0
    %2815 = vmatpush1.msra.mxu0 0.0
    %2816 = vmatprep.subr.mxu0 0.0
    %2817 = vmatpush1.msra.mxu0 0.0
    %2818 = vmatprep.subr.mxu0 0.0
    %2819 = vmatpush1.msra.mxu0 0.0
    %2820 = vmatprep.subr.mxu0 0.0
    %2821 = vmatpush1.msra.mxu0 0.0
    %2822 = vmatprep.subr.mxu0 0.0
    %2823 = vmatpush1.msra.mxu0 0.0
    %2824 = vmatprep.subr.mxu0 0.0
    %2825 = vmatpush1.msra.mxu0 0.0
    %v2826 = vand.u32 %v2056, 4294901760
    %2827 = vmatprep.mubr.f32.mxu0 %v2826
    %v2828 = vand.u32 %v2015, 4294901760
    %2829 = vmatmul.mubr.f32.gmra.mrb[0].mxu0 %v2828
    %v2830 = vpop.f32.mrb[0].mxu0
    %v2831 = vadd.f32 %v2659, %v2830
    %v2832 = vpop.f32.mrb[0].mxu0
    %v2833 = vand.u32 %v2059, 4294901760
    %2834 = vmatprep.mubr.f32.mxu0 %v2833
    %v2835 = vand.u32 %v2017, 4294901760
    %2836 = vmatmul.mubr.f32.gmra.mrb[0].mxu0 %v2835
    %v2837 = vpop.f32.mrb[0].mxu0
    %v2838 = vadd.f32 %v2670, %v2837
    %v2839 = vpop.f32.mrb[0].mxu0
    %v2840 = vand.u32 %v2062, 4294901760
    %2841 = vmatprep.mubr.f32.mxu0 %v2840
    %v2842 = vand.u32 %v2019, 4294901760
    %2843 = vmatmul.mubr.f32.gmra.mrb[0].mxu0 %v2842
    %v2844 = vpop.f32.mrb[0].mxu0
    %v2845 = vadd.f32 %v2681, %v2844
    %v2846 = vpop.f32.mrb[0].mxu0
    %2847 = vdwg.mxu0
    %2848 = vmatprep.subr.mxu0 0.0
    %v2849 = vand.u32 %v2021, 4294901760
    %2850 = vmatpush1.msra.mxu0 %v2849
    %2851 = vmatprep.subr.mxu0 0.0
    %v2852 = vand.u32 %v2022, 4294901760
    %2853 = vmatpush1.msra.mxu0 %v2852
    %2854 = vmatprep.subr.mxu0 0.0
    %v2855 = vand.u32 %v2023, 4294901760
    %2856 = vmatpush1.msra.mxu0 %v2855
    %2857 = vmatprep.subr.mxu0 0.0
    %v2858 = vand.u32 %v2024, 4294901760
    %2859 = vmatpush1.msra.mxu0 %v2858
    %2860 = vmatprep.subr.mxu0 0.0
    %v2861 = vand.u32 %v2025, 4294901760
    %2862 = vmatpush1.msra.mxu0 %v2861
    %2863 = vmatprep.subr.mxu0 0.0
    %v2864 = vand.u32 %v2026, 4294901760
    %2865 = vmatpush1.msra.mxu0 %v2864
    %2866 = vmatprep.subr.mxu0 0.0
    %v2867 = vand.u32 %v2027, 4294901760
    %2868 = vmatpush1.msra.mxu0 %v2867
    %2869 = vmatprep.subr.mxu0 0.0
    %v2870 = vand.u32 %v2028, 4294901760
    %2871 = vmatpush1.msra.mxu0 %v2870
    %2872 = vmatprep.subr.mxu0 0.0
    %v2873 = vand.u32 %v2029, 4294901760
    %2874 = vmatpush1.msra.mxu0 %v2873
    %2875 = vmatprep.subr.mxu0 0.0
    %v2876 = vand.u32 %v2030, 4294901760
    %2877 = vmatpush1.msra.mxu0 %v2876
    %2878 = vmatprep.subr.mxu0 0.0
    %v2879 = vand.u32 %v2031, 4294901760
    %2880 = vmatpush1.msra.mxu0 %v2879
    %2881 = vmatprep.subr.mxu0 0.0
    %v2882 = vand.u32 %v2032, 4294901760
    %2883 = vmatpush1.msra.mxu0 %v2882
    %2884 = vmatprep.subr.mxu0 0.0
    %v2885 = vand.u32 %v2033, 4294901760
    %2886 = vmatpush1.msra.mxu0 %v2885
    %2887 = vmatprep.subr.mxu0 0.0
    %v2888 = vand.u32 %v2034, 4294901760
    %2889 = vmatpush1.msra.mxu0 %v2888
    %2890 = vmatprep.subr.mxu0 0.0
    %v2891 = vand.u32 %v2035, 4294901760
    %2892 = vmatpush1.msra.mxu0 %v2891
    %2893 = vmatprep.subr.mxu0 0.0
    %v2894 = vand.u32 %v2036, 4294901760
    %2895 = vmatpush1.msra.mxu0 %v2894
    %2896 = vmatprep.subr.mxu0 0.0
    %v2897 = vand.u32 %v2037, 4294901760
    %2898 = vmatpush1.msra.mxu0 %v2897
    %2899 = vmatprep.subr.mxu0 0.0
    %v2900 = vand.u32 %v2038, 4294901760
    %2901 = vmatpush1.msra.mxu0 %v2900
    %2902 = vmatprep.subr.mxu0 0.0
    %v2903 = vand.u32 %v2039, 4294901760
    %2904 = vmatpush1.msra.mxu0 %v2903
    %2905 = vmatprep.subr.mxu0 0.0
    %v2906 = vand.u32 %v2040, 4294901760
    %2907 = vmatpush1.msra.mxu0 %v2906
    %2908 = vmatprep.subr.mxu0 0.0
    %v2909 = vand.u32 %v2041, 4294901760
    %2910 = vmatpush1.msra.mxu0 %v2909
    %2911 = vmatprep.subr.mxu0 0.0
    %v2912 = vand.u32 %v2042, 4294901760
    %2913 = vmatpush1.msra.mxu0 %v2912
    %2914 = vmatprep.subr.mxu0 0.0
    %v2915 = vand.u32 %v2043, 4294901760
    %2916 = vmatpush1.msra.mxu0 %v2915
    %2917 = vmatprep.subr.mxu0 0.0
    %v2918 = vand.u32 %v2044, 4294901760
    %2919 = vmatpush1.msra.mxu0 %v2918
    %2920 = vmatprep.subr.mxu0 0.0
    %v2921 = vand.u32 %v2045, 4294901760
    %2922 = vmatpush1.msra.mxu0 %v2921
    %2923 = vmatprep.subr.mxu0 0.0
    %v2924 = vand.u32 %v2046, 4294901760
    %2925 = vmatpush1.msra.mxu0 %v2924
    %2926 = vmatprep.subr.mxu0 0.0
    %2927 = vmatpush1.msra.mxu0 0.0
    %2928 = vmatprep.subr.mxu0 0.0
    %2929 = vmatpush1.msra.mxu0 0.0
    %2930 = vmatprep.subr.mxu0 0.0
    %2931 = vmatpush1.msra.mxu0 0.0
    %2932 = vmatprep.subr.mxu0 0.0
    %2933 = vmatpush1.msra.mxu0 0.0
    %2934 = vmatprep.subr.mxu0 0.0
    %2935 = vmatpush1.msra.mxu0 0.0
    %2936 = vmatprep.subr.mxu0 0.0
    %2937 = vmatpush1.msra.mxu0 0.0
    %v2938 = vand.u32 %v2056, 4294901760
    %2939 = vmatprep.mubr.f32.mxu0 %v2938
    %v2940 = vand.u32 %v2015, 4294901760
    %2941 = vmatmul.mubr.f32.gmra.mrb[0].mxu0 %v2940
    %v2942 = vpop.f32.mrb[0].mxu0
    %v2943 = vadd.f32 %v2831, %v2942
    %v2944 = vpop.f32.mrb[0].mxu0
    %v2945 = vand.u32 %v2059, 4294901760
    %2946 = vmatprep.mubr.f32.mxu0 %v2945
    %v2947 = vand.u32 %v2017, 4294901760
    %2948 = vmatmul.mubr.f32.gmra.mrb[0].mxu0 %v2947
    %v2949 = vpop.f32.mrb[0].mxu0
    %v2950 = vadd.f32 %v2838, %v2949
    %v2951 = vpop.f32.mrb[0].mxu0
    %v2952 = vand.u32 %v2062, 4294901760
    %2953 = vmatprep.mubr.f32.mxu0 %v2952
    %v2954 = vand.u32 %v2019, 4294901760
    %2955 = vmatmul.mubr.f32.gmra.mrb[0].mxu0 %v2954
    %v2956 = vpop.f32.mrb[0].mxu0
    %v2957 = vadd.f32 %v2845, %v2956
    %v2958 = vpop.f32.mrb[0].mxu0
    %2959 = vdwg.mxu0
    %v2960 = vmax.f32 %v2943, 0.0
    %v2961 = vmax.f32 %v2950, 0.0
    %v2962 = vmax.f32 %v2957, 0.0
    %2963 = vst.msk [vmem:[#allocation5 + $0x3] sm:$0xff] %vm1730, %v2960
    %vm2964 = vcmask 517120
    %2965 = vst.msk [vmem:[#allocation5 + $0xb] sm:$0x3] %vm2964, %v2961
    %vm2966 = vcmask 523266
    %2967 = vst.msk [vmem:[#allocation5 + $0x11] sm:$0xfc] %vm2966, %v2961
    %vm2968 = vcmask 519168
    %2969 = vst.msk [vmem:[#allocation5 + $0x19] sm:$0xf] %vm2968, %v2962
    %v2970 = vld [vmem:[#allocation5] sm:$0xff]
    %v2971 = vld [vmem:[#allocation5 + $0x8] sm:$0x1f]
    %2972 = vst.msk [vmem:[#allocation6] sm:$0xff] %vm1730, %v2970
    %vm2973 = vcmask 520192
    %2974 = vst.msk [vmem:[#allocation6 + $0x10] sm:$0x1f] %vm2973, %v2971
    %v2975 = vld [vmem:[#allocation5 + $0x1] sm:$0xff]
    %v2976 = vld [vmem:[#allocation5 + $0x9] sm:$0x1f]
    %2979 = vrot.lane.b32.xlu0 %v2975, 64
    %v2980 = vpop.permute.xlu0 %2979
    %2981 = vrot.lane.b32.xlu0 %v2976, 64
    %v2982 = vpop.permute.xlu0 %2981
    %vm2985 = vcmask 1048064
    %2986 = vst.msk [vmem:[#allocation6] sm:$0xff] %vm2985, %v2980
    %vm2987 = vcmask 1044992
    %2988 = vst.msk [vmem:[#allocation6 + $0x10] sm:$0x1f] %vm2987, %v2982
    %v2989 = vld [vmem:[#allocation5 + $0x2] sm:$0xff]
    %v2990 = vld [vmem:[#allocation5 + $0xa] sm:$0x1f]
    %2991 = vst.msk [vmem:[#allocation6 + $0x8] sm:$0xff] %vm1730, %v2989
    %2992 = vst.msk [vmem:[#allocation6 + $0x18] sm:$0x1f] %vm2973, %v2990
    %v2993 = vld [vmem:[#allocation5 + $0x3] sm:$0xff]
    %v2994 = vld [vmem:[#allocation5 + $0xb] sm:$0x1f]
    %2997 = vrot.lane.b32.xlu0 %v2993, 64
    %v2998 = vpop.permute.xlu0 %2997
    %2999 = vrot.lane.b32.xlu0 %v2994, 64
    %v3000 = vpop.permute.xlu0 %2999
    %3003 = vst.msk [vmem:[#allocation6 + $0x8] sm:$0xff] %vm2985, %v2998
    %3004 = vst.msk [vmem:[#allocation6 + $0x18] sm:$0x1f] %vm2987, %v3000
    %v3005 = vld [vmem:[#allocation5 + $0x10] sm:$0xff]
    %v3006 = vld [vmem:[#allocation5 + $0x18] sm:$0x1f]
    %vm3009 = vcmask 1044480
    %v3010 = vrot.slane %v3005, 3
    %v3011 = vrot.slane %v3006, 3
    %v3012 = vsel %vm3009, %v3010, %v3011
    %vm3016 = vcmask 523269
    %3017 = vst.msk [vmem:[#allocation6 + $0x10] sm:$0xe0] %vm3016, %v3010
    %3018 = vst.msk [vmem:[#allocation6 + $0x20] sm:$0xff] %vm1730, %v3012
    %3019 = vst.msk [vmem:[#allocation6 + $0x30] sm:$0x3] %vm2964, %v3011
    %v3020 = vld [vmem:[#allocation5 + $0x11] sm:$0xff]
    %v3021 = vld [vmem:[#allocation5 + $0x19] sm:$0x1f]
    %v3024 = vrot.slane %v3020, 3
    %v3025 = vrot.slane %v3021, 3
    %v3026 = vsel %vm3009, %v3024, %v3025
    %3027 = vrot.lane.b32.xlu0 %v3024, 64
    %v3028 = vpop.permute.xlu0 %3027
    %3029 = vrot.lane.b32.xlu0 %v3026, 64
    %v3030 = vpop.permute.xlu0 %3029
    %3031 = vrot.lane.b32.xlu0 %v3025, 64
    %v3032 = vpop.permute.xlu0 %3031
    %vm3036 = vcmask 1048069
    %3037 = vst.msk [vmem:[#allocation6 + $0x10] sm:$0xe0] %vm3036, %v3028
    %3038 = vst.msk [vmem:[#allocation6 + $0x20] sm:$0xff] %vm2985, %v3030
    %vm3039 = vcmask 1041920
    %3040 = vst.msk [vmem:[#allocation6 + $0x30] sm:$0x3] %vm3039, %v3032
    %v3041 = vld [vmem:[#allocation5 + $0x12] sm:$0xff]
    %v3042 = vld [vmem:[#allocation5 + $0x1a] sm:$0x1f]
    %v3045 = vrot.slane %v3041, 3
    %v3046 = vrot.slane %v3042, 3
    %v3047 = vsel %vm3009, %v3045, %v3046
    %3051 = vst.msk [vmem:[#allocation6 + $0x18] sm:$0xe0] %vm3016, %v3045
    %3052 = vst.msk [vmem:[#allocation6 + $0x28] sm:$0xff] %vm1730, %v3047
    %3053 = vst.msk [vmem:[#allocation6 + $0x38] sm:$0x3] %vm2964, %v3046
    %v3054 = vld [vmem:[#allocation5 + $0x13] sm:$0xff]
    %v3055 = vld [vmem:[#allocation5 + $0x1b] sm:$0x1f]
    %v3058 = vrot.slane %v3054, 3
    %v3059 = vrot.slane %v3055, 3
    %v3060 = vsel %vm3009, %v3058, %v3059
    %3061 = vrot.lane.b32.xlu0 %v3058, 64
    %v3062 = vpop.permute.xlu0 %3061
    %3063 = vrot.lane.b32.xlu0 %v3060, 64
    %v3064 = vpop.permute.xlu0 %3063
    %3065 = vrot.lane.b32.xlu0 %v3059, 64
    %v3066 = vpop.permute.xlu0 %3065
    %3070 = vst.msk [vmem:[#allocation6 + $0x18] sm:$0xe0] %vm3036, %v3062
    %3071 = vst.msk [vmem:[#allocation6 + $0x28] sm:$0xff] %vm2985, %v3064
    %3072 = vst.msk [vmem:[#allocation6 + $0x38] sm:$0x3] %vm3039, %v3066
    %v3073 = vld [vmem:[#allocation6] sm:$0xff]
    %v3074 = vld [vmem:[#allocation6 + $0x8] sm:$0xff]
    %v3075 = vld [vmem:[#allocation6 + $0x10] sm:$0xff]
    %v3076 = vld [vmem:[#allocation6 + $0x18] sm:$0xff]
    %v3077 = vld [vmem:[#allocation6 + $0x20] sm:$0xff]
    %v3078 = vld [vmem:[#allocation6 + $0x28] sm:$0xff]
    %v3079 = vld [vmem:[#allocation6 + $0x30] sm:$0x3]
    %v3080 = vld [vmem:[#allocation6 + $0x38] sm:$0x3]
    %v3081 = vld [vmem:[%s7] sm:$0xff]
    %v3082 = vld [vmem:[%s7 + $0x8] sm:$0xff]
    %v3083 = vld [vmem:[%s7 + $0x10] sm:$0xff]
    %v3084 = vld [vmem:[%s7 + $0x18] sm:$0xff]
    %v3085 = vld [vmem:[%s7 + $0x20] sm:$0xff]
    %v3086 = vld [vmem:[%s7 + $0x28] sm:$0xff]
    %v3087 = vld [vmem:[%s7 + $0x30] sm:$0xff]
    %v3088 = vld [vmem:[%s7 + $0x38] sm:$0xff]
    %v3089 = vld [vmem:[%s7 + $0x40] sm:$0xff]
    %v3090 = vld [vmem:[%s7 + $0x48] sm:$0xff]
    %v3091 = vld [vmem:[%s7 + $0x50] sm:$0xff]
    %v3092 = vld [vmem:[%s7 + $0x58] sm:$0xff]
    %v3093 = vld [vmem:[%s7 + $0x60] sm:$0xff]
    %v3094 = vld [vmem:[%s7 + $0x68] sm:$0xff]
    %v3095 = vld [vmem:[%s7 + $0x70] sm:$0xff]
    %v3096 = vld [vmem:[%s7 + $0x78] sm:$0xff]
    %v3097 = vld [vmem:[%s7 + $0x80] sm:$0xff]
    %v3098 = vld [vmem:[%s7 + $0x88] sm:$0xff]
    %v3099 = vld [vmem:[%s7 + $0x90] sm:$0xff]
    %v3100 = vld [vmem:[%s7 + $0x98] sm:$0xff]
    %v3101 = vld [vmem:[%s7 + $0xa0] sm:$0xff]
    %v3102 = vld [vmem:[%s7 + $0xa8] sm:$0xff]
    %v3103 = vld [vmem:[%s7 + $0xb0] sm:$0xff]
    %v3104 = vld [vmem:[%s7 + $0xb8] sm:$0xff]
    %v3105 = vld [vmem:[%s7 + $0xc0] sm:$0xff]
    %v3106 = vld [vmem:[%s7 + $0xc8] sm:$0xff]
    %v3107 = vld [vmem:[%s7 + $0xd0] sm:$0xff]
    %v3108 = vld [vmem:[%s7 + $0xd8] sm:$0xff]
    %v3109 = vld [vmem:[%s7 + $0xe0] sm:$0xff]
    %v3110 = vld [vmem:[%s7 + $0xe8] sm:$0xff]
    %v3111 = vld [vmem:[%s7 + $0xf0] sm:$0xff]
    %v3112 = vld [vmem:[%s7 + $0xf8] sm:$0xff]
    %v3113 = vld [vmem:[%s8] sm:$0x1]
    %v3115 = vlaneseq
    %v3116 = vshrl.u32 %v3115, 7
    %v3117 = vsub.s32 0, %v3116
    %v3118 = vrot.slane %v3113, %v3117
    %3120 = vmatprep.subr.mxu0 0.0
    %v3121 = vand.u32 %v3081, 4294901760
    %3122 = vmatpush1.msra.mxu0 %v3121
    %3123 = vmatprep.subr.mxu0 0.0
    %v3124 = vand.u32 %v3082, 4294901760
    %3125 = vmatpush1.msra.mxu0 %v3124
    %3126 = vmatprep.subr.mxu0 0.0
    %v3127 = vand.u32 %v3083, 4294901760
    %3128 = vmatpush1.msra.mxu0 %v3127
    %3129 = vmatprep.subr.mxu0 0.0
    %v3130 = vand.u32 %v3084, 4294901760
    %3131 = vmatpush1.msra.mxu0 %v3130
    %3132 = vmatprep.subr.mxu0 0.0
    %v3133 = vand.u32 %v3085, 4294901760
    %3134 = vmatpush1.msra.mxu0 %v3133
    %3135 = vmatprep.subr.mxu0 0.0
    %v3136 = vand.u32 %v3086, 4294901760
    %3137 = vmatpush1.msra.mxu0 %v3136
    %3138 = vmatprep.subr.mxu0 0.0
    %v3139 = vand.u32 %v3087, 4294901760
    %3140 = vmatpush1.msra.mxu0 %v3139
    %3141 = vmatprep.subr.mxu0 0.0
    %v3142 = vand.u32 %v3088, 4294901760
    %3143 = vmatpush1.msra.mxu0 %v3142
    %3144 = vmatprep.subr.mxu0 0.0
    %v3145 = vand.u32 %v3089, 4294901760
    %3146 = vmatpush1.msra.mxu0 %v3145
    %3147 = vmatprep.subr.mxu0 0.0
    %v3148 = vand.u32 %v3090, 4294901760
    %3149 = vmatpush1.msra.mxu0 %v3148
    %3150 = vmatprep.subr.mxu0 0.0
    %v3151 = vand.u32 %v3091, 4294901760
    %3152 = vmatpush1.msra.mxu0 %v3151
    %3153 = vmatprep.subr.mxu0 0.0
    %v3154 = vand.u32 %v3092, 4294901760
    %3155 = vmatpush1.msra.mxu0 %v3154
    %3156 = vmatprep.subr.mxu0 0.0
    %v3157 = vand.u32 %v3093, 4294901760
    %3158 = vmatpush1.msra.mxu0 %v3157
    %3159 = vmatprep.subr.mxu0 0.0
    %v3160 = vand.u32 %v3094, 4294901760
    %3161 = vmatpush1.msra.mxu0 %v3160
    %3162 = vmatprep.subr.mxu0 0.0
    %v3163 = vand.u32 %v3095, 4294901760
    %3164 = vmatpush1.msra.mxu0 %v3163
    %3165 = vmatprep.subr.mxu0 0.0
    %v3166 = vand.u32 %v3096, 4294901760
    %3167 = vmatpush1.msra.mxu0 %v3166
    %3168 = vmatprep.subr.mxu0 0.0
    %v3169 = vand.u32 %v3097, 4294901760
    %3170 = vmatpush1.msra.mxu0 %v3169
    %3171 = vmatprep.subr.mxu0 0.0
    %v3172 = vand.u32 %v3098, 4294901760
    %3173 = vmatpush1.msra.mxu0 %v3172
    %3174 = vmatprep.subr.mxu0 0.0
    %v3175 = vand.u32 %v3099, 4294901760
    %3176 = vmatpush1.msra.mxu0 %v3175
    %3177 = vmatprep.subr.mxu0 0.0
    %v3178 = vand.u32 %v3100, 4294901760
    %3179 = vmatpush1.msra.mxu0 %v3178
    %3180 = vmatprep.subr.mxu0 0.0
    %v3181 = vand.u32 %v3101, 4294901760
    %3182 = vmatpush1.msra.mxu0 %v3181
    %3183 = vmatprep.subr.mxu0 0.0
    %v3184 = vand.u32 %v3102, 4294901760
    %3185 = vmatpush1.msra.mxu0 %v3184
    %3186 = vmatprep.subr.mxu0 0.0
    %v3187 = vand.u32 %v3103, 4294901760
    %3188 = vmatpush1.msra.mxu0 %v3187
    %3189 = vmatprep.subr.mxu0 0.0
    %v3190 = vand.u32 %v3104, 4294901760
    %3191 = vmatpush1.msra.mxu0 %v3190
    %3192 = vmatprep.subr.mxu0 0.0
    %v3193 = vand.u32 %v3105, 4294901760
    %3194 = vmatpush1.msra.mxu0 %v3193
    %3195 = vmatprep.subr.mxu0 0.0
    %v3196 = vand.u32 %v3106, 4294901760
    %3197 = vmatpush1.msra.mxu0 %v3196
    %3198 = vmatprep.subr.mxu0 0.0
    %v3199 = vand.u32 %v3107, 4294901760
    %3200 = vmatpush1.msra.mxu0 %v3199
    %3201 = vmatprep.subr.mxu0 0.0
    %v3202 = vand.u32 %v3108, 4294901760
    %3203 = vmatpush1.msra.mxu0 %v3202
    %3204 = vmatprep.subr.mxu0 0.0
    %v3205 = vand.u32 %v3109, 4294901760
    %3206 = vmatpush1.msra.mxu0 %v3205
    %3207 = vmatprep.subr.mxu0 0.0
    %v3208 = vand.u32 %v3110, 4294901760
    %3209 = vmatpush1.msra.mxu0 %v3208
    %3210 = vmatprep.subr.mxu0 0.0
    %v3211 = vand.u32 %v3111, 4294901760
    %3212 = vmatpush1.msra.mxu0 %v3211
    %3213 = vmatprep.subr.mxu0 0.0
    %v3214 = vand.u32 %v3112, 4294901760
    %3215 = vmatpush1.msra.mxu0 %v3214
    %v3216 = vand.u32 %v3074, 4294901760
    %v3217 = vsub.f32 %v3074, %v3216
    %v3218 = vand.u32 %v3217, 4294901760
    %v3219 = vsub.f32 %v3217, %v3218
    %v3220 = vand.u32 %v3219, 4294901760
    %3221 = vmatprep.mubr.f32.mxu0 %v3220
    %v3222 = vand.u32 %v3073, 4294901760
    %v3223 = vsub.f32 %v3073, %v3222
    %v3224 = vand.u32 %v3223, 4294901760
    %v3225 = vsub.f32 %v3223, %v3224
    %v3226 = vand.u32 %v3225, 4294901760
    %3227 = vmatmul.mubr.f32.gmra.mrb[0].mxu0 %v3226
    %v3228 = vpop.f32.mrb[0].mxu0
    %v3229 = vadd.f32 %v3118, %v3228
    %v3230 = vpop.f32.mrb[0].mxu0
    %v3231 = vand.u32 %v3076, 4294901760
    %v3232 = vsub.f32 %v3076, %v3231
    %v3233 = vand.u32 %v3232, 4294901760
    %v3234 = vsub.f32 %v3232, %v3233
    %v3235 = vand.u32 %v3234, 4294901760
    %3236 = vmatprep.mubr.f32.mxu0 %v3235
    %v3237 = vand.u32 %v3075, 4294901760
    %v3238 = vsub.f32 %v3075, %v3237
    %v3239 = vand.u32 %v3238, 4294901760
    %v3240 = vsub.f32 %v3238, %v3239
    %v3241 = vand.u32 %v3240, 4294901760
    %3242 = vmatmul.mubr.f32.gmra.mrb[0].mxu0 %v3241
    %v3243 = vpop.f32.mrb[0].mxu0
    %v3244 = vadd.f32 %v3118, %v3243
    %v3245 = vpop.f32.mrb[0].mxu0
    %v3246 = vand.u32 %v3078, 4294901760
    %v3247 = vsub.f32 %v3078, %v3246
    %v3248 = vand.u32 %v3247, 4294901760
    %v3249 = vsub.f32 %v3247, %v3248
    %v3250 = vand.u32 %v3249, 4294901760
    %3251 = vmatprep.mubr.f32.mxu0 %v3250
    %v3252 = vand.u32 %v3077, 4294901760
    %v3253 = vsub.f32 %v3077, %v3252
    %v3254 = vand.u32 %v3253, 4294901760
    %v3255 = vsub.f32 %v3253, %v3254
    %v3256 = vand.u32 %v3255, 4294901760
    %3257 = vmatmul.mubr.f32.gmra.mrb[0].mxu0 %v3256
    %v3258 = vpop.f32.mrb[0].mxu0
    %v3259 = vadd.f32 %v3118, %v3258
    %v3260 = vpop.f32.mrb[0].mxu0
    %v3261 = vand.u32 %v3080, 4294901760
    %v3262 = vsub.f32 %v3080, %v3261
    %v3263 = vand.u32 %v3262, 4294901760
    %v3264 = vsub.f32 %v3262, %v3263
    %v3265 = vand.u32 %v3264, 4294901760
    %3266 = vmatprep.mubr.f32.mxu0 %v3265
    %v3267 = vand.u32 %v3079, 4294901760
    %v3268 = vsub.f32 %v3079, %v3267
    %v3269 = vand.u32 %v3268, 4294901760
    %v3270 = vsub.f32 %v3268, %v3269
    %v3271 = vand.u32 %v3270, 4294901760
    %3272 = vmatmul.mubr.f32.gmra.mrb[0].mxu0 %v3271
    %v3273 = vpop.f32.mrb[0].mxu0
    %v3274 = vadd.f32 %v3118, %v3273
    %v3275 = vpop.f32.mrb[0].mxu0
    %3276 = vdwg.mxu0
    %3277 = vmatprep.subr.mxu0 0.0
    %v3278 = vand.u32 %v3081, 4294901760
    %v3279 = vsub.f32 %v3081, %v3278
    %v3280 = vand.u32 %v3279, 4294901760
    %v3281 = vsub.f32 %v3279, %v3280
    %v3282 = vand.u32 %v3281, 4294901760
    %3283 = vmatpush1.msra.mxu0 %v3282
    %3284 = vmatprep.subr.mxu0 0.0
    %v3285 = vand.u32 %v3082, 4294901760
    %v3286 = vsub.f32 %v3082, %v3285
    %v3287 = vand.u32 %v3286, 4294901760
    %v3288 = vsub.f32 %v3286, %v3287
    %v3289 = vand.u32 %v3288, 4294901760
    %3290 = vmatpush1.msra.mxu0 %v3289
    %3291 = vmatprep.subr.mxu0 0.0
    %v3292 = vand.u32 %v3083, 4294901760
    %v3293 = vsub.f32 %v3083, %v3292
    %v3294 = vand.u32 %v3293, 4294901760
    %v3295 = vsub.f32 %v3293, %v3294
    %v3296 = vand.u32 %v3295, 4294901760
    %3297 = vmatpush1.msra.mxu0 %v3296
    %3298 = vmatprep.subr.mxu0 0.0
    %v3299 = vand.u32 %v3084, 4294901760
    %v3300 = vsub.f32 %v3084, %v3299
    %v3301 = vand.u32 %v3300, 4294901760
    %v3302 = vsub.f32 %v3300, %v3301
    %v3303 = vand.u32 %v3302, 4294901760
    %3304 = vmatpush1.msra.mxu0 %v3303
    %3305 = vmatprep.subr.mxu0 0.0
    %v3306 = vand.u32 %v3085, 4294901760
    %v3307 = vsub.f32 %v3085, %v3306
    %v3308 = vand.u32 %v3307, 4294901760
    %v3309 = vsub.f32 %v3307, %v3308
    %v3310 = vand.u32 %v3309, 4294901760
    %3311 = vmatpush1.msra.mxu0 %v3310
    %3312 = vmatprep.subr.mxu0 0.0
    %v3313 = vand.u32 %v3086, 4294901760
    %v3314 = vsub.f32 %v3086, %v3313
    %v3315 = vand.u32 %v3314, 4294901760
    %v3316 = vsub.f32 %v3314, %v3315
    %v3317 = vand.u32 %v3316, 4294901760
    %3318 = vmatpush1.msra.mxu0 %v3317
    %3319 = vmatprep.subr.mxu0 0.0
    %v3320 = vand.u32 %v3087, 4294901760
    %v3321 = vsub.f32 %v3087, %v3320
    %v3322 = vand.u32 %v3321, 4294901760
    %v3323 = vsub.f32 %v3321, %v3322
    %v3324 = vand.u32 %v3323, 4294901760
    %3325 = vmatpush1.msra.mxu0 %v3324
    %3326 = vmatprep.subr.mxu0 0.0
    %v3327 = vand.u32 %v3088, 4294901760
    %v3328 = vsub.f32 %v3088, %v3327
    %v3329 = vand.u32 %v3328, 4294901760
    %v3330 = vsub.f32 %v3328, %v3329
    %v3331 = vand.u32 %v3330, 4294901760
    %3332 = vmatpush1.msra.mxu0 %v3331
    %3333 = vmatprep.subr.mxu0 0.0
    %v3334 = vand.u32 %v3089, 4294901760
    %v3335 = vsub.f32 %v3089, %v3334
    %v3336 = vand.u32 %v3335, 4294901760
    %v3337 = vsub.f32 %v3335, %v3336
    %v3338 = vand.u32 %v3337, 4294901760
    %3339 = vmatpush1.msra.mxu0 %v3338
    %3340 = vmatprep.subr.mxu0 0.0
    %v3341 = vand.u32 %v3090, 4294901760
    %v3342 = vsub.f32 %v3090, %v3341
    %v3343 = vand.u32 %v3342, 4294901760
    %v3344 = vsub.f32 %v3342, %v3343
    %v3345 = vand.u32 %v3344, 4294901760
    %3346 = vmatpush1.msra.mxu0 %v3345
    %3347 = vmatprep.subr.mxu0 0.0
    %v3348 = vand.u32 %v3091, 4294901760
    %v3349 = vsub.f32 %v3091, %v3348
    %v3350 = vand.u32 %v3349, 4294901760
    %v3351 = vsub.f32 %v3349, %v3350
    %v3352 = vand.u32 %v3351, 4294901760
    %3353 = vmatpush1.msra.mxu0 %v3352
    %3354 = vmatprep.subr.mxu0 0.0
    %v3355 = vand.u32 %v3092, 4294901760
    %v3356 = vsub.f32 %v3092, %v3355
    %v3357 = vand.u32 %v3356, 4294901760
    %v3358 = vsub.f32 %v3356, %v3357
    %v3359 = vand.u32 %v3358, 4294901760
    %3360 = vmatpush1.msra.mxu0 %v3359
    %3361 = vmatprep.subr.mxu0 0.0
    %v3362 = vand.u32 %v3093, 4294901760
    %v3363 = vsub.f32 %v3093, %v3362
    %v3364 = vand.u32 %v3363, 4294901760
    %v3365 = vsub.f32 %v3363, %v3364
    %v3366 = vand.u32 %v3365, 4294901760
    %3367 = vmatpush1.msra.mxu0 %v3366
    %3368 = vmatprep.subr.mxu0 0.0
    %v3369 = vand.u32 %v3094, 4294901760
    %v3370 = vsub.f32 %v3094, %v3369
    %v3371 = vand.u32 %v3370, 4294901760
    %v3372 = vsub.f32 %v3370, %v3371
    %v3373 = vand.u32 %v3372, 4294901760
    %3374 = vmatpush1.msra.mxu0 %v3373
    %3375 = vmatprep.subr.mxu0 0.0
    %v3376 = vand.u32 %v3095, 4294901760
    %v3377 = vsub.f32 %v3095, %v3376
    %v3378 = vand.u32 %v3377, 4294901760
    %v3379 = vsub.f32 %v3377, %v3378
    %v3380 = vand.u32 %v3379, 4294901760
    %3381 = vmatpush1.msra.mxu0 %v3380
    %3382 = vmatprep.subr.mxu0 0.0
    %v3383 = vand.u32 %v3096, 4294901760
    %v3384 = vsub.f32 %v3096, %v3383
    %v3385 = vand.u32 %v3384, 4294901760
    %v3386 = vsub.f32 %v3384, %v3385
    %v3387 = vand.u32 %v3386, 4294901760
    %3388 = vmatpush1.msra.mxu0 %v3387
    %3389 = vmatprep.subr.mxu0 0.0
    %v3390 = vand.u32 %v3097, 4294901760
    %v3391 = vsub.f32 %v3097, %v3390
    %v3392 = vand.u32 %v3391, 4294901760
    %v3393 = vsub.f32 %v3391, %v3392
    %v3394 = vand.u32 %v3393, 4294901760
    %3395 = vmatpush1.msra.mxu0 %v3394
    %3396 = vmatprep.subr.mxu0 0.0
    %v3397 = vand.u32 %v3098, 4294901760
    %v3398 = vsub.f32 %v3098, %v3397
    %v3399 = vand.u32 %v3398, 4294901760
    %v3400 = vsub.f32 %v3398, %v3399
    %v3401 = vand.u32 %v3400, 4294901760
    %3402 = vmatpush1.msra.mxu0 %v3401
    %3403 = vmatprep.subr.mxu0 0.0
    %v3404 = vand.u32 %v3099, 4294901760
    %v3405 = vsub.f32 %v3099, %v3404
    %v3406 = vand.u32 %v3405, 4294901760
    %v3407 = vsub.f32 %v3405, %v3406
    %v3408 = vand.u32 %v3407, 4294901760
    %3409 = vmatpush1.msra.mxu0 %v3408
    %3410 = vmatprep.subr.mxu0 0.0
    %v3411 = vand.u32 %v3100, 4294901760
    %v3412 = vsub.f32 %v3100, %v3411
    %v3413 = vand.u32 %v3412, 4294901760
    %v3414 = vsub.f32 %v3412, %v3413
    %v3415 = vand.u32 %v3414, 4294901760
    %3416 = vmatpush1.msra.mxu0 %v3415
    %3417 = vmatprep.subr.mxu0 0.0
    %v3418 = vand.u32 %v3101, 4294901760
    %v3419 = vsub.f32 %v3101, %v3418
    %v3420 = vand.u32 %v3419, 4294901760
    %v3421 = vsub.f32 %v3419, %v3420
    %v3422 = vand.u32 %v3421, 4294901760
    %3423 = vmatpush1.msra.mxu0 %v3422
    %3424 = vmatprep.subr.mxu0 0.0
    %v3425 = vand.u32 %v3102, 4294901760
    %v3426 = vsub.f32 %v3102, %v3425
    %v3427 = vand.u32 %v3426, 4294901760
    %v3428 = vsub.f32 %v3426, %v3427
    %v3429 = vand.u32 %v3428, 4294901760
    %3430 = vmatpush1.msra.mxu0 %v3429
    %3431 = vmatprep.subr.mxu0 0.0
    %v3432 = vand.u32 %v3103, 4294901760
    %v3433 = vsub.f32 %v3103, %v3432
    %v3434 = vand.u32 %v3433, 4294901760
    %v3435 = vsub.f32 %v3433, %v3434
    %v3436 = vand.u32 %v3435, 4294901760
    %3437 = vmatpush1.msra.mxu0 %v3436
    %3438 = vmatprep.subr.mxu0 0.0
    %v3439 = vand.u32 %v3104, 4294901760
    %v3440 = vsub.f32 %v3104, %v3439
    %v3441 = vand.u32 %v3440, 4294901760
    %v3442 = vsub.f32 %v3440, %v3441
    %v3443 = vand.u32 %v3442, 4294901760
    %3444 = vmatpush1.msra.mxu0 %v3443
    %3445 = vmatprep.subr.mxu0 0.0
    %v3446 = vand.u32 %v3105, 4294901760
    %v3447 = vsub.f32 %v3105, %v3446
    %v3448 = vand.u32 %v3447, 4294901760
    %v3449 = vsub.f32 %v3447, %v3448
    %v3450 = vand.u32 %v3449, 4294901760
    %3451 = vmatpush1.msra.mxu0 %v3450
    %3452 = vmatprep.subr.mxu0 0.0
    %v3453 = vand.u32 %v3106, 4294901760
    %v3454 = vsub.f32 %v3106, %v3453
    %v3455 = vand.u32 %v3454, 4294901760
    %v3456 = vsub.f32 %v3454, %v3455
    %v3457 = vand.u32 %v3456, 4294901760
    %3458 = vmatpush1.msra.mxu0 %v3457
    %3459 = vmatprep.subr.mxu0 0.0
    %v3460 = vand.u32 %v3107, 4294901760
    %v3461 = vsub.f32 %v3107, %v3460
    %v3462 = vand.u32 %v3461, 4294901760
    %v3463 = vsub.f32 %v3461, %v3462
    %v3464 = vand.u32 %v3463, 4294901760
    %3465 = vmatpush1.msra.mxu0 %v3464
    %3466 = vmatprep.subr.mxu0 0.0
    %v3467 = vand.u32 %v3108, 4294901760
    %v3468 = vsub.f32 %v3108, %v3467
    %v3469 = vand.u32 %v3468, 4294901760
    %v3470 = vsub.f32 %v3468, %v3469
    %v3471 = vand.u32 %v3470, 4294901760
    %3472 = vmatpush1.msra.mxu0 %v3471
    %3473 = vmatprep.subr.mxu0 0.0
    %v3474 = vand.u32 %v3109, 4294901760
    %v3475 = vsub.f32 %v3109, %v3474
    %v3476 = vand.u32 %v3475, 4294901760
    %v3477 = vsub.f32 %v3475, %v3476
    %v3478 = vand.u32 %v3477, 4294901760
    %3479 = vmatpush1.msra.mxu0 %v3478
    %3480 = vmatprep.subr.mxu0 0.0
    %v3481 = vand.u32 %v3110, 4294901760
    %v3482 = vsub.f32 %v3110, %v3481
    %v3483 = vand.u32 %v3482, 4294901760
    %v3484 = vsub.f32 %v3482, %v3483
    %v3485 = vand.u32 %v3484, 4294901760
    %3486 = vmatpush1.msra.mxu0 %v3485
    %3487 = vmatprep.subr.mxu0 0.0
    %v3488 = vand.u32 %v3111, 4294901760
    %v3489 = vsub.f32 %v3111, %v3488
    %v3490 = vand.u32 %v3489, 4294901760
    %v3491 = vsub.f32 %v3489, %v3490
    %v3492 = vand.u32 %v3491, 4294901760
    %3493 = vmatpush1.msra.mxu0 %v3492
    %3494 = vmatprep.subr.mxu0 0.0
    %v3495 = vand.u32 %v3112, 4294901760
    %v3496 = vsub.f32 %v3112, %v3495
    %v3497 = vand.u32 %v3496, 4294901760
    %v3498 = vsub.f32 %v3496, %v3497
    %v3499 = vand.u32 %v3498, 4294901760
    %3500 = vmatpush1.msra.mxu0 %v3499
    %v3501 = vand.u32 %v3074, 4294901760
    %3502 = vmatprep.mubr.f32.mxu0 %v3501
    %v3503 = vand.u32 %v3073, 4294901760
    %3504 = vmatmul.mubr.f32.gmra.mrb[0].mxu0 %v3503
    %v3505 = vpop.f32.mrb[0].mxu0
    %v3506 = vadd.f32 %v3229, %v3505
    %v3507 = vpop.f32.mrb[0].mxu0
    %v3508 = vand.u32 %v3076, 4294901760
    %3509 = vmatprep.mubr.f32.mxu0 %v3508
    %v3510 = vand.u32 %v3075, 4294901760
    %3511 = vmatmul.mubr.f32.gmra.mrb[0].mxu0 %v3510
    %v3512 = vpop.f32.mrb[0].mxu0
    %v3513 = vadd.f32 %v3244, %v3512
    %v3514 = vpop.f32.mrb[0].mxu0
    %v3515 = vand.u32 %v3078, 4294901760
    %3516 = vmatprep.mubr.f32.mxu0 %v3515
    %v3517 = vand.u32 %v3077, 4294901760
    %3518 = vmatmul.mubr.f32.gmra.mrb[0].mxu0 %v3517
    %v3519 = vpop.f32.mrb[0].mxu0
    %v3520 = vadd.f32 %v3259, %v3519
    %v3521 = vpop.f32.mrb[0].mxu0
    %v3522 = vand.u32 %v3080, 4294901760
    %3523 = vmatprep.mubr.f32.mxu0 %v3522
    %v3524 = vand.u32 %v3079, 4294901760
    %3525 = vmatmul.mubr.f32.gmra.mrb[0].mxu0 %v3524
    %v3526 = vpop.f32.mrb[0].mxu0
    %v3527 = vadd.f32 %v3274, %v3526
    %v3528 = vpop.f32.mrb[0].mxu0
    %3529 = vdwg.mxu0
    %3530 = vmatprep.subr.mxu0 0.0
    %v3531 = vand.u32 %v3081, 4294901760
    %v3532 = vsub.f32 %v3081, %v3531
    %3533 = vmatpush1.msra.mxu0 %v3532
    %3534 = vmatprep.subr.mxu0 0.0
    %v3535 = vand.u32 %v3082, 4294901760
    %v3536 = vsub.f32 %v3082, %v3535
    %3537 = vmatpush1.msra.mxu0 %v3536
    %3538 = vmatprep.subr.mxu0 0.0
    %v3539 = vand.u32 %v3083, 4294901760
    %v3540 = vsub.f32 %v3083, %v3539
    %3541 = vmatpush1.msra.mxu0 %v3540
    %3542 = vmatprep.subr.mxu0 0.0
    %v3543 = vand.u32 %v3084, 4294901760
    %v3544 = vsub.f32 %v3084, %v3543
    %3545 = vmatpush1.msra.mxu0 %v3544
    %3546 = vmatprep.subr.mxu0 0.0
    %v3547 = vand.u32 %v3085, 4294901760
    %v3548 = vsub.f32 %v3085, %v3547
    %3549 = vmatpush1.msra.mxu0 %v3548
    %3550 = vmatprep.subr.mxu0 0.0
    %v3551 = vand.u32 %v3086, 4294901760
    %v3552 = vsub.f32 %v3086, %v3551
    %3553 = vmatpush1.msra.mxu0 %v3552
    %3554 = vmatprep.subr.mxu0 0.0
    %v3555 = vand.u32 %v3087, 4294901760
    %v3556 = vsub.f32 %v3087, %v3555
    %3557 = vmatpush1.msra.mxu0 %v3556
    %3558 = vmatprep.subr.mxu0 0.0
    %v3559 = vand.u32 %v3088, 4294901760
    %v3560 = vsub.f32 %v3088, %v3559
    %3561 = vmatpush1.msra.mxu0 %v3560
    %3562 = vmatprep.subr.mxu0 0.0
    %v3563 = vand.u32 %v3089, 4294901760
    %v3564 = vsub.f32 %v3089, %v3563
    %3565 = vmatpush1.msra.mxu0 %v3564
    %3566 = vmatprep.subr.mxu0 0.0
    %v3567 = vand.u32 %v3090, 4294901760
    %v3568 = vsub.f32 %v3090, %v3567
    %3569 = vmatpush1.msra.mxu0 %v3568
    %3570 = vmatprep.subr.mxu0 0.0
    %v3571 = vand.u32 %v3091, 4294901760
    %v3572 = vsub.f32 %v3091, %v3571
    %3573 = vmatpush1.msra.mxu0 %v3572
    %3574 = vmatprep.subr.mxu0 0.0
    %v3575 = vand.u32 %v3092, 4294901760
    %v3576 = vsub.f32 %v3092, %v3575
    %3577 = vmatpush1.msra.mxu0 %v3576
    %3578 = vmatprep.subr.mxu0 0.0
    %v3579 = vand.u32 %v3093, 4294901760
    %v3580 = vsub.f32 %v3093, %v3579
    %3581 = vmatpush1.msra.mxu0 %v3580
    %3582 = vmatprep.subr.mxu0 0.0
    %v3583 = vand.u32 %v3094, 4294901760
    %v3584 = vsub.f32 %v3094, %v3583
    %3585 = vmatpush1.msra.mxu0 %v3584
    %3586 = vmatprep.subr.mxu0 0.0
    %v3587 = vand.u32 %v3095, 4294901760
    %v3588 = vsub.f32 %v3095, %v3587
    %3589 = vmatpush1.msra.mxu0 %v3588
    %3590 = vmatprep.subr.mxu0 0.0
    %v3591 = vand.u32 %v3096, 4294901760
    %v3592 = vsub.f32 %v3096, %v3591
    %3593 = vmatpush1.msra.mxu0 %v3592
    %3594 = vmatprep.subr.mxu0 0.0
    %v3595 = vand.u32 %v3097, 4294901760
    %v3596 = vsub.f32 %v3097, %v3595
    %3597 = vmatpush1.msra.mxu0 %v3596
    %3598 = vmatprep.subr.mxu0 0.0
    %v3599 = vand.u32 %v3098, 4294901760
    %v3600 = vsub.f32 %v3098, %v3599
    %3601 = vmatpush1.msra.mxu0 %v3600
    %3602 = vmatprep.subr.mxu0 0.0
    %v3603 = vand.u32 %v3099, 4294901760
    %v3604 = vsub.f32 %v3099, %v3603
    %3605 = vmatpush1.msra.mxu0 %v3604
    %3606 = vmatprep.subr.mxu0 0.0
    %v3607 = vand.u32 %v3100, 4294901760
    %v3608 = vsub.f32 %v3100, %v3607
    %3609 = vmatpush1.msra.mxu0 %v3608
    %3610 = vmatprep.subr.mxu0 0.0
    %v3611 = vand.u32 %v3101, 4294901760
    %v3612 = vsub.f32 %v3101, %v3611
    %3613 = vmatpush1.msra.mxu0 %v3612
    %3614 = vmatprep.subr.mxu0 0.0
    %v3615 = vand.u32 %v3102, 4294901760
    %v3616 = vsub.f32 %v3102, %v3615
    %3617 = vmatpush1.msra.mxu0 %v3616
    %3618 = vmatprep.subr.mxu0 0.0
    %v3619 = vand.u32 %v3103, 4294901760
    %v3620 = vsub.f32 %v3103, %v3619
    %3621 = vmatpush1.msra.mxu0 %v3620
    %3622 = vmatprep.subr.mxu0 0.0
    %v3623 = vand.u32 %v3104, 4294901760
    %v3624 = vsub.f32 %v3104, %v3623
    %3625 = vmatpush1.msra.mxu0 %v3624
    %3626 = vmatprep.subr.mxu0 0.0
    %v3627 = vand.u32 %v3105, 4294901760
    %v3628 = vsub.f32 %v3105, %v3627
    %3629 = vmatpush1.msra.mxu0 %v3628
    %3630 = vmatprep.subr.mxu0 0.0
    %v3631 = vand.u32 %v3106, 4294901760
    %v3632 = vsub.f32 %v3106, %v3631
    %3633 = vmatpush1.msra.mxu0 %v3632
    %3634 = vmatprep.subr.mxu0 0.0
    %v3635 = vand.u32 %v3107, 4294901760
    %v3636 = vsub.f32 %v3107, %v3635
    %3637 = vmatpush1.msra.mxu0 %v3636
    %3638 = vmatprep.subr.mxu0 0.0
    %v3639 = vand.u32 %v3108, 4294901760
    %v3640 = vsub.f32 %v3108, %v3639
    %3641 = vmatpush1.msra.mxu0 %v3640
    %3642 = vmatprep.subr.mxu0 0.0
    %v3643 = vand.u32 %v3109, 4294901760
    %v3644 = vsub.f32 %v3109, %v3643
    %3645 = vmatpush1.msra.mxu0 %v3644
    %3646 = vmatprep.subr.mxu0 0.0
    %v3647 = vand.u32 %v3110, 4294901760
    %v3648 = vsub.f32 %v3110, %v3647
    %3649 = vmatpush1.msra.mxu0 %v3648
    %3650 = vmatprep.subr.mxu0 0.0
    %v3651 = vand.u32 %v3111, 4294901760
    %v3652 = vsub.f32 %v3111, %v3651
    %3653 = vmatpush1.msra.mxu0 %v3652
    %3654 = vmatprep.subr.mxu0 0.0
    %v3655 = vand.u32 %v3112, 4294901760
    %v3656 = vsub.f32 %v3112, %v3655
    %3657 = vmatpush1.msra.mxu0 %v3656
    %v3658 = vand.u32 %v3074, 4294901760
    %v3659 = vsub.f32 %v3074, %v3658
    %3660 = vmatprep.mubr.f32.mxu0 %v3659
    %v3661 = vand.u32 %v3073, 4294901760
    %v3662 = vsub.f32 %v3073, %v3661
    %3663 = vmatmul.mubr.f32.gmra.mrb[0].mxu0 %v3662
    %v3664 = vpop.f32.mrb[0].mxu0
    %v3665 = vadd.f32 %v3506, %v3664
    %v3666 = vpop.f32.mrb[0].mxu0
    %v3667 = vand.u32 %v3076, 4294901760
    %v3668 = vsub.f32 %v3076, %v3667
    %3669 = vmatprep.mubr.f32.mxu0 %v3668
    %v3670 = vand.u32 %v3075, 4294901760
    %v3671 = vsub.f32 %v3075, %v3670
    %3672 = vmatmul.mubr.f32.gmra.mrb[0].mxu0 %v3671
    %v3673 = vpop.f32.mrb[0].mxu0
    %v3674 = vadd.f32 %v3513, %v3673
    %v3675 = vpop.f32.mrb[0].mxu0
    %v3676 = vand.u32 %v3078, 4294901760
    %v3677 = vsub.f32 %v3078, %v3676
    %3678 = vmatprep.mubr.f32.mxu0 %v3677
    %v3679 = vand.u32 %v3077, 4294901760
    %v3680 = vsub.f32 %v3077, %v3679
    %3681 = vmatmul.mubr.f32.gmra.mrb[0].mxu0 %v3680
    %v3682 = vpop.f32.mrb[0].mxu0
    %v3683 = vadd.f32 %v3520, %v3682
    %v3684 = vpop.f32.mrb[0].mxu0
    %v3685 = vand.u32 %v3080, 4294901760
    %v3686 = vsub.f32 %v3080, %v3685
    %3687 = vmatprep.mubr.f32.mxu0 %v3686
    %v3688 = vand.u32 %v3079, 4294901760
    %v3689 = vsub.f32 %v3079, %v3688
    %3690 = vmatmul.mubr.f32.gmra.mrb[0].mxu0 %v3689
    %v3691 = vpop.f32.mrb[0].mxu0
    %v3692 = vadd.f32 %v3527, %v3691
    %v3693 = vpop.f32.mrb[0].mxu0
    %3694 = vdwg.mxu0
    %3695 = vmatprep.subr.mxu0 0.0
    %v3696 = vand.u32 %v3081, 4294901760
    %3697 = vmatpush1.msra.mxu0 %v3696
    %3698 = vmatprep.subr.mxu0 0.0
    %v3699 = vand.u32 %v3082, 4294901760
    %3700 = vmatpush1.msra.mxu0 %v3699
    %3701 = vmatprep.subr.mxu0 0.0
    %v3702 = vand.u32 %v3083, 4294901760
    %3703 = vmatpush1.msra.mxu0 %v3702
    %3704 = vmatprep.subr.mxu0 0.0
    %v3705 = vand.u32 %v3084, 4294901760
    %3706 = vmatpush1.msra.mxu0 %v3705
    %3707 = vmatprep.subr.mxu0 0.0
    %v3708 = vand.u32 %v3085, 4294901760
    %3709 = vmatpush1.msra.mxu0 %v3708
    %3710 = vmatprep.subr.mxu0 0.0
    %v3711 = vand.u32 %v3086, 4294901760
    %3712 = vmatpush1.msra.mxu0 %v3711
    %3713 = vmatprep.subr.mxu0 0.0
    %v3714 = vand.u32 %v3087, 4294901760
    %3715 = vmatpush1.msra.mxu0 %v3714
    %3716 = vmatprep.subr.mxu0 0.0
    %v3717 = vand.u32 %v3088, 4294901760
    %3718 = vmatpush1.msra.mxu0 %v3717
    %3719 = vmatprep.subr.mxu0 0.0
    %v3720 = vand.u32 %v3089, 4294901760
    %3721 = vmatpush1.msra.mxu0 %v3720
    %3722 = vmatprep.subr.mxu0 0.0
    %v3723 = vand.u32 %v3090, 4294901760
    %3724 = vmatpush1.msra.mxu0 %v3723
    %3725 = vmatprep.subr.mxu0 0.0
    %v3726 = vand.u32 %v3091, 4294901760
    %3727 = vmatpush1.msra.mxu0 %v3726
    %3728 = vmatprep.subr.mxu0 0.0
    %v3729 = vand.u32 %v3092, 4294901760
    %3730 = vmatpush1.msra.mxu0 %v3729
    %3731 = vmatprep.subr.mxu0 0.0
    %v3732 = vand.u32 %v3093, 4294901760
    %3733 = vmatpush1.msra.mxu0 %v3732
    %3734 = vmatprep.subr.mxu0 0.0
    %v3735 = vand.u32 %v3094, 4294901760
    %3736 = vmatpush1.msra.mxu0 %v3735
    %3737 = vmatprep.subr.mxu0 0.0
    %v3738 = vand.u32 %v3095, 4294901760
    %3739 = vmatpush1.msra.mxu0 %v3738
    %3740 = vmatprep.subr.mxu0 0.0
    %v3741 = vand.u32 %v3096, 4294901760
    %3742 = vmatpush1.msra.mxu0 %v3741
    %3743 = vmatprep.subr.mxu0 0.0
    %v3744 = vand.u32 %v3097, 4294901760
    %3745 = vmatpush1.msra.mxu0 %v3744
    %3746 = vmatprep.subr.mxu0 0.0
    %v3747 = vand.u32 %v3098, 4294901760
    %3748 = vmatpush1.msra.mxu0 %v3747
    %3749 = vmatprep.subr.mxu0 0.0
    %v3750 = vand.u32 %v3099, 4294901760
    %3751 = vmatpush1.msra.mxu0 %v3750
    %3752 = vmatprep.subr.mxu0 0.0
    %v3753 = vand.u32 %v3100, 4294901760
    %3754 = vmatpush1.msra.mxu0 %v3753
    %3755 = vmatprep.subr.mxu0 0.0
    %v3756 = vand.u32 %v3101, 4294901760
    %3757 = vmatpush1.msra.mxu0 %v3756
    %3758 = vmatprep.subr.mxu0 0.0
    %v3759 = vand.u32 %v3102, 4294901760
    %3760 = vmatpush1.msra.mxu0 %v3759
    %3761 = vmatprep.subr.mxu0 0.0
    %v3762 = vand.u32 %v3103, 4294901760
    %3763 = vmatpush1.msra.mxu0 %v3762
    %3764 = vmatprep.subr.mxu0 0.0
    %v3765 = vand.u32 %v3104, 4294901760
    %3766 = vmatpush1.msra.mxu0 %v3765
    %3767 = vmatprep.subr.mxu0 0.0
    %v3768 = vand.u32 %v3105, 4294901760
    %3769 = vmatpush1.msra.mxu0 %v3768
    %3770 = vmatprep.subr.mxu0 0.0
    %v3771 = vand.u32 %v3106, 4294901760
    %3772 = vmatpush1.msra.mxu0 %v3771
    %3773 = vmatprep.subr.mxu0 0.0
    %v3774 = vand.u32 %v3107, 4294901760
    %3775 = vmatpush1.msra.mxu0 %v3774
    %3776 = vmatprep.subr.mxu0 0.0
    %v3777 = vand.u32 %v3108, 4294901760
    %3778 = vmatpush1.msra.mxu0 %v3777
    %3779 = vmatprep.subr.mxu0 0.0
    %v3780 = vand.u32 %v3109, 4294901760
    %3781 = vmatpush1.msra.mxu0 %v3780
    %3782 = vmatprep.subr.mxu0 0.0
    %v3783 = vand.u32 %v3110, 4294901760
    %3784 = vmatpush1.msra.mxu0 %v3783
    %3785 = vmatprep.subr.mxu0 0.0
    %v3786 = vand.u32 %v3111, 4294901760
    %3787 = vmatpush1.msra.mxu0 %v3786
    %3788 = vmatprep.subr.mxu0 0.0
    %v3789 = vand.u32 %v3112, 4294901760
    %3790 = vmatpush1.msra.mxu0 %v3789
    %v3791 = vand.u32 %v3074, 4294901760
    %v3792 = vsub.f32 %v3074, %v3791
    %v3793 = vand.u32 %v3792, 4294901760
    %3794 = vmatprep.mubr.f32.mxu0 %v3793
    %v3795 = vand.u32 %v3073, 4294901760
    %v3796 = vsub.f32 %v3073, %v3795
    %v3797 = vand.u32 %v3796, 4294901760
    %3798 = vmatmul.mubr.f32.gmra.mrb[0].mxu0 %v3797
    %v3799 = vpop.f32.mrb[0].mxu0
    %v3800 = vadd.f32 %v3665, %v3799
    %v3801 = vpop.f32.mrb[0].mxu0
    %v3802 = vand.u32 %v3076, 4294901760
    %v3803 = vsub.f32 %v3076, %v3802
    %v3804 = vand.u32 %v3803, 4294901760
    %3805 = vmatprep.mubr.f32.mxu0 %v3804
    %v3806 = vand.u32 %v3075, 4294901760
    %v3807 = vsub.f32 %v3075, %v3806
    %v3808 = vand.u32 %v3807, 4294901760
    %3809 = vmatmul.mubr.f32.gmra.mrb[0].mxu0 %v3808
    %v3810 = vpop.f32.mrb[0].mxu0
    %v3811 = vadd.f32 %v3674, %v3810
    %v3812 = vpop.f32.mrb[0].mxu0
    %v3813 = vand.u32 %v3078, 4294901760
    %v3814 = vsub.f32 %v3078, %v3813
    %v3815 = vand.u32 %v3814, 4294901760
    %3816 = vmatprep.mubr.f32.mxu0 %v3815
    %v3817 = vand.u32 %v3077, 4294901760
    %v3818 = vsub.f32 %v3077, %v3817
    %v3819 = vand.u32 %v3818, 4294901760
    %3820 = vmatmul.mubr.f32.gmra.mrb[0].mxu0 %v3819
    %v3821 = vpop.f32.mrb[0].mxu0
    %v3822 = vadd.f32 %v3683, %v3821
    %v3823 = vpop.f32.mrb[0].mxu0
    %v3824 = vand.u32 %v3080, 4294901760
    %v3825 = vsub.f32 %v3080, %v3824
    %v3826 = vand.u32 %v3825, 4294901760
    %3827 = vmatprep.mubr.f32.mxu0 %v3826
    %v3828 = vand.u32 %v3079, 4294901760
    %v3829 = vsub.f32 %v3079, %v3828
    %v3830 = vand.u32 %v3829, 4294901760
    %3831 = vmatmul.mubr.f32.gmra.mrb[0].mxu0 %v3830
    %v3832 = vpop.f32.mrb[0].mxu0
    %v3833 = vadd.f32 %v3692, %v3832
    %v3834 = vpop.f32.mrb[0].mxu0
    %3835 = vdwg.mxu0
    %3836 = vmatprep.subr.mxu0 0.0
    %v3837 = vand.u32 %v3081, 4294901760
    %v3838 = vsub.f32 %v3081, %v3837
    %v3839 = vand.u32 %v3838, 4294901760
    %3840 = vmatpush1.msra.mxu0 %v3839
    %3841 = vmatprep.subr.mxu0 0.0
    %v3842 = vand.u32 %v3082, 4294901760
    %v3843 = vsub.f32 %v3082, %v3842
    %v3844 = vand.u32 %v3843, 4294901760
    %3845 = vmatpush1.msra.mxu0 %v3844
    %3846 = vmatprep.subr.mxu0 0.0
    %v3847 = vand.u32 %v3083, 4294901760
    %v3848 = vsub.f32 %v3083, %v3847
    %v3849 = vand.u32 %v3848, 4294901760
    %3850 = vmatpush1.msra.mxu0 %v3849
    %3851 = vmatprep.subr.mxu0 0.0
    %v3852 = vand.u32 %v3084, 4294901760
    %v3853 = vsub.f32 %v3084, %v3852
    %v3854 = vand.u32 %v3853, 4294901760
    %3855 = vmatpush1.msra.mxu0 %v3854
    %3856 = vmatprep.subr.mxu0 0.0
    %v3857 = vand.u32 %v3085, 4294901760
    %v3858 = vsub.f32 %v3085, %v3857
    %v3859 = vand.u32 %v3858, 4294901760
    %3860 = vmatpush1.msra.mxu0 %v3859
    %3861 = vmatprep.subr.mxu0 0.0
    %v3862 = vand.u32 %v3086, 4294901760
    %v3863 = vsub.f32 %v3086, %v3862
    %v3864 = vand.u32 %v3863, 4294901760
    %3865 = vmatpush1.msra.mxu0 %v3864
    %3866 = vmatprep.subr.mxu0 0.0
    %v3867 = vand.u32 %v3087, 4294901760
    %v3868 = vsub.f32 %v3087, %v3867
    %v3869 = vand.u32 %v3868, 4294901760
    %3870 = vmatpush1.msra.mxu0 %v3869
    %3871 = vmatprep.subr.mxu0 0.0
    %v3872 = vand.u32 %v3088, 4294901760
    %v3873 = vsub.f32 %v3088, %v3872
    %v3874 = vand.u32 %v3873, 4294901760
    %3875 = vmatpush1.msra.mxu0 %v3874
    %3876 = vmatprep.subr.mxu0 0.0
    %v3877 = vand.u32 %v3089, 4294901760
    %v3878 = vsub.f32 %v3089, %v3877
    %v3879 = vand.u32 %v3878, 4294901760
    %3880 = vmatpush1.msra.mxu0 %v3879
    %3881 = vmatprep.subr.mxu0 0.0
    %v3882 = vand.u32 %v3090, 4294901760
    %v3883 = vsub.f32 %v3090, %v3882
    %v3884 = vand.u32 %v3883, 4294901760
    %3885 = vmatpush1.msra.mxu0 %v3884
    %3886 = vmatprep.subr.mxu0 0.0
    %v3887 = vand.u32 %v3091, 4294901760
    %v3888 = vsub.f32 %v3091, %v3887
    %v3889 = vand.u32 %v3888, 4294901760
    %3890 = vmatpush1.msra.mxu0 %v3889
    %3891 = vmatprep.subr.mxu0 0.0
    %v3892 = vand.u32 %v3092, 4294901760
    %v3893 = vsub.f32 %v3092, %v3892
    %v3894 = vand.u32 %v3893, 4294901760
    %3895 = vmatpush1.msra.mxu0 %v3894
    %3896 = vmatprep.subr.mxu0 0.0
    %v3897 = vand.u32 %v3093, 4294901760
    %v3898 = vsub.f32 %v3093, %v3897
    %v3899 = vand.u32 %v3898, 4294901760
    %3900 = vmatpush1.msra.mxu0 %v3899
    %3901 = vmatprep.subr.mxu0 0.0
    %v3902 = vand.u32 %v3094, 4294901760
    %v3903 = vsub.f32 %v3094, %v3902
    %v3904 = vand.u32 %v3903, 4294901760
    %3905 = vmatpush1.msra.mxu0 %v3904
    %3906 = vmatprep.subr.mxu0 0.0
    %v3907 = vand.u32 %v3095, 4294901760
    %v3908 = vsub.f32 %v3095, %v3907
    %v3909 = vand.u32 %v3908, 4294901760
    %3910 = vmatpush1.msra.mxu0 %v3909
    %3911 = vmatprep.subr.mxu0 0.0
    %v3912 = vand.u32 %v3096, 4294901760
    %v3913 = vsub.f32 %v3096, %v3912
    %v3914 = vand.u32 %v3913, 4294901760
    %3915 = vmatpush1.msra.mxu0 %v3914
    %3916 = vmatprep.subr.mxu0 0.0
    %v3917 = vand.u32 %v3097, 4294901760
    %v3918 = vsub.f32 %v3097, %v3917
    %v3919 = vand.u32 %v3918, 4294901760
    %3920 = vmatpush1.msra.mxu0 %v3919
    %3921 = vmatprep.subr.mxu0 0.0
    %v3922 = vand.u32 %v3098, 4294901760
    %v3923 = vsub.f32 %v3098, %v3922
    %v3924 = vand.u32 %v3923, 4294901760
    %3925 = vmatpush1.msra.mxu0 %v3924
    %3926 = vmatprep.subr.mxu0 0.0
    %v3927 = vand.u32 %v3099, 4294901760
    %v3928 = vsub.f32 %v3099, %v3927
    %v3929 = vand.u32 %v3928, 4294901760
    %3930 = vmatpush1.msra.mxu0 %v3929
    %3931 = vmatprep.subr.mxu0 0.0
    %v3932 = vand.u32 %v3100, 4294901760
    %v3933 = vsub.f32 %v3100, %v3932
    %v3934 = vand.u32 %v3933, 4294901760
    %3935 = vmatpush1.msra.mxu0 %v3934
    %3936 = vmatprep.subr.mxu0 0.0
    %v3937 = vand.u32 %v3101, 4294901760
    %v3938 = vsub.f32 %v3101, %v3937
    %v3939 = vand.u32 %v3938, 4294901760
    %3940 = vmatpush1.msra.mxu0 %v3939
    %3941 = vmatprep.subr.mxu0 0.0
    %v3942 = vand.u32 %v3102, 4294901760
    %v3943 = vsub.f32 %v3102, %v3942
    %v3944 = vand.u32 %v3943, 4294901760
    %3945 = vmatpush1.msra.mxu0 %v3944
    %3946 = vmatprep.subr.mxu0 0.0
    %v3947 = vand.u32 %v3103, 4294901760
    %v3948 = vsub.f32 %v3103, %v3947
    %v3949 = vand.u32 %v3948, 4294901760
    %3950 = vmatpush1.msra.mxu0 %v3949
    %3951 = vmatprep.subr.mxu0 0.0
    %v3952 = vand.u32 %v3104, 4294901760
    %v3953 = vsub.f32 %v3104, %v3952
    %v3954 = vand.u32 %v3953, 4294901760
    %3955 = vmatpush1.msra.mxu0 %v3954
    %3956 = vmatprep.subr.mxu0 0.0
    %v3957 = vand.u32 %v3105, 4294901760
    %v3958 = vsub.f32 %v3105, %v3957
    %v3959 = vand.u32 %v3958, 4294901760
    %3960 = vmatpush1.msra.mxu0 %v3959
    %3961 = vmatprep.subr.mxu0 0.0
    %v3962 = vand.u32 %v3106, 4294901760
    %v3963 = vsub.f32 %v3106, %v3962
    %v3964 = vand.u32 %v3963, 4294901760
    %3965 = vmatpush1.msra.mxu0 %v3964
    %3966 = vmatprep.subr.mxu0 0.0
    %v3967 = vand.u32 %v3107, 4294901760
    %v3968 = vsub.f32 %v3107, %v3967
    %v3969 = vand.u32 %v3968, 4294901760
    %3970 = vmatpush1.msra.mxu0 %v3969
    %3971 = vmatprep.subr.mxu0 0.0
    %v3972 = vand.u32 %v3108, 4294901760
    %v3973 = vsub.f32 %v3108, %v3972
    %v3974 = vand.u32 %v3973, 4294901760
    %3975 = vmatpush1.msra.mxu0 %v3974
    %3976 = vmatprep.subr.mxu0 0.0
    %v3977 = vand.u32 %v3109, 4294901760
    %v3978 = vsub.f32 %v3109, %v3977
    %v3979 = vand.u32 %v3978, 4294901760
    %3980 = vmatpush1.msra.mxu0 %v3979
    %3981 = vmatprep.subr.mxu0 0.0
    %v3982 = vand.u32 %v3110, 4294901760
    %v3983 = vsub.f32 %v3110, %v3982
    %v3984 = vand.u32 %v3983, 4294901760
    %3985 = vmatpush1.msra.mxu0 %v3984
    %3986 = vmatprep.subr.mxu0 0.0
    %v3987 = vand.u32 %v3111, 4294901760
    %v3988 = vsub.f32 %v3111, %v3987
    %v3989 = vand.u32 %v3988, 4294901760
    %3990 = vmatpush1.msra.mxu0 %v3989
    %3991 = vmatprep.subr.mxu0 0.0
    %v3992 = vand.u32 %v3112, 4294901760
    %v3993 = vsub.f32 %v3112, %v3992
    %v3994 = vand.u32 %v3993, 4294901760
    %3995 = vmatpush1.msra.mxu0 %v3994
    %v3996 = vand.u32 %v3074, 4294901760
    %3997 = vmatprep.mubr.f32.mxu0 %v3996
    %v3998 = vand.u32 %v3073, 4294901760
    %3999 = vmatmul.mubr.f32.gmra.mrb[0].mxu0 %v3998
    %v4000 = vpop.f32.mrb[0].mxu0
    %v4001 = vadd.f32 %v3800, %v4000
    %v4002 = vpop.f32.mrb[0].mxu0
    %v4003 = vand.u32 %v3076, 4294901760
    %4004 = vmatprep.mubr.f32.mxu0 %v4003
    %v4005 = vand.u32 %v3075, 4294901760
    %4006 = vmatmul.mubr.f32.gmra.mrb[0].mxu0 %v4005
    %v4007 = vpop.f32.mrb[0].mxu0
    %v4008 = vadd.f32 %v3811, %v4007
    %v4009 = vpop.f32.mrb[0].mxu0
    %v4010 = vand.u32 %v3078, 4294901760
    %4011 = vmatprep.mubr.f32.mxu0 %v4010
    %v4012 = vand.u32 %v3077, 4294901760
    %4013 = vmatmul.mubr.f32.gmra.mrb[0].mxu0 %v4012
    %v4014 = vpop.f32.mrb[0].mxu0
    %v4015 = vadd.f32 %v3822, %v4014
    %v4016 = vpop.f32.mrb[0].mxu0
    %v4017 = vand.u32 %v3080, 4294901760
    %4018 = vmatprep.mubr.f32.mxu0 %v4017
    %v4019 = vand.u32 %v3079, 4294901760
    %4020 = vmatmul.mubr.f32.gmra.mrb[0].mxu0 %v4019
    %v4021 = vpop.f32.mrb[0].mxu0
    %v4022 = vadd.f32 %v3833, %v4021
    %v4023 = vpop.f32.mrb[0].mxu0
    %4024 = vdwg.mxu0
    %4025 = vmatprep.subr.mxu0 0.0
    %v4026 = vand.u32 %v3081, 4294901760
    %4027 = vmatpush1.msra.mxu0 %v4026
    %4028 = vmatprep.subr.mxu0 0.0
    %v4029 = vand.u32 %v3082, 4294901760
    %4030 = vmatpush1.msra.mxu0 %v4029
    %4031 = vmatprep.subr.mxu0 0.0
    %v4032 = vand.u32 %v3083, 4294901760
    %4033 = vmatpush1.msra.mxu0 %v4032
    %4034 = vmatprep.subr.mxu0 0.0
    %v4035 = vand.u32 %v3084, 4294901760
    %4036 = vmatpush1.msra.mxu0 %v4035
    %4037 = vmatprep.subr.mxu0 0.0
    %v4038 = vand.u32 %v3085, 4294901760
    %4039 = vmatpush1.msra.mxu0 %v4038
    %4040 = vmatprep.subr.mxu0 0.0
    %v4041 = vand.u32 %v3086, 4294901760
    %4042 = vmatpush1.msra.mxu0 %v4041
    %4043 = vmatprep.subr.mxu0 0.0
    %v4044 = vand.u32 %v3087, 4294901760
    %4045 = vmatpush1.msra.mxu0 %v4044
    %4046 = vmatprep.subr.mxu0 0.0
    %v4047 = vand.u32 %v3088, 4294901760
    %4048 = vmatpush1.msra.mxu0 %v4047
    %4049 = vmatprep.subr.mxu0 0.0
    %v4050 = vand.u32 %v3089, 4294901760
    %4051 = vmatpush1.msra.mxu0 %v4050
    %4052 = vmatprep.subr.mxu0 0.0
    %v4053 = vand.u32 %v3090, 4294901760
    %4054 = vmatpush1.msra.mxu0 %v4053
    %4055 = vmatprep.subr.mxu0 0.0
    %v4056 = vand.u32 %v3091, 4294901760
    %4057 = vmatpush1.msra.mxu0 %v4056
    %4058 = vmatprep.subr.mxu0 0.0
    %v4059 = vand.u32 %v3092, 4294901760
    %4060 = vmatpush1.msra.mxu0 %v4059
    %4061 = vmatprep.subr.mxu0 0.0
    %v4062 = vand.u32 %v3093, 4294901760
    %4063 = vmatpush1.msra.mxu0 %v4062
    %4064 = vmatprep.subr.mxu0 0.0
    %v4065 = vand.u32 %v3094, 4294901760
    %4066 = vmatpush1.msra.mxu0 %v4065
    %4067 = vmatprep.subr.mxu0 0.0
    %v4068 = vand.u32 %v3095, 4294901760
    %4069 = vmatpush1.msra.mxu0 %v4068
    %4070 = vmatprep.subr.mxu0 0.0
    %v4071 = vand.u32 %v3096, 4294901760
    %4072 = vmatpush1.msra.mxu0 %v4071
    %4073 = vmatprep.subr.mxu0 0.0
    %v4074 = vand.u32 %v3097, 4294901760
    %4075 = vmatpush1.msra.mxu0 %v4074
    %4076 = vmatprep.subr.mxu0 0.0
    %v4077 = vand.u32 %v3098, 4294901760
    %4078 = vmatpush1.msra.mxu0 %v4077
    %4079 = vmatprep.subr.mxu0 0.0
    %v4080 = vand.u32 %v3099, 4294901760
    %4081 = vmatpush1.msra.mxu0 %v4080
    %4082 = vmatprep.subr.mxu0 0.0
    %v4083 = vand.u32 %v3100, 4294901760
    %4084 = vmatpush1.msra.mxu0 %v4083
    %4085 = vmatprep.subr.mxu0 0.0
    %v4086 = vand.u32 %v3101, 4294901760
    %4087 = vmatpush1.msra.mxu0 %v4086
    %4088 = vmatprep.subr.mxu0 0.0
    %v4089 = vand.u32 %v3102, 4294901760
    %4090 = vmatpush1.msra.mxu0 %v4089
    %4091 = vmatprep.subr.mxu0 0.0
    %v4092 = vand.u32 %v3103, 4294901760
    %4093 = vmatpush1.msra.mxu0 %v4092
    %4094 = vmatprep.subr.mxu0 0.0
    %v4095 = vand.u32 %v3104, 4294901760
    %4096 = vmatpush1.msra.mxu0 %v4095
    %4097 = vmatprep.subr.mxu0 0.0
    %v4098 = vand.u32 %v3105, 4294901760
    %4099 = vmatpush1.msra.mxu0 %v4098
    %4100 = vmatprep.subr.mxu0 0.0
    %v4101 = vand.u32 %v3106, 4294901760
    %4102 = vmatpush1.msra.mxu0 %v4101
    %4103 = vmatprep.subr.mxu0 0.0
    %v4104 = vand.u32 %v3107, 4294901760
    %4105 = vmatpush1.msra.mxu0 %v4104
    %4106 = vmatprep.subr.mxu0 0.0
    %v4107 = vand.u32 %v3108, 4294901760
    %4108 = vmatpush1.msra.mxu0 %v4107
    %4109 = vmatprep.subr.mxu0 0.0
    %v4110 = vand.u32 %v3109, 4294901760
    %4111 = vmatpush1.msra.mxu0 %v4110
    %4112 = vmatprep.subr.mxu0 0.0
    %v4113 = vand.u32 %v3110, 4294901760
    %4114 = vmatpush1.msra.mxu0 %v4113
    %4115 = vmatprep.subr.mxu0 0.0
    %v4116 = vand.u32 %v3111, 4294901760
    %4117 = vmatpush1.msra.mxu0 %v4116
    %4118 = vmatprep.subr.mxu0 0.0
    %v4119 = vand.u32 %v3112, 4294901760
    %4120 = vmatpush1.msra.mxu0 %v4119
    %v4121 = vand.u32 %v3074, 4294901760
    %4122 = vmatprep.mubr.f32.mxu0 %v4121
    %v4123 = vand.u32 %v3073, 4294901760
    %4124 = vmatmul.mubr.f32.gmra.mrb[0].mxu0 %v4123
    %v4125 = vpop.f32.mrb[0].mxu0
    %v4126 = vadd.f32 %v4001, %v4125
    %v4127 = vpop.f32.mrb[0].mxu0
    %v4128 = vand.u32 %v3076, 4294901760
    %4129 = vmatprep.mubr.f32.mxu0 %v4128
    %v4130 = vand.u32 %v3075, 4294901760
    %4131 = vmatmul.mubr.f32.gmra.mrb[0].mxu0 %v4130
    %v4132 = vpop.f32.mrb[0].mxu0
    %v4133 = vadd.f32 %v4008, %v4132
    %v4134 = vpop.f32.mrb[0].mxu0
    %v4135 = vand.u32 %v3078, 4294901760
    %4136 = vmatprep.mubr.f32.mxu0 %v4135
    %v4137 = vand.u32 %v3077, 4294901760
    %4138 = vmatmul.mubr.f32.gmra.mrb[0].mxu0 %v4137
    %v4139 = vpop.f32.mrb[0].mxu0
    %v4140 = vadd.f32 %v4015, %v4139
    %v4141 = vpop.f32.mrb[0].mxu0
    %v4142 = vand.u32 %v3080, 4294901760
    %4143 = vmatprep.mubr.f32.mxu0 %v4142
    %v4144 = vand.u32 %v3079, 4294901760
    %4145 = vmatmul.mubr.f32.gmra.mrb[0].mxu0 %v4144
    %v4146 = vpop.f32.mrb[0].mxu0
    %v4147 = vadd.f32 %v4022, %v4146
    %v4148 = vpop.f32.mrb[0].mxu0
    %4149 = vdwg.mxu0
    %4150 = vst.msk [vmem:[#allocation7 + $0x3] sm:$0xff] %vm1735, %v4126
    %vm4151 = vcmask 618496
    %4152 = vst.msk [vmem:[#allocation7 + $0xb] sm:$0x1f] %vm4151, %v4133
    %vm4153 = vcmask 621573
    %4154 = vst.msk [vmem:[#allocation7 + $0x11] sm:$0xe0] %vm4153, %v4133
    %4155 = vst.msk [vmem:[#allocation7 + $0x19] sm:$0xff] %vm1735, %v4140
    %vm4156 = vcmask 615424
    %4157 = vst.msk [vmem:[#allocation7 + $0x21] sm:$0x3] %vm4156, %v4147
    %v4158 = vld [vmem:[#allocation7] sm:$0xff]
    %v4159 = vld [vmem:[#allocation7 + $0x8] sm:$0xff]
    %4160 = vst.msk [vmem:[#allocation8] sm:$0xff] %vm1735, %v4158
    %4161 = vst.msk [vmem:[#allocation8 + $0x18] sm:$0xff] %vm1735, %v4159
    %v4162 = vld [vmem:[#allocation7 + $0x1] sm:$0xff]
    %v4163 = vld [vmem:[#allocation7 + $0x9] sm:$0xff]
    %4166 = vrot.lane.b32.xlu0 %v4162, 76
    %v4167 = vpop.permute.xlu0 %4166
    %4168 = vrot.lane.b32.xlu0 %v4163, 76
    %v4169 = vpop.permute.xlu0 %4168
    %vm4172 = vcmask 1048160
    %4173 = vst.msk [vmem:[#allocation8] sm:$0xff] %vm4172, %v4167
    %4174 = vst.msk [vmem:[#allocation8 + $0x8] sm:$0xff] %vm1769, %v4167
    %4175 = vst.msk [vmem:[#allocation8 + $0x18] sm:$0xff] %vm4172, %v4169
    %4176 = vst.msk [vmem:[#allocation8 + $0x20] sm:$0xff] %vm1769, %v4169
    %v4177 = vld [vmem:[#allocation7 + $0x2] sm:$0xff]
    %v4178 = vld [vmem:[#allocation7 + $0xa] sm:$0xff]
    %4181 = vrot.lane.b32.xlu0 %v4177, 24
    %v4182 = vpop.permute.xlu0 %4181
    %4183 = vrot.lane.b32.xlu0 %v4178, 24
    %v4184 = vpop.permute.xlu0 %4183
    %vm4187 = vcmask 818368
    %4188 = vst.msk [vmem:[#allocation8 + $0x8] sm:$0xff] %vm4187, %v4182
    %4189 = vst.msk [vmem:[#allocation8 + $0x20] sm:$0xff] %vm4187, %v4184
    %v4190 = vld [vmem:[#allocation7 + $0x3] sm:$0xff]
    %v4191 = vld [vmem:[#allocation7 + $0xb] sm:$0xff]
    %4194 = vrot.lane.b32.xlu0 %v4190, 100
    %v4195 = vpop.permute.xlu0 %4194
    %4196 = vrot.lane.b32.xlu0 %v4191, 100
    %v4197 = vpop.permute.xlu0 %4196
    %vm4200 = vcmask 1048352
    %4201 = vst.msk [vmem:[#allocation8 + $0x8] sm:$0xff] %vm4200, %v4195
    %4202 = vst.msk [vmem:[#allocation8 + $0x10] sm:$0xff] %vm1797, %v4195
    %4203 = vst.msk [vmem:[#allocation8 + $0x20] sm:$0xff] %vm4200, %v4197
    %4204 = vst.msk [vmem:[#allocation8 + $0x28] sm:$0xff] %vm1797, %v4197
    %v4205 = vld [vmem:[#allocation7 + $0x13] sm:$0xff]
    %v4206 = vld [vmem:[#allocation7 + $0x1b] sm:$0xff]
    %4207 = vst.msk [vmem:[#allocation8 + $0x30] sm:$0xff] %vm1735, %v4205
    %4208 = vst.msk [vmem:[#allocation8 + $0x48] sm:$0xff] %vm1735, %v4206
    %v4209 = vld [vmem:[#allocation7 + $0x14] sm:$0xff]
    %v4210 = vld [vmem:[#allocation7 + $0x1c] sm:$0xff]
    %4213 = vrot.lane.b32.xlu0 %v4209, 76
    %v4214 = vpop.permute.xlu0 %4213
    %4215 = vrot.lane.b32.xlu0 %v4210, 76
    %v4216 = vpop.permute.xlu0 %4215
    %4219 = vst.msk [vmem:[#allocation8 + $0x30] sm:$0xff] %vm4172, %v4214
    %4220 = vst.msk [vmem:[#allocation8 + $0x38] sm:$0xff] %vm1769, %v4214
    %4221 = vst.msk [vmem:[#allocation8 + $0x48] sm:$0xff] %vm4172, %v4216
    %4222 = vst.msk [vmem:[#allocation8 + $0x50] sm:$0xff] %vm1769, %v4216
    %v4223 = vld [vmem:[#allocation7 + $0x15] sm:$0xff]
    %v4224 = vld [vmem:[#allocation7 + $0x1d] sm:$0xff]
    %4227 = vrot.lane.b32.xlu0 %v4223, 24
    %v4228 = vpop.permute.xlu0 %4227
    %4229 = vrot.lane.b32.xlu0 %v4224, 24
    %v4230 = vpop.permute.xlu0 %4229
    %4233 = vst.msk [vmem:[#allocation8 + $0x38] sm:$0xff] %vm4187, %v4228
    %4234 = vst.msk [vmem:[#allocation8 + $0x50] sm:$0xff] %vm4187, %v4230
    %v4235 = vld [vmem:[#allocation7 + $0x16] sm:$0xff]
    %v4236 = vld [vmem:[#allocation7 + $0x1e] sm:$0xff]
    %4239 = vrot.lane.b32.xlu0 %v4235, 100
    %v4240 = vpop.permute.xlu0 %4239
    %4241 = vrot.lane.b32.xlu0 %v4236, 100
    %v4242 = vpop.permute.xlu0 %4241
    %4245 = vst.msk [vmem:[#allocation8 + $0x38] sm:$0xff] %vm4200, %v4240
    %4246 = vst.msk [vmem:[#allocation8 + $0x40] sm:$0xff] %vm1797, %v4240
    %4247 = vst.msk [vmem:[#allocation8 + $0x50] sm:$0xff] %vm4200, %v4242
    %4248 = vst.msk [vmem:[#allocation8 + $0x58] sm:$0xff] %vm1797, %v4242
    %v4249 = vld [vmem:[#allocation8] sm:$0xff]
    %v4250 = vld [vmem:[#allocation8 + $0x8] sm:$0xff]
    %v4251 = vld [vmem:[#allocation8 + $0x10] sm:$0xff]
    %v4252 = vld [vmem:[#allocation8 + $0x18] sm:$0xff]
    %v4253 = vld [vmem:[#allocation8 + $0x20] sm:$0xff]
    %v4254 = vld [vmem:[#allocation8 + $0x28] sm:$0xff]
    %v4255 = vld [vmem:[#allocation8 + $0x30] sm:$0xff]
    %v4256 = vld [vmem:[#allocation8 + $0x38] sm:$0xff]
    %v4257 = vld [vmem:[#allocation8 + $0x40] sm:$0xff]
    %v4258 = vld [vmem:[#allocation8 + $0x48] sm:$0xff]
    %v4259 = vld [vmem:[#allocation8 + $0x50] sm:$0xff]
    %v4260 = vld [vmem:[#allocation8 + $0x58] sm:$0xff]
    %v4261 = vld [vmem:[%s9] sm:$0xff]
    %v4262 = vld [vmem:[%s9 + $0x8] sm:$0xff]
    %v4263 = vld [vmem:[%s9 + $0x10] sm:$0xff]
    %v4264 = vld [vmem:[%s9 + $0x18] sm:$0xff]
    %v4265 = vld [vmem:[%s9 + $0x20] sm:$0xff]
    %v4266 = vld [vmem:[%s9 + $0x28] sm:$0xff]
    %v4267 = vld [vmem:[%s9 + $0x30] sm:$0xff]
    %v4268 = vld [vmem:[%s9 + $0x38] sm:$0xff]
    %v4269 = vld [vmem:[%s9 + $0x40] sm:$0xff]
    %v4270 = vld [vmem:[%s9 + $0x48] sm:$0xff]
    %v4271 = vld [vmem:[%s9 + $0x50] sm:$0xff]
    %v4272 = vld [vmem:[%s9 + $0x58] sm:$0xff]
    %v4273 = vld [vmem:[%s9 + $0x60] sm:$0xff]
    %v4274 = vld [vmem:[%s9 + $0x68] sm:$0xff]
    %v4275 = vld [vmem:[%s9 + $0x70] sm:$0xff]
    %v4276 = vld [vmem:[%s9 + $0x78] sm:$0xff]
    %v4277 = vld [vmem:[%s9 + $0x80] sm:$0xff]
    %v4278 = vld [vmem:[%s9 + $0x88] sm:$0xff]
    %v4279 = vld [vmem:[%s9 + $0x90] sm:$0xff]
    %v4280 = vld [vmem:[%s9 + $0x98] sm:$0xff]
    %v4281 = vld [vmem:[%s9 + $0xa0] sm:$0xff]
    %v4282 = vld [vmem:[%s9 + $0xa8] sm:$0xff]
    %v4283 = vld [vmem:[%s9 + $0xb0] sm:$0xff]
    %v4284 = vld [vmem:[%s9 + $0xb8] sm:$0xff]
    %v4285 = vld [vmem:[%s9 + $0xc0] sm:$0xff]
    %v4286 = vld [vmem:[%s9 + $0xc8] sm:$0xff]
    %v4287 = vld [vmem:[%s9 + $0xd0] sm:$0xff]
    %v4288 = vld [vmem:[%s9 + $0xd8] sm:$0xff]
    %v4289 = vld [vmem:[%s9 + $0xe0] sm:$0xff]
    %v4290 = vld [vmem:[%s9 + $0xe8] sm:$0xff]
    %v4291 = vld [vmem:[%s9 + $0xf0] sm:$0xff]
    %v4292 = vld [vmem:[%s9 + $0xf8] sm:$0xff]
    %v4293 = vld [vmem:[%s9 + $0x100] sm:$0xff]
    %v4294 = vld [vmem:[%s9 + $0x108] sm:$0xff]
    %v4295 = vld [vmem:[%s9 + $0x110] sm:$0xff]
    %v4296 = vld [vmem:[%s9 + $0x118] sm:$0xff]
    %v4297 = vld [vmem:[%s9 + $0x120] sm:$0xff]
    %v4298 = vld [vmem:[%s9 + $0x128] sm:$0xff]
    %v4299 = vld [vmem:[%s10] sm:$0x1]
    %v4301 = vlaneseq
    %v4302 = vshrl.u32 %v4301, 7
    %v4303 = vsub.s32 0, %v4302
    %v4304 = vrot.slane %v4299, %v4303
    %v4307 = vsel %vm1797, %v4251, 0
    %v4310 = vsel %vm1797, %v4254, 0
    %v4313 = vsel %vm1797, %v4257, 0
    %v4316 = vsel %vm1797, %v4260, 0
    %4318 = vmatprep.subr.mxu0 0.0
    %v4319 = vand.u32 %v4261, 4294901760
    %4320 = vmatpush1.msra.mxu0 %v4319
    %4321 = vmatprep.subr.mxu0 0.0
    %v4322 = vand.u32 %v4262, 4294901760
    %4323 = vmatpush1.msra.mxu0 %v4322
    %4324 = vmatprep.subr.mxu0 0.0
    %v4325 = vand.u32 %v4263, 4294901760
    %4326 = vmatpush1.msra.mxu0 %v4325
    %4327 = vmatprep.subr.mxu0 0.0
    %v4328 = vand.u32 %v4264, 4294901760
    %4329 = vmatpush1.msra.mxu0 %v4328
    %4330 = vmatprep.subr.mxu0 0.0
    %v4331 = vand.u32 %v4265, 4294901760
    %4332 = vmatpush1.msra.mxu0 %v4331
    %4333 = vmatprep.subr.mxu0 0.0
    %v4334 = vand.u32 %v4266, 4294901760
    %4335 = vmatpush1.msra.mxu0 %v4334
    %4336 = vmatprep.subr.mxu0 0.0
    %v4337 = vand.u32 %v4267, 4294901760
    %4338 = vmatpush1.msra.mxu0 %v4337
    %4339 = vmatprep.subr.mxu0 0.0
    %v4340 = vand.u32 %v4268, 4294901760
    %4341 = vmatpush1.msra.mxu0 %v4340
    %4342 = vmatprep.subr.mxu0 0.0
    %v4343 = vand.u32 %v4269, 4294901760
    %4344 = vmatpush1.msra.mxu0 %v4343
    %4345 = vmatprep.subr.mxu0 0.0
    %v4346 = vand.u32 %v4270, 4294901760
    %4347 = vmatpush1.msra.mxu0 %v4346
    %4348 = vmatprep.subr.mxu0 0.0
    %v4349 = vand.u32 %v4271, 4294901760
    %4350 = vmatpush1.msra.mxu0 %v4349
    %4351 = vmatprep.subr.mxu0 0.0
    %v4352 = vand.u32 %v4272, 4294901760
    %4353 = vmatpush1.msra.mxu0 %v4352
    %4354 = vmatprep.subr.mxu0 0.0
    %v4355 = vand.u32 %v4273, 4294901760
    %4356 = vmatpush1.msra.mxu0 %v4355
    %4357 = vmatprep.subr.mxu0 0.0
    %v4358 = vand.u32 %v4274, 4294901760
    %4359 = vmatpush1.msra.mxu0 %v4358
    %4360 = vmatprep.subr.mxu0 0.0
    %v4361 = vand.u32 %v4275, 4294901760
    %4362 = vmatpush1.msra.mxu0 %v4361
    %4363 = vmatprep.subr.mxu0 0.0
    %v4364 = vand.u32 %v4276, 4294901760
    %4365 = vmatpush1.msra.mxu0 %v4364
    %4366 = vmatprep.subr.mxu0 0.0
    %v4367 = vand.u32 %v4277, 4294901760
    %4368 = vmatpush1.msra.mxu0 %v4367
    %4369 = vmatprep.subr.mxu0 0.0
    %v4370 = vand.u32 %v4278, 4294901760
    %4371 = vmatpush1.msra.mxu0 %v4370
    %4372 = vmatprep.subr.mxu0 0.0
    %v4373 = vand.u32 %v4279, 4294901760
    %4374 = vmatpush1.msra.mxu0 %v4373
    %4375 = vmatprep.subr.mxu0 0.0
    %v4376 = vand.u32 %v4280, 4294901760
    %4377 = vmatpush1.msra.mxu0 %v4376
    %4378 = vmatprep.subr.mxu0 0.0
    %v4379 = vand.u32 %v4281, 4294901760
    %4380 = vmatpush1.msra.mxu0 %v4379
    %4381 = vmatprep.subr.mxu0 0.0
    %v4382 = vand.u32 %v4282, 4294901760
    %4383 = vmatpush1.msra.mxu0 %v4382
    %4384 = vmatprep.subr.mxu0 0.0
    %v4385 = vand.u32 %v4283, 4294901760
    %4386 = vmatpush1.msra.mxu0 %v4385
    %4387 = vmatprep.subr.mxu0 0.0
    %v4388 = vand.u32 %v4284, 4294901760
    %4389 = vmatpush1.msra.mxu0 %v4388
    %4390 = vmatprep.subr.mxu0 0.0
    %v4391 = vand.u32 %v4285, 4294901760
    %4392 = vmatpush1.msra.mxu0 %v4391
    %4393 = vmatprep.subr.mxu0 0.0
    %v4394 = vand.u32 %v4286, 4294901760
    %4395 = vmatpush1.msra.mxu0 %v4394
    %4396 = vmatprep.subr.mxu0 0.0
    %v4397 = vand.u32 %v4287, 4294901760
    %4398 = vmatpush1.msra.mxu0 %v4397
    %4399 = vmatprep.subr.mxu0 0.0
    %v4400 = vand.u32 %v4288, 4294901760
    %4401 = vmatpush1.msra.mxu0 %v4400
    %4402 = vmatprep.subr.mxu0 0.0
    %v4403 = vand.u32 %v4289, 4294901760
    %4404 = vmatpush1.msra.mxu0 %v4403
    %4405 = vmatprep.subr.mxu0 0.0
    %v4406 = vand.u32 %v4290, 4294901760
    %4407 = vmatpush1.msra.mxu0 %v4406
    %4408 = vmatprep.subr.mxu0 0.0
    %v4409 = vand.u32 %v4291, 4294901760
    %4410 = vmatpush1.msra.mxu0 %v4409
    %4411 = vmatprep.subr.mxu0 0.0
    %v4412 = vand.u32 %v4292, 4294901760
    %4413 = vmatpush1.msra.mxu0 %v4412
    %v4414 = vand.u32 %v4250, 4294901760
    %v4415 = vsub.f32 %v4250, %v4414
    %v4416 = vand.u32 %v4415, 4294901760
    %v4417 = vsub.f32 %v4415, %v4416
    %v4418 = vand.u32 %v4417, 4294901760
    %4419 = vmatprep.mubr.f32.mxu0 %v4418
    %v4420 = vand.u32 %v4249, 4294901760
    %v4421 = vsub.f32 %v4249, %v4420
    %v4422 = vand.u32 %v4421, 4294901760
    %v4423 = vsub.f32 %v4421, %v4422
    %v4424 = vand.u32 %v4423, 4294901760
    %4425 = vmatmul.mubr.f32.gmra.mrb[0].mxu0 %v4424
    %v4426 = vpop.f32.mrb[0].mxu0
    %v4427 = vadd.f32 %v4304, %v4426
    %v4428 = vpop.f32.mrb[0].mxu0
    %v4429 = vand.u32 %v4253, 4294901760
    %v4430 = vsub.f32 %v4253, %v4429
    %v4431 = vand.u32 %v4430, 4294901760
    %v4432 = vsub.f32 %v4430, %v4431
    %v4433 = vand.u32 %v4432, 4294901760
    %4434 = vmatprep.mubr.f32.mxu0 %v4433
    %v4435 = vand.u32 %v4252, 4294901760
    %v4436 = vsub.f32 %v4252, %v4435
    %v4437 = vand.u32 %v4436, 4294901760
    %v4438 = vsub.f32 %v4436, %v4437
    %v4439 = vand.u32 %v4438, 4294901760
    %4440 = vmatmul.mubr.f32.gmra.mrb[0].mxu0 %v4439
    %v4441 = vpop.f32.mrb[0].mxu0
    %v4442 = vadd.f32 %v4304, %v4441
    %v4443 = vpop.f32.mrb[0].mxu0
    %v4444 = vand.u32 %v4256, 4294901760
    %v4445 = vsub.f32 %v4256, %v4444
    %v4446 = vand.u32 %v4445, 4294901760
    %v4447 = vsub.f32 %v4445, %v4446
    %v4448 = vand.u32 %v4447, 4294901760
    %4449 = vmatprep.mubr.f32.mxu0 %v4448
    %v4450 = vand.u32 %v4255, 4294901760
    %v4451 = vsub.f32 %v4255, %v4450
    %v4452 = vand.u32 %v4451, 4294901760
    %v4453 = vsub.f32 %v4451, %v4452
    %v4454 = vand.u32 %v4453, 4294901760
    %4455 = vmatmul.mubr.f32.gmra.mrb[0].mxu0 %v4454
    %v4456 = vpop.f32.mrb[0].mxu0
    %v4457 = vadd.f32 %v4304, %v4456
    %v4458 = vpop.f32.mrb[0].mxu0
    %v4459 = vand.u32 %v4259, 4294901760
    %v4460 = vsub.f32 %v4259, %v4459
    %v4461 = vand.u32 %v4460, 4294901760
    %v4462 = vsub.f32 %v4460, %v4461
    %v4463 = vand.u32 %v4462, 4294901760
    %4464 = vmatprep.mubr.f32.mxu0 %v4463
    %v4465 = vand.u32 %v4258, 4294901760
    %v4466 = vsub.f32 %v4258, %v4465
    %v4467 = vand.u32 %v4466, 4294901760
    %v4468 = vsub.f32 %v4466, %v4467
    %v4469 = vand.u32 %v4468, 4294901760
    %4470 = vmatmul.mubr.f32.gmra.mrb[0].mxu0 %v4469
    %v4471 = vpop.f32.mrb[0].mxu0
    %v4472 = vadd.f32 %v4304, %v4471
    %v4473 = vpop.f32.mrb[0].mxu0
    %4474 = vdwg.mxu0
    %4475 = vmatprep.subr.mxu0 0.0
    %v4476 = vand.u32 %v4261, 4294901760
    %v4477 = vsub.f32 %v4261, %v4476
    %v4478 = vand.u32 %v4477, 4294901760
    %v4479 = vsub.f32 %v4477, %v4478
    %v4480 = vand.u32 %v4479, 4294901760
    %4481 = vmatpush1.msra.mxu0 %v4480
    %4482 = vmatprep.subr.mxu0 0.0
    %v4483 = vand.u32 %v4262, 4294901760
    %v4484 = vsub.f32 %v4262, %v4483
    %v4485 = vand.u32 %v4484, 4294901760
    %v4486 = vsub.f32 %v4484, %v4485
    %v4487 = vand.u32 %v4486, 4294901760
    %4488 = vmatpush1.msra.mxu0 %v4487
    %4489 = vmatprep.subr.mxu0 0.0
    %v4490 = vand.u32 %v4263, 4294901760
    %v4491 = vsub.f32 %v4263, %v4490
    %v4492 = vand.u32 %v4491, 4294901760
    %v4493 = vsub.f32 %v4491, %v4492
    %v4494 = vand.u32 %v4493, 4294901760
    %4495 = vmatpush1.msra.mxu0 %v4494
    %4496 = vmatprep.subr.mxu0 0.0
    %v4497 = vand.u32 %v4264, 4294901760
    %v4498 = vsub.f32 %v4264, %v4497
    %v4499 = vand.u32 %v4498, 4294901760
    %v4500 = vsub.f32 %v4498, %v4499
    %v4501 = vand.u32 %v4500, 4294901760
    %4502 = vmatpush1.msra.mxu0 %v4501
    %4503 = vmatprep.subr.mxu0 0.0
    %v4504 = vand.u32 %v4265, 4294901760
    %v4505 = vsub.f32 %v4265, %v4504
    %v4506 = vand.u32 %v4505, 4294901760
    %v4507 = vsub.f32 %v4505, %v4506
    %v4508 = vand.u32 %v4507, 4294901760
    %4509 = vmatpush1.msra.mxu0 %v4508
    %4510 = vmatprep.subr.mxu0 0.0
    %v4511 = vand.u32 %v4266, 4294901760
    %v4512 = vsub.f32 %v4266, %v4511
    %v4513 = vand.u32 %v4512, 4294901760
    %v4514 = vsub.f32 %v4512, %v4513
    %v4515 = vand.u32 %v4514, 4294901760
    %4516 = vmatpush1.msra.mxu0 %v4515
    %4517 = vmatprep.subr.mxu0 0.0
    %v4518 = vand.u32 %v4267, 4294901760
    %v4519 = vsub.f32 %v4267, %v4518
    %v4520 = vand.u32 %v4519, 4294901760
    %v4521 = vsub.f32 %v4519, %v4520
    %v4522 = vand.u32 %v4521, 4294901760
    %4523 = vmatpush1.msra.mxu0 %v4522
    %4524 = vmatprep.subr.mxu0 0.0
    %v4525 = vand.u32 %v4268, 4294901760
    %v4526 = vsub.f32 %v4268, %v4525
    %v4527 = vand.u32 %v4526, 4294901760
    %v4528 = vsub.f32 %v4526, %v4527
    %v4529 = vand.u32 %v4528, 4294901760
    %4530 = vmatpush1.msra.mxu0 %v4529
    %4531 = vmatprep.subr.mxu0 0.0
    %v4532 = vand.u32 %v4269, 4294901760
    %v4533 = vsub.f32 %v4269, %v4532
    %v4534 = vand.u32 %v4533, 4294901760
    %v4535 = vsub.f32 %v4533, %v4534
    %v4536 = vand.u32 %v4535, 4294901760
    %4537 = vmatpush1.msra.mxu0 %v4536
    %4538 = vmatprep.subr.mxu0 0.0
    %v4539 = vand.u32 %v4270, 4294901760
    %v4540 = vsub.f32 %v4270, %v4539
    %v4541 = vand.u32 %v4540, 4294901760
    %v4542 = vsub.f32 %v4540, %v4541
    %v4543 = vand.u32 %v4542, 4294901760
    %4544 = vmatpush1.msra.mxu0 %v4543
    %4545 = vmatprep.subr.mxu0 0.0
    %v4546 = vand.u32 %v4271, 4294901760
    %v4547 = vsub.f32 %v4271, %v4546
    %v4548 = vand.u32 %v4547, 4294901760
    %v4549 = vsub.f32 %v4547, %v4548
    %v4550 = vand.u32 %v4549, 4294901760
    %4551 = vmatpush1.msra.mxu0 %v4550
    %4552 = vmatprep.subr.mxu0 0.0
    %v4553 = vand.u32 %v4272, 4294901760
    %v4554 = vsub.f32 %v4272, %v4553
    %v4555 = vand.u32 %v4554, 4294901760
    %v4556 = vsub.f32 %v4554, %v4555
    %v4557 = vand.u32 %v4556, 4294901760
    %4558 = vmatpush1.msra.mxu0 %v4557
    %4559 = vmatprep.subr.mxu0 0.0
    %v4560 = vand.u32 %v4273, 4294901760
    %v4561 = vsub.f32 %v4273, %v4560
    %v4562 = vand.u32 %v4561, 4294901760
    %v4563 = vsub.f32 %v4561, %v4562
    %v4564 = vand.u32 %v4563, 4294901760
    %4565 = vmatpush1.msra.mxu0 %v4564
    %4566 = vmatprep.subr.mxu0 0.0
    %v4567 = vand.u32 %v4274, 4294901760
    %v4568 = vsub.f32 %v4274, %v4567
    %v4569 = vand.u32 %v4568, 4294901760
    %v4570 = vsub.f32 %v4568, %v4569
    %v4571 = vand.u32 %v4570, 4294901760
    %4572 = vmatpush1.msra.mxu0 %v4571
    %4573 = vmatprep.subr.mxu0 0.0
    %v4574 = vand.u32 %v4275, 4294901760
    %v4575 = vsub.f32 %v4275, %v4574
    %v4576 = vand.u32 %v4575, 4294901760
    %v4577 = vsub.f32 %v4575, %v4576
    %v4578 = vand.u32 %v4577, 4294901760
    %4579 = vmatpush1.msra.mxu0 %v4578
    %4580 = vmatprep.subr.mxu0 0.0
    %v4581 = vand.u32 %v4276, 4294901760
    %v4582 = vsub.f32 %v4276, %v4581
    %v4583 = vand.u32 %v4582, 4294901760
    %v4584 = vsub.f32 %v4582, %v4583
    %v4585 = vand.u32 %v4584, 4294901760
    %4586 = vmatpush1.msra.mxu0 %v4585
    %4587 = vmatprep.subr.mxu0 0.0
    %v4588 = vand.u32 %v4277, 4294901760
    %v4589 = vsub.f32 %v4277, %v4588
    %v4590 = vand.u32 %v4589, 4294901760
    %v4591 = vsub.f32 %v4589, %v4590
    %v4592 = vand.u32 %v4591, 4294901760
    %4593 = vmatpush1.msra.mxu0 %v4592
    %4594 = vmatprep.subr.mxu0 0.0
    %v4595 = vand.u32 %v4278, 4294901760
    %v4596 = vsub.f32 %v4278, %v4595
    %v4597 = vand.u32 %v4596, 4294901760
    %v4598 = vsub.f32 %v4596, %v4597
    %v4599 = vand.u32 %v4598, 4294901760
    %4600 = vmatpush1.msra.mxu0 %v4599
    %4601 = vmatprep.subr.mxu0 0.0
    %v4602 = vand.u32 %v4279, 4294901760
    %v4603 = vsub.f32 %v4279, %v4602
    %v4604 = vand.u32 %v4603, 4294901760
    %v4605 = vsub.f32 %v4603, %v4604
    %v4606 = vand.u32 %v4605, 4294901760
    %4607 = vmatpush1.msra.mxu0 %v4606
    %4608 = vmatprep.subr.mxu0 0.0
    %v4609 = vand.u32 %v4280, 4294901760
    %v4610 = vsub.f32 %v4280, %v4609
    %v4611 = vand.u32 %v4610, 4294901760
    %v4612 = vsub.f32 %v4610, %v4611
    %v4613 = vand.u32 %v4612, 4294901760
    %4614 = vmatpush1.msra.mxu0 %v4613
    %4615 = vmatprep.subr.mxu0 0.0
    %v4616 = vand.u32 %v4281, 4294901760
    %v4617 = vsub.f32 %v4281, %v4616
    %v4618 = vand.u32 %v4617, 4294901760
    %v4619 = vsub.f32 %v4617, %v4618
    %v4620 = vand.u32 %v4619, 4294901760
    %4621 = vmatpush1.msra.mxu0 %v4620
    %4622 = vmatprep.subr.mxu0 0.0
    %v4623 = vand.u32 %v4282, 4294901760
    %v4624 = vsub.f32 %v4282, %v4623
    %v4625 = vand.u32 %v4624, 4294901760
    %v4626 = vsub.f32 %v4624, %v4625
    %v4627 = vand.u32 %v4626, 4294901760
    %4628 = vmatpush1.msra.mxu0 %v4627
    %4629 = vmatprep.subr.mxu0 0.0
    %v4630 = vand.u32 %v4283, 4294901760
    %v4631 = vsub.f32 %v4283, %v4630
    %v4632 = vand.u32 %v4631, 4294901760
    %v4633 = vsub.f32 %v4631, %v4632
    %v4634 = vand.u32 %v4633, 4294901760
    %4635 = vmatpush1.msra.mxu0 %v4634
    %4636 = vmatprep.subr.mxu0 0.0
    %v4637 = vand.u32 %v4284, 4294901760
    %v4638 = vsub.f32 %v4284, %v4637
    %v4639 = vand.u32 %v4638, 4294901760
    %v4640 = vsub.f32 %v4638, %v4639
    %v4641 = vand.u32 %v4640, 4294901760
    %4642 = vmatpush1.msra.mxu0 %v4641
    %4643 = vmatprep.subr.mxu0 0.0
    %v4644 = vand.u32 %v4285, 4294901760
    %v4645 = vsub.f32 %v4285, %v4644
    %v4646 = vand.u32 %v4645, 4294901760
    %v4647 = vsub.f32 %v4645, %v4646
    %v4648 = vand.u32 %v4647, 4294901760
    %4649 = vmatpush1.msra.mxu0 %v4648
    %4650 = vmatprep.subr.mxu0 0.0
    %v4651 = vand.u32 %v4286, 4294901760
    %v4652 = vsub.f32 %v4286, %v4651
    %v4653 = vand.u32 %v4652, 4294901760
    %v4654 = vsub.f32 %v4652, %v4653
    %v4655 = vand.u32 %v4654, 4294901760
    %4656 = vmatpush1.msra.mxu0 %v4655
    %4657 = vmatprep.subr.mxu0 0.0
    %v4658 = vand.u32 %v4287, 4294901760
    %v4659 = vsub.f32 %v4287, %v4658
    %v4660 = vand.u32 %v4659, 4294901760
    %v4661 = vsub.f32 %v4659, %v4660
    %v4662 = vand.u32 %v4661, 4294901760
    %4663 = vmatpush1.msra.mxu0 %v4662
    %4664 = vmatprep.subr.mxu0 0.0
    %v4665 = vand.u32 %v4288, 4294901760
    %v4666 = vsub.f32 %v4288, %v4665
    %v4667 = vand.u32 %v4666, 4294901760
    %v4668 = vsub.f32 %v4666, %v4667
    %v4669 = vand.u32 %v4668, 4294901760
    %4670 = vmatpush1.msra.mxu0 %v4669
    %4671 = vmatprep.subr.mxu0 0.0
    %v4672 = vand.u32 %v4289, 4294901760
    %v4673 = vsub.f32 %v4289, %v4672
    %v4674 = vand.u32 %v4673, 4294901760
    %v4675 = vsub.f32 %v4673, %v4674
    %v4676 = vand.u32 %v4675, 4294901760
    %4677 = vmatpush1.msra.mxu0 %v4676
    %4678 = vmatprep.subr.mxu0 0.0
    %v4679 = vand.u32 %v4290, 4294901760
    %v4680 = vsub.f32 %v4290, %v4679
    %v4681 = vand.u32 %v4680, 4294901760
    %v4682 = vsub.f32 %v4680, %v4681
    %v4683 = vand.u32 %v4682, 4294901760
    %4684 = vmatpush1.msra.mxu0 %v4683
    %4685 = vmatprep.subr.mxu0 0.0
    %v4686 = vand.u32 %v4291, 4294901760
    %v4687 = vsub.f32 %v4291, %v4686
    %v4688 = vand.u32 %v4687, 4294901760
    %v4689 = vsub.f32 %v4687, %v4688
    %v4690 = vand.u32 %v4689, 4294901760
    %4691 = vmatpush1.msra.mxu0 %v4690
    %4692 = vmatprep.subr.mxu0 0.0
    %v4693 = vand.u32 %v4292, 4294901760
    %v4694 = vsub.f32 %v4292, %v4693
    %v4695 = vand.u32 %v4694, 4294901760
    %v4696 = vsub.f32 %v4694, %v4695
    %v4697 = vand.u32 %v4696, 4294901760
    %4698 = vmatpush1.msra.mxu0 %v4697
    %v4699 = vand.u32 %v4250, 4294901760
    %4700 = vmatprep.mubr.f32.mxu0 %v4699
    %v4701 = vand.u32 %v4249, 4294901760
    %4702 = vmatmul.mubr.f32.gmra.mrb[0].mxu0 %v4701
    %v4703 = vpop.f32.mrb[0].mxu0
    %v4704 = vadd.f32 %v4427, %v4703
    %v4705 = vpop.f32.mrb[0].mxu0
    %v4706 = vand.u32 %v4253, 4294901760
    %4707 = vmatprep.mubr.f32.mxu0 %v4706
    %v4708 = vand.u32 %v4252, 4294901760
    %4709 = vmatmul.mubr.f32.gmra.mrb[0].mxu0 %v4708
    %v4710 = vpop.f32.mrb[0].mxu0
    %v4711 = vadd.f32 %v4442, %v4710
    %v4712 = vpop.f32.mrb[0].mxu0
    %v4713 = vand.u32 %v4256, 4294901760
    %4714 = vmatprep.mubr.f32.mxu0 %v4713
    %v4715 = vand.u32 %v4255, 4294901760
    %4716 = vmatmul.mubr.f32.gmra.mrb[0].mxu0 %v4715
    %v4717 = vpop.f32.mrb[0].mxu0
    %v4718 = vadd.f32 %v4457, %v4717
    %v4719 = vpop.f32.mrb[0].mxu0
    %v4720 = vand.u32 %v4259, 4294901760
    %4721 = vmatprep.mubr.f32.mxu0 %v4720
    %v4722 = vand.u32 %v4258, 4294901760
    %4723 = vmatmul.mubr.f32.gmra.mrb[0].mxu0 %v4722
    %v4724 = vpop.f32.mrb[0].mxu0
    %v4725 = vadd.f32 %v4472, %v4724
    %v4726 = vpop.f32.mrb[0].mxu0
    %4727 = vdwg.mxu0
    %4728 = vmatprep.subr.mxu0 0.0
    %v4729 = vand.u32 %v4261, 4294901760
    %v4730 = vsub.f32 %v4261, %v4729
    %4731 = vmatpush1.msra.mxu0 %v4730
    %4732 = vmatprep.subr.mxu0 0.0
    %v4733 = vand.u32 %v4262, 4294901760
    %v4734 = vsub.f32 %v4262, %v4733
    %4735 = vmatpush1.msra.mxu0 %v4734
    %4736 = vmatprep.subr.mxu0 0.0
    %v4737 = vand.u32 %v4263, 4294901760
    %v4738 = vsub.f32 %v4263, %v4737
    %4739 = vmatpush1.msra.mxu0 %v4738
    %4740 = vmatprep.subr.mxu0 0.0
    %v4741 = vand.u32 %v4264, 4294901760
    %v4742 = vsub.f32 %v4264, %v4741
    %4743 = vmatpush1.msra.mxu0 %v4742
    %4744 = vmatprep.subr.mxu0 0.0
    %v4745 = vand.u32 %v4265, 4294901760
    %v4746 = vsub.f32 %v4265, %v4745
    %4747 = vmatpush1.msra.mxu0 %v4746
    %4748 = vmatprep.subr.mxu0 0.0
    %v4749 = vand.u32 %v4266, 4294901760
    %v4750 = vsub.f32 %v4266, %v4749
    %4751 = vmatpush1.msra.mxu0 %v4750
    %4752 = vmatprep.subr.mxu0 0.0
    %v4753 = vand.u32 %v4267, 4294901760
    %v4754 = vsub.f32 %v4267, %v4753
    %4755 = vmatpush1.msra.mxu0 %v4754
    %4756 = vmatprep.subr.mxu0 0.0
    %v4757 = vand.u32 %v4268, 4294901760
    %v4758 = vsub.f32 %v4268, %v4757
    %4759 = vmatpush1.msra.mxu0 %v4758
    %4760 = vmatprep.subr.mxu0 0.0
    %v4761 = vand.u32 %v4269, 4294901760
    %v4762 = vsub.f32 %v4269, %v4761
    %4763 = vmatpush1.msra.mxu0 %v4762
    %4764 = vmatprep.subr.mxu0 0.0
    %v4765 = vand.u32 %v4270, 4294901760
    %v4766 = vsub.f32 %v4270, %v4765
    %4767 = vmatpush1.msra.mxu0 %v4766
    %4768 = vmatprep.subr.mxu0 0.0
    %v4769 = vand.u32 %v4271, 4294901760
    %v4770 = vsub.f32 %v4271, %v4769
    %4771 = vmatpush1.msra.mxu0 %v4770
    %4772 = vmatprep.subr.mxu0 0.0
    %v4773 = vand.u32 %v4272, 4294901760
    %v4774 = vsub.f32 %v4272, %v4773
    %4775 = vmatpush1.msra.mxu0 %v4774
    %4776 = vmatprep.subr.mxu0 0.0
    %v4777 = vand.u32 %v4273, 4294901760
    %v4778 = vsub.f32 %v4273, %v4777
    %4779 = vmatpush1.msra.mxu0 %v4778
    %4780 = vmatprep.subr.mxu0 0.0
    %v4781 = vand.u32 %v4274, 4294901760
    %v4782 = vsub.f32 %v4274, %v4781
    %4783 = vmatpush1.msra.mxu0 %v4782
    %4784 = vmatprep.subr.mxu0 0.0
    %v4785 = vand.u32 %v4275, 4294901760
    %v4786 = vsub.f32 %v4275, %v4785
    %4787 = vmatpush1.msra.mxu0 %v4786
    %4788 = vmatprep.subr.mxu0 0.0
    %v4789 = vand.u32 %v4276, 4294901760
    %v4790 = vsub.f32 %v4276, %v4789
    %4791 = vmatpush1.msra.mxu0 %v4790
    %4792 = vmatprep.subr.mxu0 0.0
    %v4793 = vand.u32 %v4277, 4294901760
    %v4794 = vsub.f32 %v4277, %v4793
    %4795 = vmatpush1.msra.mxu0 %v4794
    %4796 = vmatprep.subr.mxu0 0.0
    %v4797 = vand.u32 %v4278, 4294901760
    %v4798 = vsub.f32 %v4278, %v4797
    %4799 = vmatpush1.msra.mxu0 %v4798
    %4800 = vmatprep.subr.mxu0 0.0
    %v4801 = vand.u32 %v4279, 4294901760
    %v4802 = vsub.f32 %v4279, %v4801
    %4803 = vmatpush1.msra.mxu0 %v4802
    %4804 = vmatprep.subr.mxu0 0.0
    %v4805 = vand.u32 %v4280, 4294901760
    %v4806 = vsub.f32 %v4280, %v4805
    %4807 = vmatpush1.msra.mxu0 %v4806
    %4808 = vmatprep.subr.mxu0 0.0
    %v4809 = vand.u32 %v4281, 4294901760
    %v4810 = vsub.f32 %v4281, %v4809
    %4811 = vmatpush1.msra.mxu0 %v4810
    %4812 = vmatprep.subr.mxu0 0.0
    %v4813 = vand.u32 %v4282, 4294901760
    %v4814 = vsub.f32 %v4282, %v4813
    %4815 = vmatpush1.msra.mxu0 %v4814
    %4816 = vmatprep.subr.mxu0 0.0
    %v4817 = vand.u32 %v4283, 4294901760
    %v4818 = vsub.f32 %v4283, %v4817
    %4819 = vmatpush1.msra.mxu0 %v4818
    %4820 = vmatprep.subr.mxu0 0.0
    %v4821 = vand.u32 %v4284, 4294901760
    %v4822 = vsub.f32 %v4284, %v4821
    %4823 = vmatpush1.msra.mxu0 %v4822
    %4824 = vmatprep.subr.mxu0 0.0
    %v4825 = vand.u32 %v4285, 4294901760
    %v4826 = vsub.f32 %v4285, %v4825
    %4827 = vmatpush1.msra.mxu0 %v4826
    %4828 = vmatprep.subr.mxu0 0.0
    %v4829 = vand.u32 %v4286, 4294901760
    %v4830 = vsub.f32 %v4286, %v4829
    %4831 = vmatpush1.msra.mxu0 %v4830
    %4832 = vmatprep.subr.mxu0 0.0
    %v4833 = vand.u32 %v4287, 4294901760
    %v4834 = vsub.f32 %v4287, %v4833
    %4835 = vmatpush1.msra.mxu0 %v4834
    %4836 = vmatprep.subr.mxu0 0.0
    %v4837 = vand.u32 %v4288, 4294901760
    %v4838 = vsub.f32 %v4288, %v4837
    %4839 = vmatpush1.msra.mxu0 %v4838
    %4840 = vmatprep.subr.mxu0 0.0
    %v4841 = vand.u32 %v4289, 4294901760
    %v4842 = vsub.f32 %v4289, %v4841
    %4843 = vmatpush1.msra.mxu0 %v4842
    %4844 = vmatprep.subr.mxu0 0.0
    %v4845 = vand.u32 %v4290, 4294901760
    %v4846 = vsub.f32 %v4290, %v4845
    %4847 = vmatpush1.msra.mxu0 %v4846
    %4848 = vmatprep.subr.mxu0 0.0
    %v4849 = vand.u32 %v4291, 4294901760
    %v4850 = vsub.f32 %v4291, %v4849
    %4851 = vmatpush1.msra.mxu0 %v4850
    %4852 = vmatprep.subr.mxu0 0.0
    %v4853 = vand.u32 %v4292, 4294901760
    %v4854 = vsub.f32 %v4292, %v4853
    %4855 = vmatpush1.msra.mxu0 %v4854
    %v4856 = vand.u32 %v4250, 4294901760
    %v4857 = vsub.f32 %v4250, %v4856
    %4858 = vmatprep.mubr.f32.mxu0 %v4857
    %v4859 = vand.u32 %v4249, 4294901760
    %v4860 = vsub.f32 %v4249, %v4859
    %4861 = vmatmul.mubr.f32.gmra.mrb[0].mxu0 %v4860
    %v4862 = vpop.f32.mrb[0].mxu0
    %v4863 = vadd.f32 %v4704, %v4862
    %v4864 = vpop.f32.mrb[0].mxu0
    %v4865 = vand.u32 %v4253, 4294901760
    %v4866 = vsub.f32 %v4253, %v4865
    %4867 = vmatprep.mubr.f32.mxu0 %v4866
    %v4868 = vand.u32 %v4252, 4294901760
    %v4869 = vsub.f32 %v4252, %v4868
    %4870 = vmatmul.mubr.f32.gmra.mrb[0].mxu0 %v4869
    %v4871 = vpop.f32.mrb[0].mxu0
    %v4872 = vadd.f32 %v4711, %v4871
    %v4873 = vpop.f32.mrb[0].mxu0
    %v4874 = vand.u32 %v4256, 4294901760
    %v4875 = vsub.f32 %v4256, %v4874
    %4876 = vmatprep.mubr.f32.mxu0 %v4875
    %v4877 = vand.u32 %v4255, 4294901760
    %v4878 = vsub.f32 %v4255, %v4877
    %4879 = vmatmul.mubr.f32.gmra.mrb[0].mxu0 %v4878
    %v4880 = vpop.f32.mrb[0].mxu0
    %v4881 = vadd.f32 %v4718, %v4880
    %v4882 = vpop.f32.mrb[0].mxu0
    %v4883 = vand.u32 %v4259, 4294901760
    %v4884 = vsub.f32 %v4259, %v4883
    %4885 = vmatprep.mubr.f32.mxu0 %v4884
    %v4886 = vand.u32 %v4258, 4294901760
    %v4887 = vsub.f32 %v4258, %v4886
    %4888 = vmatmul.mubr.f32.gmra.mrb[0].mxu0 %v4887
    %v4889 = vpop.f32.mrb[0].mxu0
    %v4890 = vadd.f32 %v4725, %v4889
    %v4891 = vpop.f32.mrb[0].mxu0
    %4892 = vdwg.mxu0
    %4893 = vmatprep.subr.mxu0 0.0
    %v4894 = vand.u32 %v4261, 4294901760
    %4895 = vmatpush1.msra.mxu0 %v4894
    %4896 = vmatprep.subr.mxu0 0.0
    %v4897 = vand.u32 %v4262, 4294901760
    %4898 = vmatpush1.msra.mxu0 %v4897
    %4899 = vmatprep.subr.mxu0 0.0
    %v4900 = vand.u32 %v4263, 4294901760
    %4901 = vmatpush1.msra.mxu0 %v4900
    %4902 = vmatprep.subr.mxu0 0.0
    %v4903 = vand.u32 %v4264, 4294901760
    %4904 = vmatpush1.msra.mxu0 %v4903
    %4905 = vmatprep.subr.mxu0 0.0
    %v4906 = vand.u32 %v4265, 4294901760
    %4907 = vmatpush1.msra.mxu0 %v4906
    %4908 = vmatprep.subr.mxu0 0.0
    %v4909 = vand.u32 %v4266, 4294901760
    %4910 = vmatpush1.msra.mxu0 %v4909
    %4911 = vmatprep.subr.mxu0 0.0
    %v4912 = vand.u32 %v4267, 4294901760
    %4913 = vmatpush1.msra.mxu0 %v4912
    %4914 = vmatprep.subr.mxu0 0.0
    %v4915 = vand.u32 %v4268, 4294901760
    %4916 = vmatpush1.msra.mxu0 %v4915
    %4917 = vmatprep.subr.mxu0 0.0
    %v4918 = vand.u32 %v4269, 4294901760
    %4919 = vmatpush1.msra.mxu0 %v4918
    %4920 = vmatprep.subr.mxu0 0.0
    %v4921 = vand.u32 %v4270, 4294901760
    %4922 = vmatpush1.msra.mxu0 %v4921
    %4923 = vmatprep.subr.mxu0 0.0
    %v4924 = vand.u32 %v4271, 4294901760
    %4925 = vmatpush1.msra.mxu0 %v4924
    %4926 = vmatprep.subr.mxu0 0.0
    %v4927 = vand.u32 %v4272, 4294901760
    %4928 = vmatpush1.msra.mxu0 %v4927
    %4929 = vmatprep.subr.mxu0 0.0
    %v4930 = vand.u32 %v4273, 4294901760
    %4931 = vmatpush1.msra.mxu0 %v4930
    %4932 = vmatprep.subr.mxu0 0.0
    %v4933 = vand.u32 %v4274, 4294901760
    %4934 = vmatpush1.msra.mxu0 %v4933
    %4935 = vmatprep.subr.mxu0 0.0
    %v4936 = vand.u32 %v4275, 4294901760
    %4937 = vmatpush1.msra.mxu0 %v4936
    %4938 = vmatprep.subr.mxu0 0.0
    %v4939 = vand.u32 %v4276, 4294901760
    %4940 = vmatpush1.msra.mxu0 %v4939
    %4941 = vmatprep.subr.mxu0 0.0
    %v4942 = vand.u32 %v4277, 4294901760
    %4943 = vmatpush1.msra.mxu0 %v4942
    %4944 = vmatprep.subr.mxu0 0.0
    %v4945 = vand.u32 %v4278, 4294901760
    %4946 = vmatpush1.msra.mxu0 %v4945
    %4947 = vmatprep.subr.mxu0 0.0
    %v4948 = vand.u32 %v4279, 4294901760
    %4949 = vmatpush1.msra.mxu0 %v4948
    %4950 = vmatprep.subr.mxu0 0.0
    %v4951 = vand.u32 %v4280, 4294901760
    %4952 = vmatpush1.msra.mxu0 %v4951
    %4953 = vmatprep.subr.mxu0 0.0
    %v4954 = vand.u32 %v4281, 4294901760
    %4955 = vmatpush1.msra.mxu0 %v4954
    %4956 = vmatprep.subr.mxu0 0.0
    %v4957 = vand.u32 %v4282, 4294901760
    %4958 = vmatpush1.msra.mxu0 %v4957
    %4959 = vmatprep.subr.mxu0 0.0
    %v4960 = vand.u32 %v4283, 4294901760
    %4961 = vmatpush1.msra.mxu0 %v4960
    %4962 = vmatprep.subr.mxu0 0.0
    %v4963 = vand.u32 %v4284, 4294901760
    %4964 = vmatpush1.msra.mxu0 %v4963
    %4965 = vmatprep.subr.mxu0 0.0
    %v4966 = vand.u32 %v4285, 4294901760
    %4967 = vmatpush1.msra.mxu0 %v4966
    %4968 = vmatprep.subr.mxu0 0.0
    %v4969 = vand.u32 %v4286, 4294901760
    %4970 = vmatpush1.msra.mxu0 %v4969
    %4971 = vmatprep.subr.mxu0 0.0
    %v4972 = vand.u32 %v4287, 4294901760
    %4973 = vmatpush1.msra.mxu0 %v4972
    %4974 = vmatprep.subr.mxu0 0.0
    %v4975 = vand.u32 %v4288, 4294901760
    %4976 = vmatpush1.msra.mxu0 %v4975
    %4977 = vmatprep.subr.mxu0 0.0
    %v4978 = vand.u32 %v4289, 4294901760
    %4979 = vmatpush1.msra.mxu0 %v4978
    %4980 = vmatprep.subr.mxu0 0.0
    %v4981 = vand.u32 %v4290, 4294901760
    %4982 = vmatpush1.msra.mxu0 %v4981
    %4983 = vmatprep.subr.mxu0 0.0
    %v4984 = vand.u32 %v4291, 4294901760
    %4985 = vmatpush1.msra.mxu0 %v4984
    %4986 = vmatprep.subr.mxu0 0.0
    %v4987 = vand.u32 %v4292, 4294901760
    %4988 = vmatpush1.msra.mxu0 %v4987
    %v4989 = vand.u32 %v4250, 4294901760
    %v4990 = vsub.f32 %v4250, %v4989
    %v4991 = vand.u32 %v4990, 4294901760
    %4992 = vmatprep.mubr.f32.mxu0 %v4991
    %v4993 = vand.u32 %v4249, 4294901760
    %v4994 = vsub.f32 %v4249, %v4993
    %v4995 = vand.u32 %v4994, 4294901760
    %4996 = vmatmul.mubr.f32.gmra.mrb[0].mxu0 %v4995
    %v4997 = vpop.f32.mrb[0].mxu0
    %v4998 = vadd.f32 %v4863, %v4997
    %v4999 = vpop.f32.mrb[0].mxu0
    %v5000 = vand.u32 %v4253, 4294901760
    %v5001 = vsub.f32 %v4253, %v5000
    %v5002 = vand.u32 %v5001, 4294901760
    %5003 = vmatprep.mubr.f32.mxu0 %v5002
    %v5004 = vand.u32 %v4252, 4294901760
    %v5005 = vsub.f32 %v4252, %v5004
    %v5006 = vand.u32 %v5005, 4294901760
    %5007 = vmatmul.mubr.f32.gmra.mrb[0].mxu0 %v5006
    %v5008 = vpop.f32.mrb[0].mxu0
    %v5009 = vadd.f32 %v4872, %v5008
    %v5010 = vpop.f32.mrb[0].mxu0
    %v5011 = vand.u32 %v4256, 4294901760
    %v5012 = vsub.f32 %v4256, %v5011
    %v5013 = vand.u32 %v5012, 4294901760
    %5014 = vmatprep.mubr.f32.mxu0 %v5013
    %v5015 = vand.u32 %v4255, 4294901760
    %v5016 = vsub.f32 %v4255, %v5015
    %v5017 = vand.u32 %v5016, 4294901760
    %5018 = vmatmul.mubr.f32.gmra.mrb[0].mxu0 %v5017
    %v5019 = vpop.f32.mrb[0].mxu0
    %v5020 = vadd.f32 %v4881, %v5019
    %v5021 = vpop.f32.mrb[0].mxu0
    %v5022 = vand.u32 %v4259, 4294901760
    %v5023 = vsub.f32 %v4259, %v5022
    %v5024 = vand.u32 %v5023, 4294901760
    %5025 = vmatprep.mubr.f32.mxu0 %v5024
    %v5026 = vand.u32 %v4258, 4294901760
    %v5027 = vsub.f32 %v4258, %v5026
    %v5028 = vand.u32 %v5027, 4294901760
    %5029 = vmatmul.mubr.f32.gmra.mrb[0].mxu0 %v5028
    %v5030 = vpop.f32.mrb[0].mxu0
    %v5031 = vadd.f32 %v4890, %v5030
    %v5032 = vpop.f32.mrb[0].mxu0
    %5033 = vdwg.mxu0
    %5034 = vmatprep.subr.mxu0 0.0
    %v5035 = vand.u32 %v4261, 4294901760
    %v5036 = vsub.f32 %v4261, %v5035
    %v5037 = vand.u32 %v5036, 4294901760
    %5038 = vmatpush1.msra.mxu0 %v5037
    %5039 = vmatprep.subr.mxu0 0.0
    %v5040 = vand.u32 %v4262, 4294901760
    %v5041 = vsub.f32 %v4262, %v5040
    %v5042 = vand.u32 %v5041, 4294901760
    %5043 = vmatpush1.msra.mxu0 %v5042
    %5044 = vmatprep.subr.mxu0 0.0
    %v5045 = vand.u32 %v4263, 4294901760
    %v5046 = vsub.f32 %v4263, %v5045
    %v5047 = vand.u32 %v5046, 4294901760
    %5048 = vmatpush1.msra.mxu0 %v5047
    %5049 = vmatprep.subr.mxu0 0.0
    %v5050 = vand.u32 %v4264, 4294901760
    %v5051 = vsub.f32 %v4264, %v5050
    %v5052 = vand.u32 %v5051, 4294901760
    %5053 = vmatpush1.msra.mxu0 %v5052
    %5054 = vmatprep.subr.mxu0 0.0
    %v5055 = vand.u32 %v4265, 4294901760
    %v5056 = vsub.f32 %v4265, %v5055
    %v5057 = vand.u32 %v5056, 4294901760
    %5058 = vmatpush1.msra.mxu0 %v5057
    %5059 = vmatprep.subr.mxu0 0.0
    %v5060 = vand.u32 %v4266, 4294901760
    %v5061 = vsub.f32 %v4266, %v5060
    %v5062 = vand.u32 %v5061, 4294901760
    %5063 = vmatpush1.msra.mxu0 %v5062
    %5064 = vmatprep.subr.mxu0 0.0
    %v5065 = vand.u32 %v4267, 4294901760
    %v5066 = vsub.f32 %v4267, %v5065
    %v5067 = vand.u32 %v5066, 4294901760
    %5068 = vmatpush1.msra.mxu0 %v5067
    %5069 = vmatprep.subr.mxu0 0.0
    %v5070 = vand.u32 %v4268, 4294901760
    %v5071 = vsub.f32 %v4268, %v5070
    %v5072 = vand.u32 %v5071, 4294901760
    %5073 = vmatpush1.msra.mxu0 %v5072
    %5074 = vmatprep.subr.mxu0 0.0
    %v5075 = vand.u32 %v4269, 4294901760
    %v5076 = vsub.f32 %v4269, %v5075
    %v5077 = vand.u32 %v5076, 4294901760
    %5078 = vmatpush1.msra.mxu0 %v5077
    %5079 = vmatprep.subr.mxu0 0.0
    %v5080 = vand.u32 %v4270, 4294901760
    %v5081 = vsub.f32 %v4270, %v5080
    %v5082 = vand.u32 %v5081, 4294901760
    %5083 = vmatpush1.msra.mxu0 %v5082
    %5084 = vmatprep.subr.mxu0 0.0
    %v5085 = vand.u32 %v4271, 4294901760
    %v5086 = vsub.f32 %v4271, %v5085
    %v5087 = vand.u32 %v5086, 4294901760
    %5088 = vmatpush1.msra.mxu0 %v5087
    %5089 = vmatprep.subr.mxu0 0.0
    %v5090 = vand.u32 %v4272, 4294901760
    %v5091 = vsub.f32 %v4272, %v5090
    %v5092 = vand.u32 %v5091, 4294901760
    %5093 = vmatpush1.msra.mxu0 %v5092
    %5094 = vmatprep.subr.mxu0 0.0
    %v5095 = vand.u32 %v4273, 4294901760
    %v5096 = vsub.f32 %v4273, %v5095
    %v5097 = vand.u32 %v5096, 4294901760
    %5098 = vmatpush1.msra.mxu0 %v5097
    %5099 = vmatprep.subr.mxu0 0.0
    %v5100 = vand.u32 %v4274, 4294901760
    %v5101 = vsub.f32 %v4274, %v5100
    %v5102 = vand.u32 %v5101, 4294901760
    %5103 = vmatpush1.msra.mxu0 %v5102
    %5104 = vmatprep.subr.mxu0 0.0
    %v5105 = vand.u32 %v4275, 4294901760
    %v5106 = vsub.f32 %v4275, %v5105
    %v5107 = vand.u32 %v5106, 4294901760
    %5108 = vmatpush1.msra.mxu0 %v5107
    %5109 = vmatprep.subr.mxu0 0.0
    %v5110 = vand.u32 %v4276, 4294901760
    %v5111 = vsub.f32 %v4276, %v5110
    %v5112 = vand.u32 %v5111, 4294901760
    %5113 = vmatpush1.msra.mxu0 %v5112
    %5114 = vmatprep.subr.mxu0 0.0
    %v5115 = vand.u32 %v4277, 4294901760
    %v5116 = vsub.f32 %v4277, %v5115
    %v5117 = vand.u32 %v5116, 4294901760
    %5118 = vmatpush1.msra.mxu0 %v5117
    %5119 = vmatprep.subr.mxu0 0.0
    %v5120 = vand.u32 %v4278, 4294901760
    %v5121 = vsub.f32 %v4278, %v5120
    %v5122 = vand.u32 %v5121, 4294901760
    %5123 = vmatpush1.msra.mxu0 %v5122
    %5124 = vmatprep.subr.mxu0 0.0
    %v5125 = vand.u32 %v4279, 4294901760
    %v5126 = vsub.f32 %v4279, %v5125
    %v5127 = vand.u32 %v5126, 4294901760
    %5128 = vmatpush1.msra.mxu0 %v5127
    %5129 = vmatprep.subr.mxu0 0.0
    %v5130 = vand.u32 %v4280, 4294901760
    %v5131 = vsub.f32 %v4280, %v5130
    %v5132 = vand.u32 %v5131, 4294901760
    %5133 = vmatpush1.msra.mxu0 %v5132
    %5134 = vmatprep.subr.mxu0 0.0
    %v5135 = vand.u32 %v4281, 4294901760
    %v5136 = vsub.f32 %v4281, %v5135
    %v5137 = vand.u32 %v5136, 4294901760
    %5138 = vmatpush1.msra.mxu0 %v5137
    %5139 = vmatprep.subr.mxu0 0.0
    %v5140 = vand.u32 %v4282, 4294901760
    %v5141 = vsub.f32 %v4282, %v5140
    %v5142 = vand.u32 %v5141, 4294901760
    %5143 = vmatpush1.msra.mxu0 %v5142
    %5144 = vmatprep.subr.mxu0 0.0
    %v5145 = vand.u32 %v4283, 4294901760
    %v5146 = vsub.f32 %v4283, %v5145
    %v5147 = vand.u32 %v5146, 4294901760
    %5148 = vmatpush1.msra.mxu0 %v5147
    %5149 = vmatprep.subr.mxu0 0.0
    %v5150 = vand.u32 %v4284, 4294901760
    %v5151 = vsub.f32 %v4284, %v5150
    %v5152 = vand.u32 %v5151, 4294901760
    %5153 = vmatpush1.msra.mxu0 %v5152
    %5154 = vmatprep.subr.mxu0 0.0
    %v5155 = vand.u32 %v4285, 4294901760
    %v5156 = vsub.f32 %v4285, %v5155
    %v5157 = vand.u32 %v5156, 4294901760
    %5158 = vmatpush1.msra.mxu0 %v5157
    %5159 = vmatprep.subr.mxu0 0.0
    %v5160 = vand.u32 %v4286, 4294901760
    %v5161 = vsub.f32 %v4286, %v5160
    %v5162 = vand.u32 %v5161, 4294901760
    %5163 = vmatpush1.msra.mxu0 %v5162
    %5164 = vmatprep.subr.mxu0 0.0
    %v5165 = vand.u32 %v4287, 4294901760
    %v5166 = vsub.f32 %v4287, %v5165
    %v5167 = vand.u32 %v5166, 4294901760
    %5168 = vmatpush1.msra.mxu0 %v5167
    %5169 = vmatprep.subr.mxu0 0.0
    %v5170 = vand.u32 %v4288, 4294901760
    %v5171 = vsub.f32 %v4288, %v5170
    %v5172 = vand.u32 %v5171, 4294901760
    %5173 = vmatpush1.msra.mxu0 %v5172
    %5174 = vmatprep.subr.mxu0 0.0
    %v5175 = vand.u32 %v4289, 4294901760
    %v5176 = vsub.f32 %v4289, %v5175
    %v5177 = vand.u32 %v5176, 4294901760
    %5178 = vmatpush1.msra.mxu0 %v5177
    %5179 = vmatprep.subr.mxu0 0.0
    %v5180 = vand.u32 %v4290, 4294901760
    %v5181 = vsub.f32 %v4290, %v5180
    %v5182 = vand.u32 %v5181, 4294901760
    %5183 = vmatpush1.msra.mxu0 %v5182
    %5184 = vmatprep.subr.mxu0 0.0
    %v5185 = vand.u32 %v4291, 4294901760
    %v5186 = vsub.f32 %v4291, %v5185
    %v5187 = vand.u32 %v5186, 4294901760
    %5188 = vmatpush1.msra.mxu0 %v5187
    %5189 = vmatprep.subr.mxu0 0.0
    %v5190 = vand.u32 %v4292, 4294901760
    %v5191 = vsub.f32 %v4292, %v5190
    %v5192 = vand.u32 %v5191, 4294901760
    %5193 = vmatpush1.msra.mxu0 %v5192
    %v5194 = vand.u32 %v4250, 4294901760
    %5195 = vmatprep.mubr.f32.mxu0 %v5194
    %v5196 = vand.u32 %v4249, 4294901760
    %5197 = vmatmul.mubr.f32.gmra.mrb[0].mxu0 %v5196
    %v5198 = vpop.f32.mrb[0].mxu0
    %v5199 = vadd.f32 %v4998, %v5198
    %v5200 = vpop.f32.mrb[0].mxu0
    %v5201 = vand.u32 %v4253, 4294901760
    %5202 = vmatprep.mubr.f32.mxu0 %v5201
    %v5203 = vand.u32 %v4252, 4294901760
    %5204 = vmatmul.mubr.f32.gmra.mrb[0].mxu0 %v5203
    %v5205 = vpop.f32.mrb[0].mxu0
    %v5206 = vadd.f32 %v5009, %v5205
    %v5207 = vpop.f32.mrb[0].mxu0
    %v5208 = vand.u32 %v4256, 4294901760
    %5209 = vmatprep.mubr.f32.mxu0 %v5208
    %v5210 = vand.u32 %v4255, 4294901760
    %5211 = vmatmul.mubr.f32.gmra.mrb[0].mxu0 %v5210
    %v5212 = vpop.f32.mrb[0].mxu0
    %v5213 = vadd.f32 %v5020, %v5212
    %v5214 = vpop.f32.mrb[0].mxu0
    %v5215 = vand.u32 %v4259, 4294901760
    %5216 = vmatprep.mubr.f32.mxu0 %v5215
    %v5217 = vand.u32 %v4258, 4294901760
    %5218 = vmatmul.mubr.f32.gmra.mrb[0].mxu0 %v5217
    %v5219 = vpop.f32.mrb[0].mxu0
    %v5220 = vadd.f32 %v5031, %v5219
    %v5221 = vpop.f32.mrb[0].mxu0
    %5222 = vdwg.mxu0
    %5223 = vmatprep.subr.mxu0 0.0
    %v5224 = vand.u32 %v4261, 4294901760
    %5225 = vmatpush1.msra.mxu0 %v5224
    %5226 = vmatprep.subr.mxu0 0.0
    %v5227 = vand.u32 %v4262, 4294901760
    %5228 = vmatpush1.msra.mxu0 %v5227
    %5229 = vmatprep.subr.mxu0 0.0
    %v5230 = vand.u32 %v4263, 4294901760
    %5231 = vmatpush1.msra.mxu0 %v5230
    %5232 = vmatprep.subr.mxu0 0.0
    %v5233 = vand.u32 %v4264, 4294901760
    %5234 = vmatpush1.msra.mxu0 %v5233
    %5235 = vmatprep.subr.mxu0 0.0
    %v5236 = vand.u32 %v4265, 4294901760
    %5237 = vmatpush1.msra.mxu0 %v5236
    %5238 = vmatprep.subr.mxu0 0.0
    %v5239 = vand.u32 %v4266, 4294901760
    %5240 = vmatpush1.msra.mxu0 %v5239
    %5241 = vmatprep.subr.mxu0 0.0
    %v5242 = vand.u32 %v4267, 4294901760
    %5243 = vmatpush1.msra.mxu0 %v5242
    %5244 = vmatprep.subr.mxu0 0.0
    %v5245 = vand.u32 %v4268, 4294901760
    %5246 = vmatpush1.msra.mxu0 %v5245
    %5247 = vmatprep.subr.mxu0 0.0
    %v5248 = vand.u32 %v4269, 4294901760
    %5249 = vmatpush1.msra.mxu0 %v5248
    %5250 = vmatprep.subr.mxu0 0.0
    %v5251 = vand.u32 %v4270, 4294901760
    %5252 = vmatpush1.msra.mxu0 %v5251
    %5253 = vmatprep.subr.mxu0 0.0
    %v5254 = vand.u32 %v4271, 4294901760
    %5255 = vmatpush1.msra.mxu0 %v5254
    %5256 = vmatprep.subr.mxu0 0.0
    %v5257 = vand.u32 %v4272, 4294901760
    %5258 = vmatpush1.msra.mxu0 %v5257
    %5259 = vmatprep.subr.mxu0 0.0
    %v5260 = vand.u32 %v4273, 4294901760
    %5261 = vmatpush1.msra.mxu0 %v5260
    %5262 = vmatprep.subr.mxu0 0.0
    %v5263 = vand.u32 %v4274, 4294901760
    %5264 = vmatpush1.msra.mxu0 %v5263
    %5265 = vmatprep.subr.mxu0 0.0
    %v5266 = vand.u32 %v4275, 4294901760
    %5267 = vmatpush1.msra.mxu0 %v5266
    %5268 = vmatprep.subr.mxu0 0.0
    %v5269 = vand.u32 %v4276, 4294901760
    %5270 = vmatpush1.msra.mxu0 %v5269
    %5271 = vmatprep.subr.mxu0 0.0
    %v5272 = vand.u32 %v4277, 4294901760
    %5273 = vmatpush1.msra.mxu0 %v5272
    %5274 = vmatprep.subr.mxu0 0.0
    %v5275 = vand.u32 %v4278, 4294901760
    %5276 = vmatpush1.msra.mxu0 %v5275
    %5277 = vmatprep.subr.mxu0 0.0
    %v5278 = vand.u32 %v4279, 4294901760
    %5279 = vmatpush1.msra.mxu0 %v5278
    %5280 = vmatprep.subr.mxu0 0.0
    %v5281 = vand.u32 %v4280, 4294901760
    %5282 = vmatpush1.msra.mxu0 %v5281
    %5283 = vmatprep.subr.mxu0 0.0
    %v5284 = vand.u32 %v4281, 4294901760
    %5285 = vmatpush1.msra.mxu0 %v5284
    %5286 = vmatprep.subr.mxu0 0.0
    %v5287 = vand.u32 %v4282, 4294901760
    %5288 = vmatpush1.msra.mxu0 %v5287
    %5289 = vmatprep.subr.mxu0 0.0
    %v5290 = vand.u32 %v4283, 4294901760
    %5291 = vmatpush1.msra.mxu0 %v5290
    %5292 = vmatprep.subr.mxu0 0.0
    %v5293 = vand.u32 %v4284, 4294901760
    %5294 = vmatpush1.msra.mxu0 %v5293
    %5295 = vmatprep.subr.mxu0 0.0
    %v5296 = vand.u32 %v4285, 4294901760
    %5297 = vmatpush1.msra.mxu0 %v5296
    %5298 = vmatprep.subr.mxu0 0.0
    %v5299 = vand.u32 %v4286, 4294901760
    %5300 = vmatpush1.msra.mxu0 %v5299
    %5301 = vmatprep.subr.mxu0 0.0
    %v5302 = vand.u32 %v4287, 4294901760
    %5303 = vmatpush1.msra.mxu0 %v5302
    %5304 = vmatprep.subr.mxu0 0.0
    %v5305 = vand.u32 %v4288, 4294901760
    %5306 = vmatpush1.msra.mxu0 %v5305
    %5307 = vmatprep.subr.mxu0 0.0
    %v5308 = vand.u32 %v4289, 4294901760
    %5309 = vmatpush1.msra.mxu0 %v5308
    %5310 = vmatprep.subr.mxu0 0.0
    %v5311 = vand.u32 %v4290, 4294901760
    %5312 = vmatpush1.msra.mxu0 %v5311
    %5313 = vmatprep.subr.mxu0 0.0
    %v5314 = vand.u32 %v4291, 4294901760
    %5315 = vmatpush1.msra.mxu0 %v5314
    %5316 = vmatprep.subr.mxu0 0.0
    %v5317 = vand.u32 %v4292, 4294901760
    %5318 = vmatpush1.msra.mxu0 %v5317
    %v5319 = vand.u32 %v4250, 4294901760
    %5320 = vmatprep.mubr.f32.mxu0 %v5319
    %v5321 = vand.u32 %v4249, 4294901760
    %5322 = vmatmul.mubr.f32.gmra.mrb[0].mxu0 %v5321
    %v5323 = vpop.f32.mrb[0].mxu0
    %v5324 = vadd.f32 %v5199, %v5323
    %v5325 = vpop.f32.mrb[0].mxu0
    %v5326 = vand.u32 %v4253, 4294901760
    %5327 = vmatprep.mubr.f32.mxu0 %v5326
    %v5328 = vand.u32 %v4252, 4294901760
    %5329 = vmatmul.mubr.f32.gmra.mrb[0].mxu0 %v5328
    %v5330 = vpop.f32.mrb[0].mxu0
    %v5331 = vadd.f32 %v5206, %v5330
    %v5332 = vpop.f32.mrb[0].mxu0
    %v5333 = vand.u32 %v4256, 4294901760
    %5334 = vmatprep.mubr.f32.mxu0 %v5333
    %v5335 = vand.u32 %v4255, 4294901760
    %5336 = vmatmul.mubr.f32.gmra.mrb[0].mxu0 %v5335
    %v5337 = vpop.f32.mrb[0].mxu0
    %v5338 = vadd.f32 %v5213, %v5337
    %v5339 = vpop.f32.mrb[0].mxu0
    %v5340 = vand.u32 %v4259, 4294901760
    %5341 = vmatprep.mubr.f32.mxu0 %v5340
    %v5342 = vand.u32 %v4258, 4294901760
    %5343 = vmatmul.mubr.f32.gmra.mrb[0].mxu0 %v5342
    %v5344 = vpop.f32.mrb[0].mxu0
    %v5345 = vadd.f32 %v5220, %v5344
    %v5346 = vpop.f32.mrb[0].mxu0
    %5347 = vdwg.mxu0
    %5348 = vmatprep.subr.mxu0 0.0
    %v5349 = vand.u32 %v4293, 4294901760
    %5350 = vmatpush1.msra.mxu0 %v5349
    %5351 = vmatprep.subr.mxu0 0.0
    %v5352 = vand.u32 %v4294, 4294901760
    %5353 = vmatpush1.msra.mxu0 %v5352
    %5354 = vmatprep.subr.mxu0 0.0
    %v5355 = vand.u32 %v4295, 4294901760
    %5356 = vmatpush1.msra.mxu0 %v5355
    %5357 = vmatprep.subr.mxu0 0.0
    %v5358 = vand.u32 %v4296, 4294901760
    %5359 = vmatpush1.msra.mxu0 %v5358
    %5360 = vmatprep.subr.mxu0 0.0
    %v5361 = vand.u32 %v4297, 4294901760
    %5362 = vmatpush1.msra.mxu0 %v5361
    %5363 = vmatprep.subr.mxu0 0.0
    %v5364 = vand.u32 %v4298, 4294901760
    %5365 = vmatpush1.msra.mxu0 %v5364
    %5366 = vmatprep.subr.mxu0 0.0
    %5367 = vmatpush1.msra.mxu0 0.0
    %5368 = vmatprep.subr.mxu0 0.0
    %5369 = vmatpush1.msra.mxu0 0.0
    %5370 = vmatprep.subr.mxu0 0.0
    %5371 = vmatpush1.msra.mxu0 0.0
    %5372 = vmatprep.subr.mxu0 0.0
    %5373 = vmatpush1.msra.mxu0 0.0
    %5374 = vmatprep.subr.mxu0 0.0
    %5375 = vmatpush1.msra.mxu0 0.0
    %5376 = vmatprep.subr.mxu0 0.0
    %5377 = vmatpush1.msra.mxu0 0.0
    %5378 = vmatprep.subr.mxu0 0.0
    %5379 = vmatpush1.msra.mxu0 0.0
    %5380 = vmatprep.subr.mxu0 0.0
    %5381 = vmatpush1.msra.mxu0 0.0
    %5382 = vmatprep.subr.mxu0 0.0
    %5383 = vmatpush1.msra.mxu0 0.0
    %5384 = vmatprep.subr.mxu0 0.0
    %5385 = vmatpush1.msra.mxu0 0.0
    %5386 = vmatprep.subr.mxu0 0.0
    %5387 = vmatpush1.msra.mxu0 0.0
    %5388 = vmatprep.subr.mxu0 0.0
    %5389 = vmatpush1.msra.mxu0 0.0
    %5390 = vmatprep.subr.mxu0 0.0
    %5391 = vmatpush1.msra.mxu0 0.0
    %5392 = vmatprep.subr.mxu0 0.0
    %5393 = vmatpush1.msra.mxu0 0.0
    %5394 = vmatprep.subr.mxu0 0.0
    %5395 = vmatpush1.msra.mxu0 0.0
    %5396 = vmatprep.subr.mxu0 0.0
    %5397 = vmatpush1.msra.mxu0 0.0
    %5398 = vmatprep.subr.mxu0 0.0
    %5399 = vmatpush1.msra.mxu0 0.0
    %5400 = vmatprep.subr.mxu0 0.0
    %5401 = vmatpush1.msra.mxu0 0.0
    %5402 = vmatprep.subr.mxu0 0.0
    %5403 = vmatpush1.msra.mxu0 0.0
    %5404 = vmatprep.subr.mxu0 0.0
    %5405 = vmatpush1.msra.mxu0 0.0
    %5406 = vmatprep.subr.mxu0 0.0
    %5407 = vmatpush1.msra.mxu0 0.0
    %5408 = vmatprep.subr.mxu0 0.0
    %5409 = vmatpush1.msra.mxu0 0.0
    %5410 = vmatprep.subr.mxu0 0.0
    %5411 = vmatpush1.msra.mxu0 0.0
    %5412 = vmatprep.subr.mxu0 0.0
    %5413 = vmatpush1.msra.mxu0 0.0
    %5414 = vmatprep.subr.mxu0 0.0
    %5415 = vmatpush1.msra.mxu0 0.0
    %5416 = vmatprep.subr.mxu0 0.0
    %5417 = vmatpush1.msra.mxu0 0.0
    %5418 = vmatprep.mubr.f32.mxu0 0.0
    %v5419 = vand.u32 %v4307, 4294901760
    %v5420 = vsub.f32 %v4307, %v5419
    %v5421 = vand.u32 %v5420, 4294901760
    %v5422 = vsub.f32 %v5420, %v5421
    %v5423 = vand.u32 %v5422, 4294901760
    %5424 = vmatmul.mubr.f32.gmra.mrb[0].mxu0 %v5423
    %v5425 = vpop.f32.mrb[0].mxu0
    %v5426 = vadd.f32 %v5324, %v5425
    %v5427 = vpop.f32.mrb[0].mxu0
    %5428 = vmatprep.mubr.f32.mxu0 0.0
    %v5429 = vand.u32 %v4310, 4294901760
    %v5430 = vsub.f32 %v4310, %v5429
    %v5431 = vand.u32 %v5430, 4294901760
    %v5432 = vsub.f32 %v5430, %v5431
    %v5433 = vand.u32 %v5432, 4294901760
    %5434 = vmatmul.mubr.f32.gmra.mrb[0].mxu0 %v5433
    %v5435 = vpop.f32.mrb[0].mxu0
    %v5436 = vadd.f32 %v5331, %v5435
    %v5437 = vpop.f32.mrb[0].mxu0
    %5438 = vmatprep.mubr.f32.mxu0 0.0
    %v5439 = vand.u32 %v4313, 4294901760
    %v5440 = vsub.f32 %v4313, %v5439
    %v5441 = vand.u32 %v5440, 4294901760
    %v5442 = vsub.f32 %v5440, %v5441
    %v5443 = vand.u32 %v5442, 4294901760
    %5444 = vmatmul.mubr.f32.gmra.mrb[0].mxu0 %v5443
    %v5445 = vpop.f32.mrb[0].mxu0
    %v5446 = vadd.f32 %v5338, %v5445
    %v5447 = vpop.f32.mrb[0].mxu0
    %5448 = vmatprep.mubr.f32.mxu0 0.0
    %v5449 = vand.u32 %v4316, 4294901760
    %v5450 = vsub.f32 %v4316, %v5449
    %v5451 = vand.u32 %v5450, 4294901760
    %v5452 = vsub.f32 %v5450, %v5451
    %v5453 = vand.u32 %v5452, 4294901760
    %5454 = vmatmul.mubr.f32.gmra.mrb[0].mxu0 %v5453
    %v5455 = vpop.f32.mrb[0].mxu0
    %v5456 = vadd.f32 %v5345, %v5455
    %v5457 = vpop.f32.mrb[0].mxu0
    %5458 = vdwg.mxu0
    %5459 = vmatprep.subr.mxu0 0.0
    %v5460 = vand.u32 %v4293, 4294901760
    %v5461 = vsub.f32 %v4293, %v5460
    %v5462 = vand.u32 %v5461, 4294901760
    %v5463 = vsub.f32 %v5461, %v5462
    %v5464 = vand.u32 %v5463, 4294901760
    %5465 = vmatpush1.msra.mxu0 %v5464
    %5466 = vmatprep.subr.mxu0 0.0
    %v5467 = vand.u32 %v4294, 4294901760
    %v5468 = vsub.f32 %v4294, %v5467
    %v5469 = vand.u32 %v5468, 4294901760
    %v5470 = vsub.f32 %v5468, %v5469
    %v5471 = vand.u32 %v5470, 4294901760
    %5472 = vmatpush1.msra.mxu0 %v5471
    %5473 = vmatprep.subr.mxu0 0.0
    %v5474 = vand.u32 %v4295, 4294901760
    %v5475 = vsub.f32 %v4295, %v5474
    %v5476 = vand.u32 %v5475, 4294901760
    %v5477 = vsub.f32 %v5475, %v5476
    %v5478 = vand.u32 %v5477, 4294901760
    %5479 = vmatpush1.msra.mxu0 %v5478
    %5480 = vmatprep.subr.mxu0 0.0
    %v5481 = vand.u32 %v4296, 4294901760
    %v5482 = vsub.f32 %v4296, %v5481
    %v5483 = vand.u32 %v5482, 4294901760
    %v5484 = vsub.f32 %v5482, %v5483
    %v5485 = vand.u32 %v5484, 4294901760
    %5486 = vmatpush1.msra.mxu0 %v5485
    %5487 = vmatprep.subr.mxu0 0.0
    %v5488 = vand.u32 %v4297, 4294901760
    %v5489 = vsub.f32 %v4297, %v5488
    %v5490 = vand.u32 %v5489, 4294901760
    %v5491 = vsub.f32 %v5489, %v5490
    %v5492 = vand.u32 %v5491, 4294901760
    %5493 = vmatpush1.msra.mxu0 %v5492
    %5494 = vmatprep.subr.mxu0 0.0
    %v5495 = vand.u32 %v4298, 4294901760
    %v5496 = vsub.f32 %v4298, %v5495
    %v5497 = vand.u32 %v5496, 4294901760
    %v5498 = vsub.f32 %v5496, %v5497
    %v5499 = vand.u32 %v5498, 4294901760
    %5500 = vmatpush1.msra.mxu0 %v5499
    %5501 = vmatprep.subr.mxu0 0.0
    %5502 = vmatpush1.msra.mxu0 0.0
    %5503 = vmatprep.subr.mxu0 0.0
    %5504 = vmatpush1.msra.mxu0 0.0
    %5505 = vmatprep.subr.mxu0 0.0
    %5506 = vmatpush1.msra.mxu0 0.0
    %5507 = vmatprep.subr.mxu0 0.0
    %5508 = vmatpush1.msra.mxu0 0.0
    %5509 = vmatprep.subr.mxu0 0.0
    %5510 = vmatpush1.msra.mxu0 0.0
    %5511 = vmatprep.subr.mxu0 0.0
    %5512 = vmatpush1.msra.mxu0 0.0
    %5513 = vmatprep.subr.mxu0 0.0
    %5514 = vmatpush1.msra.mxu0 0.0
    %5515 = vmatprep.subr.mxu0 0.0
    %5516 = vmatpush1.msra.mxu0 0.0
    %5517 = vmatprep.subr.mxu0 0.0
    %5518 = vmatpush1.msra.mxu0 0.0
    %5519 = vmatprep.subr.mxu0 0.0
    %5520 = vmatpush1.msra.mxu0 0.0
    %5521 = vmatprep.subr.mxu0 0.0
    %5522 = vmatpush1.msra.mxu0 0.0
    %5523 = vmatprep.subr.mxu0 0.0
    %5524 = vmatpush1.msra.mxu0 0.0
    %5525 = vmatprep.subr.mxu0 0.0
    %5526 = vmatpush1.msra.mxu0 0.0
    %5527 = vmatprep.subr.mxu0 0.0
    %5528 = vmatpush1.msra.mxu0 0.0
    %5529 = vmatprep.subr.mxu0 0.0
    %5530 = vmatpush1.msra.mxu0 0.0
    %5531 = vmatprep.subr.mxu0 0.0
    %5532 = vmatpush1.msra.mxu0 0.0
    %5533 = vmatprep.subr.mxu0 0.0
    %5534 = vmatpush1.msra.mxu0 0.0
    %5535 = vmatprep.subr.mxu0 0.0
    %5536 = vmatpush1.msra.mxu0 0.0
    %5537 = vmatprep.subr.mxu0 0.0
    %5538 = vmatpush1.msra.mxu0 0.0
    %5539 = vmatprep.subr.mxu0 0.0
    %5540 = vmatpush1.msra.mxu0 0.0
    %5541 = vmatprep.subr.mxu0 0.0
    %5542 = vmatpush1.msra.mxu0 0.0
    %5543 = vmatprep.subr.mxu0 0.0
    %5544 = vmatpush1.msra.mxu0 0.0
    %5545 = vmatprep.subr.mxu0 0.0
    %5546 = vmatpush1.msra.mxu0 0.0
    %5547 = vmatprep.subr.mxu0 0.0
    %5548 = vmatpush1.msra.mxu0 0.0
    %5549 = vmatprep.subr.mxu0 0.0
    %5550 = vmatpush1.msra.mxu0 0.0
    %5551 = vmatprep.subr.mxu0 0.0
    %5552 = vmatpush1.msra.mxu0 0.0
    %5553 = vmatprep.mubr.f32.mxu0 0.0
    %v5554 = vand.u32 %v4307, 4294901760
    %5555 = vmatmul.mubr.f32.gmra.mrb[0].mxu0 %v5554
    %v5556 = vpop.f32.mrb[0].mxu0
    %v5557 = vadd.f32 %v5426, %v5556
    %v5558 = vpop.f32.mrb[0].mxu0
    %5559 = vmatprep.mubr.f32.mxu0 0.0
    %v5560 = vand.u32 %v4310, 4294901760
    %5561 = vmatmul.mubr.f32.gmra.mrb[0].mxu0 %v5560
    %v5562 = vpop.f32.mrb[0].mxu0
    %v5563 = vadd.f32 %v5436, %v5562
    %v5564 = vpop.f32.mrb[0].mxu0
    %5565 = vmatprep.mubr.f32.mxu0 0.0
    %v5566 = vand.u32 %v4313, 4294901760
    %5567 = vmatmul.mubr.f32.gmra.mrb[0].mxu0 %v5566
    %v5568 = vpop.f32.mrb[0].mxu0
    %v5569 = vadd.f32 %v5446, %v5568
    %v5570 = vpop.f32.mrb[0].mxu0
    %5571 = vmatprep.mubr.f32.mxu0 0.0
    %v5572 = vand.u32 %v4316, 4294901760
    %5573 = vmatmul.mubr.f32.gmra.mrb[0].mxu0 %v5572
    %v5574 = vpop.f32.mrb[0].mxu0
    %v5575 = vadd.f32 %v5456, %v5574
    %v5576 = vpop.f32.mrb[0].mxu0
    %5577 = vdwg.mxu0
    %5578 = vmatprep.subr.mxu0 0.0
    %v5579 = vand.u32 %v4293, 4294901760
    %v5580 = vsub.f32 %v4293, %v5579
    %5581 = vmatpush1.msra.mxu0 %v5580
    %5582 = vmatprep.subr.mxu0 0.0
    %v5583 = vand.u32 %v4294, 4294901760
    %v5584 = vsub.f32 %v4294, %v5583
    %5585 = vmatpush1.msra.mxu0 %v5584
    %5586 = vmatprep.subr.mxu0 0.0
    %v5587 = vand.u32 %v4295, 4294901760
    %v5588 = vsub.f32 %v4295, %v5587
    %5589 = vmatpush1.msra.mxu0 %v5588
    %5590 = vmatprep.subr.mxu0 0.0
    %v5591 = vand.u32 %v4296, 4294901760
    %v5592 = vsub.f32 %v4296, %v5591
    %5593 = vmatpush1.msra.mxu0 %v5592
    %5594 = vmatprep.subr.mxu0 0.0
    %v5595 = vand.u32 %v4297, 4294901760
    %v5596 = vsub.f32 %v4297, %v5595
    %5597 = vmatpush1.msra.mxu0 %v5596
    %5598 = vmatprep.subr.mxu0 0.0
    %v5599 = vand.u32 %v4298, 4294901760
    %v5600 = vsub.f32 %v4298, %v5599
    %5601 = vmatpush1.msra.mxu0 %v5600
    %5602 = vmatprep.subr.mxu0 0.0
    %5603 = vmatpush1.msra.mxu0 0.0
    %5604 = vmatprep.subr.mxu0 0.0
    %5605 = vmatpush1.msra.mxu0 0.0
    %5606 = vmatprep.subr.mxu0 0.0
    %5607 = vmatpush1.msra.mxu0 0.0
    %5608 = vmatprep.subr.mxu0 0.0
    %5609 = vmatpush1.msra.mxu0 0.0
    %5610 = vmatprep.subr.mxu0 0.0
    %5611 = vmatpush1.msra.mxu0 0.0
    %5612 = vmatprep.subr.mxu0 0.0
    %5613 = vmatpush1.msra.mxu0 0.0
    %5614 = vmatprep.subr.mxu0 0.0
    %5615 = vmatpush1.msra.mxu0 0.0
    %5616 = vmatprep.subr.mxu0 0.0
    %5617 = vmatpush1.msra.mxu0 0.0
    %5618 = vmatprep.subr.mxu0 0.0
    %5619 = vmatpush1.msra.mxu0 0.0
    %5620 = vmatprep.subr.mxu0 0.0
    %5621 = vmatpush1.msra.mxu0 0.0
    %5622 = vmatprep.subr.mxu0 0.0
    %5623 = vmatpush1.msra.mxu0 0.0
    %5624 = vmatprep.subr.mxu0 0.0
    %5625 = vmatpush1.msra.mxu0 0.0
    %5626 = vmatprep.subr.mxu0 0.0
    %5627 = vmatpush1.msra.mxu0 0.0
    %5628 = vmatprep.subr.mxu0 0.0
    %5629 = vmatpush1.msra.mxu0 0.0
    %5630 = vmatprep.subr.mxu0 0.0
    %5631 = vmatpush1.msra.mxu0 0.0
    %5632 = vmatprep.subr.mxu0 0.0
    %5633 = vmatpush1.msra.mxu0 0.0
    %5634 = vmatprep.subr.mxu0 0.0
    %5635 = vmatpush1.msra.mxu0 0.0
    %5636 = vmatprep.subr.mxu0 0.0
    %5637 = vmatpush1.msra.mxu0 0.0
    %5638 = vmatprep.subr.mxu0 0.0
    %5639 = vmatpush1.msra.mxu0 0.0
    %5640 = vmatprep.subr.mxu0 0.0
    %5641 = vmatpush1.msra.mxu0 0.0
    %5642 = vmatprep.subr.mxu0 0.0
    %5643 = vmatpush1.msra.mxu0 0.0
    %5644 = vmatprep.subr.mxu0 0.0
    %5645 = vmatpush1.msra.mxu0 0.0
    %5646 = vmatprep.subr.mxu0 0.0
    %5647 = vmatpush1.msra.mxu0 0.0
    %5648 = vmatprep.subr.mxu0 0.0
    %5649 = vmatpush1.msra.mxu0 0.0
    %5650 = vmatprep.subr.mxu0 0.0
    %5651 = vmatpush1.msra.mxu0 0.0
    %5652 = vmatprep.subr.mxu0 0.0
    %5653 = vmatpush1.msra.mxu0 0.0
    %5654 = vmatprep.mubr.f32.mxu0 0.0
    %v5655 = vand.u32 %v4307, 4294901760
    %v5656 = vsub.f32 %v4307, %v5655
    %5657 = vmatmul.mubr.f32.gmra.mrb[0].mxu0 %v5656
    %v5658 = vpop.f32.mrb[0].mxu0
    %v5659 = vadd.f32 %v5557, %v5658
    %v5660 = vpop.f32.mrb[0].mxu0
    %5661 = vmatprep.mubr.f32.mxu0 0.0
    %v5662 = vand.u32 %v4310, 4294901760
    %v5663 = vsub.f32 %v4310, %v5662
    %5664 = vmatmul.mubr.f32.gmra.mrb[0].mxu0 %v5663
    %v5665 = vpop.f32.mrb[0].mxu0
    %v5666 = vadd.f32 %v5563, %v5665
    %v5667 = vpop.f32.mrb[0].mxu0
    %5668 = vmatprep.mubr.f32.mxu0 0.0
    %v5669 = vand.u32 %v4313, 4294901760
    %v5670 = vsub.f32 %v4313, %v5669
    %5671 = vmatmul.mubr.f32.gmra.mrb[0].mxu0 %v5670
    %v5672 = vpop.f32.mrb[0].mxu0
    %v5673 = vadd.f32 %v5569, %v5672
    %v5674 = vpop.f32.mrb[0].mxu0
    %5675 = vmatprep.mubr.f32.mxu0 0.0
    %v5676 = vand.u32 %v4316, 4294901760
    %v5677 = vsub.f32 %v4316, %v5676
    %5678 = vmatmul.mubr.f32.gmra.mrb[0].mxu0 %v5677
    %v5679 = vpop.f32.mrb[0].mxu0
    %v5680 = vadd.f32 %v5575, %v5679
    %v5681 = vpop.f32.mrb[0].mxu0
    %5682 = vdwg.mxu0
    %5683 = vmatprep.subr.mxu0 0.0
    %v5684 = vand.u32 %v4293, 4294901760
    %5685 = vmatpush1.msra.mxu0 %v5684
    %5686 = vmatprep.subr.mxu0 0.0
    %v5687 = vand.u32 %v4294, 4294901760
    %5688 = vmatpush1.msra.mxu0 %v5687
    %5689 = vmatprep.subr.mxu0 0.0
    %v5690 = vand.u32 %v4295, 4294901760
    %5691 = vmatpush1.msra.mxu0 %v5690
    %5692 = vmatprep.subr.mxu0 0.0
    %v5693 = vand.u32 %v4296, 4294901760
    %5694 = vmatpush1.msra.mxu0 %v5693
    %5695 = vmatprep.subr.mxu0 0.0
    %v5696 = vand.u32 %v4297, 4294901760
    %5697 = vmatpush1.msra.mxu0 %v5696
    %5698 = vmatprep.subr.mxu0 0.0
    %v5699 = vand.u32 %v4298, 4294901760
    %5700 = vmatpush1.msra.mxu0 %v5699
    %5701 = vmatprep.subr.mxu0 0.0
    %5702 = vmatpush1.msra.mxu0 0.0
    %5703 = vmatprep.subr.mxu0 0.0
    %5704 = vmatpush1.msra.mxu0 0.0
    %5705 = vmatprep.subr.mxu0 0.0
    %5706 = vmatpush1.msra.mxu0 0.0
    %5707 = vmatprep.subr.mxu0 0.0
    %5708 = vmatpush1.msra.mxu0 0.0
    %5709 = vmatprep.subr.mxu0 0.0
    %5710 = vmatpush1.msra.mxu0 0.0
    %5711 = vmatprep.subr.mxu0 0.0
    %5712 = vmatpush1.msra.mxu0 0.0
    %5713 = vmatprep.subr.mxu0 0.0
    %5714 = vmatpush1.msra.mxu0 0.0
    %5715 = vmatprep.subr.mxu0 0.0
    %5716 = vmatpush1.msra.mxu0 0.0
    %5717 = vmatprep.subr.mxu0 0.0
    %5718 = vmatpush1.msra.mxu0 0.0
    %5719 = vmatprep.subr.mxu0 0.0
    %5720 = vmatpush1.msra.mxu0 0.0
    %5721 = vmatprep.subr.mxu0 0.0
    %5722 = vmatpush1.msra.mxu0 0.0
    %5723 = vmatprep.subr.mxu0 0.0
    %5724 = vmatpush1.msra.mxu0 0.0
    %5725 = vmatprep.subr.mxu0 0.0
    %5726 = vmatpush1.msra.mxu0 0.0
    %5727 = vmatprep.subr.mxu0 0.0
    %5728 = vmatpush1.msra.mxu0 0.0
    %5729 = vmatprep.subr.mxu0 0.0
    %5730 = vmatpush1.msra.mxu0 0.0
    %5731 = vmatprep.subr.mxu0 0.0
    %5732 = vmatpush1.msra.mxu0 0.0
    %5733 = vmatprep.subr.mxu0 0.0
    %5734 = vmatpush1.msra.mxu0 0.0
    %5735 = vmatprep.subr.mxu0 0.0
    %5736 = vmatpush1.msra.mxu0 0.0
    %5737 = vmatprep.subr.mxu0 0.0
    %5738 = vmatpush1.msra.mxu0 0.0
    %5739 = vmatprep.subr.mxu0 0.0
    %5740 = vmatpush1.msra.mxu0 0.0
    %5741 = vmatprep.subr.mxu0 0.0
    %5742 = vmatpush1.msra.mxu0 0.0
    %5743 = vmatprep.subr.mxu0 0.0
    %5744 = vmatpush1.msra.mxu0 0.0
    %5745 = vmatprep.subr.mxu0 0.0
    %5746 = vmatpush1.msra.mxu0 0.0
    %5747 = vmatprep.subr.mxu0 0.0
    %5748 = vmatpush1.msra.mxu0 0.0
    %5749 = vmatprep.subr.mxu0 0.0
    %5750 = vmatpush1.msra.mxu0 0.0
    %5751 = vmatprep.subr.mxu0 0.0
    %5752 = vmatpush1.msra.mxu0 0.0
    %5753 = vmatprep.mubr.f32.mxu0 0.0
    %v5754 = vand.u32 %v4307, 4294901760
    %v5755 = vsub.f32 %v4307, %v5754
    %v5756 = vand.u32 %v5755, 4294901760
    %5757 = vmatmul.mubr.f32.gmra.mrb[0].mxu0 %v5756
    %v5758 = vpop.f32.mrb[0].mxu0
    %v5759 = vadd.f32 %v5659, %v5758
    %v5760 = vpop.f32.mrb[0].mxu0
    %5761 = vmatprep.mubr.f32.mxu0 0.0
    %v5762 = vand.u32 %v4310, 4294901760
    %v5763 = vsub.f32 %v4310, %v5762
    %v5764 = vand.u32 %v5763, 4294901760
    %5765 = vmatmul.mubr.f32.gmra.mrb[0].mxu0 %v5764
    %v5766 = vpop.f32.mrb[0].mxu0
    %v5767 = vadd.f32 %v5666, %v5766
    %v5768 = vpop.f32.mrb[0].mxu0
    %5769 = vmatprep.mubr.f32.mxu0 0.0
    %v5770 = vand.u32 %v4313, 4294901760
    %v5771 = vsub.f32 %v4313, %v5770
    %v5772 = vand.u32 %v5771, 4294901760
    %5773 = vmatmul.mubr.f32.gmra.mrb[0].mxu0 %v5772
    %v5774 = vpop.f32.mrb[0].mxu0
    %v5775 = vadd.f32 %v5673, %v5774
    %v5776 = vpop.f32.mrb[0].mxu0
    %5777 = vmatprep.mubr.f32.mxu0 0.0
    %v5778 = vand.u32 %v4316, 4294901760
    %v5779 = vsub.f32 %v4316, %v5778
    %v5780 = vand.u32 %v5779, 4294901760
    %5781 = vmatmul.mubr.f32.gmra.mrb[0].mxu0 %v5780
    %v5782 = vpop.f32.mrb[0].mxu0
    %v5783 = vadd.f32 %v5680, %v5782
    %v5784 = vpop.f32.mrb[0].mxu0
    %5785 = vdwg.mxu0
    %5786 = vmatprep.subr.mxu0 0.0
    %v5787 = vand.u32 %v4293, 4294901760
    %v5788 = vsub.f32 %v4293, %v5787
    %v5789 = vand.u32 %v5788, 4294901760
    %5790 = vmatpush1.msra.mxu0 %v5789
    %5791 = vmatprep.subr.mxu0 0.0
    %v5792 = vand.u32 %v4294, 4294901760
    %v5793 = vsub.f32 %v4294, %v5792
    %v5794 = vand.u32 %v5793, 4294901760
    %5795 = vmatpush1.msra.mxu0 %v5794
    %5796 = vmatprep.subr.mxu0 0.0
    %v5797 = vand.u32 %v4295, 4294901760
    %v5798 = vsub.f32 %v4295, %v5797
    %v5799 = vand.u32 %v5798, 4294901760
    %5800 = vmatpush1.msra.mxu0 %v5799
    %5801 = vmatprep.subr.mxu0 0.0
    %v5802 = vand.u32 %v4296, 4294901760
    %v5803 = vsub.f32 %v4296, %v5802
    %v5804 = vand.u32 %v5803, 4294901760
    %5805 = vmatpush1.msra.mxu0 %v5804
    %5806 = vmatprep.subr.mxu0 0.0
    %v5807 = vand.u32 %v4297, 4294901760
    %v5808 = vsub.f32 %v4297, %v5807
    %v5809 = vand.u32 %v5808, 4294901760
    %5810 = vmatpush1.msra.mxu0 %v5809
    %5811 = vmatprep.subr.mxu0 0.0
    %v5812 = vand.u32 %v4298, 4294901760
    %v5813 = vsub.f32 %v4298, %v5812
    %v5814 = vand.u32 %v5813, 4294901760
    %5815 = vmatpush1.msra.mxu0 %v5814
    %5816 = vmatprep.subr.mxu0 0.0
    %5817 = vmatpush1.msra.mxu0 0.0
    %5818 = vmatprep.subr.mxu0 0.0
    %5819 = vmatpush1.msra.mxu0 0.0
    %5820 = vmatprep.subr.mxu0 0.0
    %5821 = vmatpush1.msra.mxu0 0.0
    %5822 = vmatprep.subr.mxu0 0.0
    %5823 = vmatpush1.msra.mxu0 0.0
    %5824 = vmatprep.subr.mxu0 0.0
    %5825 = vmatpush1.msra.mxu0 0.0
    %5826 = vmatprep.subr.mxu0 0.0
    %5827 = vmatpush1.msra.mxu0 0.0
    %5828 = vmatprep.subr.mxu0 0.0
    %5829 = vmatpush1.msra.mxu0 0.0
    %5830 = vmatprep.subr.mxu0 0.0
    %5831 = vmatpush1.msra.mxu0 0.0
    %5832 = vmatprep.subr.mxu0 0.0
    %5833 = vmatpush1.msra.mxu0 0.0
    %5834 = vmatprep.subr.mxu0 0.0
    %5835 = vmatpush1.msra.mxu0 0.0
    %5836 = vmatprep.subr.mxu0 0.0
    %5837 = vmatpush1.msra.mxu0 0.0
    %5838 = vmatprep.subr.mxu0 0.0
    %5839 = vmatpush1.msra.mxu0 0.0
    %5840 = vmatprep.subr.mxu0 0.0
    %5841 = vmatpush1.msra.mxu0 0.0
    %5842 = vmatprep.subr.mxu0 0.0
    %5843 = vmatpush1.msra.mxu0 0.0
    %5844 = vmatprep.subr.mxu0 0.0
    %5845 = vmatpush1.msra.mxu0 0.0
    %5846 = vmatprep.subr.mxu0 0.0
    %5847 = vmatpush1.msra.mxu0 0.0
    %5848 = vmatprep.subr.mxu0 0.0
    %5849 = vmatpush1.msra.mxu0 0.0
    %5850 = vmatprep.subr.mxu0 0.0
    %5851 = vmatpush1.msra.mxu0 0.0
    %5852 = vmatprep.subr.mxu0 0.0
    %5853 = vmatpush1.msra.mxu0 0.0
    %5854 = vmatprep.subr.mxu0 0.0
    %5855 = vmatpush1.msra.mxu0 0.0
    %5856 = vmatprep.subr.mxu0 0.0
    %5857 = vmatpush1.msra.mxu0 0.0
    %5858 = vmatprep.subr.mxu0 0.0
    %5859 = vmatpush1.msra.mxu0 0.0
    %5860 = vmatprep.subr.mxu0 0.0
    %5861 = vmatpush1.msra.mxu0 0.0
    %5862 = vmatprep.subr.mxu0 0.0
    %5863 = vmatpush1.msra.mxu0 0.0
    %5864 = vmatprep.subr.mxu0 0.0
    %5865 = vmatpush1.msra.mxu0 0.0
    %5866 = vmatprep.subr.mxu0 0.0
    %5867 = vmatpush1.msra.mxu0 0.0
    %5868 = vmatprep.mubr.f32.mxu0 0.0
    %v5869 = vand.u32 %v4307, 4294901760
    %5870 = vmatmul.mubr.f32.gmra.mrb[0].mxu0 %v5869
    %v5871 = vpop.f32.mrb[0].mxu0
    %v5872 = vadd.f32 %v5759, %v5871
    %v5873 = vpop.f32.mrb[0].mxu0
    %5874 = vmatprep.mubr.f32.mxu0 0.0
    %v5875 = vand.u32 %v4310, 4294901760
    %5876 = vmatmul.mubr.f32.gmra.mrb[0].mxu0 %v5875
    %v5877 = vpop.f32.mrb[0].mxu0
    %v5878 = vadd.f32 %v5767, %v5877
    %v5879 = vpop.f32.mrb[0].mxu0
    %5880 = vmatprep.mubr.f32.mxu0 0.0
    %v5881 = vand.u32 %v4313, 4294901760
    %5882 = vmatmul.mubr.f32.gmra.mrb[0].mxu0 %v5881
    %v5883 = vpop.f32.mrb[0].mxu0
    %v5884 = vadd.f32 %v5775, %v5883
    %v5885 = vpop.f32.mrb[0].mxu0
    %5886 = vmatprep.mubr.f32.mxu0 0.0
    %v5887 = vand.u32 %v4316, 4294901760
    %5888 = vmatmul.mubr.f32.gmra.mrb[0].mxu0 %v5887
    %v5889 = vpop.f32.mrb[0].mxu0
    %v5890 = vadd.f32 %v5783, %v5889
    %v5891 = vpop.f32.mrb[0].mxu0
    %5892 = vdwg.mxu0
    %5893 = vmatprep.subr.mxu0 0.0
    %v5894 = vand.u32 %v4293, 4294901760
    %5895 = vmatpush1.msra.mxu0 %v5894
    %5896 = vmatprep.subr.mxu0 0.0
    %v5897 = vand.u32 %v4294, 4294901760
    %5898 = vmatpush1.msra.mxu0 %v5897
    %5899 = vmatprep.subr.mxu0 0.0
    %v5900 = vand.u32 %v4295, 4294901760
    %5901 = vmatpush1.msra.mxu0 %v5900
    %5902 = vmatprep.subr.mxu0 0.0
    %v5903 = vand.u32 %v4296, 4294901760
    %5904 = vmatpush1.msra.mxu0 %v5903
    %5905 = vmatprep.subr.mxu0 0.0
    %v5906 = vand.u32 %v4297, 4294901760
    %5907 = vmatpush1.msra.mxu0 %v5906
    %5908 = vmatprep.subr.mxu0 0.0
    %v5909 = vand.u32 %v4298, 4294901760
    %5910 = vmatpush1.msra.mxu0 %v5909
    %5911 = vmatprep.subr.mxu0 0.0
    %5912 = vmatpush1.msra.mxu0 0.0
    %5913 = vmatprep.subr.mxu0 0.0
    %5914 = vmatpush1.msra.mxu0 0.0
    %5915 = vmatprep.subr.mxu0 0.0
    %5916 = vmatpush1.msra.mxu0 0.0
    %5917 = vmatprep.subr.mxu0 0.0
    %5918 = vmatpush1.msra.mxu0 0.0
    %5919 = vmatprep.subr.mxu0 0.0
    %5920 = vmatpush1.msra.mxu0 0.0
    %5921 = vmatprep.subr.mxu0 0.0
    %5922 = vmatpush1.msra.mxu0 0.0
    %5923 = vmatprep.subr.mxu0 0.0
    %5924 = vmatpush1.msra.mxu0 0.0
    %5925 = vmatprep.subr.mxu0 0.0
    %5926 = vmatpush1.msra.mxu0 0.0
    %5927 = vmatprep.subr.mxu0 0.0
    %5928 = vmatpush1.msra.mxu0 0.0
    %5929 = vmatprep.subr.mxu0 0.0
    %5930 = vmatpush1.msra.mxu0 0.0
    %5931 = vmatprep.subr.mxu0 0.0
    %5932 = vmatpush1.msra.mxu0 0.0
    %5933 = vmatprep.subr.mxu0 0.0
    %5934 = vmatpush1.msra.mxu0 0.0
    %5935 = vmatprep.subr.mxu0 0.0
    %5936 = vmatpush1.msra.mxu0 0.0
    %5937 = vmatprep.subr.mxu0 0.0
    %5938 = vmatpush1.msra.mxu0 0.0
    %5939 = vmatprep.subr.mxu0 0.0
    %5940 = vmatpush1.msra.mxu0 0.0
    %5941 = vmatprep.subr.mxu0 0.0
    %5942 = vmatpush1.msra.mxu0 0.0
    %5943 = vmatprep.subr.mxu0 0.0
    %5944 = vmatpush1.msra.mxu0 0.0
    %5945 = vmatprep.subr.mxu0 0.0
    %5946 = vmatpush1.msra.mxu0 0.0
    %5947 = vmatprep.subr.mxu0 0.0
    %5948 = vmatpush1.msra.mxu0 0.0
    %5949 = vmatprep.subr.mxu0 0.0
    %5950 = vmatpush1.msra.mxu0 0.0
    %5951 = vmatprep.subr.mxu0 0.0
    %5952 = vmatpush1.msra.mxu0 0.0
    %5953 = vmatprep.subr.mxu0 0.0
    %5954 = vmatpush1.msra.mxu0 0.0
    %5955 = vmatprep.subr.mxu0 0.0
    %5956 = vmatpush1.msra.mxu0 0.0
    %5957 = vmatprep.subr.mxu0 0.0
    %5958 = vmatpush1.msra.mxu0 0.0
    %5959 = vmatprep.subr.mxu0 0.0
    %5960 = vmatpush1.msra.mxu0 0.0
    %5961 = vmatprep.subr.mxu0 0.0
    %5962 = vmatpush1.msra.mxu0 0.0
    %5963 = vmatprep.mubr.f32.mxu0 0.0
    %v5964 = vand.u32 %v4307, 4294901760
    %5965 = vmatmul.mubr.f32.gmra.mrb[0].mxu0 %v5964
    %v5966 = vpop.f32.mrb[0].mxu0
    %v5967 = vadd.f32 %v5872, %v5966
    %v5968 = vpop.f32.mrb[0].mxu0
    %5969 = vmatprep.mubr.f32.mxu0 0.0
    %v5970 = vand.u32 %v4310, 4294901760
    %5971 = vmatmul.mubr.f32.gmra.mrb[0].mxu0 %v5970
    %v5972 = vpop.f32.mrb[0].mxu0
    %v5973 = vadd.f32 %v5878, %v5972
    %v5974 = vpop.f32.mrb[0].mxu0
    %5975 = vmatprep.mubr.f32.mxu0 0.0
    %v5976 = vand.u32 %v4313, 4294901760
    %5977 = vmatmul.mubr.f32.gmra.mrb[0].mxu0 %v5976
    %v5978 = vpop.f32.mrb[0].mxu0
    %v5979 = vadd.f32 %v5884, %v5978
    %v5980 = vpop.f32.mrb[0].mxu0
    %5981 = vmatprep.mubr.f32.mxu0 0.0
    %v5982 = vand.u32 %v4316, 4294901760
    %5983 = vmatmul.mubr.f32.gmra.mrb[0].mxu0 %v5982
    %v5984 = vpop.f32.mrb[0].mxu0
    %v5985 = vadd.f32 %v5890, %v5984
    %v5986 = vpop.f32.mrb[0].mxu0
    %5987 = vdwg.mxu0
    %5988 = vst.msk [vmem:[#allocation9] sm:$0xff] %vm1730, %v5967
    %5989 = vst.msk [vmem:[#allocation9 + $0x8] sm:$0xff] %vm1730, %v5973
    %s5990 = scalar_lea.vmem [#allocation9], 16
    %5991 = vst.msk [vmem:[%s5990] sm:$0xff] %vm1730, %v5979
    %5992 = vst.msk [vmem:[%s5990 + $0x8] sm:$0xff] %vm1730, %v5985
    // Predicated region
    $region46: #{tpu_custom_call.1} parent=1 // pred_check
      _
    $region47: #{tpu_custom_call.1} parent=1 // pred_check_branch
      %5994 = sbr.rel (0) target = $region49
    $region48: #{tpu_custom_call.1} parent=1 // pred_region
      %s5996 = ssub.s32 512, 512
      %5997 = vsyncadd [#allocation10], %s5996
      %s5998 = sshll.u32 [#allocation9], 4
      %s5999 = int_to_ptr.vmem [resolvable:$true] %s5998
      %6004 = dma.vmem_to_hbm [thread:$0]  %s5999, 512, %s11, [#allocation10], 128, 128, 8
    $region49: #{tpu_custom_call.1} parent=1 // pred_fallthru
      _
    // Predicated region
    $region50: #{tpu_custom_call.1} parent=1 // pred_check
      _
    $region51: #{tpu_custom_call.1} parent=1 // pred_check_branch
      %6006 = sbr.rel (0) target = $region53
    $region52: #{tpu_custom_call.1} parent=1 // pred_region
      %6007 = dma.done [#allocation10], 512
    $region53: #{tpu_custom_call.1} parent=1 // pred_fallthru
      _
    %6008 = vsyncpa [#allocation10], 1

</llo_original>
